<compile_context>
chip_gen: v6e
topology: v6e:2x2x1
jax: 0.10.0
libtpu: 0.0.40
codegen_flags: <defaults>
</compile_context>

<pallas_src>
import jax
import jax.numpy as jnp
from jax.experimental import pallas as pl
from jax.experimental.pallas import tpu as pltpu

BN_EPS = 1e-3
_MiB = 1024 * 1024


# -----------------------------------------------------------------------------
# Helpers
# -----------------------------------------------------------------------------
def _padded_bytes(shape, dtype):
    """VMEM footprint of an array after Mosaic (sublane, lane) tiling."""
    itemsize = jnp.dtype(dtype).itemsize
    sub = {4: 8, 2: 16, 1: 32}[itemsize]
    dims = list(shape)
    if len(dims) == 1:
        dims = [1] + dims
    dims[-1] = pl.cdiv(dims[-1], 128) * 128
    dims[-2] = pl.cdiv(dims[-2], sub) * sub
    n = 1
    for d in dims:
        n *= d
    return n * itemsize


def _bcast_spec(shape):
    """Full-array block whose index map is constant across the grid."""
    zeros = (0,) * len(shape)
    return pl.BlockSpec(shape, lambda n: zeros)


# -----------------------------------------------------------------------------
# Fused kernel: whole DoubleBottleneckBlock, one image per grid step
# -----------------------------------------------------------------------------
def _make_dbb_kernel(H, W):
    L = H * W          # flattened spatial (lane dim)
    G = W + 1          # zero-guard width (max |tap shift| = W + 1)

    def kernel(x_ref,
               w1, b1, w2, b2, w3, b3, w4, b4, w5, b5,
               o_ref, buf_ref):
        f32 = jnp.float32
        bf16 = jnp.bfloat16

        # Column masks for the horizontal-wrap taps (dx = -1 / +1).
        pid = jax.lax.broadcasted_iota(jnp.int32, (1, L), 1).astype(f32)
        col = pid - jnp.floor((pid + 0.5) * (1.0 / W)) * W
        mask_l = jnp.where(col >= 0.5, 1.0, 0.0).astype(bf16)       # col != 0
        mask_r = jnp.where(col <= W - 1.5, 1.0, 0.0).astype(bf16)   # col != W-1

        # Zero the guarded scratch once per grid step (guards stay zero; the
        # interior is overwritten by every conv3x3).  Unconditional so each
        # megacore's private scratch is always initialized.
        buf_ref[...] = jnp.zeros_like(buf_ref)

        def epilogue(acc, b_ref):
            y = acc + b_ref[...]                 # folded-BN bias, f32
            return jnp.maximum(y, 0.1 * y)       # LeakyReLU(0.1)

        def conv1x1(a, w_ref, b_ref):
            acc = jnp.dot(w_ref[...], a.astype(bf16),
                          preferred_element_type=f32)
            return epilogue(acc, b_ref)

        def conv3x3(a, w_ref, b_ref):
            cin = a.shape[0]
            # Place the image in the zero-guarded flat buffer (bf16).
            buf_ref[0:cin, G:G + L] = a.astype(bf16)
            acc = None
            for di in (-1, 0, 1):
                for dj in (-1, 0, 1):
                    s = di * W + dj
                    op = buf_ref[0:cin, G + s:G + s + L]   # static lane shift
                    if dj == -1:
                        op = op * mask_l                   # kill row wrap-around
                    elif dj == 1:
                        op = op * mask_r
                    t = (di + 1) * 3 + (dj + 1)
                    d = jnp.dot(w_ref[t], op, preferred_element_type=f32)
                    acc = d if acc is None else acc + d
            return epilogue(acc, b_ref)

        a = conv3x3(x_ref[0], w1, b1).astype(bf16)   # (outer, L)
        a = conv1x1(a, w2, b2).astype(bf16)          # (bneck, L)
        a = conv3x3(a, w3, b3).astype(bf16)          # (outer, L)
        a = conv1x1(a, w4, b4).astype(bf16)          # (bneck, L)
        a = conv3x3(a, w5, b5)                       # (outer, L), f32
        o_ref[0] = a.astype(o_ref.dtype)

    return kernel


def double_bottleneck_forward(params, x_nchw):
    """Forward pass of DoubleBottleneckBlock.  NCHW in, NCHW out."""
    layers = params["layers"]
    N, C, H, W = x_nchw.shape
    L = H * W
    outer = layers[0]["cout"]
    cmax = max(l["cin"] for l in layers if l["ksize"] == 3)

    x = x_nchw.reshape(N, C, L).astype(jnp.float32)   # free reshape, no transpose

    args = [x]
    in_specs = [pl.BlockSpec((1, C, L), lambda n: (n, 0, 0))]
    for l in layers:
        args.append(l["w_kern"])
        in_specs.append(_bcast_spec(l["w_kern"].shape))
        args.append(l["b_kern"])
        in_specs.append(_bcast_spec(l["b_kern"].shape))
    out_spec = pl.BlockSpec((1, outer, L), lambda n: (n, 0, 0))

    buf_shape = (cmax, L + 2 * (W + 1))

    # Padding-aware VMEM accounting (blocks double-buffered) + f32 temporaries.
    need = 2 * _padded_bytes((1, C, L), jnp.float32)
    need += 2 * _padded_bytes((1, outer, L), jnp.float32)
    for l in layers:
        need += 2 * _padded_bytes(l["w_kern"].shape, jnp.bfloat16)
        need += 2 * _padded_bytes(l["b_kern"].shape, jnp.float32)
    need += _padded_bytes(buf_shape, jnp.bfloat16)
    need += 8 * _padded_bytes((outer, L), jnp.float32)   # live f32 values (est.)
    vmem_limit = int(min(40 * _MiB, max(16 * _MiB, 2 * need)))

    out = pl.pallas_call(
        _make_dbb_kernel(H, W),
        out_shape=jax.ShapeDtypeStruct((N, outer, L), jnp.float32),
        grid=(N,),
        in_specs=in_specs,
        out_specs=out_spec,
        scratch_shapes=[pltpu.VMEM(buf_shape, jnp.bfloat16)],
        compiler_params=pltpu.CompilerParams(
            dimension_semantics=("parallel",),     # megacore split over batch
            vmem_limit_bytes=vmem_limit),
    )(*args)

    return out.reshape(N, outer, H, W)


# -----------------------------------------------------------------------------
# Parameters (deterministic, in-script) -- mirrors the PyTorch init
# -----------------------------------------------------------------------------
def init_conv_bn(key, cin, cout, k):
    """Conv2d(bias=False, xavier_normal) + BatchNorm2d(eps=1e-3), eval-mode
    running stats folded into the weights (f32 fold, then bf16 cast)."""
    k1, k2, k3, k4, k5 = jax.random.split(key, 5)
    fan_in, fan_out = cin * k * k, cout * k * k
    std = (2.0 / (fan_in + fan_out)) ** 0.5
    w0 = jax.random.normal(k1, (cout, cin, k, k), jnp.float32) * std   # OIHW
    gamma = 1.0 + 0.1 * jax.random.normal(k2, (cout,), jnp.float32)
    beta = 0.1 * jax.random.normal(k3, (cout,), jnp.float32)
    rmean = 0.1 * jax.random.normal(k4, (cout,), jnp.float32)
    rvar = jax.random.uniform(k5, (cout,), jnp.float32, 0.5, 1.5)

    scale = gamma / jnp.sqrt(rvar + BN_EPS)
    bias = beta - rmean * scale
    w_fold = w0 * scale[:, None, None, None]                 # fold BN scale (f32)
    if k == 3:
        # tap-major layout: (9, Cout, Cin), tap t = ky*3 + kx
        w_kern = jnp.transpose(w_fold, (2, 3, 0, 1)).reshape(9, cout, cin)
    else:
        w_kern = w_fold.reshape(cout, cin)
    w_kern = w_kern.astype(jnp.bfloat16)
    b_kern = bias.reshape(cout, 1).astype(jnp.float32)

    return dict(w0=w0, scale=scale, bias=bias,
                w_kern=w_kern, b_kern=b_kern,
                ksize=k, cin=cin, cout=cout)


def init_double_bottleneck(key, input_channels, outer_filter, bottleneck_filter):
    specs = [
        (input_channels,    outer_filter,      3),  # BottleneckBlock.first_layer
        (outer_filter,      bottleneck_filter, 1),  # BottleneckBlock.second_layer
        (bottleneck_filter, outer_filter,      3),  # BottleneckBlock.third_layer
        (outer_filter,      bottleneck_filter, 1),  # DoubleBottleneckBlock.second_layer
        (bottleneck_filter, outer_filter,      3),  # DoubleBottleneckBlock.third_layer
    ]
    keys = jax.random.split(key, len(specs))
    return {"layers": [init_conv_bn(keys[i], *specs[i])
                       for i in range(len(specs))]}


# -----------------------------------------------------------------------------
# Pure-JAX reference (f32 convs) for correctness checking
# -----------------------------------------------------------------------------
def reference_forward(params, x_nchw):
    x = x_nchw.astype(jnp.float32)
    for l in params["layers"]:
        k, cout = l["ksize"], l["cout"]
        pad = (k - 1) // 2
        y = jax.lax.conv_general_dilated(
            x, l["w0"], window_strides=(1, 1),
            padding=((pad, pad), (pad, pad)),
            dimension_numbers=("NCHW", "OIHW", "NCHW"),
            precision=jax.lax.Precision.HIGHEST)
        y = (y * l["scale"].reshape(1, cout, 1, 1)
             + l["bias"].reshape(1, cout, 1, 1))
        x = jnp.maximum(y, 0.1 * y)
    return x


# -----------------------------------------------------------------------------
if __name__ == "__main__":
    key = jax.random.PRNGKey(0)
    kx, kp = jax.random.split(key)

    # Small, module-consistent shapes: batch=2, input_channels=32,
    # outer_filter=128, bottleneck_filter=64, spatial 16x16.
    N, CIN, HS, WS = 2, 32, 16, 16
    OUTER, BNECK = 128, 64

    x_nchw = jax.random.normal(kx, (N, CIN, HS, WS), jnp.float32)
    params = init_double_bottleneck(kp, CIN, OUTER, BNECK)

    out = jax.block_until_ready(double_bottleneck_forward(params, x_nchw))
    ref = jax.block_until_ready(reference_forward(params, x_nchw))

    assert out.shape == (N, OUTER, HS, WS), out.shape
    assert bool(jnp.all(jnp.isfinite(out)))
    rel = float(jnp.linalg.norm(out - ref)) / (float(jnp.linalg.norm(ref)) + 1e-12)
    assert rel < 5e-2, rel   # bf16 MXU operands, f32 accumulation
    print("KERNEL_OK")
</pallas_src>

<mosaic_0001>
module attributes {stable_mosaic.version = 11 : i64} {
  func.func @kernel(%arg0: i32, %arg1: memref<1x32x256xf32, #tpu.memory_space<vmem>>, %arg2: memref<9x128x32xbf16, #tpu.memory_space<vmem>>, %arg3: memref<128x1xf32, #tpu.memory_space<vmem>>, %arg4: memref<64x128xbf16, #tpu.memory_space<vmem>>, %arg5: memref<64x1xf32, #tpu.memory_space<vmem>>, %arg6: memref<9x128x64xbf16, #tpu.memory_space<vmem>>, %arg7: memref<128x1xf32, #tpu.memory_space<vmem>>, %arg8: memref<64x128xbf16, #tpu.memory_space<vmem>>, %arg9: memref<64x1xf32, #tpu.memory_space<vmem>>, %arg10: memref<9x128x64xbf16, #tpu.memory_space<vmem>>, %arg11: memref<128x1xf32, #tpu.memory_space<vmem>>, %arg12: memref<1x128x256xf32, #tpu.memory_space<vmem>>, %arg13: memref<64x290xbf16, #tpu.memory_space<vmem>>) attributes {dimension_semantics = [#tpu.dimension_semantics<parallel>], iteration_bounds = array<i64: 2>, scalar_prefetch = 0 : i64, scratch_operands = 1 : i64, tpu.core_type = #tpu.core_type<tc>, window_params = [{transform_indices = @transform_0, window_bounds = array<i64: 1, 32, 256>}, {pipeline_mode = #tpu.pipeline_mode<synchronous>, transform_indices = @transform_1, window_bounds = array<i64: 9, 128, 32>}, {pipeline_mode = #tpu.pipeline_mode<synchronous>, transform_indices = @transform_2, window_bounds = array<i64: 128, 1>}, {pipeline_mode = #tpu.pipeline_mode<synchronous>, transform_indices = @transform_3, window_bounds = array<i64: 64, 128>}, {pipeline_mode = #tpu.pipeline_mode<synchronous>, transform_indices = @transform_4, window_bounds = array<i64: 64, 1>}, {pipeline_mode = #tpu.pipeline_mode<synchronous>, transform_indices = @transform_5, window_bounds = array<i64: 9, 128, 64>}, {pipeline_mode = #tpu.pipeline_mode<synchronous>, transform_indices = @transform_6, window_bounds = array<i64: 128, 1>}, {pipeline_mode = #tpu.pipeline_mode<synchronous>, transform_indices = @transform_7, window_bounds = array<i64: 64, 128>}, {pipeline_mode = #tpu.pipeline_mode<synchronous>, transform_indices = @transform_8, window_bounds = array<i64: 64, 1>}, {pipeline_mode = #tpu.pipeline_mode<synchronous>, transform_indices = @transform_9, window_bounds = array<i64: 9, 128, 64>}, {pipeline_mode = #tpu.pipeline_mode<synchronous>, transform_indices = @transform_10, window_bounds = array<i64: 128, 1>}, {transform_indices = @transform_11, window_bounds = array<i64: 1, 128, 256>}]} {
    %0 = tpu.iota {dimensions = array<i32: 1>} : vector<1x256xi32>
    %1 = arith.sitofp %0 : vector<1x256xi32> to vector<1x256xf32>
    %cst = arith.constant 5.000000e-01 : f32
    %2 = vector.broadcast %cst : f32 to vector<1x256xf32>
    %3 = arith.addf %1, %2 : vector<1x256xf32>
    %cst_0 = arith.constant 6.250000e-02 : f32
    %4 = vector.broadcast %cst_0 : f32 to vector<1x256xf32>
    %5 = arith.mulf %3, %4 : vector<1x256xf32>
    %6 = math.floor %5 : vector<1x256xf32>
    %cst_1 = arith.constant 1.600000e+01 : f32
    %7 = vector.broadcast %cst_1 : f32 to vector<1x256xf32>
    %8 = arith.mulf %6, %7 : vector<1x256xf32>
    %9 = arith.subf %1, %8 : vector<1x256xf32>
    %cst_2 = arith.constant 5.000000e-01 : f32
    %10 = vector.broadcast %cst_2 : f32 to vector<1x256xf32>
    %11 = arith.cmpf oge, %9, %10 : vector<1x256xf32>
    %cst_3 = arith.constant 1.000000e+00 : f32
    %cst_4 = arith.constant 0.000000e+00 : f32
    %12 = vector.broadcast %cst_3 : f32 to vector<1x256xf32>
    %13 = vector.broadcast %cst_4 : f32 to vector<1x256xf32>
    %14 = arith.select %11, %12, %13 : vector<1x256xi1>, vector<1x256xf32>
    %15 = arith.truncf %14 : vector<1x256xf32> to vector<1x256xbf16>
    %cst_5 = arith.constant 1.450000e+01 : f32
    %16 = vector.broadcast %cst_5 : f32 to vector<1x256xf32>
    %17 = arith.cmpf ole, %9, %16 : vector<1x256xf32>
    %cst_6 = arith.constant 1.000000e+00 : f32
    %cst_7 = arith.constant 0.000000e+00 : f32
    %18 = vector.broadcast %cst_6 : f32 to vector<1x256xf32>
    %19 = vector.broadcast %cst_7 : f32 to vector<1x256xf32>
    %20 = arith.select %17, %18, %19 : vector<1x256xi1>, vector<1x256xf32>
    %21 = arith.truncf %20 : vector<1x256xf32> to vector<1x256xbf16>
    %cst_8 = arith.constant 0.000000e+00 : bf16
    %22 = vector.broadcast %cst_8 : bf16 to vector<64x290xbf16>
    %c0 = arith.constant 0 : index
    %c0_9 = arith.constant 0 : index
    %23 = vector.load %arg13[%c0, %c0_9] : memref<64x290xbf16, #tpu.memory_space<vmem>>, vector<64x290xbf16>
    tpu.vector_store %arg13[%c0, %c0_9], %22 {strides = array<i32>} : memref<64x290xbf16, #tpu.memory_space<vmem>>, vector<64x290xbf16>,
    %c0_10 = arith.constant 0 : index
    %c0_11 = arith.constant 0 : index
    %c0_12 = arith.constant 0 : index
    %24 = vector.load %arg1[%c0_10, %c0_11, %c0_12] : memref<1x32x256xf32, #tpu.memory_space<vmem>>, vector<1x32x256xf32>
    %25 = vector.shape_cast %24 : vector<1x32x256xf32> to vector<32x256xf32>
    %26 = arith.truncf %25 : vector<32x256xf32> to vector<32x256xbf16>
    %c0_13 = arith.constant 0 : index
    %c17 = arith.constant 17 : index
    %27 = vector.load %arg13[%c0_13, %c17] : memref<64x290xbf16, #tpu.memory_space<vmem>>, vector<32x256xbf16>
    tpu.vector_store %arg13[%c0_13, %c17], %26 {strides = array<i32>} : memref<64x290xbf16, #tpu.memory_space<vmem>>, vector<32x256xbf16>,
    %c0_14 = arith.constant 0 : index
    %c0_15 = arith.constant 0 : index
    %28 = vector.load %arg13[%c0_14, %c0_15] : memref<64x290xbf16, #tpu.memory_space<vmem>>, vector<32x256xbf16>
    %29 = vector.broadcast %15 : vector<1x256xbf16> to vector<32x256xbf16>
    %30 = arith.mulf %28, %29 : vector<32x256xbf16>
    %c0_16 = arith.constant 0 : index
    %c0_17 = arith.constant 0 : index
    %c0_18 = arith.constant 0 : index
    %31 = vector.load %arg2[%c0_16, %c0_17, %c0_18] : memref<9x128x32xbf16, #tpu.memory_space<vmem>>, vector<1x128x32xbf16>
    %32 = vector.shape_cast %31 : vector<1x128x32xbf16> to vector<128x32xbf16>
    %cst_19 = arith.constant dense<0.000000e+00> : vector<128x256xf32>
    %33 = tpu.matmul %32, %30, %cst_19 {dimension_numbers = #tpu.dot_dimension_numbers<[1], [0], [0], [1], [0, 0, 1, 1], [], []>} : vector<128x32xbf16>, vector<32x256xbf16>, vector<128x256xf32> -> vector<128x256xf32>
    %c0_20 = arith.constant 0 : index
    %c1 = arith.constant 1 : index
    %34 = vector.load %arg13[%c0_20, %c1] : memref<64x290xbf16, #tpu.memory_space<vmem>>, vector<32x256xbf16>
    %c1_21 = arith.constant 1 : index
    %c0_22 = arith.constant 0 : index
    %c0_23 = arith.constant 0 : index
    %35 = vector.load %arg2[%c1_21, %c0_22, %c0_23] : memref<9x128x32xbf16, #tpu.memory_space<vmem>>, vector<1x128x32xbf16>
    %36 = vector.shape_cast %35 : vector<1x128x32xbf16> to vector<128x32xbf16>
    %cst_24 = arith.constant dense<0.000000e+00> : vector<128x256xf32>
    %37 = tpu.matmul %36, %34, %cst_24 {dimension_numbers = #tpu.dot_dimension_numbers<[1], [0], [0], [1], [0, 0, 1, 1], [], []>} : vector<128x32xbf16>, vector<32x256xbf16>, vector<128x256xf32> -> vector<128x256xf32>
    %38 = arith.addf %33, %37 : vector<128x256xf32>
    %c0_25 = arith.constant 0 : index
    %c2 = arith.constant 2 : index
    %39 = vector.load %arg13[%c0_25, %c2] : memref<64x290xbf16, #tpu.memory_space<vmem>>, vector<32x256xbf16>
    %40 = vector.broadcast %21 : vector<1x256xbf16> to vector<32x256xbf16>
    %41 = arith.mulf %39, %40 : vector<32x256xbf16>
    %c2_26 = arith.constant 2 : index
    %c0_27 = arith.constant 0 : index
    %c0_28 = arith.constant 0 : index
    %42 = vector.load %arg2[%c2_26, %c0_27, %c0_28] : memref<9x128x32xbf16, #tpu.memory_space<vmem>>, vector<1x128x32xbf16>
    %43 = vector.shape_cast %42 : vector<1x128x32xbf16> to vector<128x32xbf16>
    %cst_29 = arith.constant dense<0.000000e+00> : vector<128x256xf32>
    %44 = tpu.matmul %43, %41, %cst_29 {dimension_numbers = #tpu.dot_dimension_numbers<[1], [0], [0], [1], [0, 0, 1, 1], [], []>} : vector<128x32xbf16>, vector<32x256xbf16>, vector<128x256xf32> -> vector<128x256xf32>
    %45 = arith.addf %38, %44 : vector<128x256xf32>
    %c0_30 = arith.constant 0 : index
    %c16 = arith.constant 16 : index
    %46 = vector.load %arg13[%c0_30, %c16] : memref<64x290xbf16, #tpu.memory_space<vmem>>, vector<32x256xbf16>
    %47 = vector.broadcast %15 : vector<1x256xbf16> to vector<32x256xbf16>
    %48 = arith.mulf %46, %47 : vector<32x256xbf16>
    %c3 = arith.constant 3 : index
    %c0_31 = arith.constant 0 : index
    %c0_32 = arith.constant 0 : index
    %49 = vector.load %arg2[%c3, %c0_31, %c0_32] : memref<9x128x32xbf16, #tpu.memory_space<vmem>>, vector<1x128x32xbf16>
    %50 = vector.shape_cast %49 : vector<1x128x32xbf16> to vector<128x32xbf16>
    %cst_33 = arith.constant dense<0.000000e+00> : vector<128x256xf32>
    %51 = tpu.matmul %50, %48, %cst_33 {dimension_numbers = #tpu.dot_dimension_numbers<[1], [0], [0], [1], [0, 0, 1, 1], [], []>} : vector<128x32xbf16>, vector<32x256xbf16>, vector<128x256xf32> -> vector<128x256xf32>
    %52 = arith.addf %45, %51 : vector<128x256xf32>
    %c0_34 = arith.constant 0 : index
    %c17_35 = arith.constant 17 : index
    %53 = vector.load %arg13[%c0_34, %c17_35] : memref<64x290xbf16, #tpu.memory_space<vmem>>, vector<32x256xbf16>
    %c4 = arith.constant 4 : index
    %c0_36 = arith.constant 0 : index
    %c0_37 = arith.constant 0 : index
    %54 = vector.load %arg2[%c4, %c0_36, %c0_37] : memref<9x128x32xbf16, #tpu.memory_space<vmem>>, vector<1x128x32xbf16>
    %55 = vector.shape_cast %54 : vector<1x128x32xbf16> to vector<128x32xbf16>
    %cst_38 = arith.constant dense<0.000000e+00> : vector<128x256xf32>
    %56 = tpu.matmul %55, %53, %cst_38 {dimension_numbers = #tpu.dot_dimension_numbers<[1], [0], [0], [1], [0, 0, 1, 1], [], []>} : vector<128x32xbf16>, vector<32x256xbf16>, vector<128x256xf32> -> vector<128x256xf32>
    %57 = arith.addf %52, %56 : vector<128x256xf32>
    %c0_39 = arith.constant 0 : index
    %c18 = arith.constant 18 : index
    %58 = vector.load %arg13[%c0_39, %c18] : memref<64x290xbf16, #tpu.memory_space<vmem>>, vector<32x256xbf16>
    %59 = vector.broadcast %21 : vector<1x256xbf16> to vector<32x256xbf16>
    %60 = arith.mulf %58, %59 : vector<32x256xbf16>
    %c5 = arith.constant 5 : index
    %c0_40 = arith.constant 0 : index
    %c0_41 = arith.constant 0 : index
    %61 = vector.load %arg2[%c5, %c0_40, %c0_41] : memref<9x128x32xbf16, #tpu.memory_space<vmem>>, vector<1x128x32xbf16>
    %62 = vector.shape_cast %61 : vector<1x128x32xbf16> to vector<128x32xbf16>
    %cst_42 = arith.constant dense<0.000000e+00> : vector<128x256xf32>
    %63 = tpu.matmul %62, %60, %cst_42 {dimension_numbers = #tpu.dot_dimension_numbers<[1], [0], [0], [1], [0, 0, 1, 1], [], []>} : vector<128x32xbf16>, vector<32x256xbf16>, vector<128x256xf32> -> vector<128x256xf32>
    %64 = arith.addf %57, %63 : vector<128x256xf32>
    %c0_43 = arith.constant 0 : index
    %c32 = arith.constant 32 : index
    %65 = vector.load %arg13[%c0_43, %c32] : memref<64x290xbf16, #tpu.memory_space<vmem>>, vector<32x256xbf16>
    %66 = vector.broadcast %15 : vector<1x256xbf16> to vector<32x256xbf16>
    %67 = arith.mulf %65, %66 : vector<32x256xbf16>
    %c6 = arith.constant 6 : index
    %c0_44 = arith.constant 0 : index
    %c0_45 = arith.constant 0 : index
    %68 = vector.load %arg2[%c6, %c0_44, %c0_45] : memref<9x128x32xbf16, #tpu.memory_space<vmem>>, vector<1x128x32xbf16>
    %69 = vector.shape_cast %68 : vector<1x128x32xbf16> to vector<128x32xbf16>
    %cst_46 = arith.constant dense<0.000000e+00> : vector<128x256xf32>
    %70 = tpu.matmul %69, %67, %cst_46 {dimension_numbers = #tpu.dot_dimension_numbers<[1], [0], [0], [1], [0, 0, 1, 1], [], []>} : vector<128x32xbf16>, vector<32x256xbf16>, vector<128x256xf32> -> vector<128x256xf32>
    %71 = arith.addf %64, %70 : vector<128x256xf32>
    %c0_47 = arith.constant 0 : index
    %c33 = arith.constant 33 : index
    %72 = vector.load %arg13[%c0_47, %c33] : memref<64x290xbf16, #tpu.memory_space<vmem>>, vector<32x256xbf16>
    %c7 = arith.constant 7 : index
    %c0_48 = arith.constant 0 : index
    %c0_49 = arith.constant 0 : index
    %73 = vector.load %arg2[%c7, %c0_48, %c0_49] : memref<9x128x32xbf16, #tpu.memory_space<vmem>>, vector<1x128x32xbf16>
    %74 = vector.shape_cast %73 : vector<1x128x32xbf16> to vector<128x32xbf16>
    %cst_50 = arith.constant dense<0.000000e+00> : vector<128x256xf32>
    %75 = tpu.matmul %74, %72, %cst_50 {dimension_numbers = #tpu.dot_dimension_numbers<[1], [0], [0], [1], [0, 0, 1, 1], [], []>} : vector<128x32xbf16>, vector<32x256xbf16>, vector<128x256xf32> -> vector<128x256xf32>
    %76 = arith.addf %71, %75 : vector<128x256xf32>
    %c0_51 = arith.constant 0 : index
    %c34 = arith.constant 34 : index
    %77 = vector.load %arg13[%c0_51, %c34] : memref<64x290xbf16, #tpu.memory_space<vmem>>, vector<32x256xbf16>
    %78 = vector.broadcast %21 : vector<1x256xbf16> to vector<32x256xbf16>
    %79 = arith.mulf %77, %78 : vector<32x256xbf16>
    %c8 = arith.constant 8 : index
    %c0_52 = arith.constant 0 : index
    %c0_53 = arith.constant 0 : index
    %80 = vector.load %arg2[%c8, %c0_52, %c0_53] : memref<9x128x32xbf16, #tpu.memory_space<vmem>>, vector<1x128x32xbf16>
    %81 = vector.shape_cast %80 : vector<1x128x32xbf16> to vector<128x32xbf16>
    %cst_54 = arith.constant dense<0.000000e+00> : vector<128x256xf32>
    %82 = tpu.matmul %81, %79, %cst_54 {dimension_numbers = #tpu.dot_dimension_numbers<[1], [0], [0], [1], [0, 0, 1, 1], [], []>} : vector<128x32xbf16>, vector<32x256xbf16>, vector<128x256xf32> -> vector<128x256xf32>
    %83 = arith.addf %76, %82 : vector<128x256xf32>
    %c0_55 = arith.constant 0 : index
    %c0_56 = arith.constant 0 : index
    %84 = vector.load %arg3[%c0_55, %c0_56] : memref<128x1xf32, #tpu.memory_space<vmem>>, vector<128x1xf32>
    %85 = vector.broadcast %84 : vector<128x1xf32> to vector<128x256xf32>
    %86 = arith.addf %83, %85 : vector<128x256xf32>
    %cst_57 = arith.constant 1.000000e-01 : f32
    %87 = vector.broadcast %cst_57 : f32 to vector<128x256xf32>
    %88 = arith.mulf %87, %86 : vector<128x256xf32>
    %89 = arith.maximumf %86, %88 : vector<128x256xf32>
    %90 = arith.truncf %89 : vector<128x256xf32> to vector<128x256xbf16>
    %c0_58 = arith.constant 0 : index
    %c0_59 = arith.constant 0 : index
    %91 = vector.load %arg4[%c0_58, %c0_59] : memref<64x128xbf16, #tpu.memory_space<vmem>>, vector<64x128xbf16>
    %cst_60 = arith.constant dense<0.000000e+00> : vector<64x256xf32>
    %92 = tpu.matmul %91, %90, %cst_60 {dimension_numbers = #tpu.dot_dimension_numbers<[1], [0], [0], [1], [0, 0, 1, 1], [], []>} : vector<64x128xbf16>, vector<128x256xbf16>, vector<64x256xf32> -> vector<64x256xf32>
    %c0_61 = arith.constant 0 : index
    %c0_62 = arith.constant 0 : index
    %93 = vector.load %arg5[%c0_61, %c0_62] : memref<64x1xf32, #tpu.memory_space<vmem>>, vector<64x1xf32>
    %94 = vector.broadcast %93 : vector<64x1xf32> to vector<64x256xf32>
    %95 = arith.addf %92, %94 : vector<64x256xf32>
    %cst_63 = arith.constant 1.000000e-01 : f32
    %96 = vector.broadcast %cst_63 : f32 to vector<64x256xf32>
    %97 = arith.mulf %96, %95 : vector<64x256xf32>
    %98 = arith.maximumf %95, %97 : vector<64x256xf32>
    %99 = arith.truncf %98 : vector<64x256xf32> to vector<64x256xbf16>
    %c0_64 = arith.constant 0 : index
    %c17_65 = arith.constant 17 : index
    %100 = vector.load %arg13[%c0_64, %c17_65] : memref<64x290xbf16, #tpu.memory_space<vmem>>, vector<64x256xbf16>
    tpu.vector_store %arg13[%c0_64, %c17_65], %99 {strides = array<i32>} : memref<64x290xbf16, #tpu.memory_space<vmem>>, vector<64x256xbf16>,
    %c0_66 = arith.constant 0 : index
    %c0_67 = arith.constant 0 : index
    %101 = vector.load %arg13[%c0_66, %c0_67] : memref<64x290xbf16, #tpu.memory_space<vmem>>, vector<64x256xbf16>
    %102 = vector.broadcast %15 : vector<1x256xbf16> to vector<64x256xbf16>
    %103 = arith.mulf %101, %102 : vector<64x256xbf16>
    %c0_68 = arith.constant 0 : index
    %c0_69 = arith.constant 0 : index
    %c0_70 = arith.constant 0 : index
    %104 = vector.load %arg6[%c0_68, %c0_69, %c0_70] : memref<9x128x64xbf16, #tpu.memory_space<vmem>>, vector<1x128x64xbf16>
    %105 = vector.shape_cast %104 : vector<1x128x64xbf16> to vector<128x64xbf16>
    %cst_71 = arith.constant dense<0.000000e+00> : vector<128x256xf32>
    %106 = tpu.matmul %105, %103, %cst_71 {dimension_numbers = #tpu.dot_dimension_numbers<[1], [0], [0], [1], [0, 0, 1, 1], [], []>} : vector<128x64xbf16>, vector<64x256xbf16>, vector<128x256xf32> -> vector<128x256xf32>
    %c0_72 = arith.constant 0 : index
    %c1_73 = arith.constant 1 : index
    %107 = vector.load %arg13[%c0_72, %c1_73] : memref<64x290xbf16, #tpu.memory_space<vmem>>, vector<64x256xbf16>
    %c1_74 = arith.constant 1 : index
    %c0_75 = arith.constant 0 : index
    %c0_76 = arith.constant 0 : index
    %108 = vector.load %arg6[%c1_74, %c0_75, %c0_76] : memref<9x128x64xbf16, #tpu.memory_space<vmem>>, vector<1x128x64xbf16>
    %109 = vector.shape_cast %108 : vector<1x128x64xbf16> to vector<128x64xbf16>
    %cst_77 = arith.constant dense<0.000000e+00> : vector<128x256xf32>
    %110 = tpu.matmul %109, %107, %cst_77 {dimension_numbers = #tpu.dot_dimension_numbers<[1], [0], [0], [1], [0, 0, 1, 1], [], []>} : vector<128x64xbf16>, vector<64x256xbf16>, vector<128x256xf32> -> vector<128x256xf32>
    %111 = arith.addf %106, %110 : vector<128x256xf32>
    %c0_78 = arith.constant 0 : index
    %c2_79 = arith.constant 2 : index
    %112 = vector.load %arg13[%c0_78, %c2_79] : memref<64x290xbf16, #tpu.memory_space<vmem>>, vector<64x256xbf16>
    %113 = vector.broadcast %21 : vector<1x256xbf16> to vector<64x256xbf16>
    %114 = arith.mulf %112, %113 : vector<64x256xbf16>
    %c2_80 = arith.constant 2 : index
    %c0_81 = arith.constant 0 : index
    %c0_82 = arith.constant 0 : index
    %115 = vector.load %arg6[%c2_80, %c0_81, %c0_82] : memref<9x128x64xbf16, #tpu.memory_space<vmem>>, vector<1x128x64xbf16>
    %116 = vector.shape_cast %115 : vector<1x128x64xbf16> to vector<128x64xbf16>
    %cst_83 = arith.constant dense<0.000000e+00> : vector<128x256xf32>
    %117 = tpu.matmul %116, %114, %cst_83 {dimension_numbers = #tpu.dot_dimension_numbers<[1], [0], [0], [1], [0, 0, 1, 1], [], []>} : vector<128x64xbf16>, vector<64x256xbf16>, vector<128x256xf32> -> vector<128x256xf32>
    %118 = arith.addf %111, %117 : vector<128x256xf32>
    %c0_84 = arith.constant 0 : index
    %c16_85 = arith.constant 16 : index
    %119 = vector.load %arg13[%c0_84, %c16_85] : memref<64x290xbf16, #tpu.memory_space<vmem>>, vector<64x256xbf16>
    %120 = vector.broadcast %15 : vector<1x256xbf16> to vector<64x256xbf16>
    %121 = arith.mulf %119, %120 : vector<64x256xbf16>
    %c3_86 = arith.constant 3 : index
    %c0_87 = arith.constant 0 : index
    %c0_88 = arith.constant 0 : index
    %122 = vector.load %arg6[%c3_86, %c0_87, %c0_88] : memref<9x128x64xbf16, #tpu.memory_space<vmem>>, vector<1x128x64xbf16>
    %123 = vector.shape_cast %122 : vector<1x128x64xbf16> to vector<128x64xbf16>
    %cst_89 = arith.constant dense<0.000000e+00> : vector<128x256xf32>
    %124 = tpu.matmul %123, %121, %cst_89 {dimension_numbers = #tpu.dot_dimension_numbers<[1], [0], [0], [1], [0, 0, 1, 1], [], []>} : vector<128x64xbf16>, vector<64x256xbf16>, vector<128x256xf32> -> vector<128x256xf32>
    %125 = arith.addf %118, %124 : vector<128x256xf32>
    %c0_90 = arith.constant 0 : index
    %c17_91 = arith.constant 17 : index
    %126 = vector.load %arg13[%c0_90, %c17_91] : memref<64x290xbf16, #tpu.memory_space<vmem>>, vector<64x256xbf16>
    %c4_92 = arith.constant 4 : index
    %c0_93 = arith.constant 0 : index
    %c0_94 = arith.constant 0 : index
    %127 = vector.load %arg6[%c4_92, %c0_93, %c0_94] : memref<9x128x64xbf16, #tpu.memory_space<vmem>>, vector<1x128x64xbf16>
    %128 = vector.shape_cast %127 : vector<1x128x64xbf16> to vector<128x64xbf16>
    %cst_95 = arith.constant dense<0.000000e+00> : vector<128x256xf32>
    %129 = tpu.matmul %128, %126, %cst_95 {dimension_numbers = #tpu.dot_dimension_numbers<[1], [0], [0], [1], [0, 0, 1, 1], [], []>} : vector<128x64xbf16>, vector<64x256xbf16>, vector<128x256xf32> -> vector<128x256xf32>
    %130 = arith.addf %125, %129 : vector<128x256xf32>
    %c0_96 = arith.constant 0 : index
    %c18_97 = arith.constant 18 : index
    %131 = vector.load %arg13[%c0_96, %c18_97] : memref<64x290xbf16, #tpu.memory_space<vmem>>, vector<64x256xbf16>
    %132 = vector.broadcast %21 : vector<1x256xbf16> to vector<64x256xbf16>
    %133 = arith.mulf %131, %132 : vector<64x256xbf16>
    %c5_98 = arith.constant 5 : index
    %c0_99 = arith.constant 0 : index
    %c0_100 = arith.constant 0 : index
    %134 = vector.load %arg6[%c5_98, %c0_99, %c0_100] : memref<9x128x64xbf16, #tpu.memory_space<vmem>>, vector<1x128x64xbf16>
    %135 = vector.shape_cast %134 : vector<1x128x64xbf16> to vector<128x64xbf16>
    %cst_101 = arith.constant dense<0.000000e+00> : vector<128x256xf32>
    %136 = tpu.matmul %135, %133, %cst_101 {dimension_numbers = #tpu.dot_dimension_numbers<[1], [0], [0], [1], [0, 0, 1, 1], [], []>} : vector<128x64xbf16>, vector<64x256xbf16>, vector<128x256xf32> -> vector<128x256xf32>
    %137 = arith.addf %130, %136 : vector<128x256xf32>
    %c0_102 = arith.constant 0 : index
    %c32_103 = arith.constant 32 : index
    %138 = vector.load %arg13[%c0_102, %c32_103] : memref<64x290xbf16, #tpu.memory_space<vmem>>, vector<64x256xbf16>
    %139 = vector.broadcast %15 : vector<1x256xbf16> to vector<64x256xbf16>
    %140 = arith.mulf %138, %139 : vector<64x256xbf16>
    %c6_104 = arith.constant 6 : index
    %c0_105 = arith.constant 0 : index
    %c0_106 = arith.constant 0 : index
    %141 = vector.load %arg6[%c6_104, %c0_105, %c0_106] : memref<9x128x64xbf16, #tpu.memory_space<vmem>>, vector<1x128x64xbf16>
    %142 = vector.shape_cast %141 : vector<1x128x64xbf16> to vector<128x64xbf16>
    %cst_107 = arith.constant dense<0.000000e+00> : vector<128x256xf32>
    %143 = tpu.matmul %142, %140, %cst_107 {dimension_numbers = #tpu.dot_dimension_numbers<[1], [0], [0], [1], [0, 0, 1, 1], [], []>} : vector<128x64xbf16>, vector<64x256xbf16>, vector<128x256xf32> -> vector<128x256xf32>
    %144 = arith.addf %137, %143 : vector<128x256xf32>
    %c0_108 = arith.constant 0 : index
    %c33_109 = arith.constant 33 : index
    %145 = vector.load %arg13[%c0_108, %c33_109] : memref<64x290xbf16, #tpu.memory_space<vmem>>, vector<64x256xbf16>
    %c7_110 = arith.constant 7 : index
    %c0_111 = arith.constant 0 : index
    %c0_112 = arith.constant 0 : index
    %146 = vector.load %arg6[%c7_110, %c0_111, %c0_112] : memref<9x128x64xbf16, #tpu.memory_space<vmem>>, vector<1x128x64xbf16>
    %147 = vector.shape_cast %146 : vector<1x128x64xbf16> to vector<128x64xbf16>
    %cst_113 = arith.constant dense<0.000000e+00> : vector<128x256xf32>
    %148 = tpu.matmul %147, %145, %cst_113 {dimension_numbers = #tpu.dot_dimension_numbers<[1], [0], [0], [1], [0, 0, 1, 1], [], []>} : vector<128x64xbf16>, vector<64x256xbf16>, vector<128x256xf32> -> vector<128x256xf32>
    %149 = arith.addf %144, %148 : vector<128x256xf32>
    %c0_114 = arith.constant 0 : index
    %c34_115 = arith.constant 34 : index
    %150 = vector.load %arg13[%c0_114, %c34_115] : memref<64x290xbf16, #tpu.memory_space<vmem>>, vector<64x256xbf16>
    %151 = vector.broadcast %21 : vector<1x256xbf16> to vector<64x256xbf16>
    %152 = arith.mulf %150, %151 : vector<64x256xbf16>
    %c8_116 = arith.constant 8 : index
    %c0_117 = arith.constant 0 : index
    %c0_118 = arith.constant 0 : index
    %153 = vector.load %arg6[%c8_116, %c0_117, %c0_118] : memref<9x128x64xbf16, #tpu.memory_space<vmem>>, vector<1x128x64xbf16>
    %154 = vector.shape_cast %153 : vector<1x128x64xbf16> to vector<128x64xbf16>
    %cst_119 = arith.constant dense<0.000000e+00> : vector<128x256xf32>
    %155 = tpu.matmul %154, %152, %cst_119 {dimension_numbers = #tpu.dot_dimension_numbers<[1], [0], [0], [1], [0, 0, 1, 1], [], []>} : vector<128x64xbf16>, vector<64x256xbf16>, vector<128x256xf32> -> vector<128x256xf32>
    %156 = arith.addf %149, %155 : vector<128x256xf32>
    %c0_120 = arith.constant 0 : index
    %c0_121 = arith.constant 0 : index
    %157 = vector.load %arg7[%c0_120, %c0_121] : memref<128x1xf32, #tpu.memory_space<vmem>>, vector<128x1xf32>
    %158 = vector.broadcast %157 : vector<128x1xf32> to vector<128x256xf32>
    %159 = arith.addf %156, %158 : vector<128x256xf32>
    %cst_122 = arith.constant 1.000000e-01 : f32
    %160 = vector.broadcast %cst_122 : f32 to vector<128x256xf32>
    %161 = arith.mulf %160, %159 : vector<128x256xf32>
    %162 = arith.maximumf %159, %161 : vector<128x256xf32>
    %163 = arith.truncf %162 : vector<128x256xf32> to vector<128x256xbf16>
    %c0_123 = arith.constant 0 : index
    %c0_124 = arith.constant 0 : index
    %164 = vector.load %arg8[%c0_123, %c0_124] : memref<64x128xbf16, #tpu.memory_space<vmem>>, vector<64x128xbf16>
    %cst_125 = arith.constant dense<0.000000e+00> : vector<64x256xf32>
    %165 = tpu.matmul %164, %163, %cst_125 {dimension_numbers = #tpu.dot_dimension_numbers<[1], [0], [0], [1], [0, 0, 1, 1], [], []>} : vector<64x128xbf16>, vector<128x256xbf16>, vector<64x256xf32> -> vector<64x256xf32>
    %c0_126 = arith.constant 0 : index
    %c0_127 = arith.constant 0 : index
    %166 = vector.load %arg9[%c0_126, %c0_127] : memref<64x1xf32, #tpu.memory_space<vmem>>, vector<64x1xf32>
    %167 = vector.broadcast %166 : vector<64x1xf32> to vector<64x256xf32>
    %168 = arith.addf %165, %167 : vector<64x256xf32>
    %cst_128 = arith.constant 1.000000e-01 : f32
    %169 = vector.broadcast %cst_128 : f32 to vector<64x256xf32>
    %170 = arith.mulf %169, %168 : vector<64x256xf32>
    %171 = arith.maximumf %168, %170 : vector<64x256xf32>
    %172 = arith.truncf %171 : vector<64x256xf32> to vector<64x256xbf16>
    %c0_129 = arith.constant 0 : index
    %c17_130 = arith.constant 17 : index
    %173 = vector.load %arg13[%c0_129, %c17_130] : memref<64x290xbf16, #tpu.memory_space<vmem>>, vector<64x256xbf16>
    tpu.vector_store %arg13[%c0_129, %c17_130], %172 {strides = array<i32>} : memref<64x290xbf16, #tpu.memory_space<vmem>>, vector<64x256xbf16>,
    %c0_131 = arith.constant 0 : index
    %c0_132 = arith.constant 0 : index
    %174 = vector.load %arg13[%c0_131, %c0_132] : memref<64x290xbf16, #tpu.memory_space<vmem>>, vector<64x256xbf16>
    %175 = vector.broadcast %15 : vector<1x256xbf16> to vector<64x256xbf16>
    %176 = arith.mulf %174, %175 : vector<64x256xbf16>
    %c0_133 = arith.constant 0 : index
    %c0_134 = arith.constant 0 : index
    %c0_135 = arith.constant 0 : index
    %177 = vector.load %arg10[%c0_133, %c0_134, %c0_135] : memref<9x128x64xbf16, #tpu.memory_space<vmem>>, vector<1x128x64xbf16>
    %178 = vector.shape_cast %177 : vector<1x128x64xbf16> to vector<128x64xbf16>
    %cst_136 = arith.constant dense<0.000000e+00> : vector<128x256xf32>
    %179 = tpu.matmul %178, %176, %cst_136 {dimension_numbers = #tpu.dot_dimension_numbers<[1], [0], [0], [1], [0, 0, 1, 1], [], []>} : vector<128x64xbf16>, vector<64x256xbf16>, vector<128x256xf32> -> vector<128x256xf32>
    %c0_137 = arith.constant 0 : index
    %c1_138 = arith.constant 1 : index
    %180 = vector.load %arg13[%c0_137, %c1_138] : memref<64x290xbf16, #tpu.memory_space<vmem>>, vector<64x256xbf16>
    %c1_139 = arith.constant 1 : index
    %c0_140 = arith.constant 0 : index
    %c0_141 = arith.constant 0 : index
    %181 = vector.load %arg10[%c1_139, %c0_140, %c0_141] : memref<9x128x64xbf16, #tpu.memory_space<vmem>>, vector<1x128x64xbf16>
    %182 = vector.shape_cast %181 : vector<1x128x64xbf16> to vector<128x64xbf16>
    %cst_142 = arith.constant dense<0.000000e+00> : vector<128x256xf32>
    %183 = tpu.matmul %182, %180, %cst_142 {dimension_numbers = #tpu.dot_dimension_numbers<[1], [0], [0], [1], [0, 0, 1, 1], [], []>} : vector<128x64xbf16>, vector<64x256xbf16>, vector<128x256xf32> -> vector<128x256xf32>
    %184 = arith.addf %179, %183 : vector<128x256xf32>
    %c0_143 = arith.constant 0 : index
    %c2_144 = arith.constant 2 : index
    %185 = vector.load %arg13[%c0_143, %c2_144] : memref<64x290xbf16, #tpu.memory_space<vmem>>, vector<64x256xbf16>
    %186 = vector.broadcast %21 : vector<1x256xbf16> to vector<64x256xbf16>
    %187 = arith.mulf %185, %186 : vector<64x256xbf16>
    %c2_145 = arith.constant 2 : index
    %c0_146 = arith.constant 0 : index
    %c0_147 = arith.constant 0 : index
    %188 = vector.load %arg10[%c2_145, %c0_146, %c0_147] : memref<9x128x64xbf16, #tpu.memory_space<vmem>>, vector<1x128x64xbf16>
    %189 = vector.shape_cast %188 : vector<1x128x64xbf16> to vector<128x64xbf16>
    %cst_148 = arith.constant dense<0.000000e+00> : vector<128x256xf32>
    %190 = tpu.matmul %189, %187, %cst_148 {dimension_numbers = #tpu.dot_dimension_numbers<[1], [0], [0], [1], [0, 0, 1, 1], [], []>} : vector<128x64xbf16>, vector<64x256xbf16>, vector<128x256xf32> -> vector<128x256xf32>
    %191 = arith.addf %184, %190 : vector<128x256xf32>
    %c0_149 = arith.constant 0 : index
    %c16_150 = arith.constant 16 : index
    %192 = vector.load %arg13[%c0_149, %c16_150] : memref<64x290xbf16, #tpu.memory_space<vmem>>, vector<64x256xbf16>
    %193 = vector.broadcast %15 : vector<1x256xbf16> to vector<64x256xbf16>
    %194 = arith.mulf %192, %193 : vector<64x256xbf16>
    %c3_151 = arith.constant 3 : index
    %c0_152 = arith.constant 0 : index
    %c0_153 = arith.constant 0 : index
    %195 = vector.load %arg10[%c3_151, %c0_152, %c0_153] : memref<9x128x64xbf16, #tpu.memory_space<vmem>>, vector<1x128x64xbf16>
    %196 = vector.shape_cast %195 : vector<1x128x64xbf16> to vector<128x64xbf16>
    %cst_154 = arith.constant dense<0.000000e+00> : vector<128x256xf32>
    %197 = tpu.matmul %196, %194, %cst_154 {dimension_numbers = #tpu.dot_dimension_numbers<[1], [0], [0], [1], [0, 0, 1, 1], [], []>} : vector<128x64xbf16>, vector<64x256xbf16>, vector<128x256xf32> -> vector<128x256xf32>
    %198 = arith.addf %191, %197 : vector<128x256xf32>
    %c0_155 = arith.constant 0 : index
    %c17_156 = arith.constant 17 : index
    %199 = vector.load %arg13[%c0_155, %c17_156] : memref<64x290xbf16, #tpu.memory_space<vmem>>, vector<64x256xbf16>
    %c4_157 = arith.constant 4 : index
    %c0_158 = arith.constant 0 : index
    %c0_159 = arith.constant 0 : index
    %200 = vector.load %arg10[%c4_157, %c0_158, %c0_159] : memref<9x128x64xbf16, #tpu.memory_space<vmem>>, vector<1x128x64xbf16>
    %201 = vector.shape_cast %200 : vector<1x128x64xbf16> to vector<128x64xbf16>
    %cst_160 = arith.constant dense<0.000000e+00> : vector<128x256xf32>
    %202 = tpu.matmul %201, %199, %cst_160 {dimension_numbers = #tpu.dot_dimension_numbers<[1], [0], [0], [1], [0, 0, 1, 1], [], []>} : vector<128x64xbf16>, vector<64x256xbf16>, vector<128x256xf32> -> vector<128x256xf32>
    %203 = arith.addf %198, %202 : vector<128x256xf32>
    %c0_161 = arith.constant 0 : index
    %c18_162 = arith.constant 18 : index
    %204 = vector.load %arg13[%c0_161, %c18_162] : memref<64x290xbf16, #tpu.memory_space<vmem>>, vector<64x256xbf16>
    %205 = vector.broadcast %21 : vector<1x256xbf16> to vector<64x256xbf16>
    %206 = arith.mulf %204, %205 : vector<64x256xbf16>
    %c5_163 = arith.constant 5 : index
    %c0_164 = arith.constant 0 : index
    %c0_165 = arith.constant 0 : index
    %207 = vector.load %arg10[%c5_163, %c0_164, %c0_165] : memref<9x128x64xbf16, #tpu.memory_space<vmem>>, vector<1x128x64xbf16>
    %208 = vector.shape_cast %207 : vector<1x128x64xbf16> to vector<128x64xbf16>
    %cst_166 = arith.constant dense<0.000000e+00> : vector<128x256xf32>
    %209 = tpu.matmul %208, %206, %cst_166 {dimension_numbers = #tpu.dot_dimension_numbers<[1], [0], [0], [1], [0, 0, 1, 1], [], []>} : vector<128x64xbf16>, vector<64x256xbf16>, vector<128x256xf32> -> vector<128x256xf32>
    %210 = arith.addf %203, %209 : vector<128x256xf32>
    %c0_167 = arith.constant 0 : index
    %c32_168 = arith.constant 32 : index
    %211 = vector.load %arg13[%c0_167, %c32_168] : memref<64x290xbf16, #tpu.memory_space<vmem>>, vector<64x256xbf16>
    %212 = vector.broadcast %15 : vector<1x256xbf16> to vector<64x256xbf16>
    %213 = arith.mulf %211, %212 : vector<64x256xbf16>
    %c6_169 = arith.constant 6 : index
    %c0_170 = arith.constant 0 : index
    %c0_171 = arith.constant 0 : index
    %214 = vector.load %arg10[%c6_169, %c0_170, %c0_171] : memref<9x128x64xbf16, #tpu.memory_space<vmem>>, vector<1x128x64xbf16>
    %215 = vector.shape_cast %214 : vector<1x128x64xbf16> to vector<128x64xbf16>
    %cst_172 = arith.constant dense<0.000000e+00> : vector<128x256xf32>
    %216 = tpu.matmul %215, %213, %cst_172 {dimension_numbers = #tpu.dot_dimension_numbers<[1], [0], [0], [1], [0, 0, 1, 1], [], []>} : vector<128x64xbf16>, vector<64x256xbf16>, vector<128x256xf32> -> vector<128x256xf32>
    %217 = arith.addf %210, %216 : vector<128x256xf32>
    %c0_173 = arith.constant 0 : index
    %c33_174 = arith.constant 33 : index
    %218 = vector.load %arg13[%c0_173, %c33_174] : memref<64x290xbf16, #tpu.memory_space<vmem>>, vector<64x256xbf16>
    %c7_175 = arith.constant 7 : index
    %c0_176 = arith.constant 0 : index
    %c0_177 = arith.constant 0 : index
    %219 = vector.load %arg10[%c7_175, %c0_176, %c0_177] : memref<9x128x64xbf16, #tpu.memory_space<vmem>>, vector<1x128x64xbf16>
    %220 = vector.shape_cast %219 : vector<1x128x64xbf16> to vector<128x64xbf16>
    %cst_178 = arith.constant dense<0.000000e+00> : vector<128x256xf32>
    %221 = tpu.matmul %220, %218, %cst_178 {dimension_numbers = #tpu.dot_dimension_numbers<[1], [0], [0], [1], [0, 0, 1, 1], [], []>} : vector<128x64xbf16>, vector<64x256xbf16>, vector<128x256xf32> -> vector<128x256xf32>
    %222 = arith.addf %217, %221 : vector<128x256xf32>
    %c0_179 = arith.constant 0 : index
    %c34_180 = arith.constant 34 : index
    %223 = vector.load %arg13[%c0_179, %c34_180] : memref<64x290xbf16, #tpu.memory_space<vmem>>, vector<64x256xbf16>
    %224 = vector.broadcast %21 : vector<1x256xbf16> to vector<64x256xbf16>
    %225 = arith.mulf %223, %224 : vector<64x256xbf16>
    %c8_181 = arith.constant 8 : index
    %c0_182 = arith.constant 0 : index
    %c0_183 = arith.constant 0 : index
    %226 = vector.load %arg10[%c8_181, %c0_182, %c0_183] : memref<9x128x64xbf16, #tpu.memory_space<vmem>>, vector<1x128x64xbf16>
    %227 = vector.shape_cast %226 : vector<1x128x64xbf16> to vector<128x64xbf16>
    %cst_184 = arith.constant dense<0.000000e+00> : vector<128x256xf32>
    %228 = tpu.matmul %227, %225, %cst_184 {dimension_numbers = #tpu.dot_dimension_numbers<[1], [0], [0], [1], [0, 0, 1, 1], [], []>} : vector<128x64xbf16>, vector<64x256xbf16>, vector<128x256xf32> -> vector<128x256xf32>
    %229 = arith.addf %222, %228 : vector<128x256xf32>
    %c0_185 = arith.constant 0 : index
    %c0_186 = arith.constant 0 : index
    %230 = vector.load %arg11[%c0_185, %c0_186] : memref<128x1xf32, #tpu.memory_space<vmem>>, vector<128x1xf32>
    %231 = vector.broadcast %230 : vector<128x1xf32> to vector<128x256xf32>
    %232 = arith.addf %229, %231 : vector<128x256xf32>
    %cst_187 = arith.constant 1.000000e-01 : f32
    %233 = vector.broadcast %cst_187 : f32 to vector<128x256xf32>
    %234 = arith.mulf %233, %232 : vector<128x256xf32>
    %235 = arith.maximumf %232, %234 : vector<128x256xf32>
    %c0_188 = arith.constant 0 : index
    %c0_189 = arith.constant 0 : index
    %c0_190 = arith.constant 0 : index
    %236 = vector.load %arg12[%c0_188, %c0_189, %c0_190] : memref<1x128x256xf32, #tpu.memory_space<vmem>>, vector<1x128x256xf32>
    %237 = vector.shape_cast %236 : vector<1x128x256xf32> to vector<128x256xf32>
    %238 = vector.shape_cast %235 : vector<128x256xf32> to vector<1x128x256xf32>
    tpu.vector_store %arg12[%c0_188, %c0_189, %c0_190], %238 {strides = array<i32>} : memref<1x128x256xf32, #tpu.memory_space<vmem>>, vector<1x128x256xf32>,
    return
  }
  func.func @transform_0(%arg0: i32) -> (i32, i32, i32) {
    %c0_i32 = arith.constant 0 : i32
    %c0_i32_0 = arith.constant 0 : i32
    %c0_i32_1 = arith.constant 0 : i32
    return %arg0, %c0_i32, %c0_i32_0 : i32, i32, i32
  }
  func.func @transform_1(%arg0: i32) -> (i32, i32, i32) {
    %c0_i32 = arith.constant 0 : i32
    %c0_i32_0 = arith.constant 0 : i32
    %c0_i32_1 = arith.constant 0 : i32
    %c0_i32_2 = arith.constant 0 : i32
    return %c0_i32, %c0_i32_0, %c0_i32_1 : i32, i32, i32
  }
  func.func @transform_2(%arg0: i32) -> (i32, i32) {
    %c0_i32 = arith.constant 0 : i32
    %c0_i32_0 = arith.constant 0 : i32
    %c0_i32_1 = arith.constant 0 : i32
    return %c0_i32, %c0_i32_0 : i32, i32
  }
  func.func @transform_3(%arg0: i32) -> (i32, i32) {
    %c0_i32 = arith.constant 0 : i32
    %c0_i32_0 = arith.constant 0 : i32
    %c0_i32_1 = arith.constant 0 : i32
    return %c0_i32, %c0_i32_0 : i32, i32
  }
  func.func @transform_4(%arg0: i32) -> (i32, i32) {
    %c0_i32 = arith.constant 0 : i32
    %c0_i32_0 = arith.constant 0 : i32
    %c0_i32_1 = arith.constant 0 : i32
    return %c0_i32, %c0_i32_0 : i32, i32
  }
  func.func @transform_5(%arg0: i32) -> (i32, i32, i32) {
    %c0_i32 = arith.constant 0 : i32
    %c0_i32_0 = arith.constant 0 : i32
    %c0_i32_1 = arith.constant 0 : i32
    %c0_i32_2 = arith.constant 0 : i32
    return %c0_i32, %c0_i32_0, %c0_i32_1 : i32, i32, i32
  }
  func.func @transform_6(%arg0: i32) -> (i32, i32) {
    %c0_i32 = arith.constant 0 : i32
    %c0_i32_0 = arith.constant 0 : i32
    %c0_i32_1 = arith.constant 0 : i32
    return %c0_i32, %c0_i32_0 : i32, i32
  }
  func.func @transform_7(%arg0: i32) -> (i32, i32) {
    %c0_i32 = arith.constant 0 : i32
    %c0_i32_0 = arith.constant 0 : i32
    %c0_i32_1 = arith.constant 0 : i32
    return %c0_i32, %c0_i32_0 : i32, i32
  }
  func.func @transform_8(%arg0: i32) -> (i32, i32) {
    %c0_i32 = arith.constant 0 : i32
    %c0_i32_0 = arith.constant 0 : i32
    %c0_i32_1 = arith.constant 0 : i32
    return %c0_i32, %c0_i32_0 : i32, i32
  }
  func.func @transform_9(%arg0: i32) -> (i32, i32, i32) {
    %c0_i32 = arith.constant 0 : i32
    %c0_i32_0 = arith.constant 0 : i32
    %c0_i32_1 = arith.constant 0 : i32
    %c0_i32_2 = arith.constant 0 : i32
    return %c0_i32, %c0_i32_0, %c0_i32_1 : i32, i32, i32
  }
  func.func @transform_10(%arg0: i32) -> (i32, i32) {
    %c0_i32 = arith.constant 0 : i32
    %c0_i32_0 = arith.constant 0 : i32
    %c0_i32_1 = arith.constant 0 : i32
    return %c0_i32, %c0_i32_0 : i32, i32
  }
  func.func @transform_11(%arg0: i32) -> (i32, i32, i32) {
    %c0_i32 = arith.constant 0 : i32
    %c0_i32_0 = arith.constant 0 : i32
    %c0_i32_1 = arith.constant 0 : i32
    return %arg0, %c0_i32, %c0_i32_0 : i32, i32, i32
  }
}

</mosaic_0001>

<llo_original>
// kernel: tpu_custom_call.1
$region0: #{tpu_custom_call.1}
  #allocation0 [shape = 'u32[]', space=smem, size = 0x4, offset = 0x4, fixed_abs, tag = 'smem constant byte address 0x4 - core index']
  #allocation1 [shape = 'u32[144,128]{1,0:T(1,128)}', space=vmem, size = 0x12000, scoped, tag = 'internal scratch']
  #allocation2 [shape = 'bf16[64,290]{1,0:T(8,128)(2,1)}', space=vmem, size = 0xc000, scoped, tag = 'scratch operand']
  %s0 = inlined_call_operand.vmem [shape: f32[2,32,256], index: 0, kind: input, shape index: {}]
  %s1 = inlined_call_operand.vmem [shape: bf16[9,128,32], index: 1, kind: input, shape index: {}]
  %s2 = inlined_call_operand.vmem [shape: f32[128,1], index: 2, kind: input, shape index: {}]
  %s3 = inlined_call_operand.vmem [shape: bf16[64,128], index: 3, kind: input, shape index: {}]
  %s4 = inlined_call_operand.vmem [shape: f32[64,1], index: 4, kind: input, shape index: {}]
  %s5 = inlined_call_operand.vmem [shape: bf16[9,128,64], index: 5, kind: input, shape index: {}]
  %s6 = inlined_call_operand.vmem [shape: f32[128,1], index: 6, kind: input, shape index: {}]
  %s7 = inlined_call_operand.vmem [shape: bf16[64,128], index: 7, kind: input, shape index: {}]
  %s8 = inlined_call_operand.vmem [shape: f32[64,1], index: 8, kind: input, shape index: {}]
  %s9 = inlined_call_operand.vmem [shape: bf16[9,128,64], index: 9, kind: input, shape index: {}]
  %s10 = inlined_call_operand.vmem [shape: f32[128,1], index: 10, kind: input, shape index: {}]
  %s11 = inlined_call_operand.hbm [shape: f32[2,128,256], index: 11, kind: output, shape index: {}]
  %s12 = sld [smem:[#allocation0]]
  $region77: #{tpu_custom_call.1} parent=0
    _
  %s14 = ssub.s32 1, %s12
  %s15 = scalar_select 0, %s14, %s12
  $region1: #{tpu_custom_call.1} parent=0
    #allocation3 [shape = 'u8[262144]{0}', space=vmem, size = 0x40000, scoped, tag = 'output window, operand 0']
    #allocation4 [shape = 's32[2]{0}', space=sflag, size = 0x8, scoped, tag = 'scoped memory for tpu_custom_call.1']
    %16 = vsyncpa [#allocation4], 0
    %s17 = scalar_lea.sflag [#allocation4], 1
    %18 = vsyncpa %s17, 0
    loop: start=0, step=1, limit=4
    $region2: #{tpu_custom_call.1} parent=1 // loop_pre_header
      _
    $region3: #{tpu_custom_call.1} parent=1 // loop_header
      %s20 = sphi 0, %s24
      %p21 = scmp.ge.s32.totalorder %s20, 4
      %s30 = sphi 0, %s32
      %s33 = sphi 0, %s30
      %s34 = sphi 0, %s33
      %s50 = sphi 0, %s34
      %s54 = sphi 0, %s54
      %s56 = sphi 0, %s54
      %s57 = sphi 0, %s56
      %s71 = sphi 0, %s57
      %s75 = sphi 0, %s75
      %s77 = sphi 0, %s75
      %s78 = sphi 0, %s77
      %s92 = sphi 0, %s78
      %s96 = sphi 0, %s96
      %s98 = sphi 0, %s96
      %s99 = sphi 0, %s98
      %s113 = sphi 0, %s99
      %s117 = sphi 0, %s117
      %s119 = sphi 0, %s117
      %s120 = sphi 0, %s119
      %s134 = sphi 0, %s120
      %s138 = sphi 0, %s138
      %s140 = sphi 0, %s138
      %s141 = sphi 0, %s140
      %s155 = sphi 0, %s141
      %s159 = sphi 0, %s159
      %s161 = sphi 0, %s159
      %s162 = sphi 0, %s161
      %s176 = sphi 0, %s162
      %s180 = sphi 0, %s180
      %s182 = sphi 0, %s180
      %s183 = sphi 0, %s182
      %s197 = sphi 0, %s183
      %s201 = sphi 0, %s201
      %s203 = sphi 0, %s201
      %s204 = sphi 0, %s203
      %s218 = sphi 0, %s204
      %s222 = sphi 0, %s222
      %s224 = sphi 0, %s222
      %s225 = sphi 0, %s224
      %s239 = sphi 0, %s225
      %s243 = sphi 0, %s243
      %s245 = sphi 0, %s243
      %s246 = sphi 0, %s245
      %s260 = sphi 0, %s246
      %s266 = sphi 0, %s268
      %s269 = sphi 0, %s266
      %s270 = sphi 0, %s269
      %s286 = sphi 0, %s270
    $region4: #{tpu_custom_call.1} parent=1 // loop_header_branch
      %23 = sbr.rel (%p21) target = $region8
    $region5: #{tpu_custom_call.1} parent=1 // loop_body
      %s25 = ssub.s32 %s20, 1
      %s26 = ssub.s32 %s20, 2
      %s27 = sadd.s32 %s20, 1
      %s28 = ssub.s32 %s20, %s27
      %p29 = scmp.eq.s32.totalorder %s28, 0
      %s31 = sadd.s32 %s30, 1
      %s32 = scalar_select %p29, %s30, %s31
      %p35 = pneg %p29
      %p36 = scmp.eq.s32.totalorder %s20, 1
      %p37 = por %p35, %p36
      %p38 = scmp.ne.s32.totalorder %s30, %s33
      %p39 = scmp.eq.s32.totalorder %s20, 0
      %p40 = por %p38, %p39
      %p41 = scmp.ne.s32.totalorder %s30, %s33
      %p42 = scmp.eq.s32.totalorder %s25, 1
      %p43 = por %p41, %p42
      %p44 = scmp.ne.s32.totalorder %s33, %s34
      %p45 = scmp.eq.s32.totalorder %s25, 0
      %p46 = por %p44, %p45
      %p47 = scmp.ne.s32.totalorder %s33, %s34
      %p48 = scmp.eq.s32.totalorder %s26, 1
      %p49 = por %p47, %p48
      %p51 = scmp.ne.s32.totalorder %s34, %s50
      %p52 = scmp.eq.s32.totalorder %s26, 0
      %p53 = por %p51, %p52
      %s55 = sadd.s32 %s54, 1
      %p58 = scmp.eq.s32.totalorder %s20, 1
      %p59 = scmp.ne.s32.totalorder %s54, %s56
      %p60 = scmp.eq.s32.totalorder %s20, 0
      %p61 = por %p59, %p60
      %p62 = scmp.ne.s32.totalorder %s54, %s56
      %p63 = scmp.eq.s32.totalorder %s25, 1
      %p64 = por %p62, %p63
      %p65 = scmp.ne.s32.totalorder %s56, %s57
      %p66 = scmp.eq.s32.totalorder %s25, 0
      %p67 = por %p65, %p66
      %p68 = scmp.ne.s32.totalorder %s56, %s57
      %p69 = scmp.eq.s32.totalorder %s26, 1
      %p70 = por %p68, %p69
      %p72 = scmp.ne.s32.totalorder %s57, %s71
      %p73 = scmp.eq.s32.totalorder %s26, 0
      %p74 = por %p72, %p73
      %s76 = sadd.s32 %s75, 1
      %p79 = scmp.eq.s32.totalorder %s20, 1
      %p80 = scmp.ne.s32.totalorder %s75, %s77
      %p81 = scmp.eq.s32.totalorder %s20, 0
      %p82 = por %p80, %p81
      %p83 = scmp.ne.s32.totalorder %s75, %s77
      %p84 = scmp.eq.s32.totalorder %s25, 1
      %p85 = por %p83, %p84
      %p86 = scmp.ne.s32.totalorder %s77, %s78
      %p87 = scmp.eq.s32.totalorder %s25, 0
      %p88 = por %p86, %p87
      %p89 = scmp.ne.s32.totalorder %s77, %s78
      %p90 = scmp.eq.s32.totalorder %s26, 1
      %p91 = por %p89, %p90
      %p93 = scmp.ne.s32.totalorder %s78, %s92
      %p94 = scmp.eq.s32.totalorder %s26, 0
      %p95 = por %p93, %p94
      %s97 = sadd.s32 %s96, 1
      %p100 = scmp.eq.s32.totalorder %s20, 1
      %p101 = scmp.ne.s32.totalorder %s96, %s98
      %p102 = scmp.eq.s32.totalorder %s20, 0
      %p103 = por %p101, %p102
      %p104 = scmp.ne.s32.totalorder %s96, %s98
      %p105 = scmp.eq.s32.totalorder %s25, 1
      %p106 = por %p104, %p105
      %p107 = scmp.ne.s32.totalorder %s98, %s99
      %p108 = scmp.eq.s32.totalorder %s25, 0
      %p109 = por %p107, %p108
      %p110 = scmp.ne.s32.totalorder %s98, %s99
      %p111 = scmp.eq.s32.totalorder %s26, 1
      %p112 = por %p110, %p111
      %p114 = scmp.ne.s32.totalorder %s99, %s113
      %p115 = scmp.eq.s32.totalorder %s26, 0
      %p116 = por %p114, %p115
      %s118 = sadd.s32 %s117, 1
      %p121 = scmp.eq.s32.totalorder %s20, 1
      %p122 = scmp.ne.s32.totalorder %s117, %s119
      %p123 = scmp.eq.s32.totalorder %s20, 0
      %p124 = por %p122, %p123
      %p125 = scmp.ne.s32.totalorder %s117, %s119
      %p126 = scmp.eq.s32.totalorder %s25, 1
      %p127 = por %p125, %p126
      %p128 = scmp.ne.s32.totalorder %s119, %s120
      %p129 = scmp.eq.s32.totalorder %s25, 0
      %p130 = por %p128, %p129
      %p131 = scmp.ne.s32.totalorder %s119, %s120
      %p132 = scmp.eq.s32.totalorder %s26, 1
      %p133 = por %p131, %p132
      %p135 = scmp.ne.s32.totalorder %s120, %s134
      %p136 = scmp.eq.s32.totalorder %s26, 0
      %p137 = por %p135, %p136
      %s139 = sadd.s32 %s138, 1
      %p142 = scmp.eq.s32.totalorder %s20, 1
      %p143 = scmp.ne.s32.totalorder %s138, %s140
      %p144 = scmp.eq.s32.totalorder %s20, 0
      %p145 = por %p143, %p144
      %p146 = scmp.ne.s32.totalorder %s138, %s140
      %p147 = scmp.eq.s32.totalorder %s25, 1
      %p148 = por %p146, %p147
      %p149 = scmp.ne.s32.totalorder %s140, %s141
      %p150 = scmp.eq.s32.totalorder %s25, 0
      %p151 = por %p149, %p150
      %p152 = scmp.ne.s32.totalorder %s140, %s141
      %p153 = scmp.eq.s32.totalorder %s26, 1
      %p154 = por %p152, %p153
      %p156 = scmp.ne.s32.totalorder %s141, %s155
      %p157 = scmp.eq.s32.totalorder %s26, 0
      %p158 = por %p156, %p157
      %s160 = sadd.s32 %s159, 1
      %p163 = scmp.eq.s32.totalorder %s20, 1
      %p164 = scmp.ne.s32.totalorder %s159, %s161
      %p165 = scmp.eq.s32.totalorder %s20, 0
      %p166 = por %p164, %p165
      %p167 = scmp.ne.s32.totalorder %s159, %s161
      %p168 = scmp.eq.s32.totalorder %s25, 1
      %p169 = por %p167, %p168
      %p170 = scmp.ne.s32.totalorder %s161, %s162
      %p171 = scmp.eq.s32.totalorder %s25, 0
      %p172 = por %p170, %p171
      %p173 = scmp.ne.s32.totalorder %s161, %s162
      %p174 = scmp.eq.s32.totalorder %s26, 1
      %p175 = por %p173, %p174
      %p177 = scmp.ne.s32.totalorder %s162, %s176
      %p178 = scmp.eq.s32.totalorder %s26, 0
      %p179 = por %p177, %p178
      %s181 = sadd.s32 %s180, 1
      %p184 = scmp.eq.s32.totalorder %s20, 1
      %p185 = scmp.ne.s32.totalorder %s180, %s182
      %p186 = scmp.eq.s32.totalorder %s20, 0
      %p187 = por %p185, %p186
      %p188 = scmp.ne.s32.totalorder %s180, %s182
      %p189 = scmp.eq.s32.totalorder %s25, 1
      %p190 = por %p188, %p189
      %p191 = scmp.ne.s32.totalorder %s182, %s183
      %p192 = scmp.eq.s32.totalorder %s25, 0
      %p193 = por %p191, %p192
      %p194 = scmp.ne.s32.totalorder %s182, %s183
      %p195 = scmp.eq.s32.totalorder %s26, 1
      %p196 = por %p194, %p195
      %p198 = scmp.ne.s32.totalorder %s183, %s197
      %p199 = scmp.eq.s32.totalorder %s26, 0
      %p200 = por %p198, %p199
      %s202 = sadd.s32 %s201, 1
      %p205 = scmp.eq.s32.totalorder %s20, 1
      %p206 = scmp.ne.s32.totalorder %s201, %s203
      %p207 = scmp.eq.s32.totalorder %s20, 0
      %p208 = por %p206, %p207
      %p209 = scmp.ne.s32.totalorder %s201, %s203
      %p210 = scmp.eq.s32.totalorder %s25, 1
      %p211 = por %p209, %p210
      %p212 = scmp.ne.s32.totalorder %s203, %s204
      %p213 = scmp.eq.s32.totalorder %s25, 0
      %p214 = por %p212, %p213
      %p215 = scmp.ne.s32.totalorder %s203, %s204
      %p216 = scmp.eq.s32.totalorder %s26, 1
      %p217 = por %p215, %p216
      %p219 = scmp.ne.s32.totalorder %s204, %s218
      %p220 = scmp.eq.s32.totalorder %s26, 0
      %p221 = por %p219, %p220
      %s223 = sadd.s32 %s222, 1
      %p226 = scmp.eq.s32.totalorder %s20, 1
      %p227 = scmp.ne.s32.totalorder %s222, %s224
      %p228 = scmp.eq.s32.totalorder %s20, 0
      %p229 = por %p227, %p228
      %p230 = scmp.ne.s32.totalorder %s222, %s224
      %p231 = scmp.eq.s32.totalorder %s25, 1
      %p232 = por %p230, %p231
      %p233 = scmp.ne.s32.totalorder %s224, %s225
      %p234 = scmp.eq.s32.totalorder %s25, 0
      %p235 = por %p233, %p234
      %p236 = scmp.ne.s32.totalorder %s224, %s225
      %p237 = scmp.eq.s32.totalorder %s26, 1
      %p238 = por %p236, %p237
      %p240 = scmp.ne.s32.totalorder %s225, %s239
      %p241 = scmp.eq.s32.totalorder %s26, 0
      %p242 = por %p240, %p241
      %s244 = sadd.s32 %s243, 1
      %p247 = scmp.eq.s32.totalorder %s20, 1
      %p248 = scmp.ne.s32.totalorder %s243, %s245
      %p249 = scmp.eq.s32.totalorder %s20, 0
      %p250 = por %p248, %p249
      %p251 = scmp.ne.s32.totalorder %s243, %s245
      %p252 = scmp.eq.s32.totalorder %s25, 1
      %p253 = por %p251, %p252
      %p254 = scmp.ne.s32.totalorder %s245, %s246
      %p255 = scmp.eq.s32.totalorder %s25, 0
      %p256 = por %p254, %p255
      %p257 = scmp.ne.s32.totalorder %s245, %s246
      %p258 = scmp.eq.s32.totalorder %s26, 1
      %p259 = por %p257, %p258
      %p261 = scmp.ne.s32.totalorder %s246, %s260
      %p262 = scmp.eq.s32.totalorder %s26, 0
      %p263 = por %p261, %p262
      %s264 = ssub.s32 %s20, %s27
      %p265 = scmp.eq.s32.totalorder %s264, 0
      %s267 = sadd.s32 %s266, 1
      %s268 = scalar_select %p265, %s266, %s267
      %p271 = pneg %p265
      %p272 = scmp.eq.s32.totalorder %s20, 1
      %p273 = por %p271, %p272
      %p274 = scmp.ne.s32.totalorder %s266, %s269
      %p275 = scmp.eq.s32.totalorder %s20, 0
      %p276 = por %p274, %p275
      %p277 = scmp.ne.s32.totalorder %s266, %s269
      %p278 = scmp.eq.s32.totalorder %s25, 1
      %p279 = por %p277, %p278
      %p280 = scmp.ne.s32.totalorder %s269, %s270
      %p281 = scmp.eq.s32.totalorder %s25, 0
      %p282 = por %p280, %p281
      %p283 = scmp.ne.s32.totalorder %s269, %s270
      %p284 = scmp.eq.s32.totalorder %s26, 1
      %p285 = por %p283, %p284
      %p287 = scmp.ne.s32.totalorder %s270, %s286
      %p288 = scmp.eq.s32.totalorder %s26, 0
      %p289 = por %p287, %p288
      %p290 = scmp.le.s32.totalorder 1, %s20
      %p291 = scmp.lt.s32.totalorder %s20, 3
      %p292 = pnand %p290, %p291
      %p293 = pneg %p292
      // Predicated region
      $region9: #{tpu_custom_call.1} parent=5 // pred_check
        _
      $region10: #{tpu_custom_call.1} parent=5 // pred_check_branch
        %295 = sbr.rel (%p292) target = $region12
      $region11: #{tpu_custom_call.1} parent=5 // pred_region
        %s296 = ssub.s32 %s20, 1
        // Predicated region
        $region13: #{tpu_custom_call.1} parent=11 // pred_check
          %p297 = pneg %p67
        $region14: #{tpu_custom_call.1} parent=11 // pred_check_branch
          %299 = sbr.rel (%p297) target = $region16
        $region15: #{tpu_custom_call.1} parent=11 // pred_region
          _
        $region16: #{tpu_custom_call.1} parent=11 // pred_fallthru
          _
        // Predicated region
        $region17: #{tpu_custom_call.1} parent=11 // pred_check
          %p300 = pneg %p88
        $region18: #{tpu_custom_call.1} parent=11 // pred_check_branch
          %302 = sbr.rel (%p300) target = $region20
        $region19: #{tpu_custom_call.1} parent=11 // pred_region
          _
        $region20: #{tpu_custom_call.1} parent=11 // pred_fallthru
          _
        // Predicated region
        $region21: #{tpu_custom_call.1} parent=11 // pred_check
          %p303 = pneg %p109
        $region22: #{tpu_custom_call.1} parent=11 // pred_check_branch
          %305 = sbr.rel (%p303) target = $region24
        $region23: #{tpu_custom_call.1} parent=11 // pred_region
          _
        $region24: #{tpu_custom_call.1} parent=11 // pred_fallthru
          _
        // Predicated region
        $region25: #{tpu_custom_call.1} parent=11 // pred_check
          %p306 = pneg %p130
        $region26: #{tpu_custom_call.1} parent=11 // pred_check_branch
          %308 = sbr.rel (%p306) target = $region28
        $region27: #{tpu_custom_call.1} parent=11 // pred_region
          _
        $region28: #{tpu_custom_call.1} parent=11 // pred_fallthru
          _
        // Predicated region
        $region29: #{tpu_custom_call.1} parent=11 // pred_check
          %p309 = pneg %p151
        $region30: #{tpu_custom_call.1} parent=11 // pred_check_branch
          %311 = sbr.rel (%p309) target = $region32
        $region31: #{tpu_custom_call.1} parent=11 // pred_region
          _
        $region32: #{tpu_custom_call.1} parent=11 // pred_fallthru
          _
        // Predicated region
        $region33: #{tpu_custom_call.1} parent=11 // pred_check
          %p312 = pneg %p172
        $region34: #{tpu_custom_call.1} parent=11 // pred_check_branch
          %314 = sbr.rel (%p312) target = $region36
        $region35: #{tpu_custom_call.1} parent=11 // pred_region
          _
        $region36: #{tpu_custom_call.1} parent=11 // pred_fallthru
          _
        // Predicated region
        $region37: #{tpu_custom_call.1} parent=11 // pred_check
          %p315 = pneg %p193
        $region38: #{tpu_custom_call.1} parent=11 // pred_check_branch
          %317 = sbr.rel (%p315) target = $region40
        $region39: #{tpu_custom_call.1} parent=11 // pred_region
          _
        $region40: #{tpu_custom_call.1} parent=11 // pred_fallthru
          _
        // Predicated region
        $region41: #{tpu_custom_call.1} parent=11 // pred_check
          %p318 = pneg %p214
        $region42: #{tpu_custom_call.1} parent=11 // pred_check_branch
          %320 = sbr.rel (%p318) target = $region44
        $region43: #{tpu_custom_call.1} parent=11 // pred_region
          _
        $region44: #{tpu_custom_call.1} parent=11 // pred_fallthru
          _
        // Predicated region
        $region45: #{tpu_custom_call.1} parent=11 // pred_check
          %p321 = pneg %p235
        $region46: #{tpu_custom_call.1} parent=11 // pred_check_branch
          %323 = sbr.rel (%p321) target = $region48
        $region47: #{tpu_custom_call.1} parent=11 // pred_region
          _
        $region48: #{tpu_custom_call.1} parent=11 // pred_fallthru
          _
        // Predicated region
        $region49: #{tpu_custom_call.1} parent=11 // pred_check
          %p324 = pneg %p256
        $region50: #{tpu_custom_call.1} parent=11 // pred_check_branch
          %326 = sbr.rel (%p324) target = $region52
        $region51: #{tpu_custom_call.1} parent=11 // pred_region
          _
        $region52: #{tpu_custom_call.1} parent=11 // pred_fallthru
          _
      $region12: #{tpu_custom_call.1} parent=5 // pred_fallthru
        _
      %p327 = scmp.lt.s32.totalorder %s20, 2
      // Predicated region
      $region53: #{tpu_custom_call.1} parent=5 // pred_check
        %p328 = pneg %p327
      $region54: #{tpu_custom_call.1} parent=5 // pred_check_branch
        %330 = sbr.rel (%p328) target = $region56
      $region55: #{tpu_custom_call.1} parent=5 // pred_region
        // Predicated region
        $region57: #{tpu_custom_call.1} parent=55 // pred_check
          %p331 = pneg %p40
        $region58: #{tpu_custom_call.1} parent=55 // pred_check_branch
          %333 = sbr.rel (%p331) target = $region60
        $region59: #{tpu_custom_call.1} parent=55 // pred_region
          %p334 = scmp.lt.s32.totalorder %s20, 1
          %s335 = scalar_select %p334, %s20, 1
          %s336 = smul.addr %s335, 8
          %s337 = smul.addr %s336, 8
          %s338 = scalar_lea.vmem %s0, %s337
        $region60: #{tpu_custom_call.1} parent=55 // pred_fallthru
          _
      $region56: #{tpu_custom_call.1} parent=5 // pred_fallthru
        _
      %p339 = scmp.le.s32.totalorder 1, %s20
      %p340 = scmp.lt.s32.totalorder %s20, 3
      %p341 = pnand %p339, %p340
      %p342 = pneg %p341
      // Predicated region
      $region61: #{tpu_custom_call.1} parent=5 // pred_check
        _
      $region62: #{tpu_custom_call.1} parent=5 // pred_check_branch
        %344 = sbr.rel (%p341) target = $region64
      $region63: #{tpu_custom_call.1} parent=5 // pred_region
        %s345 = ssub.s32 %s20, 1
        %p346 = scmp.lt.s32.totalorder %s25, 1
        %s347 = scalar_select %p346, %s25, 1
        %s348 = smul.addr %s347, 8
        %s349 = smul.addr %s348, 8
        %s350 = scalar_lea.vmem %s0, %s349
        %p351 = pneg %p46
        %p352 = pneg %p43
        %p353 = pneg %p67
        %p354 = pneg %p64
        %p355 = pneg %p88
        %p356 = pneg %p85
        %p357 = pneg %p109
        %p358 = pneg %p106
        %p359 = pneg %p130
        %p360 = pneg %p127
        %p361 = pneg %p151
        %p362 = pneg %p148
        %p363 = pneg %p172
        %p364 = pneg %p169
        %p365 = pneg %p193
        %p366 = pneg %p190
        %p367 = pneg %p214
        %p368 = pneg %p211
        %p369 = pneg %p235
        %p370 = pneg %p232
        %p371 = pneg %p256
        %p372 = pneg %p253
        %p373 = pneg %p282
        %p374 = pneg %p279
        %s375 = sand.u32 %s269, 1
        %s376 = scalar_lea.sflag [#allocation4], %s375
        %s377 = sand.u32 %s269, 1
        %s378 = smul.addr %s377, 256
        %s379 = scalar_lea.vmem [#allocation3], %s378
        %p380 = scmp.lt.s32.totalorder %s25, 1
        %s381 = scalar_select %p380, %s25, 1
        %s382 = smul.addr %s381, 8
        %s383 = smul.addr %s382, 8
        %s384 = scalar_lea.vmem %s0, %s383
        %v386 = vlaneseq
        %v387 = vand.u32 %v386, 127
        %v388 = vadd.s32 %v387, 128
        %v389 = vcvt.s32.f32 %v387
        %v390 = vcvt.s32.f32 %v388
        %v391 = vadd.f32 %v389, 0.5
        %v392 = vadd.f32 %v390, 0.5
        %v393 = vmul.f32 %v391, 0.0625
        %v394 = vmul.f32 %v392, 0.0625
        %v395 = vfloor.f32 %v393
        %v396 = vfloor.f32 %v394
        %v397 = vmul.f32 %v395, 16.0
        %v398 = vmul.f32 %v396, 16.0
        %v399 = vsub.f32 %v389, %v397
        %v400 = vsub.f32 %v390, %v398
        %vm401 = vcmp.ge.f32.partialorder %v399, 0.5
        %vm402 = vcmp.ge.f32.partialorder %v400, 0.5
        %v403 = vsel %vm401, 1.0, 0.0
        %v404 = vsel %vm402, 1.0, 0.0
        %v405 = vpack.c.bf16 %v403, %v403
        %v406 = vpack.c.bf16 %v404, %v404
        %vm407 = vcmp.le.f32.partialorder %v399, 14.5
        %vm408 = vcmp.le.f32.partialorder %v400, 14.5
        %v409 = vsel %vm407, 1.0, 0.0
        %v410 = vsel %vm408, 1.0, 0.0
        %v411 = vpack.c.bf16 %v409, %v409
        %v412 = vpack.c.bf16 %v410, %v410
        %413 = vst [vmem:[#allocation2] sm:$0xff] 0
        %vm414 = vcmask 273408
        %415 = vst.msk [vmem:[#allocation2 + $0x8] sm:$0xf] %vm414, 0
        %416 = vst [vmem:[#allocation2 + $0xc] sm:$0xff] 0
        %417 = vst.msk [vmem:[#allocation2 + $0x14] sm:$0xf] %vm414, 0
        %418 = vst [vmem:[#allocation2 + $0x18] sm:$0xff] 0
        %419 = vst.msk [vmem:[#allocation2 + $0x20] sm:$0xf] %vm414, 0
        %420 = vst [vmem:[#allocation2 + $0x24] sm:$0xff] 0
        %421 = vst.msk [vmem:[#allocation2 + $0x2c] sm:$0xf] %vm414, 0
        %422 = vst [vmem:[#allocation2 + $0x30] sm:$0xff] 0
        %423 = vst.msk [vmem:[#allocation2 + $0x38] sm:$0xf] %vm414, 0
        %424 = vst [vmem:[#allocation2 + $0x3c] sm:$0xff] 0
        %425 = vst.msk [vmem:[#allocation2 + $0x44] sm:$0xf] %vm414, 0
        %426 = vst [vmem:[#allocation2 + $0x48] sm:$0xff] 0
        %427 = vst.msk [vmem:[#allocation2 + $0x50] sm:$0xf] %vm414, 0
        %428 = vst [vmem:[#allocation2 + $0x54] sm:$0xff] 0
        %429 = vst.msk [vmem:[#allocation2 + $0x5c] sm:$0xf] %vm414, 0
        %v430 = vld [vmem:[%s384] sm:$0xff]
        %v431 = vld [vmem:[%s384 + $0x8] sm:$0xff]
        %v432 = vld [vmem:[%s384 + $0x10] sm:$0xff]
        %v433 = vld [vmem:[%s384 + $0x18] sm:$0xff]
        %v434 = vld [vmem:[%s384 + $0x20] sm:$0xff]
        %v435 = vld [vmem:[%s384 + $0x28] sm:$0xff]
        %v436 = vld [vmem:[%s384 + $0x30] sm:$0xff]
        %v437 = vld [vmem:[%s384 + $0x38] sm:$0xff]
        %v438 = vpack.c.bf16 %v432, %v430
        %v439 = vpack.c.bf16 %v433, %v431
        %v440 = vpack.c.bf16 %v436, %v434
        %v441 = vpack.c.bf16 %v437, %v435
        %v446 = vunpack.c.l.b16 %v438
        %v447 = vunpack.c.l.b16 %v439
        %v448 = vunpack.c.h.b16 %v438
        %v449 = vunpack.c.h.b16 %v439
        %v450 = vunpack.c.l.b16 %v440
        %v451 = vunpack.c.l.b16 %v441
        %v452 = vunpack.c.h.b16 %v440
        %v453 = vunpack.c.h.b16 %v441
        %v454 = vpack.c.b16 %v447, %v446
        %v455 = vpack.c.b16 %v449, %v448
        %v456 = vpack.c.b16 %v451, %v450
        %v457 = vpack.c.b16 %v453, %v452
        %458 = vrot.lane.b32.xlu0 %v454, 17
        %v459 = vpop.permute.xlu0 %458
        %460 = vrot.lane.b32.xlu0 %v455, 17
        %v461 = vpop.permute.xlu0 %460
        %462 = vrot.lane.b32.xlu0 %v456, 17
        %v463 = vpop.permute.xlu0 %462
        %464 = vrot.lane.b32.xlu0 %v457, 17
        %v465 = vpop.permute.xlu0 %464
        %v466 = vrot.slane %v459, 4
        %v467 = vrot.slane %v461, 4
        %v468 = vrot.slane %v463, 4
        %v469 = vrot.slane %v465, 4
        %vm470 = vcmask 138240
        %v471 = vsel %vm470, %v466, %v459
        %v472 = vsel %vm470, %v467, %v461
        %v473 = vsel %vm470, %v468, %v463
        %v474 = vsel %vm470, %v469, %v465
        %vm483 = vcmask 1043592
        %vm484 = vcmask 1047556
        %vm485 = vmor %vm484, %vm483
        %486 = vst.msk [vmem:[#allocation2] sm:$0xff] %vm485, %v471
        %vm487 = vcmask 134144
        %488 = vst.msk [vmem:[#allocation2 + $0x8] sm:$0xf] %vm487, %v466
        %489 = vst.msk [vmem:[#allocation2 + $0xc] sm:$0xff] %vm485, %v472
        %490 = vst.msk [vmem:[#allocation2 + $0x14] sm:$0xf] %vm487, %v467
        %491 = vst.msk [vmem:[#allocation2 + $0x18] sm:$0xff] %vm485, %v473
        %492 = vst.msk [vmem:[#allocation2 + $0x20] sm:$0xf] %vm487, %v468
        %493 = vst.msk [vmem:[#allocation2 + $0x24] sm:$0xff] %vm485, %v474
        %494 = vst.msk [vmem:[#allocation2 + $0x2c] sm:$0xf] %vm487, %v469
        %v495 = vld [vmem:[#allocation2] sm:$0xff]
        %v496 = vld [vmem:[#allocation2 + $0xc] sm:$0xff]
        %v497 = vld [vmem:[#allocation2 + $0x18] sm:$0xff]
        %v498 = vld [vmem:[#allocation2 + $0x24] sm:$0xff]
        %v501 = vunpack.c.l.b16 %v405
        %v502 = vunpack.c.l.b16 %v406
        %v503 = vpack.c.b16 %v502, %v501
        %v505 = vmul.bf16 %v495, %v503
        %v506 = vmul.bf16 %v496, %v503
        %v507 = vmul.bf16 %v497, %v503
        %v508 = vmul.bf16 %v498, %v503
        %v509 = vld [vmem:[%s1] sm:$0xf]
        %v510 = vld [vmem:[%s1 + $0x4] sm:$0xf]
        %v511 = vld [vmem:[%s1 + $0x8] sm:$0xf]
        %v512 = vld [vmem:[%s1 + $0xc] sm:$0xf]
        %v513 = vld [vmem:[%s1 + $0x10] sm:$0xf]
        %v514 = vld [vmem:[%s1 + $0x14] sm:$0xf]
        %v515 = vld [vmem:[%s1 + $0x18] sm:$0xf]
        %v516 = vld [vmem:[%s1 + $0x1c] sm:$0xf]
        %v517 = vld [vmem:[%s1 + $0x20] sm:$0xf]
        %v518 = vld [vmem:[%s1 + $0x24] sm:$0xf]
        %v519 = vld [vmem:[%s1 + $0x28] sm:$0xf]
        %v520 = vld [vmem:[%s1 + $0x2c] sm:$0xf]
        %v521 = vld [vmem:[%s1 + $0x30] sm:$0xf]
        %v522 = vld [vmem:[%s1 + $0x34] sm:$0xf]
        %v523 = vld [vmem:[%s1 + $0x38] sm:$0xf]
        %v524 = vld [vmem:[%s1 + $0x3c] sm:$0xf]
        %v525 = vld [vmem:[#allocation2 + $0x8] sm:$0xf]
        %v526 = vld [vmem:[#allocation2 + $0x14] sm:$0xf]
        %v527 = vld [vmem:[#allocation2 + $0x20] sm:$0xf]
        %v528 = vld [vmem:[#allocation2 + $0x2c] sm:$0xf]
        %s529 = scalar_lea.vmem %s1, 64
        %v530 = vld [vmem:[%s529] sm:$0xf]
        %v531 = vld [vmem:[%s529 + $0x4] sm:$0xf]
        %v532 = vld [vmem:[%s529 + $0x8] sm:$0xf]
        %v533 = vld [vmem:[%s529 + $0xc] sm:$0xf]
        %v534 = vld [vmem:[%s529 + $0x10] sm:$0xf]
        %v535 = vld [vmem:[%s529 + $0x14] sm:$0xf]
        %v536 = vld [vmem:[%s529 + $0x18] sm:$0xf]
        %v537 = vld [vmem:[%s529 + $0x1c] sm:$0xf]
        %v538 = vld [vmem:[%s529 + $0x20] sm:$0xf]
        %v539 = vld [vmem:[%s529 + $0x24] sm:$0xf]
        %v540 = vld [vmem:[%s529 + $0x28] sm:$0xf]
        %v541 = vld [vmem:[%s529 + $0x2c] sm:$0xf]
        %v542 = vld [vmem:[%s529 + $0x30] sm:$0xf]
        %v543 = vld [vmem:[%s529 + $0x34] sm:$0xf]
        %v544 = vld [vmem:[%s529 + $0x38] sm:$0xf]
        %v545 = vld [vmem:[%s529 + $0x3c] sm:$0xf]
        %v562 = vunpack.c.l.b16 %v530
        %v563 = vunpack.c.l.b16 %v531
        %v564 = vunpack.c.l.b16 %v532
        %v565 = vunpack.c.l.b16 %v533
        %v566 = vunpack.c.l.b16 %v534
        %v567 = vunpack.c.l.b16 %v535
        %v568 = vunpack.c.l.b16 %v536
        %v569 = vunpack.c.l.b16 %v537
        %v570 = vunpack.c.l.b16 %v538
        %v571 = vunpack.c.l.b16 %v539
        %v572 = vunpack.c.l.b16 %v540
        %v573 = vunpack.c.l.b16 %v541
        %v574 = vunpack.c.l.b16 %v542
        %v575 = vunpack.c.l.b16 %v543
        %v576 = vunpack.c.l.b16 %v544
        %v577 = vunpack.c.l.b16 %v545
        %v578 = vpack.c.b16 %v563, %v562
        %v579 = vpack.c.b16 %v565, %v564
        %v580 = vpack.c.b16 %v567, %v566
        %v581 = vpack.c.b16 %v569, %v568
        %v582 = vpack.c.b16 %v571, %v570
        %v583 = vpack.c.b16 %v573, %v572
        %v584 = vpack.c.b16 %v575, %v574
        %v585 = vpack.c.b16 %v577, %v576
        %v594 = vunpack.c.l.b16 %v495
        %v595 = vunpack.c.h.b16 %v495
        %v596 = vunpack.c.l.b16 %v525
        %v597 = vunpack.c.l.b16 %v496
        %v598 = vunpack.c.h.b16 %v496
        %v599 = vunpack.c.l.b16 %v526
        %v600 = vunpack.c.l.b16 %v497
        %v601 = vunpack.c.h.b16 %v497
        %v602 = vunpack.c.l.b16 %v527
        %v603 = vunpack.c.l.b16 %v498
        %v604 = vunpack.c.h.b16 %v498
        %v605 = vunpack.c.l.b16 %v528
        %v606 = vpack.c.b16 %v597, %v594
        %v607 = vpack.c.b16 %v598, %v595
        %v608 = vpack.c.b16 %v599, %v596
        %v609 = vpack.c.b16 %v603, %v600
        %v610 = vpack.c.b16 %v604, %v601
        %v611 = vpack.c.b16 %v605, %v602
        %612 = vrot.lane.b32.xlu0 %v606, 127
        %v613 = vpop.permute.xlu0 %612
        %614 = vrot.lane.b32.xlu0 %v607, 127
        %v615 = vpop.permute.xlu0 %614
        %616 = vrot.lane.b32.xlu0 %v608, 127
        %v617 = vpop.permute.xlu0 %616
        %618 = vrot.lane.b32.xlu0 %v609, 127
        %v619 = vpop.permute.xlu0 %618
        %620 = vrot.lane.b32.xlu0 %v610, 127
        %v621 = vpop.permute.xlu0 %620
        %622 = vrot.lane.b32.xlu0 %v611, 127
        %v623 = vpop.permute.xlu0 %622
        %vm624 = vcmask 1039360
        %v625 = vsel %vm624, %v613, %v615
        %v626 = vsel %vm624, %v615, %v617
        %v627 = vsel %vm624, %v619, %v621
        %v628 = vsel %vm624, %v621, %v623
        %vm633 = vcmask 261120
        %v635 = vsel %vm633, %v578, 0
        %v638 = vsel %vm633, %v579, 0
        %v641 = vsel %vm633, %v580, 0
        %v644 = vsel %vm633, %v581, 0
        %v647 = vsel %vm633, %v582, 0
        %v650 = vsel %vm633, %v583, 0
        %v653 = vsel %vm633, %v584, 0
        %v656 = vsel %vm633, %v585, 0
        %658 = vmatprep.subr.bf16.mxu0 0
        %659 = vmatpush1.bf16.msra.mxu0 0
        %660 = vmatprep.subr.bf16.mxu0 0
        %661 = vmatpush1.bf16.msra.mxu0 0
        %662 = vmatprep.subr.bf16.mxu0 0
        %663 = vmatpush1.bf16.msra.mxu0 0
        %664 = vmatprep.subr.bf16.mxu0 0
        %665 = vmatpush1.bf16.msra.mxu0 0
        %666 = vmatprep.subr.bf16.mxu0 0
        %667 = vmatpush1.bf16.msra.mxu0 0
        %668 = vmatprep.subr.bf16.mxu0 0
        %669 = vmatpush1.bf16.msra.mxu0 0
        %670 = vmatprep.subr.bf16.mxu0 %v628
        %671 = vmatpush1.bf16.msra.mxu0 %v627
        %672 = vmatprep.subr.bf16.mxu0 %v626
        %673 = vmatpush1.bf16.msra.mxu0 %v625
        %674 = vmatprep.subr.bf16.mxu0 0
        %675 = vmatpush2.bf16.msra.mxu0 0
        %676 = vmatprep.subr.bf16.mxu0 0
        %677 = vmatpush2.bf16.msra.mxu0 0
        %678 = vmatprep.subr.bf16.mxu0 0
        %679 = vmatpush2.bf16.msra.mxu0 0
        %680 = vmatprep.subr.bf16.mxu0 0
        %681 = vmatpush2.bf16.msra.mxu0 0
        %682 = vmatprep.subr.bf16.mxu0 0
        %683 = vmatpush2.bf16.msra.mxu0 0
        %684 = vmatprep.subr.bf16.mxu0 0
        %685 = vmatpush2.bf16.msra.mxu0 0
        %686 = vmatprep.subr.bf16.mxu0 0
        %687 = vmatpush2.bf16.msra.mxu0 0
        %688 = vmatprep.subr.bf16.mxu0 0
        %689 = vmatpush2.bf16.msra.mxu0 0
        %690 = vmatprep.mubr.bf16.mxu0 0
        %691 = vmatmul.mubr.bf16.gmra.mxu0 %v635
        %v692 = vpop.f32.mrf.mxu0
        %v693 = vadd.f32 0.0, %v692
        %v694 = vpop.f32.mrf.mxu0
        %v695 = vadd.f32 0.0, %v694
        %v696 = vpop.f32.mrf.mxu0
        %v697 = vadd.f32 0.0, %v696
        %v698 = vpop.f32.mrf.mxu0
        %v699 = vadd.f32 0.0, %v698
        %700 = vmatprep.mubr.bf16.mxu0 0
        %701 = vmatmul.mubr.bf16.gmra.mxu0 %v638
        %v702 = vpop.f32.mrf.mxu0
        %v703 = vadd.f32 0.0, %v702
        %v704 = vpop.f32.mrf.mxu0
        %v705 = vadd.f32 0.0, %v704
        %v706 = vpop.f32.mrf.mxu0
        %v707 = vadd.f32 0.0, %v706
        %v708 = vpop.f32.mrf.mxu0
        %v709 = vadd.f32 0.0, %v708
        %710 = vmatprep.mubr.bf16.mxu0 0
        %711 = vmatmul.mubr.bf16.gmra.mxu0 %v641
        %v712 = vpop.f32.mrf.mxu0
        %v713 = vadd.f32 0.0, %v712
        %v714 = vpop.f32.mrf.mxu0
        %v715 = vadd.f32 0.0, %v714
        %v716 = vpop.f32.mrf.mxu0
        %v717 = vadd.f32 0.0, %v716
        %v718 = vpop.f32.mrf.mxu0
        %v719 = vadd.f32 0.0, %v718
        %720 = vmatprep.mubr.bf16.mxu0 0
        %721 = vmatmul.mubr.bf16.gmra.mxu0 %v644
        %v722 = vpop.f32.mrf.mxu0
        %v723 = vadd.f32 0.0, %v722
        %v724 = vpop.f32.mrf.mxu0
        %v725 = vadd.f32 0.0, %v724
        %v726 = vpop.f32.mrf.mxu0
        %v727 = vadd.f32 0.0, %v726
        %v728 = vpop.f32.mrf.mxu0
        %v729 = vadd.f32 0.0, %v728
        %730 = vmatprep.mubr.bf16.mxu0 0
        %731 = vmatmul.mubr.bf16.gmra.mxu0 %v647
        %v732 = vpop.f32.mrf.mxu0
        %v733 = vadd.f32 0.0, %v732
        %v734 = vpop.f32.mrf.mxu0
        %v735 = vadd.f32 0.0, %v734
        %v736 = vpop.f32.mrf.mxu0
        %v737 = vadd.f32 0.0, %v736
        %v738 = vpop.f32.mrf.mxu0
        %v739 = vadd.f32 0.0, %v738
        %740 = vmatprep.mubr.bf16.mxu0 0
        %741 = vmatmul.mubr.bf16.gmra.mxu0 %v650
        %v742 = vpop.f32.mrf.mxu0
        %v743 = vadd.f32 0.0, %v742
        %v744 = vpop.f32.mrf.mxu0
        %v745 = vadd.f32 0.0, %v744
        %v746 = vpop.f32.mrf.mxu0
        %v747 = vadd.f32 0.0, %v746
        %v748 = vpop.f32.mrf.mxu0
        %v749 = vadd.f32 0.0, %v748
        %750 = vmatprep.mubr.bf16.mxu0 0
        %751 = vmatmul.mubr.bf16.gmra.mxu0 %v653
        %v752 = vpop.f32.mrf.mxu0
        %v753 = vadd.f32 0.0, %v752
        %v754 = vpop.f32.mrf.mxu0
        %v755 = vadd.f32 0.0, %v754
        %v756 = vpop.f32.mrf.mxu0
        %v757 = vadd.f32 0.0, %v756
        %v758 = vpop.f32.mrf.mxu0
        %v759 = vadd.f32 0.0, %v758
        %760 = vmatprep.mubr.bf16.mxu0 0
        %761 = vmatmul.mubr.bf16.gmra.mxu0 %v656
        %v762 = vpop.f32.mrf.mxu0
        %v763 = vadd.f32 0.0, %v762
        %v764 = vpop.f32.mrf.mxu0
        %v765 = vadd.f32 0.0, %v764
        %v766 = vpop.f32.mrf.mxu0
        %v767 = vadd.f32 0.0, %v766
        %v768 = vpop.f32.mrf.mxu0
        %v769 = vadd.f32 0.0, %v768
        %770 = vdwg.mxu0
        %v787 = vunpack.c.l.b16 %v509
        %v788 = vunpack.c.l.b16 %v510
        %v789 = vunpack.c.l.b16 %v511
        %v790 = vunpack.c.l.b16 %v512
        %v791 = vunpack.c.l.b16 %v513
        %v792 = vunpack.c.l.b16 %v514
        %v793 = vunpack.c.l.b16 %v515
        %v794 = vunpack.c.l.b16 %v516
        %v795 = vunpack.c.l.b16 %v517
        %v796 = vunpack.c.l.b16 %v518
        %v797 = vunpack.c.l.b16 %v519
        %v798 = vunpack.c.l.b16 %v520
        %v799 = vunpack.c.l.b16 %v521
        %v800 = vunpack.c.l.b16 %v522
        %v801 = vunpack.c.l.b16 %v523
        %v802 = vunpack.c.l.b16 %v524
        %v803 = vpack.c.b16 %v788, %v787
        %v804 = vpack.c.b16 %v790, %v789
        %v805 = vpack.c.b16 %v792, %v791
        %v806 = vpack.c.b16 %v794, %v793
        %v807 = vpack.c.b16 %v796, %v795
        %v808 = vpack.c.b16 %v798, %v797
        %v809 = vpack.c.b16 %v800, %v799
        %v810 = vpack.c.b16 %v802, %v801
        %v815 = vunpack.c.l.b16 %v505
        %v816 = vunpack.c.h.b16 %v505
        %v817 = vunpack.c.l.b16 %v506
        %v818 = vunpack.c.h.b16 %v506
        %v819 = vunpack.c.l.b16 %v507
        %v820 = vunpack.c.h.b16 %v507
        %v821 = vunpack.c.l.b16 %v508
        %v822 = vunpack.c.h.b16 %v508
        %v823 = vpack.c.b16 %v817, %v815
        %v824 = vpack.c.b16 %v818, %v816
        %v825 = vpack.c.b16 %v821, %v819
        %v826 = vpack.c.b16 %v822, %v820
        %v832 = vsel %vm633, %v803, 0
        %v835 = vsel %vm633, %v804, 0
        %v838 = vsel %vm633, %v805, 0
        %v841 = vsel %vm633, %v806, 0
        %v844 = vsel %vm633, %v807, 0
        %v847 = vsel %vm633, %v808, 0
        %v850 = vsel %vm633, %v809, 0
        %v853 = vsel %vm633, %v810, 0
        %855 = vmatprep.subr.bf16.mxu0 0
        %856 = vmatpush1.bf16.msra.mxu0 0
        %857 = vmatprep.subr.bf16.mxu0 0
        %858 = vmatpush1.bf16.msra.mxu0 0
        %859 = vmatprep.subr.bf16.mxu0 0
        %860 = vmatpush1.bf16.msra.mxu0 0
        %861 = vmatprep.subr.bf16.mxu0 0
        %862 = vmatpush1.bf16.msra.mxu0 0
        %863 = vmatprep.subr.bf16.mxu0 0
        %864 = vmatpush1.bf16.msra.mxu0 0
        %865 = vmatprep.subr.bf16.mxu0 0
        %866 = vmatpush1.bf16.msra.mxu0 0
        %867 = vmatprep.subr.bf16.mxu0 %v826
        %868 = vmatpush1.bf16.msra.mxu0 %v825
        %869 = vmatprep.subr.bf16.mxu0 %v824
        %870 = vmatpush1.bf16.msra.mxu0 %v823
        %871 = vmatprep.subr.bf16.mxu0 0
        %872 = vmatpush2.bf16.msra.mxu0 0
        %873 = vmatprep.subr.bf16.mxu0 0
        %874 = vmatpush2.bf16.msra.mxu0 0
        %875 = vmatprep.subr.bf16.mxu0 0
        %876 = vmatpush2.bf16.msra.mxu0 0
        %877 = vmatprep.subr.bf16.mxu0 0
        %878 = vmatpush2.bf16.msra.mxu0 0
        %879 = vmatprep.subr.bf16.mxu0 0
        %880 = vmatpush2.bf16.msra.mxu0 0
        %881 = vmatprep.subr.bf16.mxu0 0
        %882 = vmatpush2.bf16.msra.mxu0 0
        %883 = vmatprep.subr.bf16.mxu0 0
        %884 = vmatpush2.bf16.msra.mxu0 0
        %885 = vmatprep.subr.bf16.mxu0 0
        %886 = vmatpush2.bf16.msra.mxu0 0
        %887 = vmatprep.mubr.bf16.mxu0 0
        %888 = vmatmul.mubr.bf16.gmra.mxu0 %v832
        %v889 = vpop.f32.mrf.mxu0
        %v890 = vadd.f32 %v693, %v889
        %v891 = vpop.f32.mrf.mxu0
        %v892 = vadd.f32 %v695, %v891
        %v893 = vpop.f32.mrf.mxu0
        %v894 = vadd.f32 %v697, %v893
        %v895 = vpop.f32.mrf.mxu0
        %v896 = vadd.f32 %v699, %v895
        %897 = vmatprep.mubr.bf16.mxu0 0
        %898 = vmatmul.mubr.bf16.gmra.mxu0 %v835
        %v899 = vpop.f32.mrf.mxu0
        %v900 = vadd.f32 %v703, %v899
        %v901 = vpop.f32.mrf.mxu0
        %v902 = vadd.f32 %v705, %v901
        %v903 = vpop.f32.mrf.mxu0
        %v904 = vadd.f32 %v707, %v903
        %v905 = vpop.f32.mrf.mxu0
        %v906 = vadd.f32 %v709, %v905
        %907 = vmatprep.mubr.bf16.mxu0 0
        %908 = vmatmul.mubr.bf16.gmra.mxu0 %v838
        %v909 = vpop.f32.mrf.mxu0
        %v910 = vadd.f32 %v713, %v909
        %v911 = vpop.f32.mrf.mxu0
        %v912 = vadd.f32 %v715, %v911
        %v913 = vpop.f32.mrf.mxu0
        %v914 = vadd.f32 %v717, %v913
        %v915 = vpop.f32.mrf.mxu0
        %v916 = vadd.f32 %v719, %v915
        %917 = vmatprep.mubr.bf16.mxu0 0
        %918 = vmatmul.mubr.bf16.gmra.mxu0 %v841
        %v919 = vpop.f32.mrf.mxu0
        %v920 = vadd.f32 %v723, %v919
        %v921 = vpop.f32.mrf.mxu0
        %v922 = vadd.f32 %v725, %v921
        %v923 = vpop.f32.mrf.mxu0
        %v924 = vadd.f32 %v727, %v923
        %v925 = vpop.f32.mrf.mxu0
        %v926 = vadd.f32 %v729, %v925
        %927 = vmatprep.mubr.bf16.mxu0 0
        %928 = vmatmul.mubr.bf16.gmra.mxu0 %v844
        %v929 = vpop.f32.mrf.mxu0
        %v930 = vadd.f32 %v733, %v929
        %v931 = vpop.f32.mrf.mxu0
        %v932 = vadd.f32 %v735, %v931
        %v933 = vpop.f32.mrf.mxu0
        %v934 = vadd.f32 %v737, %v933
        %v935 = vpop.f32.mrf.mxu0
        %v936 = vadd.f32 %v739, %v935
        %937 = vmatprep.mubr.bf16.mxu0 0
        %938 = vmatmul.mubr.bf16.gmra.mxu0 %v847
        %v939 = vpop.f32.mrf.mxu0
        %v940 = vadd.f32 %v743, %v939
        %v941 = vpop.f32.mrf.mxu0
        %v942 = vadd.f32 %v745, %v941
        %v943 = vpop.f32.mrf.mxu0
        %v944 = vadd.f32 %v747, %v943
        %v945 = vpop.f32.mrf.mxu0
        %v946 = vadd.f32 %v749, %v945
        %947 = vmatprep.mubr.bf16.mxu0 0
        %948 = vmatmul.mubr.bf16.gmra.mxu0 %v850
        %v949 = vpop.f32.mrf.mxu0
        %v950 = vadd.f32 %v753, %v949
        %v951 = vpop.f32.mrf.mxu0
        %v952 = vadd.f32 %v755, %v951
        %v953 = vpop.f32.mrf.mxu0
        %v954 = vadd.f32 %v757, %v953
        %v955 = vpop.f32.mrf.mxu0
        %v956 = vadd.f32 %v759, %v955
        %957 = vmatprep.mubr.bf16.mxu0 0
        %958 = vmatmul.mubr.bf16.gmra.mxu0 %v853
        %v959 = vpop.f32.mrf.mxu0
        %v960 = vadd.f32 %v763, %v959
        %v961 = vpop.f32.mrf.mxu0
        %v962 = vadd.f32 %v765, %v961
        %v963 = vpop.f32.mrf.mxu0
        %v964 = vadd.f32 %v767, %v963
        %v965 = vpop.f32.mrf.mxu0
        %v966 = vadd.f32 %v769, %v965
        %967 = vdwg.mxu0
        %v970 = vunpack.c.l.b16 %v411
        %v971 = vunpack.c.l.b16 %v412
        %v972 = vpack.c.b16 %v971, %v970
        %973 = vrot.lane.b32.xlu0 %v972, 2
        %v974 = vpop.permute.xlu0 %973
        %v975 = vrot.slane %v974, 4
        %vm976 = vcmask 15360
        %v977 = vsel %vm976, %v975, %v974
        %v980 = vmul.bf16 %v495, %v977
        %v981 = vmul.bf16 %v525, %v975
        %v982 = vmul.bf16 %v496, %v977
        %v983 = vmul.bf16 %v526, %v975
        %v984 = vmul.bf16 %v497, %v977
        %v985 = vmul.bf16 %v527, %v975
        %v986 = vmul.bf16 %v498, %v977
        %v987 = vmul.bf16 %v528, %v975
        %s988 = scalar_lea.vmem %s1, 128
        %v989 = vld [vmem:[%s988] sm:$0xf]
        %v990 = vld [vmem:[%s988 + $0x4] sm:$0xf]
        %v991 = vld [vmem:[%s988 + $0x8] sm:$0xf]
        %v992 = vld [vmem:[%s988 + $0xc] sm:$0xf]
        %v993 = vld [vmem:[%s988 + $0x10] sm:$0xf]
        %v994 = vld [vmem:[%s988 + $0x14] sm:$0xf]
        %v995 = vld [vmem:[%s988 + $0x18] sm:$0xf]
        %v996 = vld [vmem:[%s988 + $0x1c] sm:$0xf]
        %v997 = vld [vmem:[%s988 + $0x20] sm:$0xf]
        %v998 = vld [vmem:[%s988 + $0x24] sm:$0xf]
        %v999 = vld [vmem:[%s988 + $0x28] sm:$0xf]
        %v1000 = vld [vmem:[%s988 + $0x2c] sm:$0xf]
        %v1001 = vld [vmem:[%s988 + $0x30] sm:$0xf]
        %v1002 = vld [vmem:[%s988 + $0x34] sm:$0xf]
        %v1003 = vld [vmem:[%s988 + $0x38] sm:$0xf]
        %v1004 = vld [vmem:[%s988 + $0x3c] sm:$0xf]
        %v1021 = vunpack.c.l.b16 %v989
        %v1022 = vunpack.c.l.b16 %v990
        %v1023 = vunpack.c.l.b16 %v991
        %v1024 = vunpack.c.l.b16 %v992
        %v1025 = vunpack.c.l.b16 %v993
        %v1026 = vunpack.c.l.b16 %v994
        %v1027 = vunpack.c.l.b16 %v995
        %v1028 = vunpack.c.l.b16 %v996
        %v1029 = vunpack.c.l.b16 %v997
        %v1030 = vunpack.c.l.b16 %v998
        %v1031 = vunpack.c.l.b16 %v999
        %v1032 = vunpack.c.l.b16 %v1000
        %v1033 = vunpack.c.l.b16 %v1001
        %v1034 = vunpack.c.l.b16 %v1002
        %v1035 = vunpack.c.l.b16 %v1003
        %v1036 = vunpack.c.l.b16 %v1004
        %v1037 = vpack.c.b16 %v1022, %v1021
        %v1038 = vpack.c.b16 %v1024, %v1023
        %v1039 = vpack.c.b16 %v1026, %v1025
        %v1040 = vpack.c.b16 %v1028, %v1027
        %v1041 = vpack.c.b16 %v1030, %v1029
        %v1042 = vpack.c.b16 %v1032, %v1031
        %v1043 = vpack.c.b16 %v1034, %v1033
        %v1044 = vpack.c.b16 %v1036, %v1035
        %v1053 = vunpack.c.l.b16 %v980
        %v1054 = vunpack.c.h.b16 %v980
        %v1055 = vunpack.c.l.b16 %v981
        %v1056 = vunpack.c.l.b16 %v982
        %v1057 = vunpack.c.h.b16 %v982
        %v1058 = vunpack.c.l.b16 %v983
        %v1059 = vunpack.c.l.b16 %v984
        %v1060 = vunpack.c.h.b16 %v984
        %v1061 = vunpack.c.l.b16 %v985
        %v1062 = vunpack.c.l.b16 %v986
        %v1063 = vunpack.c.h.b16 %v986
        %v1064 = vunpack.c.l.b16 %v987
        %v1065 = vpack.c.b16 %v1056, %v1053
        %v1066 = vpack.c.b16 %v1057, %v1054
        %v1067 = vpack.c.b16 %v1058, %v1055
        %v1068 = vpack.c.b16 %v1062, %v1059
        %v1069 = vpack.c.b16 %v1063, %v1060
        %v1070 = vpack.c.b16 %v1064, %v1061
        %1071 = vrot.lane.b32.xlu0 %v1065, 126
        %v1072 = vpop.permute.xlu0 %1071
        %1073 = vrot.lane.b32.xlu0 %v1066, 126
        %v1074 = vpop.permute.xlu0 %1073
        %1075 = vrot.lane.b32.xlu0 %v1067, 126
        %v1076 = vpop.permute.xlu0 %1075
        %1077 = vrot.lane.b32.xlu0 %v1068, 126
        %v1078 = vpop.permute.xlu0 %1077
        %1079 = vrot.lane.b32.xlu0 %v1069, 126
        %v1080 = vpop.permute.xlu0 %1079
        %1081 = vrot.lane.b32.xlu0 %v1070, 126
        %v1082 = vpop.permute.xlu0 %1081
        %vm1083 = vcmask 1031168
        %v1084 = vsel %vm1083, %v1072, %v1074
        %v1085 = vsel %vm1083, %v1074, %v1076
        %v1086 = vsel %vm1083, %v1078, %v1080
        %v1087 = vsel %vm1083, %v1080, %v1082
        %v1093 = vsel %vm633, %v1037, 0
        %v1096 = vsel %vm633, %v1038, 0
        %v1099 = vsel %vm633, %v1039, 0
        %v1102 = vsel %vm633, %v1040, 0
        %v1105 = vsel %vm633, %v1041, 0
        %v1108 = vsel %vm633, %v1042, 0
        %v1111 = vsel %vm633, %v1043, 0
        %v1114 = vsel %vm633, %v1044, 0
        %1116 = vmatprep.subr.bf16.mxu0 0
        %1117 = vmatpush1.bf16.msra.mxu0 0
        %1118 = vmatprep.subr.bf16.mxu0 0
        %1119 = vmatpush1.bf16.msra.mxu0 0
        %1120 = vmatprep.subr.bf16.mxu0 0
        %1121 = vmatpush1.bf16.msra.mxu0 0
        %1122 = vmatprep.subr.bf16.mxu0 0
        %1123 = vmatpush1.bf16.msra.mxu0 0
        %1124 = vmatprep.subr.bf16.mxu0 0
        %1125 = vmatpush1.bf16.msra.mxu0 0
        %1126 = vmatprep.subr.bf16.mxu0 0
        %1127 = vmatpush1.bf16.msra.mxu0 0
        %1128 = vmatprep.subr.bf16.mxu0 %v1087
        %1129 = vmatpush1.bf16.msra.mxu0 %v1086
        %1130 = vmatprep.subr.bf16.mxu0 %v1085
        %1131 = vmatpush1.bf16.msra.mxu0 %v1084
        %1132 = vmatprep.subr.bf16.mxu0 0
        %1133 = vmatpush2.bf16.msra.mxu0 0
        %1134 = vmatprep.subr.bf16.mxu0 0
        %1135 = vmatpush2.bf16.msra.mxu0 0
        %1136 = vmatprep.subr.bf16.mxu0 0
        %1137 = vmatpush2.bf16.msra.mxu0 0
        %1138 = vmatprep.subr.bf16.mxu0 0
        %1139 = vmatpush2.bf16.msra.mxu0 0
        %1140 = vmatprep.subr.bf16.mxu0 0
        %1141 = vmatpush2.bf16.msra.mxu0 0
        %1142 = vmatprep.subr.bf16.mxu0 0
        %1143 = vmatpush2.bf16.msra.mxu0 0
        %1144 = vmatprep.subr.bf16.mxu0 0
        %1145 = vmatpush2.bf16.msra.mxu0 0
        %1146 = vmatprep.subr.bf16.mxu0 0
        %1147 = vmatpush2.bf16.msra.mxu0 0
        %1148 = vmatprep.mubr.bf16.mxu0 0
        %1149 = vmatmul.mubr.bf16.gmra.mxu0 %v1093
        %v1150 = vpop.f32.mrf.mxu0
        %v1151 = vadd.f32 0.0, %v1150
        %v1152 = vpop.f32.mrf.mxu0
        %v1153 = vadd.f32 0.0, %v1152
        %v1154 = vpop.f32.mrf.mxu0
        %v1155 = vadd.f32 0.0, %v1154
        %v1156 = vpop.f32.mrf.mxu0
        %v1157 = vadd.f32 0.0, %v1156
        %1158 = vmatprep.mubr.bf16.mxu0 0
        %1159 = vmatmul.mubr.bf16.gmra.mxu0 %v1096
        %v1160 = vpop.f32.mrf.mxu0
        %v1161 = vadd.f32 0.0, %v1160
        %v1162 = vpop.f32.mrf.mxu0
        %v1163 = vadd.f32 0.0, %v1162
        %v1164 = vpop.f32.mrf.mxu0
        %v1165 = vadd.f32 0.0, %v1164
        %v1166 = vpop.f32.mrf.mxu0
        %v1167 = vadd.f32 0.0, %v1166
        %1168 = vmatprep.mubr.bf16.mxu0 0
        %1169 = vmatmul.mubr.bf16.gmra.mxu0 %v1099
        %v1170 = vpop.f32.mrf.mxu0
        %v1171 = vadd.f32 0.0, %v1170
        %v1172 = vpop.f32.mrf.mxu0
        %v1173 = vadd.f32 0.0, %v1172
        %v1174 = vpop.f32.mrf.mxu0
        %v1175 = vadd.f32 0.0, %v1174
        %v1176 = vpop.f32.mrf.mxu0
        %v1177 = vadd.f32 0.0, %v1176
        %1178 = vmatprep.mubr.bf16.mxu0 0
        %1179 = vmatmul.mubr.bf16.gmra.mxu0 %v1102
        %v1180 = vpop.f32.mrf.mxu0
        %v1181 = vadd.f32 0.0, %v1180
        %v1182 = vpop.f32.mrf.mxu0
        %v1183 = vadd.f32 0.0, %v1182
        %v1184 = vpop.f32.mrf.mxu0
        %v1185 = vadd.f32 0.0, %v1184
        %v1186 = vpop.f32.mrf.mxu0
        %v1187 = vadd.f32 0.0, %v1186
        %1188 = vmatprep.mubr.bf16.mxu0 0
        %1189 = vmatmul.mubr.bf16.gmra.mxu0 %v1105
        %v1190 = vpop.f32.mrf.mxu0
        %v1191 = vadd.f32 0.0, %v1190
        %v1192 = vpop.f32.mrf.mxu0
        %v1193 = vadd.f32 0.0, %v1192
        %v1194 = vpop.f32.mrf.mxu0
        %v1195 = vadd.f32 0.0, %v1194
        %v1196 = vpop.f32.mrf.mxu0
        %v1197 = vadd.f32 0.0, %v1196
        %1198 = vmatprep.mubr.bf16.mxu0 0
        %1199 = vmatmul.mubr.bf16.gmra.mxu0 %v1108
        %v1200 = vpop.f32.mrf.mxu0
        %v1201 = vadd.f32 0.0, %v1200
        %v1202 = vpop.f32.mrf.mxu0
        %v1203 = vadd.f32 0.0, %v1202
        %v1204 = vpop.f32.mrf.mxu0
        %v1205 = vadd.f32 0.0, %v1204
        %v1206 = vpop.f32.mrf.mxu0
        %v1207 = vadd.f32 0.0, %v1206
        %1208 = vmatprep.mubr.bf16.mxu0 0
        %1209 = vmatmul.mubr.bf16.gmra.mxu0 %v1111
        %v1210 = vpop.f32.mrf.mxu0
        %v1211 = vadd.f32 0.0, %v1210
        %v1212 = vpop.f32.mrf.mxu0
        %v1213 = vadd.f32 0.0, %v1212
        %v1214 = vpop.f32.mrf.mxu0
        %v1215 = vadd.f32 0.0, %v1214
        %v1216 = vpop.f32.mrf.mxu0
        %v1217 = vadd.f32 0.0, %v1216
        %1218 = vmatprep.mubr.bf16.mxu0 0
        %1219 = vmatmul.mubr.bf16.gmra.mxu0 %v1114
        %v1220 = vpop.f32.mrf.mxu0
        %v1221 = vadd.f32 0.0, %v1220
        %v1222 = vpop.f32.mrf.mxu0
        %v1223 = vadd.f32 0.0, %v1222
        %v1224 = vpop.f32.mrf.mxu0
        %v1225 = vadd.f32 0.0, %v1224
        %v1226 = vpop.f32.mrf.mxu0
        %v1227 = vadd.f32 0.0, %v1226
        %1228 = vdwg.mxu0
        %v1229 = vadd.f32 %v890, %v1151
        %v1230 = vadd.f32 %v892, %v1153
        %v1231 = vadd.f32 %v894, %v1155
        %v1232 = vadd.f32 %v896, %v1157
        %v1233 = vadd.f32 %v900, %v1161
        %v1234 = vadd.f32 %v902, %v1163
        %v1235 = vadd.f32 %v904, %v1165
        %v1236 = vadd.f32 %v906, %v1167
        %v1237 = vadd.f32 %v910, %v1171
        %v1238 = vadd.f32 %v912, %v1173
        %v1239 = vadd.f32 %v914, %v1175
        %v1240 = vadd.f32 %v916, %v1177
        %v1241 = vadd.f32 %v920, %v1181
        %v1242 = vadd.f32 %v922, %v1183
        %v1243 = vadd.f32 %v924, %v1185
        %v1244 = vadd.f32 %v926, %v1187
        %v1245 = vadd.f32 %v930, %v1191
        %v1246 = vadd.f32 %v932, %v1193
        %v1247 = vadd.f32 %v934, %v1195
        %v1248 = vadd.f32 %v936, %v1197
        %v1249 = vadd.f32 %v940, %v1201
        %v1250 = vadd.f32 %v942, %v1203
        %v1251 = vadd.f32 %v944, %v1205
        %v1252 = vadd.f32 %v946, %v1207
        %v1253 = vadd.f32 %v950, %v1211
        %v1254 = vadd.f32 %v952, %v1213
        %v1255 = vadd.f32 %v954, %v1215
        %v1256 = vadd.f32 %v956, %v1217
        %v1257 = vadd.f32 %v960, %v1221
        %v1258 = vadd.f32 %v962, %v1223
        %v1259 = vadd.f32 %v964, %v1225
        %v1260 = vadd.f32 %v966, %v1227
        %1261 = vrot.lane.b32.xlu0 %v503, 16
        %v1262 = vpop.permute.xlu0 %1261
        %v1263 = vrot.slane %v1262, 4
        %vm1264 = vcmask 130048
        %v1265 = vsel %vm1264, %v1263, %v1262
        %v1268 = vmul.bf16 %v495, %v1265
        %v1269 = vmul.bf16 %v525, %v1263
        %v1270 = vmul.bf16 %v496, %v1265
        %v1271 = vmul.bf16 %v526, %v1263
        %v1272 = vmul.bf16 %v497, %v1265
        %v1273 = vmul.bf16 %v527, %v1263
        %v1274 = vmul.bf16 %v498, %v1265
        %v1275 = vmul.bf16 %v528, %v1263
        %s1276 = scalar_lea.vmem %s1, 192
        %v1277 = vld [vmem:[%s1276] sm:$0xf]
        %v1278 = vld [vmem:[%s1276 + $0x4] sm:$0xf]
        %v1279 = vld [vmem:[%s1276 + $0x8] sm:$0xf]
        %v1280 = vld [vmem:[%s1276 + $0xc] sm:$0xf]
        %v1281 = vld [vmem:[%s1276 + $0x10] sm:$0xf]
        %v1282 = vld [vmem:[%s1276 + $0x14] sm:$0xf]
        %v1283 = vld [vmem:[%s1276 + $0x18] sm:$0xf]
        %v1284 = vld [vmem:[%s1276 + $0x1c] sm:$0xf]
        %v1285 = vld [vmem:[%s1276 + $0x20] sm:$0xf]
        %v1286 = vld [vmem:[%s1276 + $0x24] sm:$0xf]
        %v1287 = vld [vmem:[%s1276 + $0x28] sm:$0xf]
        %v1288 = vld [vmem:[%s1276 + $0x2c] sm:$0xf]
        %v1289 = vld [vmem:[%s1276 + $0x30] sm:$0xf]
        %v1290 = vld [vmem:[%s1276 + $0x34] sm:$0xf]
        %v1291 = vld [vmem:[%s1276 + $0x38] sm:$0xf]
        %v1292 = vld [vmem:[%s1276 + $0x3c] sm:$0xf]
        %v1309 = vunpack.c.l.b16 %v1277
        %v1310 = vunpack.c.l.b16 %v1278
        %v1311 = vunpack.c.l.b16 %v1279
        %v1312 = vunpack.c.l.b16 %v1280
        %v1313 = vunpack.c.l.b16 %v1281
        %v1314 = vunpack.c.l.b16 %v1282
        %v1315 = vunpack.c.l.b16 %v1283
        %v1316 = vunpack.c.l.b16 %v1284
        %v1317 = vunpack.c.l.b16 %v1285
        %v1318 = vunpack.c.l.b16 %v1286
        %v1319 = vunpack.c.l.b16 %v1287
        %v1320 = vunpack.c.l.b16 %v1288
        %v1321 = vunpack.c.l.b16 %v1289
        %v1322 = vunpack.c.l.b16 %v1290
        %v1323 = vunpack.c.l.b16 %v1291
        %v1324 = vunpack.c.l.b16 %v1292
        %v1325 = vpack.c.b16 %v1310, %v1309
        %v1326 = vpack.c.b16 %v1312, %v1311
        %v1327 = vpack.c.b16 %v1314, %v1313
        %v1328 = vpack.c.b16 %v1316, %v1315
        %v1329 = vpack.c.b16 %v1318, %v1317
        %v1330 = vpack.c.b16 %v1320, %v1319
        %v1331 = vpack.c.b16 %v1322, %v1321
        %v1332 = vpack.c.b16 %v1324, %v1323
        %v1341 = vunpack.c.l.b16 %v1268
        %v1342 = vunpack.c.h.b16 %v1268
        %v1343 = vunpack.c.l.b16 %v1269
        %v1344 = vunpack.c.l.b16 %v1270
        %v1345 = vunpack.c.h.b16 %v1270
        %v1346 = vunpack.c.l.b16 %v1271
        %v1347 = vunpack.c.l.b16 %v1272
        %v1348 = vunpack.c.h.b16 %v1272
        %v1349 = vunpack.c.l.b16 %v1273
        %v1350 = vunpack.c.l.b16 %v1274
        %v1351 = vunpack.c.h.b16 %v1274
        %v1352 = vunpack.c.l.b16 %v1275
        %v1353 = vpack.c.b16 %v1344, %v1341
        %v1354 = vpack.c.b16 %v1345, %v1342
        %v1355 = vpack.c.b16 %v1346, %v1343
        %v1356 = vpack.c.b16 %v1350, %v1347
        %v1357 = vpack.c.b16 %v1351, %v1348
        %v1358 = vpack.c.b16 %v1352, %v1349
        %1359 = vrot.lane.b32.xlu0 %v1353, 112
        %v1360 = vpop.permute.xlu0 %1359
        %1361 = vrot.lane.b32.xlu0 %v1354, 112
        %v1362 = vpop.permute.xlu0 %1361
        %1363 = vrot.lane.b32.xlu0 %v1355, 112
        %v1364 = vpop.permute.xlu0 %1363
        %1365 = vrot.lane.b32.xlu0 %v1356, 112
        %v1366 = vpop.permute.xlu0 %1365
        %1367 = vrot.lane.b32.xlu0 %v1357, 112
        %v1368 = vpop.permute.xlu0 %1367
        %1369 = vrot.lane.b32.xlu0 %v1358, 112
        %v1370 = vpop.permute.xlu0 %1369
        %vm1371 = vcmask 916480
        %v1372 = vsel %vm1371, %v1360, %v1362
        %v1373 = vsel %vm1371, %v1362, %v1364
        %v1374 = vsel %vm1371, %v1366, %v1368
        %v1375 = vsel %vm1371, %v1368, %v1370
        %v1381 = vsel %vm633, %v1325, 0
        %v1384 = vsel %vm633, %v1326, 0
        %v1387 = vsel %vm633, %v1327, 0
        %v1390 = vsel %vm633, %v1328, 0
        %v1393 = vsel %vm633, %v1329, 0
        %v1396 = vsel %vm633, %v1330, 0
        %v1399 = vsel %vm633, %v1331, 0
        %v1402 = vsel %vm633, %v1332, 0
        %1404 = vmatprep.subr.bf16.mxu0 0
        %1405 = vmatpush1.bf16.msra.mxu0 0
        %1406 = vmatprep.subr.bf16.mxu0 0
        %1407 = vmatpush1.bf16.msra.mxu0 0
        %1408 = vmatprep.subr.bf16.mxu0 0
        %1409 = vmatpush1.bf16.msra.mxu0 0
        %1410 = vmatprep.subr.bf16.mxu0 0
        %1411 = vmatpush1.bf16.msra.mxu0 0
        %1412 = vmatprep.subr.bf16.mxu0 0
        %1413 = vmatpush1.bf16.msra.mxu0 0
        %1414 = vmatprep.subr.bf16.mxu0 0
        %1415 = vmatpush1.bf16.msra.mxu0 0
        %1416 = vmatprep.subr.bf16.mxu0 %v1375
        %1417 = vmatpush1.bf16.msra.mxu0 %v1374
        %1418 = vmatprep.subr.bf16.mxu0 %v1373
        %1419 = vmatpush1.bf16.msra.mxu0 %v1372
        %1420 = vmatprep.subr.bf16.mxu0 0
        %1421 = vmatpush2.bf16.msra.mxu0 0
        %1422 = vmatprep.subr.bf16.mxu0 0
        %1423 = vmatpush2.bf16.msra.mxu0 0
        %1424 = vmatprep.subr.bf16.mxu0 0
        %1425 = vmatpush2.bf16.msra.mxu0 0
        %1426 = vmatprep.subr.bf16.mxu0 0
        %1427 = vmatpush2.bf16.msra.mxu0 0
        %1428 = vmatprep.subr.bf16.mxu0 0
        %1429 = vmatpush2.bf16.msra.mxu0 0
        %1430 = vmatprep.subr.bf16.mxu0 0
        %1431 = vmatpush2.bf16.msra.mxu0 0
        %1432 = vmatprep.subr.bf16.mxu0 0
        %1433 = vmatpush2.bf16.msra.mxu0 0
        %1434 = vmatprep.subr.bf16.mxu0 0
        %1435 = vmatpush2.bf16.msra.mxu0 0
        %1436 = vmatprep.mubr.bf16.mxu0 0
        %1437 = vmatmul.mubr.bf16.gmra.mxu0 %v1381
        %v1438 = vpop.f32.mrf.mxu0
        %v1439 = vadd.f32 0.0, %v1438
        %v1440 = vpop.f32.mrf.mxu0
        %v1441 = vadd.f32 0.0, %v1440
        %v1442 = vpop.f32.mrf.mxu0
        %v1443 = vadd.f32 0.0, %v1442
        %v1444 = vpop.f32.mrf.mxu0
        %v1445 = vadd.f32 0.0, %v1444
        %1446 = vmatprep.mubr.bf16.mxu0 0
        %1447 = vmatmul.mubr.bf16.gmra.mxu0 %v1384
        %v1448 = vpop.f32.mrf.mxu0
        %v1449 = vadd.f32 0.0, %v1448
        %v1450 = vpop.f32.mrf.mxu0
        %v1451 = vadd.f32 0.0, %v1450
        %v1452 = vpop.f32.mrf.mxu0
        %v1453 = vadd.f32 0.0, %v1452
        %v1454 = vpop.f32.mrf.mxu0
        %v1455 = vadd.f32 0.0, %v1454
        %1456 = vmatprep.mubr.bf16.mxu0 0
        %1457 = vmatmul.mubr.bf16.gmra.mxu0 %v1387
        %v1458 = vpop.f32.mrf.mxu0
        %v1459 = vadd.f32 0.0, %v1458
        %v1460 = vpop.f32.mrf.mxu0
        %v1461 = vadd.f32 0.0, %v1460
        %v1462 = vpop.f32.mrf.mxu0
        %v1463 = vadd.f32 0.0, %v1462
        %v1464 = vpop.f32.mrf.mxu0
        %v1465 = vadd.f32 0.0, %v1464
        %1466 = vmatprep.mubr.bf16.mxu0 0
        %1467 = vmatmul.mubr.bf16.gmra.mxu0 %v1390
        %v1468 = vpop.f32.mrf.mxu0
        %v1469 = vadd.f32 0.0, %v1468
        %v1470 = vpop.f32.mrf.mxu0
        %v1471 = vadd.f32 0.0, %v1470
        %v1472 = vpop.f32.mrf.mxu0
        %v1473 = vadd.f32 0.0, %v1472
        %v1474 = vpop.f32.mrf.mxu0
        %v1475 = vadd.f32 0.0, %v1474
        %1476 = vmatprep.mubr.bf16.mxu0 0
        %1477 = vmatmul.mubr.bf16.gmra.mxu0 %v1393
        %v1478 = vpop.f32.mrf.mxu0
        %v1479 = vadd.f32 0.0, %v1478
        %v1480 = vpop.f32.mrf.mxu0
        %v1481 = vadd.f32 0.0, %v1480
        %v1482 = vpop.f32.mrf.mxu0
        %v1483 = vadd.f32 0.0, %v1482
        %v1484 = vpop.f32.mrf.mxu0
        %v1485 = vadd.f32 0.0, %v1484
        %1486 = vmatprep.mubr.bf16.mxu0 0
        %1487 = vmatmul.mubr.bf16.gmra.mxu0 %v1396
        %v1488 = vpop.f32.mrf.mxu0
        %v1489 = vadd.f32 0.0, %v1488
        %v1490 = vpop.f32.mrf.mxu0
        %v1491 = vadd.f32 0.0, %v1490
        %v1492 = vpop.f32.mrf.mxu0
        %v1493 = vadd.f32 0.0, %v1492
        %v1494 = vpop.f32.mrf.mxu0
        %v1495 = vadd.f32 0.0, %v1494
        %1496 = vmatprep.mubr.bf16.mxu0 0
        %1497 = vmatmul.mubr.bf16.gmra.mxu0 %v1399
        %v1498 = vpop.f32.mrf.mxu0
        %v1499 = vadd.f32 0.0, %v1498
        %v1500 = vpop.f32.mrf.mxu0
        %v1501 = vadd.f32 0.0, %v1500
        %v1502 = vpop.f32.mrf.mxu0
        %v1503 = vadd.f32 0.0, %v1502
        %v1504 = vpop.f32.mrf.mxu0
        %v1505 = vadd.f32 0.0, %v1504
        %1506 = vmatprep.mubr.bf16.mxu0 0
        %1507 = vmatmul.mubr.bf16.gmra.mxu0 %v1402
        %v1508 = vpop.f32.mrf.mxu0
        %v1509 = vadd.f32 0.0, %v1508
        %v1510 = vpop.f32.mrf.mxu0
        %v1511 = vadd.f32 0.0, %v1510
        %v1512 = vpop.f32.mrf.mxu0
        %v1513 = vadd.f32 0.0, %v1512
        %v1514 = vpop.f32.mrf.mxu0
        %v1515 = vadd.f32 0.0, %v1514
        %1516 = vdwg.mxu0
        %v1517 = vadd.f32 %v1229, %v1439
        %v1518 = vadd.f32 %v1230, %v1441
        %v1519 = vadd.f32 %v1231, %v1443
        %v1520 = vadd.f32 %v1232, %v1445
        %v1521 = vadd.f32 %v1233, %v1449
        %v1522 = vadd.f32 %v1234, %v1451
        %v1523 = vadd.f32 %v1235, %v1453
        %v1524 = vadd.f32 %v1236, %v1455
        %v1525 = vadd.f32 %v1237, %v1459
        %v1526 = vadd.f32 %v1238, %v1461
        %v1527 = vadd.f32 %v1239, %v1463
        %v1528 = vadd.f32 %v1240, %v1465
        %v1529 = vadd.f32 %v1241, %v1469
        %v1530 = vadd.f32 %v1242, %v1471
        %v1531 = vadd.f32 %v1243, %v1473
        %v1532 = vadd.f32 %v1244, %v1475
        %v1533 = vadd.f32 %v1245, %v1479
        %v1534 = vadd.f32 %v1246, %v1481
        %v1535 = vadd.f32 %v1247, %v1483
        %v1536 = vadd.f32 %v1248, %v1485
        %v1537 = vadd.f32 %v1249, %v1489
        %v1538 = vadd.f32 %v1250, %v1491
        %v1539 = vadd.f32 %v1251, %v1493
        %v1540 = vadd.f32 %v1252, %v1495
        %v1541 = vadd.f32 %v1253, %v1499
        %v1542 = vadd.f32 %v1254, %v1501
        %v1543 = vadd.f32 %v1255, %v1503
        %v1544 = vadd.f32 %v1256, %v1505
        %v1545 = vadd.f32 %v1257, %v1509
        %v1546 = vadd.f32 %v1258, %v1511
        %v1547 = vadd.f32 %v1259, %v1513
        %v1548 = vadd.f32 %v1260, %v1515
        %s1549 = scalar_lea.vmem %s1, 256
        %v1550 = vld [vmem:[%s1549] sm:$0xf]
        %v1551 = vld [vmem:[%s1549 + $0x4] sm:$0xf]
        %v1552 = vld [vmem:[%s1549 + $0x8] sm:$0xf]
        %v1553 = vld [vmem:[%s1549 + $0xc] sm:$0xf]
        %v1554 = vld [vmem:[%s1549 + $0x10] sm:$0xf]
        %v1555 = vld [vmem:[%s1549 + $0x14] sm:$0xf]
        %v1556 = vld [vmem:[%s1549 + $0x18] sm:$0xf]
        %v1557 = vld [vmem:[%s1549 + $0x1c] sm:$0xf]
        %v1558 = vld [vmem:[%s1549 + $0x20] sm:$0xf]
        %v1559 = vld [vmem:[%s1549 + $0x24] sm:$0xf]
        %v1560 = vld [vmem:[%s1549 + $0x28] sm:$0xf]
        %v1561 = vld [vmem:[%s1549 + $0x2c] sm:$0xf]
        %v1562 = vld [vmem:[%s1549 + $0x30] sm:$0xf]
        %v1563 = vld [vmem:[%s1549 + $0x34] sm:$0xf]
        %v1564 = vld [vmem:[%s1549 + $0x38] sm:$0xf]
        %v1565 = vld [vmem:[%s1549 + $0x3c] sm:$0xf]
        %v1582 = vunpack.c.l.b16 %v1550
        %v1583 = vunpack.c.l.b16 %v1551
        %v1584 = vunpack.c.l.b16 %v1552
        %v1585 = vunpack.c.l.b16 %v1553
        %v1586 = vunpack.c.l.b16 %v1554
        %v1587 = vunpack.c.l.b16 %v1555
        %v1588 = vunpack.c.l.b16 %v1556
        %v1589 = vunpack.c.l.b16 %v1557
        %v1590 = vunpack.c.l.b16 %v1558
        %v1591 = vunpack.c.l.b16 %v1559
        %v1592 = vunpack.c.l.b16 %v1560
        %v1593 = vunpack.c.l.b16 %v1561
        %v1594 = vunpack.c.l.b16 %v1562
        %v1595 = vunpack.c.l.b16 %v1563
        %v1596 = vunpack.c.l.b16 %v1564
        %v1597 = vunpack.c.l.b16 %v1565
        %v1598 = vpack.c.b16 %v1583, %v1582
        %v1599 = vpack.c.b16 %v1585, %v1584
        %v1600 = vpack.c.b16 %v1587, %v1586
        %v1601 = vpack.c.b16 %v1589, %v1588
        %v1602 = vpack.c.b16 %v1591, %v1590
        %v1603 = vpack.c.b16 %v1593, %v1592
        %v1604 = vpack.c.b16 %v1595, %v1594
        %v1605 = vpack.c.b16 %v1597, %v1596
        %1606 = vrot.lane.b32.xlu0 %v606, 111
        %v1607 = vpop.permute.xlu0 %1606
        %1608 = vrot.lane.b32.xlu0 %v607, 111
        %v1609 = vpop.permute.xlu0 %1608
        %1610 = vrot.lane.b32.xlu0 %v608, 111
        %v1611 = vpop.permute.xlu0 %1610
        %1612 = vrot.lane.b32.xlu0 %v609, 111
        %v1613 = vpop.permute.xlu0 %1612
        %1614 = vrot.lane.b32.xlu0 %v610, 111
        %v1615 = vpop.permute.xlu0 %1614
        %1616 = vrot.lane.b32.xlu0 %v611, 111
        %v1617 = vpop.permute.xlu0 %1616
        %vm1618 = vcmask 908288
        %v1619 = vsel %vm1618, %v1607, %v1609
        %v1620 = vsel %vm1618, %v1609, %v1611
        %v1621 = vsel %vm1618, %v1613, %v1615
        %v1622 = vsel %vm1618, %v1615, %v1617
        %v1628 = vsel %vm633, %v1598, 0
        %v1631 = vsel %vm633, %v1599, 0
        %v1634 = vsel %vm633, %v1600, 0
        %v1637 = vsel %vm633, %v1601, 0
        %v1640 = vsel %vm633, %v1602, 0
        %v1643 = vsel %vm633, %v1603, 0
        %v1646 = vsel %vm633, %v1604, 0
        %v1649 = vsel %vm633, %v1605, 0
        %1651 = vmatprep.subr.bf16.mxu0 0
        %1652 = vmatpush1.bf16.msra.mxu0 0
        %1653 = vmatprep.subr.bf16.mxu0 0
        %1654 = vmatpush1.bf16.msra.mxu0 0
        %1655 = vmatprep.subr.bf16.mxu0 0
        %1656 = vmatpush1.bf16.msra.mxu0 0
        %1657 = vmatprep.subr.bf16.mxu0 0
        %1658 = vmatpush1.bf16.msra.mxu0 0
        %1659 = vmatprep.subr.bf16.mxu0 0
        %1660 = vmatpush1.bf16.msra.mxu0 0
        %1661 = vmatprep.subr.bf16.mxu0 0
        %1662 = vmatpush1.bf16.msra.mxu0 0
        %1663 = vmatprep.subr.bf16.mxu0 %v1622
        %1664 = vmatpush1.bf16.msra.mxu0 %v1621
        %1665 = vmatprep.subr.bf16.mxu0 %v1620
        %1666 = vmatpush1.bf16.msra.mxu0 %v1619
        %1667 = vmatprep.subr.bf16.mxu0 0
        %1668 = vmatpush2.bf16.msra.mxu0 0
        %1669 = vmatprep.subr.bf16.mxu0 0
        %1670 = vmatpush2.bf16.msra.mxu0 0
        %1671 = vmatprep.subr.bf16.mxu0 0
        %1672 = vmatpush2.bf16.msra.mxu0 0
        %1673 = vmatprep.subr.bf16.mxu0 0
        %1674 = vmatpush2.bf16.msra.mxu0 0
        %1675 = vmatprep.subr.bf16.mxu0 0
        %1676 = vmatpush2.bf16.msra.mxu0 0
        %1677 = vmatprep.subr.bf16.mxu0 0
        %1678 = vmatpush2.bf16.msra.mxu0 0
        %1679 = vmatprep.subr.bf16.mxu0 0
        %1680 = vmatpush2.bf16.msra.mxu0 0
        %1681 = vmatprep.subr.bf16.mxu0 0
        %1682 = vmatpush2.bf16.msra.mxu0 0
        %1683 = vmatprep.mubr.bf16.mxu0 0
        %1684 = vmatmul.mubr.bf16.gmra.mxu0 %v1628
        %v1685 = vpop.f32.mrf.mxu0
        %v1686 = vadd.f32 0.0, %v1685
        %v1687 = vpop.f32.mrf.mxu0
        %v1688 = vadd.f32 0.0, %v1687
        %v1689 = vpop.f32.mrf.mxu0
        %v1690 = vadd.f32 0.0, %v1689
        %v1691 = vpop.f32.mrf.mxu0
        %v1692 = vadd.f32 0.0, %v1691
        %1693 = vmatprep.mubr.bf16.mxu0 0
        %1694 = vmatmul.mubr.bf16.gmra.mxu0 %v1631
        %v1695 = vpop.f32.mrf.mxu0
        %v1696 = vadd.f32 0.0, %v1695
        %v1697 = vpop.f32.mrf.mxu0
        %v1698 = vadd.f32 0.0, %v1697
        %v1699 = vpop.f32.mrf.mxu0
        %v1700 = vadd.f32 0.0, %v1699
        %v1701 = vpop.f32.mrf.mxu0
        %v1702 = vadd.f32 0.0, %v1701
        %1703 = vmatprep.mubr.bf16.mxu0 0
        %1704 = vmatmul.mubr.bf16.gmra.mxu0 %v1634
        %v1705 = vpop.f32.mrf.mxu0
        %v1706 = vadd.f32 0.0, %v1705
        %v1707 = vpop.f32.mrf.mxu0
        %v1708 = vadd.f32 0.0, %v1707
        %v1709 = vpop.f32.mrf.mxu0
        %v1710 = vadd.f32 0.0, %v1709
        %v1711 = vpop.f32.mrf.mxu0
        %v1712 = vadd.f32 0.0, %v1711
        %1713 = vmatprep.mubr.bf16.mxu0 0
        %1714 = vmatmul.mubr.bf16.gmra.mxu0 %v1637
        %v1715 = vpop.f32.mrf.mxu0
        %v1716 = vadd.f32 0.0, %v1715
        %v1717 = vpop.f32.mrf.mxu0
        %v1718 = vadd.f32 0.0, %v1717
        %v1719 = vpop.f32.mrf.mxu0
        %v1720 = vadd.f32 0.0, %v1719
        %v1721 = vpop.f32.mrf.mxu0
        %v1722 = vadd.f32 0.0, %v1721
        %1723 = vmatprep.mubr.bf16.mxu0 0
        %1724 = vmatmul.mubr.bf16.gmra.mxu0 %v1640
        %v1725 = vpop.f32.mrf.mxu0
        %v1726 = vadd.f32 0.0, %v1725
        %v1727 = vpop.f32.mrf.mxu0
        %v1728 = vadd.f32 0.0, %v1727
        %v1729 = vpop.f32.mrf.mxu0
        %v1730 = vadd.f32 0.0, %v1729
        %v1731 = vpop.f32.mrf.mxu0
        %v1732 = vadd.f32 0.0, %v1731
        %1733 = vmatprep.mubr.bf16.mxu0 0
        %1734 = vmatmul.mubr.bf16.gmra.mxu0 %v1643
        %v1735 = vpop.f32.mrf.mxu0
        %v1736 = vadd.f32 0.0, %v1735
        %v1737 = vpop.f32.mrf.mxu0
        %v1738 = vadd.f32 0.0, %v1737
        %v1739 = vpop.f32.mrf.mxu0
        %v1740 = vadd.f32 0.0, %v1739
        %v1741 = vpop.f32.mrf.mxu0
        %v1742 = vadd.f32 0.0, %v1741
        %1743 = vmatprep.mubr.bf16.mxu0 0
        %1744 = vmatmul.mubr.bf16.gmra.mxu0 %v1646
        %v1745 = vpop.f32.mrf.mxu0
        %v1746 = vadd.f32 0.0, %v1745
        %v1747 = vpop.f32.mrf.mxu0
        %v1748 = vadd.f32 0.0, %v1747
        %v1749 = vpop.f32.mrf.mxu0
        %v1750 = vadd.f32 0.0, %v1749
        %v1751 = vpop.f32.mrf.mxu0
        %v1752 = vadd.f32 0.0, %v1751
        %1753 = vmatprep.mubr.bf16.mxu0 0
        %1754 = vmatmul.mubr.bf16.gmra.mxu0 %v1649
        %v1755 = vpop.f32.mrf.mxu0
        %v1756 = vadd.f32 0.0, %v1755
        %v1757 = vpop.f32.mrf.mxu0
        %v1758 = vadd.f32 0.0, %v1757
        %v1759 = vpop.f32.mrf.mxu0
        %v1760 = vadd.f32 0.0, %v1759
        %v1761 = vpop.f32.mrf.mxu0
        %v1762 = vadd.f32 0.0, %v1761
        %1763 = vdwg.mxu0
        %v1764 = vadd.f32 %v1517, %v1686
        %v1765 = vadd.f32 %v1518, %v1688
        %v1766 = vadd.f32 %v1519, %v1690
        %v1767 = vadd.f32 %v1520, %v1692
        %v1768 = vadd.f32 %v1521, %v1696
        %v1769 = vadd.f32 %v1522, %v1698
        %v1770 = vadd.f32 %v1523, %v1700
        %v1771 = vadd.f32 %v1524, %v1702
        %v1772 = vadd.f32 %v1525, %v1706
        %v1773 = vadd.f32 %v1526, %v1708
        %v1774 = vadd.f32 %v1527, %v1710
        %v1775 = vadd.f32 %v1528, %v1712
        %v1776 = vadd.f32 %v1529, %v1716
        %v1777 = vadd.f32 %v1530, %v1718
        %v1778 = vadd.f32 %v1531, %v1720
        %v1779 = vadd.f32 %v1532, %v1722
        %v1780 = vadd.f32 %v1533, %v1726
        %v1781 = vadd.f32 %v1534, %v1728
        %v1782 = vadd.f32 %v1535, %v1730
        %v1783 = vadd.f32 %v1536, %v1732
        %v1784 = vadd.f32 %v1537, %v1736
        %v1785 = vadd.f32 %v1538, %v1738
        %v1786 = vadd.f32 %v1539, %v1740
        %v1787 = vadd.f32 %v1540, %v1742
        %v1788 = vadd.f32 %v1541, %v1746
        %v1789 = vadd.f32 %v1542, %v1748
        %v1790 = vadd.f32 %v1543, %v1750
        %v1791 = vadd.f32 %v1544, %v1752
        %v1792 = vadd.f32 %v1545, %v1756
        %v1793 = vadd.f32 %v1546, %v1758
        %v1794 = vadd.f32 %v1547, %v1760
        %v1795 = vadd.f32 %v1548, %v1762
        %1796 = vrot.lane.b32.xlu0 %v972, 18
        %v1797 = vpop.permute.xlu0 %1796
        %v1798 = vrot.slane %v1797, 4
        %vm1799 = vcmask 146432
        %v1800 = vsel %vm1799, %v1798, %v1797
        %v1803 = vmul.bf16 %v495, %v1800
        %v1804 = vmul.bf16 %v525, %v1798
        %v1805 = vmul.bf16 %v496, %v1800
        %v1806 = vmul.bf16 %v526, %v1798
        %v1807 = vmul.bf16 %v497, %v1800
        %v1808 = vmul.bf16 %v527, %v1798
        %v1809 = vmul.bf16 %v498, %v1800
        %v1810 = vmul.bf16 %v528, %v1798
        %s1811 = scalar_lea.vmem %s1, 320
        %v1812 = vld [vmem:[%s1811] sm:$0xf]
        %v1813 = vld [vmem:[%s1811 + $0x4] sm:$0xf]
        %v1814 = vld [vmem:[%s1811 + $0x8] sm:$0xf]
        %v1815 = vld [vmem:[%s1811 + $0xc] sm:$0xf]
        %v1816 = vld [vmem:[%s1811 + $0x10] sm:$0xf]
        %v1817 = vld [vmem:[%s1811 + $0x14] sm:$0xf]
        %v1818 = vld [vmem:[%s1811 + $0x18] sm:$0xf]
        %v1819 = vld [vmem:[%s1811 + $0x1c] sm:$0xf]
        %v1820 = vld [vmem:[%s1811 + $0x20] sm:$0xf]
        %v1821 = vld [vmem:[%s1811 + $0x24] sm:$0xf]
        %v1822 = vld [vmem:[%s1811 + $0x28] sm:$0xf]
        %v1823 = vld [vmem:[%s1811 + $0x2c] sm:$0xf]
        %v1824 = vld [vmem:[%s1811 + $0x30] sm:$0xf]
        %v1825 = vld [vmem:[%s1811 + $0x34] sm:$0xf]
        %v1826 = vld [vmem:[%s1811 + $0x38] sm:$0xf]
        %v1827 = vld [vmem:[%s1811 + $0x3c] sm:$0xf]
        %v1844 = vunpack.c.l.b16 %v1812
        %v1845 = vunpack.c.l.b16 %v1813
        %v1846 = vunpack.c.l.b16 %v1814
        %v1847 = vunpack.c.l.b16 %v1815
        %v1848 = vunpack.c.l.b16 %v1816
        %v1849 = vunpack.c.l.b16 %v1817
        %v1850 = vunpack.c.l.b16 %v1818
        %v1851 = vunpack.c.l.b16 %v1819
        %v1852 = vunpack.c.l.b16 %v1820
        %v1853 = vunpack.c.l.b16 %v1821
        %v1854 = vunpack.c.l.b16 %v1822
        %v1855 = vunpack.c.l.b16 %v1823
        %v1856 = vunpack.c.l.b16 %v1824
        %v1857 = vunpack.c.l.b16 %v1825
        %v1858 = vunpack.c.l.b16 %v1826
        %v1859 = vunpack.c.l.b16 %v1827
        %v1860 = vpack.c.b16 %v1845, %v1844
        %v1861 = vpack.c.b16 %v1847, %v1846
        %v1862 = vpack.c.b16 %v1849, %v1848
        %v1863 = vpack.c.b16 %v1851, %v1850
        %v1864 = vpack.c.b16 %v1853, %v1852
        %v1865 = vpack.c.b16 %v1855, %v1854
        %v1866 = vpack.c.b16 %v1857, %v1856
        %v1867 = vpack.c.b16 %v1859, %v1858
        %v1876 = vunpack.c.l.b16 %v1803
        %v1877 = vunpack.c.h.b16 %v1803
        %v1878 = vunpack.c.l.b16 %v1804
        %v1879 = vunpack.c.l.b16 %v1805
        %v1880 = vunpack.c.h.b16 %v1805
        %v1881 = vunpack.c.l.b16 %v1806
        %v1882 = vunpack.c.l.b16 %v1807
        %v1883 = vunpack.c.h.b16 %v1807
        %v1884 = vunpack.c.l.b16 %v1808
        %v1885 = vunpack.c.l.b16 %v1809
        %v1886 = vunpack.c.h.b16 %v1809
        %v1887 = vunpack.c.l.b16 %v1810
        %v1888 = vpack.c.b16 %v1879, %v1876
        %v1889 = vpack.c.b16 %v1880, %v1877
        %v1890 = vpack.c.b16 %v1881, %v1878
        %v1891 = vpack.c.b16 %v1885, %v1882
        %v1892 = vpack.c.b16 %v1886, %v1883
        %v1893 = vpack.c.b16 %v1887, %v1884
        %1894 = vrot.lane.b32.xlu0 %v1888, 110
        %v1895 = vpop.permute.xlu0 %1894
        %1896 = vrot.lane.b32.xlu0 %v1889, 110
        %v1897 = vpop.permute.xlu0 %1896
        %1898 = vrot.lane.b32.xlu0 %v1890, 110
        %v1899 = vpop.permute.xlu0 %1898
        %1900 = vrot.lane.b32.xlu0 %v1891, 110
        %v1901 = vpop.permute.xlu0 %1900
        %1902 = vrot.lane.b32.xlu0 %v1892, 110
        %v1903 = vpop.permute.xlu0 %1902
        %1904 = vrot.lane.b32.xlu0 %v1893, 110
        %v1905 = vpop.permute.xlu0 %1904
        %vm1906 = vcmask 900096
        %v1907 = vsel %vm1906, %v1895, %v1897
        %v1908 = vsel %vm1906, %v1897, %v1899
        %v1909 = vsel %vm1906, %v1901, %v1903
        %v1910 = vsel %vm1906, %v1903, %v1905
        %v1916 = vsel %vm633, %v1860, 0
        %v1919 = vsel %vm633, %v1861, 0
        %v1922 = vsel %vm633, %v1862, 0
        %v1925 = vsel %vm633, %v1863, 0
        %v1928 = vsel %vm633, %v1864, 0
        %v1931 = vsel %vm633, %v1865, 0
        %v1934 = vsel %vm633, %v1866, 0
        %v1937 = vsel %vm633, %v1867, 0
        %1939 = vmatprep.subr.bf16.mxu0 0
        %1940 = vmatpush1.bf16.msra.mxu0 0
        %1941 = vmatprep.subr.bf16.mxu0 0
        %1942 = vmatpush1.bf16.msra.mxu0 0
        %1943 = vmatprep.subr.bf16.mxu0 0
        %1944 = vmatpush1.bf16.msra.mxu0 0
        %1945 = vmatprep.subr.bf16.mxu0 0
        %1946 = vmatpush1.bf16.msra.mxu0 0
        %1947 = vmatprep.subr.bf16.mxu0 0
        %1948 = vmatpush1.bf16.msra.mxu0 0
        %1949 = vmatprep.subr.bf16.mxu0 0
        %1950 = vmatpush1.bf16.msra.mxu0 0
        %1951 = vmatprep.subr.bf16.mxu0 %v1910
        %1952 = vmatpush1.bf16.msra.mxu0 %v1909
        %1953 = vmatprep.subr.bf16.mxu0 %v1908
        %1954 = vmatpush1.bf16.msra.mxu0 %v1907
        %1955 = vmatprep.subr.bf16.mxu0 0
        %1956 = vmatpush2.bf16.msra.mxu0 0
        %1957 = vmatprep.subr.bf16.mxu0 0
        %1958 = vmatpush2.bf16.msra.mxu0 0
        %1959 = vmatprep.subr.bf16.mxu0 0
        %1960 = vmatpush2.bf16.msra.mxu0 0
        %1961 = vmatprep.subr.bf16.mxu0 0
        %1962 = vmatpush2.bf16.msra.mxu0 0
        %1963 = vmatprep.subr.bf16.mxu0 0
        %1964 = vmatpush2.bf16.msra.mxu0 0
        %1965 = vmatprep.subr.bf16.mxu0 0
        %1966 = vmatpush2.bf16.msra.mxu0 0
        %1967 = vmatprep.subr.bf16.mxu0 0
        %1968 = vmatpush2.bf16.msra.mxu0 0
        %1969 = vmatprep.subr.bf16.mxu0 0
        %1970 = vmatpush2.bf16.msra.mxu0 0
        %1971 = vmatprep.mubr.bf16.mxu0 0
        %1972 = vmatmul.mubr.bf16.gmra.mxu0 %v1916
        %v1973 = vpop.f32.mrf.mxu0
        %v1974 = vadd.f32 0.0, %v1973
        %v1975 = vpop.f32.mrf.mxu0
        %v1976 = vadd.f32 0.0, %v1975
        %v1977 = vpop.f32.mrf.mxu0
        %v1978 = vadd.f32 0.0, %v1977
        %v1979 = vpop.f32.mrf.mxu0
        %v1980 = vadd.f32 0.0, %v1979
        %1981 = vmatprep.mubr.bf16.mxu0 0
        %1982 = vmatmul.mubr.bf16.gmra.mxu0 %v1919
        %v1983 = vpop.f32.mrf.mxu0
        %v1984 = vadd.f32 0.0, %v1983
        %v1985 = vpop.f32.mrf.mxu0
        %v1986 = vadd.f32 0.0, %v1985
        %v1987 = vpop.f32.mrf.mxu0
        %v1988 = vadd.f32 0.0, %v1987
        %v1989 = vpop.f32.mrf.mxu0
        %v1990 = vadd.f32 0.0, %v1989
        %1991 = vmatprep.mubr.bf16.mxu0 0
        %1992 = vmatmul.mubr.bf16.gmra.mxu0 %v1922
        %v1993 = vpop.f32.mrf.mxu0
        %v1994 = vadd.f32 0.0, %v1993
        %v1995 = vpop.f32.mrf.mxu0
        %v1996 = vadd.f32 0.0, %v1995
        %v1997 = vpop.f32.mrf.mxu0
        %v1998 = vadd.f32 0.0, %v1997
        %v1999 = vpop.f32.mrf.mxu0
        %v2000 = vadd.f32 0.0, %v1999
        %2001 = vmatprep.mubr.bf16.mxu0 0
        %2002 = vmatmul.mubr.bf16.gmra.mxu0 %v1925
        %v2003 = vpop.f32.mrf.mxu0
        %v2004 = vadd.f32 0.0, %v2003
        %v2005 = vpop.f32.mrf.mxu0
        %v2006 = vadd.f32 0.0, %v2005
        %v2007 = vpop.f32.mrf.mxu0
        %v2008 = vadd.f32 0.0, %v2007
        %v2009 = vpop.f32.mrf.mxu0
        %v2010 = vadd.f32 0.0, %v2009
        %2011 = vmatprep.mubr.bf16.mxu0 0
        %2012 = vmatmul.mubr.bf16.gmra.mxu0 %v1928
        %v2013 = vpop.f32.mrf.mxu0
        %v2014 = vadd.f32 0.0, %v2013
        %v2015 = vpop.f32.mrf.mxu0
        %v2016 = vadd.f32 0.0, %v2015
        %v2017 = vpop.f32.mrf.mxu0
        %v2018 = vadd.f32 0.0, %v2017
        %v2019 = vpop.f32.mrf.mxu0
        %v2020 = vadd.f32 0.0, %v2019
        %2021 = vmatprep.mubr.bf16.mxu0 0
        %2022 = vmatmul.mubr.bf16.gmra.mxu0 %v1931
        %v2023 = vpop.f32.mrf.mxu0
        %v2024 = vadd.f32 0.0, %v2023
        %v2025 = vpop.f32.mrf.mxu0
        %v2026 = vadd.f32 0.0, %v2025
        %v2027 = vpop.f32.mrf.mxu0
        %v2028 = vadd.f32 0.0, %v2027
        %v2029 = vpop.f32.mrf.mxu0
        %v2030 = vadd.f32 0.0, %v2029
        %2031 = vmatprep.mubr.bf16.mxu0 0
        %2032 = vmatmul.mubr.bf16.gmra.mxu0 %v1934
        %v2033 = vpop.f32.mrf.mxu0
        %v2034 = vadd.f32 0.0, %v2033
        %v2035 = vpop.f32.mrf.mxu0
        %v2036 = vadd.f32 0.0, %v2035
        %v2037 = vpop.f32.mrf.mxu0
        %v2038 = vadd.f32 0.0, %v2037
        %v2039 = vpop.f32.mrf.mxu0
        %v2040 = vadd.f32 0.0, %v2039
        %2041 = vmatprep.mubr.bf16.mxu0 0
        %2042 = vmatmul.mubr.bf16.gmra.mxu0 %v1937
        %v2043 = vpop.f32.mrf.mxu0
        %v2044 = vadd.f32 0.0, %v2043
        %v2045 = vpop.f32.mrf.mxu0
        %v2046 = vadd.f32 0.0, %v2045
        %v2047 = vpop.f32.mrf.mxu0
        %v2048 = vadd.f32 0.0, %v2047
        %v2049 = vpop.f32.mrf.mxu0
        %v2050 = vadd.f32 0.0, %v2049
        %2051 = vdwg.mxu0
        %v2052 = vadd.f32 %v1764, %v1974
        %v2053 = vadd.f32 %v1765, %v1976
        %v2054 = vadd.f32 %v1766, %v1978
        %v2055 = vadd.f32 %v1767, %v1980
        %v2056 = vadd.f32 %v1768, %v1984
        %v2057 = vadd.f32 %v1769, %v1986
        %v2058 = vadd.f32 %v1770, %v1988
        %v2059 = vadd.f32 %v1771, %v1990
        %v2060 = vadd.f32 %v1772, %v1994
        %v2061 = vadd.f32 %v1773, %v1996
        %v2062 = vadd.f32 %v1774, %v1998
        %v2063 = vadd.f32 %v1775, %v2000
        %v2064 = vadd.f32 %v1776, %v2004
        %v2065 = vadd.f32 %v1777, %v2006
        %v2066 = vadd.f32 %v1778, %v2008
        %v2067 = vadd.f32 %v1779, %v2010
        %v2068 = vadd.f32 %v1780, %v2014
        %v2069 = vadd.f32 %v1781, %v2016
        %v2070 = vadd.f32 %v1782, %v2018
        %v2071 = vadd.f32 %v1783, %v2020
        %v2072 = vadd.f32 %v1784, %v2024
        %v2073 = vadd.f32 %v1785, %v2026
        %v2074 = vadd.f32 %v1786, %v2028
        %v2075 = vadd.f32 %v1787, %v2030
        %v2076 = vadd.f32 %v1788, %v2034
        %v2077 = vadd.f32 %v1789, %v2036
        %v2078 = vadd.f32 %v1790, %v2038
        %v2079 = vadd.f32 %v1791, %v2040
        %v2080 = vadd.f32 %v1792, %v2044
        %v2081 = vadd.f32 %v1793, %v2046
        %v2082 = vadd.f32 %v1794, %v2048
        %v2083 = vadd.f32 %v1795, %v2050
        %2084 = vrot.lane.b32.xlu0 %v503, 32
        %v2085 = vpop.permute.xlu0 %2084
        %v2086 = vrot.slane %v2085, 4
        %vm2087 = vcmask 261120
        %v2088 = vsel %vm2087, %v2086, %v2085
        %v2091 = vmul.bf16 %v495, %v2088
        %v2092 = vmul.bf16 %v525, %v2086
        %v2093 = vmul.bf16 %v496, %v2088
        %v2094 = vmul.bf16 %v526, %v2086
        %v2095 = vmul.bf16 %v497, %v2088
        %v2096 = vmul.bf16 %v527, %v2086
        %v2097 = vmul.bf16 %v498, %v2088
        %v2098 = vmul.bf16 %v528, %v2086
        %s2099 = scalar_lea.vmem %s1, 384
        %v2100 = vld [vmem:[%s2099] sm:$0xf]
        %v2101 = vld [vmem:[%s2099 + $0x4] sm:$0xf]
        %v2102 = vld [vmem:[%s2099 + $0x8] sm:$0xf]
        %v2103 = vld [vmem:[%s2099 + $0xc] sm:$0xf]
        %v2104 = vld [vmem:[%s2099 + $0x10] sm:$0xf]
        %v2105 = vld [vmem:[%s2099 + $0x14] sm:$0xf]
        %v2106 = vld [vmem:[%s2099 + $0x18] sm:$0xf]
        %v2107 = vld [vmem:[%s2099 + $0x1c] sm:$0xf]
        %v2108 = vld [vmem:[%s2099 + $0x20] sm:$0xf]
        %v2109 = vld [vmem:[%s2099 + $0x24] sm:$0xf]
        %v2110 = vld [vmem:[%s2099 + $0x28] sm:$0xf]
        %v2111 = vld [vmem:[%s2099 + $0x2c] sm:$0xf]
        %v2112 = vld [vmem:[%s2099 + $0x30] sm:$0xf]
        %v2113 = vld [vmem:[%s2099 + $0x34] sm:$0xf]
        %v2114 = vld [vmem:[%s2099 + $0x38] sm:$0xf]
        %v2115 = vld [vmem:[%s2099 + $0x3c] sm:$0xf]
        %v2132 = vunpack.c.l.b16 %v2100
        %v2133 = vunpack.c.l.b16 %v2101
        %v2134 = vunpack.c.l.b16 %v2102
        %v2135 = vunpack.c.l.b16 %v2103
        %v2136 = vunpack.c.l.b16 %v2104
        %v2137 = vunpack.c.l.b16 %v2105
        %v2138 = vunpack.c.l.b16 %v2106
        %v2139 = vunpack.c.l.b16 %v2107
        %v2140 = vunpack.c.l.b16 %v2108
        %v2141 = vunpack.c.l.b16 %v2109
        %v2142 = vunpack.c.l.b16 %v2110
        %v2143 = vunpack.c.l.b16 %v2111
        %v2144 = vunpack.c.l.b16 %v2112
        %v2145 = vunpack.c.l.b16 %v2113
        %v2146 = vunpack.c.l.b16 %v2114
        %v2147 = vunpack.c.l.b16 %v2115
        %v2148 = vpack.c.b16 %v2133, %v2132
        %v2149 = vpack.c.b16 %v2135, %v2134
        %v2150 = vpack.c.b16 %v2137, %v2136
        %v2151 = vpack.c.b16 %v2139, %v2138
        %v2152 = vpack.c.b16 %v2141, %v2140
        %v2153 = vpack.c.b16 %v2143, %v2142
        %v2154 = vpack.c.b16 %v2145, %v2144
        %v2155 = vpack.c.b16 %v2147, %v2146
        %v2164 = vunpack.c.l.b16 %v2091
        %v2165 = vunpack.c.h.b16 %v2091
        %v2166 = vunpack.c.l.b16 %v2092
        %v2167 = vunpack.c.l.b16 %v2093
        %v2168 = vunpack.c.h.b16 %v2093
        %v2169 = vunpack.c.l.b16 %v2094
        %v2170 = vunpack.c.l.b16 %v2095
        %v2171 = vunpack.c.h.b16 %v2095
        %v2172 = vunpack.c.l.b16 %v2096
        %v2173 = vunpack.c.l.b16 %v2097
        %v2174 = vunpack.c.h.b16 %v2097
        %v2175 = vunpack.c.l.b16 %v2098
        %v2176 = vpack.c.b16 %v2167, %v2164
        %v2177 = vpack.c.b16 %v2168, %v2165
        %v2178 = vpack.c.b16 %v2169, %v2166
        %v2179 = vpack.c.b16 %v2173, %v2170
        %v2180 = vpack.c.b16 %v2174, %v2171
        %v2181 = vpack.c.b16 %v2175, %v2172
        %2182 = vrot.lane.b32.xlu0 %v2176, 96
        %v2183 = vpop.permute.xlu0 %2182
        %2184 = vrot.lane.b32.xlu0 %v2177, 96
        %v2185 = vpop.permute.xlu0 %2184
        %2186 = vrot.lane.b32.xlu0 %v2178, 96
        %v2187 = vpop.permute.xlu0 %2186
        %2188 = vrot.lane.b32.xlu0 %v2179, 96
        %v2189 = vpop.permute.xlu0 %2188
        %2190 = vrot.lane.b32.xlu0 %v2180, 96
        %v2191 = vpop.permute.xlu0 %2190
        %2192 = vrot.lane.b32.xlu0 %v2181, 96
        %v2193 = vpop.permute.xlu0 %2192
        %vm2194 = vcmask 785408
        %v2195 = vsel %vm2194, %v2183, %v2185
        %v2196 = vsel %vm2194, %v2185, %v2187
        %v2197 = vsel %vm2194, %v2189, %v2191
        %v2198 = vsel %vm2194, %v2191, %v2193
        %v2204 = vsel %vm633, %v2148, 0
        %v2207 = vsel %vm633, %v2149, 0
        %v2210 = vsel %vm633, %v2150, 0
        %v2213 = vsel %vm633, %v2151, 0
        %v2216 = vsel %vm633, %v2152, 0
        %v2219 = vsel %vm633, %v2153, 0
        %v2222 = vsel %vm633, %v2154, 0
        %v2225 = vsel %vm633, %v2155, 0
        %2227 = vmatprep.subr.bf16.mxu0 0
        %2228 = vmatpush1.bf16.msra.mxu0 0
        %2229 = vmatprep.subr.bf16.mxu0 0
        %2230 = vmatpush1.bf16.msra.mxu0 0
        %2231 = vmatprep.subr.bf16.mxu0 0
        %2232 = vmatpush1.bf16.msra.mxu0 0
        %2233 = vmatprep.subr.bf16.mxu0 0
        %2234 = vmatpush1.bf16.msra.mxu0 0
        %2235 = vmatprep.subr.bf16.mxu0 0
        %2236 = vmatpush1.bf16.msra.mxu0 0
        %2237 = vmatprep.subr.bf16.mxu0 0
        %2238 = vmatpush1.bf16.msra.mxu0 0
        %2239 = vmatprep.subr.bf16.mxu0 %v2198
        %2240 = vmatpush1.bf16.msra.mxu0 %v2197
        %2241 = vmatprep.subr.bf16.mxu0 %v2196
        %2242 = vmatpush1.bf16.msra.mxu0 %v2195
        %2243 = vmatprep.subr.bf16.mxu0 0
        %2244 = vmatpush2.bf16.msra.mxu0 0
        %2245 = vmatprep.subr.bf16.mxu0 0
        %2246 = vmatpush2.bf16.msra.mxu0 0
        %2247 = vmatprep.subr.bf16.mxu0 0
        %2248 = vmatpush2.bf16.msra.mxu0 0
        %2249 = vmatprep.subr.bf16.mxu0 0
        %2250 = vmatpush2.bf16.msra.mxu0 0
        %2251 = vmatprep.subr.bf16.mxu0 0
        %2252 = vmatpush2.bf16.msra.mxu0 0
        %2253 = vmatprep.subr.bf16.mxu0 0
        %2254 = vmatpush2.bf16.msra.mxu0 0
        %2255 = vmatprep.subr.bf16.mxu0 0
        %2256 = vmatpush2.bf16.msra.mxu0 0
        %2257 = vmatprep.subr.bf16.mxu0 0
        %2258 = vmatpush2.bf16.msra.mxu0 0
        %2259 = vmatprep.mubr.bf16.mxu0 0
        %2260 = vmatmul.mubr.bf16.gmra.mxu0 %v2204
        %v2261 = vpop.f32.mrf.mxu0
        %v2262 = vadd.f32 0.0, %v2261
        %v2263 = vpop.f32.mrf.mxu0
        %v2264 = vadd.f32 0.0, %v2263
        %v2265 = vpop.f32.mrf.mxu0
        %v2266 = vadd.f32 0.0, %v2265
        %v2267 = vpop.f32.mrf.mxu0
        %v2268 = vadd.f32 0.0, %v2267
        %2269 = vmatprep.mubr.bf16.mxu0 0
        %2270 = vmatmul.mubr.bf16.gmra.mxu0 %v2207
        %v2271 = vpop.f32.mrf.mxu0
        %v2272 = vadd.f32 0.0, %v2271
        %v2273 = vpop.f32.mrf.mxu0
        %v2274 = vadd.f32 0.0, %v2273
        %v2275 = vpop.f32.mrf.mxu0
        %v2276 = vadd.f32 0.0, %v2275
        %v2277 = vpop.f32.mrf.mxu0
        %v2278 = vadd.f32 0.0, %v2277
        %2279 = vmatprep.mubr.bf16.mxu0 0
        %2280 = vmatmul.mubr.bf16.gmra.mxu0 %v2210
        %v2281 = vpop.f32.mrf.mxu0
        %v2282 = vadd.f32 0.0, %v2281
        %v2283 = vpop.f32.mrf.mxu0
        %v2284 = vadd.f32 0.0, %v2283
        %v2285 = vpop.f32.mrf.mxu0
        %v2286 = vadd.f32 0.0, %v2285
        %v2287 = vpop.f32.mrf.mxu0
        %v2288 = vadd.f32 0.0, %v2287
        %2289 = vmatprep.mubr.bf16.mxu0 0
        %2290 = vmatmul.mubr.bf16.gmra.mxu0 %v2213
        %v2291 = vpop.f32.mrf.mxu0
        %v2292 = vadd.f32 0.0, %v2291
        %v2293 = vpop.f32.mrf.mxu0
        %v2294 = vadd.f32 0.0, %v2293
        %v2295 = vpop.f32.mrf.mxu0
        %v2296 = vadd.f32 0.0, %v2295
        %v2297 = vpop.f32.mrf.mxu0
        %v2298 = vadd.f32 0.0, %v2297
        %2299 = vmatprep.mubr.bf16.mxu0 0
        %2300 = vmatmul.mubr.bf16.gmra.mxu0 %v2216
        %v2301 = vpop.f32.mrf.mxu0
        %v2302 = vadd.f32 0.0, %v2301
        %v2303 = vpop.f32.mrf.mxu0
        %v2304 = vadd.f32 0.0, %v2303
        %v2305 = vpop.f32.mrf.mxu0
        %v2306 = vadd.f32 0.0, %v2305
        %v2307 = vpop.f32.mrf.mxu0
        %v2308 = vadd.f32 0.0, %v2307
        %2309 = vmatprep.mubr.bf16.mxu0 0
        %2310 = vmatmul.mubr.bf16.gmra.mxu0 %v2219
        %v2311 = vpop.f32.mrf.mxu0
        %v2312 = vadd.f32 0.0, %v2311
        %v2313 = vpop.f32.mrf.mxu0
        %v2314 = vadd.f32 0.0, %v2313
        %v2315 = vpop.f32.mrf.mxu0
        %v2316 = vadd.f32 0.0, %v2315
        %v2317 = vpop.f32.mrf.mxu0
        %v2318 = vadd.f32 0.0, %v2317
        %2319 = vmatprep.mubr.bf16.mxu0 0
        %2320 = vmatmul.mubr.bf16.gmra.mxu0 %v2222
        %v2321 = vpop.f32.mrf.mxu0
        %v2322 = vadd.f32 0.0, %v2321
        %v2323 = vpop.f32.mrf.mxu0
        %v2324 = vadd.f32 0.0, %v2323
        %v2325 = vpop.f32.mrf.mxu0
        %v2326 = vadd.f32 0.0, %v2325
        %v2327 = vpop.f32.mrf.mxu0
        %v2328 = vadd.f32 0.0, %v2327
        %2329 = vmatprep.mubr.bf16.mxu0 0
        %2330 = vmatmul.mubr.bf16.gmra.mxu0 %v2225
        %v2331 = vpop.f32.mrf.mxu0
        %v2332 = vadd.f32 0.0, %v2331
        %v2333 = vpop.f32.mrf.mxu0
        %v2334 = vadd.f32 0.0, %v2333
        %v2335 = vpop.f32.mrf.mxu0
        %v2336 = vadd.f32 0.0, %v2335
        %v2337 = vpop.f32.mrf.mxu0
        %v2338 = vadd.f32 0.0, %v2337
        %2339 = vdwg.mxu0
        %v2340 = vadd.f32 %v2052, %v2262
        %v2341 = vadd.f32 %v2053, %v2264
        %v2342 = vadd.f32 %v2054, %v2266
        %v2343 = vadd.f32 %v2055, %v2268
        %v2344 = vadd.f32 %v2056, %v2272
        %v2345 = vadd.f32 %v2057, %v2274
        %v2346 = vadd.f32 %v2058, %v2276
        %v2347 = vadd.f32 %v2059, %v2278
        %v2348 = vadd.f32 %v2060, %v2282
        %v2349 = vadd.f32 %v2061, %v2284
        %v2350 = vadd.f32 %v2062, %v2286
        %v2351 = vadd.f32 %v2063, %v2288
        %v2352 = vadd.f32 %v2064, %v2292
        %v2353 = vadd.f32 %v2065, %v2294
        %v2354 = vadd.f32 %v2066, %v2296
        %v2355 = vadd.f32 %v2067, %v2298
        %v2356 = vadd.f32 %v2068, %v2302
        %v2357 = vadd.f32 %v2069, %v2304
        %v2358 = vadd.f32 %v2070, %v2306
        %v2359 = vadd.f32 %v2071, %v2308
        %v2360 = vadd.f32 %v2072, %v2312
        %v2361 = vadd.f32 %v2073, %v2314
        %v2362 = vadd.f32 %v2074, %v2316
        %v2363 = vadd.f32 %v2075, %v2318
        %v2364 = vadd.f32 %v2076, %v2322
        %v2365 = vadd.f32 %v2077, %v2324
        %v2366 = vadd.f32 %v2078, %v2326
        %v2367 = vadd.f32 %v2079, %v2328
        %v2368 = vadd.f32 %v2080, %v2332
        %v2369 = vadd.f32 %v2081, %v2334
        %v2370 = vadd.f32 %v2082, %v2336
        %v2371 = vadd.f32 %v2083, %v2338
        %s2372 = scalar_lea.vmem %s1, 448
        %v2373 = vld [vmem:[%s2372] sm:$0xf]
        %v2374 = vld [vmem:[%s2372 + $0x4] sm:$0xf]
        %v2375 = vld [vmem:[%s2372 + $0x8] sm:$0xf]
        %v2376 = vld [vmem:[%s2372 + $0xc] sm:$0xf]
        %v2377 = vld [vmem:[%s2372 + $0x10] sm:$0xf]
        %v2378 = vld [vmem:[%s2372 + $0x14] sm:$0xf]
        %v2379 = vld [vmem:[%s2372 + $0x18] sm:$0xf]
        %v2380 = vld [vmem:[%s2372 + $0x1c] sm:$0xf]
        %v2381 = vld [vmem:[%s2372 + $0x20] sm:$0xf]
        %v2382 = vld [vmem:[%s2372 + $0x24] sm:$0xf]
        %v2383 = vld [vmem:[%s2372 + $0x28] sm:$0xf]
        %v2384 = vld [vmem:[%s2372 + $0x2c] sm:$0xf]
        %v2385 = vld [vmem:[%s2372 + $0x30] sm:$0xf]
        %v2386 = vld [vmem:[%s2372 + $0x34] sm:$0xf]
        %v2387 = vld [vmem:[%s2372 + $0x38] sm:$0xf]
        %v2388 = vld [vmem:[%s2372 + $0x3c] sm:$0xf]
        %v2405 = vunpack.c.l.b16 %v2373
        %v2406 = vunpack.c.l.b16 %v2374
        %v2407 = vunpack.c.l.b16 %v2375
        %v2408 = vunpack.c.l.b16 %v2376
        %v2409 = vunpack.c.l.b16 %v2377
        %v2410 = vunpack.c.l.b16 %v2378
        %v2411 = vunpack.c.l.b16 %v2379
        %v2412 = vunpack.c.l.b16 %v2380
        %v2413 = vunpack.c.l.b16 %v2381
        %v2414 = vunpack.c.l.b16 %v2382
        %v2415 = vunpack.c.l.b16 %v2383
        %v2416 = vunpack.c.l.b16 %v2384
        %v2417 = vunpack.c.l.b16 %v2385
        %v2418 = vunpack.c.l.b16 %v2386
        %v2419 = vunpack.c.l.b16 %v2387
        %v2420 = vunpack.c.l.b16 %v2388
        %v2421 = vpack.c.b16 %v2406, %v2405
        %v2422 = vpack.c.b16 %v2408, %v2407
        %v2423 = vpack.c.b16 %v2410, %v2409
        %v2424 = vpack.c.b16 %v2412, %v2411
        %v2425 = vpack.c.b16 %v2414, %v2413
        %v2426 = vpack.c.b16 %v2416, %v2415
        %v2427 = vpack.c.b16 %v2418, %v2417
        %v2428 = vpack.c.b16 %v2420, %v2419
        %2429 = vrot.lane.b32.xlu0 %v606, 95
        %v2430 = vpop.permute.xlu0 %2429
        %2431 = vrot.lane.b32.xlu0 %v607, 95
        %v2432 = vpop.permute.xlu0 %2431
        %2433 = vrot.lane.b32.xlu0 %v608, 95
        %v2434 = vpop.permute.xlu0 %2433
        %2435 = vrot.lane.b32.xlu0 %v609, 95
        %v2436 = vpop.permute.xlu0 %2435
        %2437 = vrot.lane.b32.xlu0 %v610, 95
        %v2438 = vpop.permute.xlu0 %2437
        %2439 = vrot.lane.b32.xlu0 %v611, 95
        %v2440 = vpop.permute.xlu0 %2439
        %vm2441 = vcmask 777216
        %v2442 = vsel %vm2441, %v2430, %v2432
        %v2443 = vsel %vm2441, %v2432, %v2434
        %v2444 = vsel %vm2441, %v2436, %v2438
        %v2445 = vsel %vm2441, %v2438, %v2440
        %v2451 = vsel %vm633, %v2421, 0
        %v2454 = vsel %vm633, %v2422, 0
        %v2457 = vsel %vm633, %v2423, 0
        %v2460 = vsel %vm633, %v2424, 0
        %v2463 = vsel %vm633, %v2425, 0
        %v2466 = vsel %vm633, %v2426, 0
        %v2469 = vsel %vm633, %v2427, 0
        %v2472 = vsel %vm633, %v2428, 0
        %2474 = vmatprep.subr.bf16.mxu0 0
        %2475 = vmatpush1.bf16.msra.mxu0 0
        %2476 = vmatprep.subr.bf16.mxu0 0
        %2477 = vmatpush1.bf16.msra.mxu0 0
        %2478 = vmatprep.subr.bf16.mxu0 0
        %2479 = vmatpush1.bf16.msra.mxu0 0
        %2480 = vmatprep.subr.bf16.mxu0 0
        %2481 = vmatpush1.bf16.msra.mxu0 0
        %2482 = vmatprep.subr.bf16.mxu0 0
        %2483 = vmatpush1.bf16.msra.mxu0 0
        %2484 = vmatprep.subr.bf16.mxu0 0
        %2485 = vmatpush1.bf16.msra.mxu0 0
        %2486 = vmatprep.subr.bf16.mxu0 %v2445
        %2487 = vmatpush1.bf16.msra.mxu0 %v2444
        %2488 = vmatprep.subr.bf16.mxu0 %v2443
        %2489 = vmatpush1.bf16.msra.mxu0 %v2442
        %2490 = vmatprep.subr.bf16.mxu0 0
        %2491 = vmatpush2.bf16.msra.mxu0 0
        %2492 = vmatprep.subr.bf16.mxu0 0
        %2493 = vmatpush2.bf16.msra.mxu0 0
        %2494 = vmatprep.subr.bf16.mxu0 0
        %2495 = vmatpush2.bf16.msra.mxu0 0
        %2496 = vmatprep.subr.bf16.mxu0 0
        %2497 = vmatpush2.bf16.msra.mxu0 0
        %2498 = vmatprep.subr.bf16.mxu0 0
        %2499 = vmatpush2.bf16.msra.mxu0 0
        %2500 = vmatprep.subr.bf16.mxu0 0
        %2501 = vmatpush2.bf16.msra.mxu0 0
        %2502 = vmatprep.subr.bf16.mxu0 0
        %2503 = vmatpush2.bf16.msra.mxu0 0
        %2504 = vmatprep.subr.bf16.mxu0 0
        %2505 = vmatpush2.bf16.msra.mxu0 0
        %2506 = vmatprep.mubr.bf16.mxu0 0
        %2507 = vmatmul.mubr.bf16.gmra.mxu0 %v2451
        %v2508 = vpop.f32.mrf.mxu0
        %v2509 = vadd.f32 0.0, %v2508
        %v2510 = vpop.f32.mrf.mxu0
        %v2511 = vadd.f32 0.0, %v2510
        %v2512 = vpop.f32.mrf.mxu0
        %v2513 = vadd.f32 0.0, %v2512
        %v2514 = vpop.f32.mrf.mxu0
        %v2515 = vadd.f32 0.0, %v2514
        %2516 = vmatprep.mubr.bf16.mxu0 0
        %2517 = vmatmul.mubr.bf16.gmra.mxu0 %v2454
        %v2518 = vpop.f32.mrf.mxu0
        %v2519 = vadd.f32 0.0, %v2518
        %v2520 = vpop.f32.mrf.mxu0
        %v2521 = vadd.f32 0.0, %v2520
        %v2522 = vpop.f32.mrf.mxu0
        %v2523 = vadd.f32 0.0, %v2522
        %v2524 = vpop.f32.mrf.mxu0
        %v2525 = vadd.f32 0.0, %v2524
        %2526 = vmatprep.mubr.bf16.mxu0 0
        %2527 = vmatmul.mubr.bf16.gmra.mxu0 %v2457
        %v2528 = vpop.f32.mrf.mxu0
        %v2529 = vadd.f32 0.0, %v2528
        %v2530 = vpop.f32.mrf.mxu0
        %v2531 = vadd.f32 0.0, %v2530
        %v2532 = vpop.f32.mrf.mxu0
        %v2533 = vadd.f32 0.0, %v2532
        %v2534 = vpop.f32.mrf.mxu0
        %v2535 = vadd.f32 0.0, %v2534
        %2536 = vmatprep.mubr.bf16.mxu0 0
        %2537 = vmatmul.mubr.bf16.gmra.mxu0 %v2460
        %v2538 = vpop.f32.mrf.mxu0
        %v2539 = vadd.f32 0.0, %v2538
        %v2540 = vpop.f32.mrf.mxu0
        %v2541 = vadd.f32 0.0, %v2540
        %v2542 = vpop.f32.mrf.mxu0
        %v2543 = vadd.f32 0.0, %v2542
        %v2544 = vpop.f32.mrf.mxu0
        %v2545 = vadd.f32 0.0, %v2544
        %2546 = vmatprep.mubr.bf16.mxu0 0
        %2547 = vmatmul.mubr.bf16.gmra.mxu0 %v2463
        %v2548 = vpop.f32.mrf.mxu0
        %v2549 = vadd.f32 0.0, %v2548
        %v2550 = vpop.f32.mrf.mxu0
        %v2551 = vadd.f32 0.0, %v2550
        %v2552 = vpop.f32.mrf.mxu0
        %v2553 = vadd.f32 0.0, %v2552
        %v2554 = vpop.f32.mrf.mxu0
        %v2555 = vadd.f32 0.0, %v2554
        %2556 = vmatprep.mubr.bf16.mxu0 0
        %2557 = vmatmul.mubr.bf16.gmra.mxu0 %v2466
        %v2558 = vpop.f32.mrf.mxu0
        %v2559 = vadd.f32 0.0, %v2558
        %v2560 = vpop.f32.mrf.mxu0
        %v2561 = vadd.f32 0.0, %v2560
        %v2562 = vpop.f32.mrf.mxu0
        %v2563 = vadd.f32 0.0, %v2562
        %v2564 = vpop.f32.mrf.mxu0
        %v2565 = vadd.f32 0.0, %v2564
        %2566 = vmatprep.mubr.bf16.mxu0 0
        %2567 = vmatmul.mubr.bf16.gmra.mxu0 %v2469
        %v2568 = vpop.f32.mrf.mxu0
        %v2569 = vadd.f32 0.0, %v2568
        %v2570 = vpop.f32.mrf.mxu0
        %v2571 = vadd.f32 0.0, %v2570
        %v2572 = vpop.f32.mrf.mxu0
        %v2573 = vadd.f32 0.0, %v2572
        %v2574 = vpop.f32.mrf.mxu0
        %v2575 = vadd.f32 0.0, %v2574
        %2576 = vmatprep.mubr.bf16.mxu0 0
        %2577 = vmatmul.mubr.bf16.gmra.mxu0 %v2472
        %v2578 = vpop.f32.mrf.mxu0
        %v2579 = vadd.f32 0.0, %v2578
        %v2580 = vpop.f32.mrf.mxu0
        %v2581 = vadd.f32 0.0, %v2580
        %v2582 = vpop.f32.mrf.mxu0
        %v2583 = vadd.f32 0.0, %v2582
        %v2584 = vpop.f32.mrf.mxu0
        %v2585 = vadd.f32 0.0, %v2584
        %2586 = vdwg.mxu0
        %v2587 = vadd.f32 %v2340, %v2509
        %v2588 = vadd.f32 %v2341, %v2511
        %v2589 = vadd.f32 %v2342, %v2513
        %v2590 = vadd.f32 %v2343, %v2515
        %v2591 = vadd.f32 %v2344, %v2519
        %v2592 = vadd.f32 %v2345, %v2521
        %v2593 = vadd.f32 %v2346, %v2523
        %v2594 = vadd.f32 %v2347, %v2525
        %v2595 = vadd.f32 %v2348, %v2529
        %v2596 = vadd.f32 %v2349, %v2531
        %v2597 = vadd.f32 %v2350, %v2533
        %v2598 = vadd.f32 %v2351, %v2535
        %v2599 = vadd.f32 %v2352, %v2539
        %v2600 = vadd.f32 %v2353, %v2541
        %v2601 = vadd.f32 %v2354, %v2543
        %v2602 = vadd.f32 %v2355, %v2545
        %v2603 = vadd.f32 %v2356, %v2549
        %v2604 = vadd.f32 %v2357, %v2551
        %v2605 = vadd.f32 %v2358, %v2553
        %v2606 = vadd.f32 %v2359, %v2555
        %v2607 = vadd.f32 %v2360, %v2559
        %v2608 = vadd.f32 %v2361, %v2561
        %v2609 = vadd.f32 %v2362, %v2563
        %v2610 = vadd.f32 %v2363, %v2565
        %v2611 = vadd.f32 %v2364, %v2569
        %v2612 = vadd.f32 %v2365, %v2571
        %v2613 = vadd.f32 %v2366, %v2573
        %v2614 = vadd.f32 %v2367, %v2575
        %v2615 = vadd.f32 %v2368, %v2579
        %v2616 = vadd.f32 %v2369, %v2581
        %v2617 = vadd.f32 %v2370, %v2583
        %v2618 = vadd.f32 %v2371, %v2585
        %2619 = vrot.lane.b32.xlu0 %v972, 34
        %v2620 = vpop.permute.xlu0 %2619
        %v2621 = vrot.slane %v2620, 4
        %vm2622 = vcmask 277504
        %v2623 = vsel %vm2622, %v2621, %v2620
        %v2626 = vmul.bf16 %v495, %v2623
        %v2627 = vmul.bf16 %v525, %v2621
        %v2628 = vmul.bf16 %v496, %v2623
        %v2629 = vmul.bf16 %v526, %v2621
        %v2630 = vmul.bf16 %v497, %v2623
        %v2631 = vmul.bf16 %v527, %v2621
        %v2632 = vmul.bf16 %v498, %v2623
        %v2633 = vmul.bf16 %v528, %v2621
        %s2634 = scalar_lea.vmem %s1, 512
        %v2635 = vld [vmem:[%s2634] sm:$0xf]
        %v2636 = vld [vmem:[%s2634 + $0x4] sm:$0xf]
        %v2637 = vld [vmem:[%s2634 + $0x8] sm:$0xf]
        %v2638 = vld [vmem:[%s2634 + $0xc] sm:$0xf]
        %v2639 = vld [vmem:[%s2634 + $0x10] sm:$0xf]
        %v2640 = vld [vmem:[%s2634 + $0x14] sm:$0xf]
        %v2641 = vld [vmem:[%s2634 + $0x18] sm:$0xf]
        %v2642 = vld [vmem:[%s2634 + $0x1c] sm:$0xf]
        %v2643 = vld [vmem:[%s2634 + $0x20] sm:$0xf]
        %v2644 = vld [vmem:[%s2634 + $0x24] sm:$0xf]
        %v2645 = vld [vmem:[%s2634 + $0x28] sm:$0xf]
        %v2646 = vld [vmem:[%s2634 + $0x2c] sm:$0xf]
        %v2647 = vld [vmem:[%s2634 + $0x30] sm:$0xf]
        %v2648 = vld [vmem:[%s2634 + $0x34] sm:$0xf]
        %v2649 = vld [vmem:[%s2634 + $0x38] sm:$0xf]
        %v2650 = vld [vmem:[%s2634 + $0x3c] sm:$0xf]
        %v2667 = vunpack.c.l.b16 %v2635
        %v2668 = vunpack.c.l.b16 %v2636
        %v2669 = vunpack.c.l.b16 %v2637
        %v2670 = vunpack.c.l.b16 %v2638
        %v2671 = vunpack.c.l.b16 %v2639
        %v2672 = vunpack.c.l.b16 %v2640
        %v2673 = vunpack.c.l.b16 %v2641
        %v2674 = vunpack.c.l.b16 %v2642
        %v2675 = vunpack.c.l.b16 %v2643
        %v2676 = vunpack.c.l.b16 %v2644
        %v2677 = vunpack.c.l.b16 %v2645
        %v2678 = vunpack.c.l.b16 %v2646
        %v2679 = vunpack.c.l.b16 %v2647
        %v2680 = vunpack.c.l.b16 %v2648
        %v2681 = vunpack.c.l.b16 %v2649
        %v2682 = vunpack.c.l.b16 %v2650
        %v2683 = vpack.c.b16 %v2668, %v2667
        %v2684 = vpack.c.b16 %v2670, %v2669
        %v2685 = vpack.c.b16 %v2672, %v2671
        %v2686 = vpack.c.b16 %v2674, %v2673
        %v2687 = vpack.c.b16 %v2676, %v2675
        %v2688 = vpack.c.b16 %v2678, %v2677
        %v2689 = vpack.c.b16 %v2680, %v2679
        %v2690 = vpack.c.b16 %v2682, %v2681
        %v2699 = vunpack.c.l.b16 %v2626
        %v2700 = vunpack.c.h.b16 %v2626
        %v2701 = vunpack.c.l.b16 %v2627
        %v2702 = vunpack.c.l.b16 %v2628
        %v2703 = vunpack.c.h.b16 %v2628
        %v2704 = vunpack.c.l.b16 %v2629
        %v2705 = vunpack.c.l.b16 %v2630
        %v2706 = vunpack.c.h.b16 %v2630
        %v2707 = vunpack.c.l.b16 %v2631
        %v2708 = vunpack.c.l.b16 %v2632
        %v2709 = vunpack.c.h.b16 %v2632
        %v2710 = vunpack.c.l.b16 %v2633
        %v2711 = vpack.c.b16 %v2702, %v2699
        %v2712 = vpack.c.b16 %v2703, %v2700
        %v2713 = vpack.c.b16 %v2704, %v2701
        %v2714 = vpack.c.b16 %v2708, %v2705
        %v2715 = vpack.c.b16 %v2709, %v2706
        %v2716 = vpack.c.b16 %v2710, %v2707
        %2717 = vrot.lane.b32.xlu0 %v2711, 94
        %v2718 = vpop.permute.xlu0 %2717
        %2719 = vrot.lane.b32.xlu0 %v2712, 94
        %v2720 = vpop.permute.xlu0 %2719
        %2721 = vrot.lane.b32.xlu0 %v2713, 94
        %v2722 = vpop.permute.xlu0 %2721
        %2723 = vrot.lane.b32.xlu0 %v2714, 94
        %v2724 = vpop.permute.xlu0 %2723
        %2725 = vrot.lane.b32.xlu0 %v2715, 94
        %v2726 = vpop.permute.xlu0 %2725
        %2727 = vrot.lane.b32.xlu0 %v2716, 94
        %v2728 = vpop.permute.xlu0 %2727
        %vm2729 = vcmask 769024
        %v2730 = vsel %vm2729, %v2718, %v2720
        %v2731 = vsel %vm2729, %v2720, %v2722
        %v2732 = vsel %vm2729, %v2724, %v2726
        %v2733 = vsel %vm2729, %v2726, %v2728
        %v2739 = vsel %vm633, %v2683, 0
        %v2742 = vsel %vm633, %v2684, 0
        %v2745 = vsel %vm633, %v2685, 0
        %v2748 = vsel %vm633, %v2686, 0
        %v2751 = vsel %vm633, %v2687, 0
        %v2754 = vsel %vm633, %v2688, 0
        %v2757 = vsel %vm633, %v2689, 0
        %v2760 = vsel %vm633, %v2690, 0
        %2762 = vmatprep.subr.bf16.mxu0 0
        %2763 = vmatpush1.bf16.msra.mxu0 0
        %2764 = vmatprep.subr.bf16.mxu0 0
        %2765 = vmatpush1.bf16.msra.mxu0 0
        %2766 = vmatprep.subr.bf16.mxu0 0
        %2767 = vmatpush1.bf16.msra.mxu0 0
        %2768 = vmatprep.subr.bf16.mxu0 0
        %2769 = vmatpush1.bf16.msra.mxu0 0
        %2770 = vmatprep.subr.bf16.mxu0 0
        %2771 = vmatpush1.bf16.msra.mxu0 0
        %2772 = vmatprep.subr.bf16.mxu0 0
        %2773 = vmatpush1.bf16.msra.mxu0 0
        %2774 = vmatprep.subr.bf16.mxu0 %v2733
        %2775 = vmatpush1.bf16.msra.mxu0 %v2732
        %2776 = vmatprep.subr.bf16.mxu0 %v2731
        %2777 = vmatpush1.bf16.msra.mxu0 %v2730
        %2778 = vmatprep.subr.bf16.mxu0 0
        %2779 = vmatpush2.bf16.msra.mxu0 0
        %2780 = vmatprep.subr.bf16.mxu0 0
        %2781 = vmatpush2.bf16.msra.mxu0 0
        %2782 = vmatprep.subr.bf16.mxu0 0
        %2783 = vmatpush2.bf16.msra.mxu0 0
        %2784 = vmatprep.subr.bf16.mxu0 0
        %2785 = vmatpush2.bf16.msra.mxu0 0
        %2786 = vmatprep.subr.bf16.mxu0 0
        %2787 = vmatpush2.bf16.msra.mxu0 0
        %2788 = vmatprep.subr.bf16.mxu0 0
        %2789 = vmatpush2.bf16.msra.mxu0 0
        %2790 = vmatprep.subr.bf16.mxu0 0
        %2791 = vmatpush2.bf16.msra.mxu0 0
        %2792 = vmatprep.subr.bf16.mxu0 0
        %2793 = vmatpush2.bf16.msra.mxu0 0
        %2794 = vmatprep.mubr.bf16.mxu0 0
        %2795 = vmatmul.mubr.bf16.gmra.mxu0 %v2739
        %v2796 = vpop.f32.mrf.mxu0
        %v2797 = vadd.f32 0.0, %v2796
        %v2798 = vpop.f32.mrf.mxu0
        %v2799 = vadd.f32 0.0, %v2798
        %v2800 = vpop.f32.mrf.mxu0
        %v2801 = vadd.f32 0.0, %v2800
        %v2802 = vpop.f32.mrf.mxu0
        %v2803 = vadd.f32 0.0, %v2802
        %2804 = vmatprep.mubr.bf16.mxu0 0
        %2805 = vmatmul.mubr.bf16.gmra.mxu0 %v2742
        %v2806 = vpop.f32.mrf.mxu0
        %v2807 = vadd.f32 0.0, %v2806
        %v2808 = vpop.f32.mrf.mxu0
        %v2809 = vadd.f32 0.0, %v2808
        %v2810 = vpop.f32.mrf.mxu0
        %v2811 = vadd.f32 0.0, %v2810
        %v2812 = vpop.f32.mrf.mxu0
        %v2813 = vadd.f32 0.0, %v2812
        %2814 = vmatprep.mubr.bf16.mxu0 0
        %2815 = vmatmul.mubr.bf16.gmra.mxu0 %v2745
        %v2816 = vpop.f32.mrf.mxu0
        %v2817 = vadd.f32 0.0, %v2816
        %v2818 = vpop.f32.mrf.mxu0
        %v2819 = vadd.f32 0.0, %v2818
        %v2820 = vpop.f32.mrf.mxu0
        %v2821 = vadd.f32 0.0, %v2820
        %v2822 = vpop.f32.mrf.mxu0
        %v2823 = vadd.f32 0.0, %v2822
        %2824 = vmatprep.mubr.bf16.mxu0 0
        %2825 = vmatmul.mubr.bf16.gmra.mxu0 %v2748
        %v2826 = vpop.f32.mrf.mxu0
        %v2827 = vadd.f32 0.0, %v2826
        %v2828 = vpop.f32.mrf.mxu0
        %v2829 = vadd.f32 0.0, %v2828
        %v2830 = vpop.f32.mrf.mxu0
        %v2831 = vadd.f32 0.0, %v2830
        %v2832 = vpop.f32.mrf.mxu0
        %v2833 = vadd.f32 0.0, %v2832
        %2834 = vmatprep.mubr.bf16.mxu0 0
        %2835 = vmatmul.mubr.bf16.gmra.mxu0 %v2751
        %v2836 = vpop.f32.mrf.mxu0
        %v2837 = vadd.f32 0.0, %v2836
        %v2838 = vpop.f32.mrf.mxu0
        %v2839 = vadd.f32 0.0, %v2838
        %v2840 = vpop.f32.mrf.mxu0
        %v2841 = vadd.f32 0.0, %v2840
        %v2842 = vpop.f32.mrf.mxu0
        %v2843 = vadd.f32 0.0, %v2842
        %2844 = vmatprep.mubr.bf16.mxu0 0
        %2845 = vmatmul.mubr.bf16.gmra.mxu0 %v2754
        %v2846 = vpop.f32.mrf.mxu0
        %v2847 = vadd.f32 0.0, %v2846
        %v2848 = vpop.f32.mrf.mxu0
        %v2849 = vadd.f32 0.0, %v2848
        %v2850 = vpop.f32.mrf.mxu0
        %v2851 = vadd.f32 0.0, %v2850
        %v2852 = vpop.f32.mrf.mxu0
        %v2853 = vadd.f32 0.0, %v2852
        %2854 = vmatprep.mubr.bf16.mxu0 0
        %2855 = vmatmul.mubr.bf16.gmra.mxu0 %v2757
        %v2856 = vpop.f32.mrf.mxu0
        %v2857 = vadd.f32 0.0, %v2856
        %v2858 = vpop.f32.mrf.mxu0
        %v2859 = vadd.f32 0.0, %v2858
        %v2860 = vpop.f32.mrf.mxu0
        %v2861 = vadd.f32 0.0, %v2860
        %v2862 = vpop.f32.mrf.mxu0
        %v2863 = vadd.f32 0.0, %v2862
        %2864 = vmatprep.mubr.bf16.mxu0 0
        %2865 = vmatmul.mubr.bf16.gmra.mxu0 %v2760
        %v2866 = vpop.f32.mrf.mxu0
        %v2867 = vadd.f32 0.0, %v2866
        %v2868 = vpop.f32.mrf.mxu0
        %v2869 = vadd.f32 0.0, %v2868
        %v2870 = vpop.f32.mrf.mxu0
        %v2871 = vadd.f32 0.0, %v2870
        %v2872 = vpop.f32.mrf.mxu0
        %v2873 = vadd.f32 0.0, %v2872
        %2874 = vdwg.mxu0
        %v2875 = vadd.f32 %v2587, %v2797
        %v2876 = vadd.f32 %v2588, %v2799
        %v2877 = vadd.f32 %v2589, %v2801
        %v2878 = vadd.f32 %v2590, %v2803
        %v2879 = vadd.f32 %v2591, %v2807
        %v2880 = vadd.f32 %v2592, %v2809
        %v2881 = vadd.f32 %v2593, %v2811
        %v2882 = vadd.f32 %v2594, %v2813
        %v2883 = vadd.f32 %v2595, %v2817
        %v2884 = vadd.f32 %v2596, %v2819
        %v2885 = vadd.f32 %v2597, %v2821
        %v2886 = vadd.f32 %v2598, %v2823
        %v2887 = vadd.f32 %v2599, %v2827
        %v2888 = vadd.f32 %v2600, %v2829
        %v2889 = vadd.f32 %v2601, %v2831
        %v2890 = vadd.f32 %v2602, %v2833
        %v2891 = vadd.f32 %v2603, %v2837
        %v2892 = vadd.f32 %v2604, %v2839
        %v2893 = vadd.f32 %v2605, %v2841
        %v2894 = vadd.f32 %v2606, %v2843
        %v2895 = vadd.f32 %v2607, %v2847
        %v2896 = vadd.f32 %v2608, %v2849
        %v2897 = vadd.f32 %v2609, %v2851
        %v2898 = vadd.f32 %v2610, %v2853
        %v2899 = vadd.f32 %v2611, %v2857
        %v2900 = vadd.f32 %v2612, %v2859
        %v2901 = vadd.f32 %v2613, %v2861
        %v2902 = vadd.f32 %v2614, %v2863
        %v2903 = vadd.f32 %v2615, %v2867
        %v2904 = vadd.f32 %v2616, %v2869
        %v2905 = vadd.f32 %v2617, %v2871
        %v2906 = vadd.f32 %v2618, %v2873
        %v2907 = vld [vmem:[%s2] sm:$0xff]
        %v2908 = vld [vmem:[%s2 + $0x8] sm:$0xff]
        %v2909 = vld [vmem:[%s2 + $0x10] sm:$0xff]
        %v2910 = vld [vmem:[%s2 + $0x18] sm:$0xff]
        %v2911 = vld [vmem:[%s2 + $0x20] sm:$0xff]
        %v2912 = vld [vmem:[%s2 + $0x28] sm:$0xff]
        %v2913 = vld [vmem:[%s2 + $0x30] sm:$0xff]
        %v2914 = vld [vmem:[%s2 + $0x38] sm:$0xff]
        %v2915 = vld [vmem:[%s2 + $0x40] sm:$0xff]
        %v2916 = vld [vmem:[%s2 + $0x48] sm:$0xff]
        %v2917 = vld [vmem:[%s2 + $0x50] sm:$0xff]
        %v2918 = vld [vmem:[%s2 + $0x58] sm:$0xff]
        %v2919 = vld [vmem:[%s2 + $0x60] sm:$0xff]
        %v2920 = vld [vmem:[%s2 + $0x68] sm:$0xff]
        %v2921 = vld [vmem:[%s2 + $0x70] sm:$0xff]
        %v2922 = vld [vmem:[%s2 + $0x78] sm:$0xff]
        %2924 = vset.pattern.permute.xlu0 0
        %2925 = vperm.xlu0 %2924, %v2907
        %v2926 = vpop.permute.xlu0 %2925
        %2929 = vset.pattern.permute.xlu0 0
        %2930 = vperm.xlu0 %2929, %v2908
        %v2931 = vpop.permute.xlu0 %2930
        %2934 = vset.pattern.permute.xlu0 0
        %2935 = vperm.xlu0 %2934, %v2909
        %v2936 = vpop.permute.xlu0 %2935
        %2939 = vset.pattern.permute.xlu0 0
        %2940 = vperm.xlu0 %2939, %v2910
        %v2941 = vpop.permute.xlu0 %2940
        %2944 = vset.pattern.permute.xlu0 0
        %2945 = vperm.xlu0 %2944, %v2911
        %v2946 = vpop.permute.xlu0 %2945
        %2949 = vset.pattern.permute.xlu0 0
        %2950 = vperm.xlu0 %2949, %v2912
        %v2951 = vpop.permute.xlu0 %2950
        %2954 = vset.pattern.permute.xlu0 0
        %2955 = vperm.xlu0 %2954, %v2913
        %v2956 = vpop.permute.xlu0 %2955
        %2959 = vset.pattern.permute.xlu0 0
        %2960 = vperm.xlu0 %2959, %v2914
        %v2961 = vpop.permute.xlu0 %2960
        %2964 = vset.pattern.permute.xlu0 0
        %2965 = vperm.xlu0 %2964, %v2915
        %v2966 = vpop.permute.xlu0 %2965
        %2969 = vset.pattern.permute.xlu0 0
        %2970 = vperm.xlu0 %2969, %v2916
        %v2971 = vpop.permute.xlu0 %2970
        %2974 = vset.pattern.permute.xlu0 0
        %2975 = vperm.xlu0 %2974, %v2917
        %v2976 = vpop.permute.xlu0 %2975
        %2979 = vset.pattern.permute.xlu0 0
        %2980 = vperm.xlu0 %2979, %v2918
        %v2981 = vpop.permute.xlu0 %2980
        %2984 = vset.pattern.permute.xlu0 0
        %2985 = vperm.xlu0 %2984, %v2919
        %v2986 = vpop.permute.xlu0 %2985
        %2989 = vset.pattern.permute.xlu0 0
        %2990 = vperm.xlu0 %2989, %v2920
        %v2991 = vpop.permute.xlu0 %2990
        %2994 = vset.pattern.permute.xlu0 0
        %2995 = vperm.xlu0 %2994, %v2921
        %v2996 = vpop.permute.xlu0 %2995
        %2999 = vset.pattern.permute.xlu0 0
        %3000 = vperm.xlu0 %2999, %v2922
        %v3001 = vpop.permute.xlu0 %3000
        %v3003 = vadd.f32 %v2875, %v2926
        %v3004 = vadd.f32 %v2876, %v2926
        %v3005 = vadd.f32 %v2877, %v2931
        %v3006 = vadd.f32 %v2878, %v2931
        %v3007 = vadd.f32 %v2879, %v2936
        %v3008 = vadd.f32 %v2880, %v2936
        %v3009 = vadd.f32 %v2881, %v2941
        %v3010 = vadd.f32 %v2882, %v2941
        %v3011 = vadd.f32 %v2883, %v2946
        %v3012 = vadd.f32 %v2884, %v2946
        %v3013 = vadd.f32 %v2885, %v2951
        %v3014 = vadd.f32 %v2886, %v2951
        %v3015 = vadd.f32 %v2887, %v2956
        %v3016 = vadd.f32 %v2888, %v2956
        %v3017 = vadd.f32 %v2889, %v2961
        %v3018 = vadd.f32 %v2890, %v2961
        %v3019 = vadd.f32 %v2891, %v2966
        %v3020 = vadd.f32 %v2892, %v2966
        %v3021 = vadd.f32 %v2893, %v2971
        %v3022 = vadd.f32 %v2894, %v2971
        %v3023 = vadd.f32 %v2895, %v2976
        %v3024 = vadd.f32 %v2896, %v2976
        %v3025 = vadd.f32 %v2897, %v2981
        %v3026 = vadd.f32 %v2898, %v2981
        %v3027 = vadd.f32 %v2899, %v2986
        %v3028 = vadd.f32 %v2900, %v2986
        %v3029 = vadd.f32 %v2901, %v2991
        %v3030 = vadd.f32 %v2902, %v2991
        %v3031 = vadd.f32 %v2903, %v2996
        %v3032 = vadd.f32 %v2904, %v2996
        %v3033 = vadd.f32 %v2905, %v3001
        %v3034 = vadd.f32 %v2906, %v3001
        %v3035 = vmul.f32 %v3003, 0.1
        %v3036 = vmul.f32 %v3004, 0.1
        %v3037 = vmul.f32 %v3005, 0.1
        %v3038 = vmul.f32 %v3006, 0.1
        %v3039 = vmul.f32 %v3007, 0.1
        %v3040 = vmul.f32 %v3008, 0.1
        %v3041 = vmul.f32 %v3009, 0.1
        %v3042 = vmul.f32 %v3010, 0.1
        %v3043 = vmul.f32 %v3011, 0.1
        %v3044 = vmul.f32 %v3012, 0.1
        %v3045 = vmul.f32 %v3013, 0.1
        %v3046 = vmul.f32 %v3014, 0.1
        %v3047 = vmul.f32 %v3015, 0.1
        %v3048 = vmul.f32 %v3016, 0.1
        %v3049 = vmul.f32 %v3017, 0.1
        %v3050 = vmul.f32 %v3018, 0.1
        %v3051 = vmul.f32 %v3019, 0.1
        %v3052 = vmul.f32 %v3020, 0.1
        %v3053 = vmul.f32 %v3021, 0.1
        %v3054 = vmul.f32 %v3022, 0.1
        %v3055 = vmul.f32 %v3023, 0.1
        %v3056 = vmul.f32 %v3024, 0.1
        %v3057 = vmul.f32 %v3025, 0.1
        %v3058 = vmul.f32 %v3026, 0.1
        %v3059 = vmul.f32 %v3027, 0.1
        %v3060 = vmul.f32 %v3028, 0.1
        %v3061 = vmul.f32 %v3029, 0.1
        %v3062 = vmul.f32 %v3030, 0.1
        %v3063 = vmul.f32 %v3031, 0.1
        %v3064 = vmul.f32 %v3032, 0.1
        %v3065 = vmul.f32 %v3033, 0.1
        %v3066 = vmul.f32 %v3034, 0.1
        %v3067 = vmax.f32 %v3003, %v3035
        %v3068 = vmax.f32 %v3004, %v3036
        %v3069 = vmax.f32 %v3005, %v3037
        %v3070 = vmax.f32 %v3006, %v3038
        %v3071 = vmax.f32 %v3007, %v3039
        %v3072 = vmax.f32 %v3008, %v3040
        %v3073 = vmax.f32 %v3009, %v3041
        %v3074 = vmax.f32 %v3010, %v3042
        %v3075 = vmax.f32 %v3011, %v3043
        %v3076 = vmax.f32 %v3012, %v3044
        %v3077 = vmax.f32 %v3013, %v3045
        %v3078 = vmax.f32 %v3014, %v3046
        %v3079 = vmax.f32 %v3015, %v3047
        %v3080 = vmax.f32 %v3016, %v3048
        %v3081 = vmax.f32 %v3017, %v3049
        %v3082 = vmax.f32 %v3018, %v3050
        %v3083 = vmax.f32 %v3019, %v3051
        %v3084 = vmax.f32 %v3020, %v3052
        %v3085 = vmax.f32 %v3021, %v3053
        %v3086 = vmax.f32 %v3022, %v3054
        %v3087 = vmax.f32 %v3023, %v3055
        %v3088 = vmax.f32 %v3024, %v3056
        %v3089 = vmax.f32 %v3025, %v3057
        %v3090 = vmax.f32 %v3026, %v3058
        %v3091 = vmax.f32 %v3027, %v3059
        %v3092 = vmax.f32 %v3028, %v3060
        %v3093 = vmax.f32 %v3029, %v3061
        %v3094 = vmax.f32 %v3030, %v3062
        %v3095 = vmax.f32 %v3031, %v3063
        %v3096 = vmax.f32 %v3032, %v3064
        %v3097 = vmax.f32 %v3033, %v3065
        %v3098 = vmax.f32 %v3034, %v3066
        %v3099 = vpack.c.bf16 %v3069, %v3067
        %v3100 = vpack.c.bf16 %v3070, %v3068
        %v3101 = vpack.c.bf16 %v3073, %v3071
        %v3102 = vpack.c.bf16 %v3074, %v3072
        %v3103 = vpack.c.bf16 %v3077, %v3075
        %v3104 = vpack.c.bf16 %v3078, %v3076
        %v3105 = vpack.c.bf16 %v3081, %v3079
        %v3106 = vpack.c.bf16 %v3082, %v3080
        %v3107 = vpack.c.bf16 %v3085, %v3083
        %v3108 = vpack.c.bf16 %v3086, %v3084
        %v3109 = vpack.c.bf16 %v3089, %v3087
        %v3110 = vpack.c.bf16 %v3090, %v3088
        %v3111 = vpack.c.bf16 %v3093, %v3091
        %v3112 = vpack.c.bf16 %v3094, %v3092
        %v3113 = vpack.c.bf16 %v3097, %v3095
        %v3114 = vpack.c.bf16 %v3098, %v3096
        %v3115 = vld [vmem:[%s3] sm:$0xf]
        %v3116 = vld [vmem:[%s3 + $0x4] sm:$0xf]
        %v3117 = vld [vmem:[%s3 + $0x8] sm:$0xf]
        %v3118 = vld [vmem:[%s3 + $0xc] sm:$0xf]
        %v3119 = vld [vmem:[%s3 + $0x10] sm:$0xf]
        %v3120 = vld [vmem:[%s3 + $0x14] sm:$0xf]
        %v3121 = vld [vmem:[%s3 + $0x18] sm:$0xf]
        %v3122 = vld [vmem:[%s3 + $0x1c] sm:$0xf]
        %v3123 = vld [vmem:[%s4] sm:$0xff]
        %v3124 = vld [vmem:[%s4 + $0x8] sm:$0xff]
        %v3125 = vld [vmem:[%s4 + $0x10] sm:$0xff]
        %v3126 = vld [vmem:[%s4 + $0x18] sm:$0xff]
        %v3127 = vld [vmem:[%s4 + $0x20] sm:$0xff]
        %v3128 = vld [vmem:[%s4 + $0x28] sm:$0xff]
        %v3129 = vld [vmem:[%s4 + $0x30] sm:$0xff]
        %v3130 = vld [vmem:[%s4 + $0x38] sm:$0xff]
        %3132 = vset.pattern.permute.xlu0 0
        %3133 = vperm.xlu0 %3132, %v3123
        %v3134 = vpop.permute.xlu0 %3133
        %3137 = vset.pattern.permute.xlu0 0
        %3138 = vperm.xlu0 %3137, %v3124
        %v3139 = vpop.permute.xlu0 %3138
        %3142 = vset.pattern.permute.xlu0 0
        %3143 = vperm.xlu0 %3142, %v3125
        %v3144 = vpop.permute.xlu0 %3143
        %3147 = vset.pattern.permute.xlu0 0
        %3148 = vperm.xlu0 %3147, %v3126
        %v3149 = vpop.permute.xlu0 %3148
        %3152 = vset.pattern.permute.xlu0 0
        %3153 = vperm.xlu0 %3152, %v3127
        %v3154 = vpop.permute.xlu0 %3153
        %3157 = vset.pattern.permute.xlu0 0
        %3158 = vperm.xlu0 %3157, %v3128
        %v3159 = vpop.permute.xlu0 %3158
        %3162 = vset.pattern.permute.xlu0 0
        %3163 = vperm.xlu0 %3162, %v3129
        %v3164 = vpop.permute.xlu0 %3163
        %3167 = vset.pattern.permute.xlu0 0
        %3168 = vperm.xlu0 %3167, %v3130
        %v3169 = vpop.permute.xlu0 %3168
        %v3179 = vunpack.c.l.b16 %v3115
        %v3180 = vunpack.c.l.b16 %v3116
        %v3181 = vunpack.c.l.b16 %v3117
        %v3182 = vunpack.c.l.b16 %v3118
        %v3183 = vunpack.c.l.b16 %v3119
        %v3184 = vunpack.c.l.b16 %v3120
        %v3185 = vunpack.c.l.b16 %v3121
        %v3186 = vunpack.c.l.b16 %v3122
        %v3187 = vpack.c.b16 %v3180, %v3179
        %v3188 = vpack.c.b16 %v3182, %v3181
        %v3189 = vpack.c.b16 %v3184, %v3183
        %v3190 = vpack.c.b16 %v3186, %v3185
        %3195 = vmatprep.subr.bf16.mxu0 %v3114
        %3196 = vmatpush1.bf16.msra.mxu0 %v3113
        %3197 = vmatprep.subr.bf16.mxu0 %v3112
        %3198 = vmatpush1.bf16.msra.mxu0 %v3111
        %3199 = vmatprep.subr.bf16.mxu0 %v3110
        %3200 = vmatpush1.bf16.msra.mxu0 %v3109
        %3201 = vmatprep.subr.bf16.mxu0 %v3108
        %3202 = vmatpush1.bf16.msra.mxu0 %v3107
        %3203 = vmatprep.subr.bf16.mxu0 %v3106
        %3204 = vmatpush1.bf16.msra.mxu0 %v3105
        %3205 = vmatprep.subr.bf16.mxu0 %v3104
        %3206 = vmatpush1.bf16.msra.mxu0 %v3103
        %3207 = vmatprep.subr.bf16.mxu0 %v3102
        %3208 = vmatpush1.bf16.msra.mxu0 %v3101
        %3209 = vmatprep.subr.bf16.mxu0 %v3100
        %3210 = vmatpush1.bf16.msra.mxu0 %v3099
        %3211 = vmatprep.subr.bf16.mxu0 0
        %3212 = vmatpush2.bf16.msra.mxu0 0
        %3213 = vmatprep.subr.bf16.mxu0 0
        %3214 = vmatpush2.bf16.msra.mxu0 0
        %3215 = vmatprep.subr.bf16.mxu0 0
        %3216 = vmatpush2.bf16.msra.mxu0 0
        %3217 = vmatprep.subr.bf16.mxu0 0
        %3218 = vmatpush2.bf16.msra.mxu0 0
        %3219 = vmatprep.subr.bf16.mxu0 0
        %3220 = vmatpush2.bf16.msra.mxu0 0
        %3221 = vmatprep.subr.bf16.mxu0 0
        %3222 = vmatpush2.bf16.msra.mxu0 0
        %3223 = vmatprep.subr.bf16.mxu0 0
        %3224 = vmatpush2.bf16.msra.mxu0 0
        %3225 = vmatprep.subr.bf16.mxu0 0
        %3226 = vmatpush2.bf16.msra.mxu0 0
        %3227 = vmatprep.mubr.bf16.mxu0 0
        %3228 = vmatmul.mubr.bf16.gmra.mxu0 %v3187
        %v3229 = vpop.f32.mrf.mxu0
        %v3230 = vadd.f32 %v3134, %v3229
        %v3231 = vpop.f32.mrf.mxu0
        %v3232 = vadd.f32 %v3134, %v3231
        %v3233 = vpop.f32.mrf.mxu0
        %v3234 = vadd.f32 %v3139, %v3233
        %v3235 = vpop.f32.mrf.mxu0
        %v3236 = vadd.f32 %v3139, %v3235
        %3237 = vmatprep.mubr.bf16.mxu0 0
        %3238 = vmatmul.mubr.bf16.gmra.mxu0 %v3188
        %v3239 = vpop.f32.mrf.mxu0
        %v3240 = vadd.f32 %v3144, %v3239
        %v3241 = vpop.f32.mrf.mxu0
        %v3242 = vadd.f32 %v3144, %v3241
        %v3243 = vpop.f32.mrf.mxu0
        %v3244 = vadd.f32 %v3149, %v3243
        %v3245 = vpop.f32.mrf.mxu0
        %v3246 = vadd.f32 %v3149, %v3245
        %3247 = vmatprep.mubr.bf16.mxu0 0
        %3248 = vmatmul.mubr.bf16.gmra.mxu0 %v3189
        %v3249 = vpop.f32.mrf.mxu0
        %v3250 = vadd.f32 %v3154, %v3249
        %v3251 = vpop.f32.mrf.mxu0
        %v3252 = vadd.f32 %v3154, %v3251
        %v3253 = vpop.f32.mrf.mxu0
        %v3254 = vadd.f32 %v3159, %v3253
        %v3255 = vpop.f32.mrf.mxu0
        %v3256 = vadd.f32 %v3159, %v3255
        %3257 = vmatprep.mubr.bf16.mxu0 0
        %3258 = vmatmul.mubr.bf16.gmra.mxu0 %v3190
        %v3259 = vpop.f32.mrf.mxu0
        %v3260 = vadd.f32 %v3164, %v3259
        %v3261 = vpop.f32.mrf.mxu0
        %v3262 = vadd.f32 %v3164, %v3261
        %v3263 = vpop.f32.mrf.mxu0
        %v3264 = vadd.f32 %v3169, %v3263
        %v3265 = vpop.f32.mrf.mxu0
        %v3266 = vadd.f32 %v3169, %v3265
        %3267 = vdwg.mxu0
        %v3268 = vmul.f32 %v3230, 0.1
        %v3269 = vmul.f32 %v3232, 0.1
        %v3270 = vmul.f32 %v3234, 0.1
        %v3271 = vmul.f32 %v3236, 0.1
        %v3272 = vmul.f32 %v3240, 0.1
        %v3273 = vmul.f32 %v3242, 0.1
        %v3274 = vmul.f32 %v3244, 0.1
        %v3275 = vmul.f32 %v3246, 0.1
        %v3276 = vmul.f32 %v3250, 0.1
        %v3277 = vmul.f32 %v3252, 0.1
        %v3278 = vmul.f32 %v3254, 0.1
        %v3279 = vmul.f32 %v3256, 0.1
        %v3280 = vmul.f32 %v3260, 0.1
        %v3281 = vmul.f32 %v3262, 0.1
        %v3282 = vmul.f32 %v3264, 0.1
        %v3283 = vmul.f32 %v3266, 0.1
        %v3284 = vmax.f32 %v3230, %v3268
        %v3285 = vmax.f32 %v3232, %v3269
        %v3286 = vmax.f32 %v3234, %v3270
        %v3287 = vmax.f32 %v3236, %v3271
        %v3288 = vmax.f32 %v3240, %v3272
        %v3289 = vmax.f32 %v3242, %v3273
        %v3290 = vmax.f32 %v3244, %v3274
        %v3291 = vmax.f32 %v3246, %v3275
        %v3292 = vmax.f32 %v3250, %v3276
        %v3293 = vmax.f32 %v3252, %v3277
        %v3294 = vmax.f32 %v3254, %v3278
        %v3295 = vmax.f32 %v3256, %v3279
        %v3296 = vmax.f32 %v3260, %v3280
        %v3297 = vmax.f32 %v3262, %v3281
        %v3298 = vmax.f32 %v3264, %v3282
        %v3299 = vmax.f32 %v3266, %v3283
        %v3300 = vpack.c.bf16 %v3286, %v3284
        %v3301 = vpack.c.bf16 %v3287, %v3285
        %v3302 = vpack.c.bf16 %v3290, %v3288
        %v3303 = vpack.c.bf16 %v3291, %v3289
        %v3304 = vpack.c.bf16 %v3294, %v3292
        %v3305 = vpack.c.bf16 %v3295, %v3293
        %v3306 = vpack.c.bf16 %v3298, %v3296
        %v3307 = vpack.c.bf16 %v3299, %v3297
        %v3316 = vunpack.c.l.b16 %v3300
        %v3317 = vunpack.c.l.b16 %v3301
        %v3318 = vunpack.c.h.b16 %v3300
        %v3319 = vunpack.c.h.b16 %v3301
        %v3320 = vunpack.c.l.b16 %v3302
        %v3321 = vunpack.c.l.b16 %v3303
        %v3322 = vunpack.c.h.b16 %v3302
        %v3323 = vunpack.c.h.b16 %v3303
        %v3324 = vunpack.c.l.b16 %v3304
        %v3325 = vunpack.c.l.b16 %v3305
        %v3326 = vunpack.c.h.b16 %v3304
        %v3327 = vunpack.c.h.b16 %v3305
        %v3328 = vunpack.c.l.b16 %v3306
        %v3329 = vunpack.c.l.b16 %v3307
        %v3330 = vunpack.c.h.b16 %v3306
        %v3331 = vunpack.c.h.b16 %v3307
        %v3332 = vpack.c.b16 %v3317, %v3316
        %v3333 = vpack.c.b16 %v3319, %v3318
        %v3334 = vpack.c.b16 %v3321, %v3320
        %v3335 = vpack.c.b16 %v3323, %v3322
        %v3336 = vpack.c.b16 %v3325, %v3324
        %v3337 = vpack.c.b16 %v3327, %v3326
        %v3338 = vpack.c.b16 %v3329, %v3328
        %v3339 = vpack.c.b16 %v3331, %v3330
        %3340 = vrot.lane.b32.xlu0 %v3332, 17
        %v3341 = vpop.permute.xlu0 %3340
        %3342 = vrot.lane.b32.xlu0 %v3333, 17
        %v3343 = vpop.permute.xlu0 %3342
        %3344 = vrot.lane.b32.xlu0 %v3334, 17
        %v3345 = vpop.permute.xlu0 %3344
        %3346 = vrot.lane.b32.xlu0 %v3335, 17
        %v3347 = vpop.permute.xlu0 %3346
        %3348 = vrot.lane.b32.xlu0 %v3336, 17
        %v3349 = vpop.permute.xlu0 %3348
        %3350 = vrot.lane.b32.xlu0 %v3337, 17
        %v3351 = vpop.permute.xlu0 %3350
        %3352 = vrot.lane.b32.xlu0 %v3338, 17
        %v3353 = vpop.permute.xlu0 %3352
        %3354 = vrot.lane.b32.xlu0 %v3339, 17
        %v3355 = vpop.permute.xlu0 %3354
        %v3356 = vrot.slane %v3341, 4
        %v3357 = vrot.slane %v3343, 4
        %v3358 = vrot.slane %v3345, 4
        %v3359 = vrot.slane %v3347, 4
        %v3360 = vrot.slane %v3349, 4
        %v3361 = vrot.slane %v3351, 4
        %v3362 = vrot.slane %v3353, 4
        %v3363 = vrot.slane %v3355, 4
        %v3364 = vsel %vm470, %v3356, %v3341
        %v3365 = vsel %vm470, %v3357, %v3343
        %v3366 = vsel %vm470, %v3358, %v3345
        %v3367 = vsel %vm470, %v3359, %v3347
        %v3368 = vsel %vm470, %v3360, %v3349
        %v3369 = vsel %vm470, %v3361, %v3351
        %v3370 = vsel %vm470, %v3362, %v3353
        %v3371 = vsel %vm470, %v3363, %v3355
        %3388 = vst.msk [vmem:[#allocation2] sm:$0xff] %vm485, %v3364
        %3389 = vst.msk [vmem:[#allocation2 + $0x8] sm:$0xf] %vm487, %v3356
        %3390 = vst.msk [vmem:[#allocation2 + $0xc] sm:$0xff] %vm485, %v3365
        %3391 = vst.msk [vmem:[#allocation2 + $0x14] sm:$0xf] %vm487, %v3357
        %3392 = vst.msk [vmem:[#allocation2 + $0x18] sm:$0xff] %vm485, %v3366
        %3393 = vst.msk [vmem:[#allocation2 + $0x20] sm:$0xf] %vm487, %v3358
        %3394 = vst.msk [vmem:[#allocation2 + $0x24] sm:$0xff] %vm485, %v3367
        %3395 = vst.msk [vmem:[#allocation2 + $0x2c] sm:$0xf] %vm487, %v3359
        %3396 = vst.msk [vmem:[#allocation2 + $0x30] sm:$0xff] %vm485, %v3368
        %3397 = vst.msk [vmem:[#allocation2 + $0x38] sm:$0xf] %vm487, %v3360
        %3398 = vst.msk [vmem:[#allocation2 + $0x3c] sm:$0xff] %vm485, %v3369
        %3399 = vst.msk [vmem:[#allocation2 + $0x44] sm:$0xf] %vm487, %v3361
        %3400 = vst.msk [vmem:[#allocation2 + $0x48] sm:$0xff] %vm485, %v3370
        %3401 = vst.msk [vmem:[#allocation2 + $0x50] sm:$0xf] %vm487, %v3362
        %3402 = vst.msk [vmem:[#allocation2 + $0x54] sm:$0xff] %vm485, %v3371
        %3403 = vst.msk [vmem:[#allocation2 + $0x5c] sm:$0xf] %vm487, %v3363
        %v3404 = vld [vmem:[#allocation2] sm:$0xff]
        %v3405 = vld [vmem:[#allocation2 + $0xc] sm:$0xff]
        %v3406 = vld [vmem:[#allocation2 + $0x18] sm:$0xff]
        %v3407 = vld [vmem:[#allocation2 + $0x24] sm:$0xff]
        %v3408 = vld [vmem:[#allocation2 + $0x30] sm:$0xff]
        %v3409 = vld [vmem:[#allocation2 + $0x3c] sm:$0xff]
        %v3410 = vld [vmem:[#allocation2 + $0x48] sm:$0xff]
        %v3411 = vld [vmem:[#allocation2 + $0x54] sm:$0xff]
        %v3412 = vmul.bf16 %v3404, %v503
        %v3413 = vmul.bf16 %v3405, %v503
        %v3414 = vmul.bf16 %v3406, %v503
        %v3415 = vmul.bf16 %v3407, %v503
        %v3416 = vmul.bf16 %v3408, %v503
        %v3417 = vmul.bf16 %v3409, %v503
        %v3418 = vmul.bf16 %v3410, %v503
        %v3419 = vmul.bf16 %v3411, %v503
        %v3420 = vld [vmem:[%s5] sm:$0xf]
        %v3421 = vld [vmem:[%s5 + $0x4] sm:$0xf]
        %v3422 = vld [vmem:[%s5 + $0x8] sm:$0xf]
        %v3423 = vld [vmem:[%s5 + $0xc] sm:$0xf]
        %v3424 = vld [vmem:[%s5 + $0x10] sm:$0xf]
        %v3425 = vld [vmem:[%s5 + $0x14] sm:$0xf]
        %v3426 = vld [vmem:[%s5 + $0x18] sm:$0xf]
        %v3427 = vld [vmem:[%s5 + $0x1c] sm:$0xf]
        %v3428 = vld [vmem:[%s5 + $0x20] sm:$0xf]
        %v3429 = vld [vmem:[%s5 + $0x24] sm:$0xf]
        %v3430 = vld [vmem:[%s5 + $0x28] sm:$0xf]
        %v3431 = vld [vmem:[%s5 + $0x2c] sm:$0xf]
        %v3432 = vld [vmem:[%s5 + $0x30] sm:$0xf]
        %v3433 = vld [vmem:[%s5 + $0x34] sm:$0xf]
        %v3434 = vld [vmem:[%s5 + $0x38] sm:$0xf]
        %v3435 = vld [vmem:[%s5 + $0x3c] sm:$0xf]
        %v3436 = vld [vmem:[#allocation2 + $0x8] sm:$0xf]
        %v3437 = vld [vmem:[#allocation2 + $0x14] sm:$0xf]
        %v3438 = vld [vmem:[#allocation2 + $0x20] sm:$0xf]
        %v3439 = vld [vmem:[#allocation2 + $0x2c] sm:$0xf]
        %v3440 = vld [vmem:[#allocation2 + $0x38] sm:$0xf]
        %v3441 = vld [vmem:[#allocation2 + $0x44] sm:$0xf]
        %v3442 = vld [vmem:[#allocation2 + $0x50] sm:$0xf]
        %v3443 = vld [vmem:[#allocation2 + $0x5c] sm:$0xf]
        %s3444 = scalar_lea.vmem %s5, 64
        %v3445 = vld [vmem:[%s3444] sm:$0xf]
        %v3446 = vld [vmem:[%s3444 + $0x4] sm:$0xf]
        %v3447 = vld [vmem:[%s3444 + $0x8] sm:$0xf]
        %v3448 = vld [vmem:[%s3444 + $0xc] sm:$0xf]
        %v3449 = vld [vmem:[%s3444 + $0x10] sm:$0xf]
        %v3450 = vld [vmem:[%s3444 + $0x14] sm:$0xf]
        %v3451 = vld [vmem:[%s3444 + $0x18] sm:$0xf]
        %v3452 = vld [vmem:[%s3444 + $0x1c] sm:$0xf]
        %v3453 = vld [vmem:[%s3444 + $0x20] sm:$0xf]
        %v3454 = vld [vmem:[%s3444 + $0x24] sm:$0xf]
        %v3455 = vld [vmem:[%s3444 + $0x28] sm:$0xf]
        %v3456 = vld [vmem:[%s3444 + $0x2c] sm:$0xf]
        %v3457 = vld [vmem:[%s3444 + $0x30] sm:$0xf]
        %v3458 = vld [vmem:[%s3444 + $0x34] sm:$0xf]
        %v3459 = vld [vmem:[%s3444 + $0x38] sm:$0xf]
        %v3460 = vld [vmem:[%s3444 + $0x3c] sm:$0xf]
        %v3477 = vunpack.c.l.b16 %v3445
        %v3478 = vunpack.c.l.b16 %v3446
        %v3479 = vunpack.c.l.b16 %v3447
        %v3480 = vunpack.c.l.b16 %v3448
        %v3481 = vunpack.c.l.b16 %v3449
        %v3482 = vunpack.c.l.b16 %v3450
        %v3483 = vunpack.c.l.b16 %v3451
        %v3484 = vunpack.c.l.b16 %v3452
        %v3485 = vunpack.c.l.b16 %v3453
        %v3486 = vunpack.c.l.b16 %v3454
        %v3487 = vunpack.c.l.b16 %v3455
        %v3488 = vunpack.c.l.b16 %v3456
        %v3489 = vunpack.c.l.b16 %v3457
        %v3490 = vunpack.c.l.b16 %v3458
        %v3491 = vunpack.c.l.b16 %v3459
        %v3492 = vunpack.c.l.b16 %v3460
        %v3493 = vpack.c.b16 %v3478, %v3477
        %v3494 = vpack.c.b16 %v3480, %v3479
        %v3495 = vpack.c.b16 %v3482, %v3481
        %v3496 = vpack.c.b16 %v3484, %v3483
        %v3497 = vpack.c.b16 %v3486, %v3485
        %v3498 = vpack.c.b16 %v3488, %v3487
        %v3499 = vpack.c.b16 %v3490, %v3489
        %v3500 = vpack.c.b16 %v3492, %v3491
        %v3517 = vunpack.c.l.b16 %v3404
        %v3518 = vunpack.c.h.b16 %v3404
        %v3519 = vunpack.c.l.b16 %v3436
        %v3520 = vunpack.c.l.b16 %v3405
        %v3521 = vunpack.c.h.b16 %v3405
        %v3522 = vunpack.c.l.b16 %v3437
        %v3523 = vunpack.c.l.b16 %v3406
        %v3524 = vunpack.c.h.b16 %v3406
        %v3525 = vunpack.c.l.b16 %v3438
        %v3526 = vunpack.c.l.b16 %v3407
        %v3527 = vunpack.c.h.b16 %v3407
        %v3528 = vunpack.c.l.b16 %v3439
        %v3529 = vunpack.c.l.b16 %v3408
        %v3530 = vunpack.c.h.b16 %v3408
        %v3531 = vunpack.c.l.b16 %v3440
        %v3532 = vunpack.c.l.b16 %v3409
        %v3533 = vunpack.c.h.b16 %v3409
        %v3534 = vunpack.c.l.b16 %v3441
        %v3535 = vunpack.c.l.b16 %v3410
        %v3536 = vunpack.c.h.b16 %v3410
        %v3537 = vunpack.c.l.b16 %v3442
        %v3538 = vunpack.c.l.b16 %v3411
        %v3539 = vunpack.c.h.b16 %v3411
        %v3540 = vunpack.c.l.b16 %v3443
        %v3541 = vpack.c.b16 %v3520, %v3517
        %v3542 = vpack.c.b16 %v3521, %v3518
        %v3543 = vpack.c.b16 %v3522, %v3519
        %v3544 = vpack.c.b16 %v3526, %v3523
        %v3545 = vpack.c.b16 %v3527, %v3524
        %v3546 = vpack.c.b16 %v3528, %v3525
        %v3547 = vpack.c.b16 %v3532, %v3529
        %v3548 = vpack.c.b16 %v3533, %v3530
        %v3549 = vpack.c.b16 %v3534, %v3531
        %v3550 = vpack.c.b16 %v3538, %v3535
        %v3551 = vpack.c.b16 %v3539, %v3536
        %v3552 = vpack.c.b16 %v3540, %v3537
        %3553 = vrot.lane.b32.xlu0 %v3541, 127
        %v3554 = vpop.permute.xlu0 %3553
        %3555 = vrot.lane.b32.xlu0 %v3542, 127
        %v3556 = vpop.permute.xlu0 %3555
        %3557 = vrot.lane.b32.xlu0 %v3543, 127
        %v3558 = vpop.permute.xlu0 %3557
        %3559 = vrot.lane.b32.xlu0 %v3544, 127
        %v3560 = vpop.permute.xlu0 %3559
        %3561 = vrot.lane.b32.xlu0 %v3545, 127
        %v3562 = vpop.permute.xlu0 %3561
        %3563 = vrot.lane.b32.xlu0 %v3546, 127
        %v3564 = vpop.permute.xlu0 %3563
        %3565 = vrot.lane.b32.xlu0 %v3547, 127
        %v3566 = vpop.permute.xlu0 %3565
        %3567 = vrot.lane.b32.xlu0 %v3548, 127
        %v3568 = vpop.permute.xlu0 %3567
        %3569 = vrot.lane.b32.xlu0 %v3549, 127
        %v3570 = vpop.permute.xlu0 %3569
        %3571 = vrot.lane.b32.xlu0 %v3550, 127
        %v3572 = vpop.permute.xlu0 %3571
        %3573 = vrot.lane.b32.xlu0 %v3551, 127
        %v3574 = vpop.permute.xlu0 %3573
        %3575 = vrot.lane.b32.xlu0 %v3552, 127
        %v3576 = vpop.permute.xlu0 %3575
        %v3577 = vsel %vm624, %v3554, %v3556
        %v3578 = vsel %vm624, %v3556, %v3558
        %v3579 = vsel %vm624, %v3560, %v3562
        %v3580 = vsel %vm624, %v3562, %v3564
        %v3581 = vsel %vm624, %v3566, %v3568
        %v3582 = vsel %vm624, %v3568, %v3570
        %v3583 = vsel %vm624, %v3572, %v3574
        %v3584 = vsel %vm624, %v3574, %v3576
        %vm3593 = vcmask 523264
        %v3595 = vsel %vm3593, %v3493, 0
        %v3598 = vsel %vm3593, %v3494, 0
        %v3601 = vsel %vm3593, %v3495, 0
        %v3604 = vsel %vm3593, %v3496, 0
        %v3607 = vsel %vm3593, %v3497, 0
        %v3610 = vsel %vm3593, %v3498, 0
        %v3613 = vsel %vm3593, %v3499, 0
        %v3616 = vsel %vm3593, %v3500, 0
        %3618 = vmatprep.subr.bf16.mxu0 0
        %3619 = vmatpush1.bf16.msra.mxu0 0
        %3620 = vmatprep.subr.bf16.mxu0 0
        %3621 = vmatpush1.bf16.msra.mxu0 0
        %3622 = vmatprep.subr.bf16.mxu0 0
        %3623 = vmatpush1.bf16.msra.mxu0 0
        %3624 = vmatprep.subr.bf16.mxu0 0
        %3625 = vmatpush1.bf16.msra.mxu0 0
        %3626 = vmatprep.subr.bf16.mxu0 %v3584
        %3627 = vmatpush1.bf16.msra.mxu0 %v3583
        %3628 = vmatprep.subr.bf16.mxu0 %v3582
        %3629 = vmatpush1.bf16.msra.mxu0 %v3581
        %3630 = vmatprep.subr.bf16.mxu0 %v3580
        %3631 = vmatpush1.bf16.msra.mxu0 %v3579
        %3632 = vmatprep.subr.bf16.mxu0 %v3578
        %3633 = vmatpush1.bf16.msra.mxu0 %v3577
        %3634 = vmatprep.subr.bf16.mxu0 0
        %3635 = vmatpush2.bf16.msra.mxu0 0
        %3636 = vmatprep.subr.bf16.mxu0 0
        %3637 = vmatpush2.bf16.msra.mxu0 0
        %3638 = vmatprep.subr.bf16.mxu0 0
        %3639 = vmatpush2.bf16.msra.mxu0 0
        %3640 = vmatprep.subr.bf16.mxu0 0
        %3641 = vmatpush2.bf16.msra.mxu0 0
        %3642 = vmatprep.subr.bf16.mxu0 0
        %3643 = vmatpush2.bf16.msra.mxu0 0
        %3644 = vmatprep.subr.bf16.mxu0 0
        %3645 = vmatpush2.bf16.msra.mxu0 0
        %3646 = vmatprep.subr.bf16.mxu0 0
        %3647 = vmatpush2.bf16.msra.mxu0 0
        %3648 = vmatprep.subr.bf16.mxu0 0
        %3649 = vmatpush2.bf16.msra.mxu0 0
        %3650 = vmatprep.mubr.bf16.mxu0 0
        %3651 = vmatmul.mubr.bf16.gmra.mxu0 %v3595
        %v3652 = vpop.f32.mrf.mxu0
        %v3653 = vadd.f32 0.0, %v3652
        %v3654 = vpop.f32.mrf.mxu0
        %v3655 = vadd.f32 0.0, %v3654
        %v3656 = vpop.f32.mrf.mxu0
        %v3657 = vadd.f32 0.0, %v3656
        %v3658 = vpop.f32.mrf.mxu0
        %v3659 = vadd.f32 0.0, %v3658
        %3660 = vmatprep.mubr.bf16.mxu0 0
        %3661 = vmatmul.mubr.bf16.gmra.mxu0 %v3598
        %v3662 = vpop.f32.mrf.mxu0
        %v3663 = vadd.f32 0.0, %v3662
        %v3664 = vpop.f32.mrf.mxu0
        %v3665 = vadd.f32 0.0, %v3664
        %v3666 = vpop.f32.mrf.mxu0
        %v3667 = vadd.f32 0.0, %v3666
        %v3668 = vpop.f32.mrf.mxu0
        %v3669 = vadd.f32 0.0, %v3668
        %3670 = vmatprep.mubr.bf16.mxu0 0
        %3671 = vmatmul.mubr.bf16.gmra.mxu0 %v3601
        %v3672 = vpop.f32.mrf.mxu0
        %v3673 = vadd.f32 0.0, %v3672
        %v3674 = vpop.f32.mrf.mxu0
        %v3675 = vadd.f32 0.0, %v3674
        %v3676 = vpop.f32.mrf.mxu0
        %v3677 = vadd.f32 0.0, %v3676
        %v3678 = vpop.f32.mrf.mxu0
        %v3679 = vadd.f32 0.0, %v3678
        %3680 = vmatprep.mubr.bf16.mxu0 0
        %3681 = vmatmul.mubr.bf16.gmra.mxu0 %v3604
        %v3682 = vpop.f32.mrf.mxu0
        %v3683 = vadd.f32 0.0, %v3682
        %v3684 = vpop.f32.mrf.mxu0
        %v3685 = vadd.f32 0.0, %v3684
        %v3686 = vpop.f32.mrf.mxu0
        %v3687 = vadd.f32 0.0, %v3686
        %v3688 = vpop.f32.mrf.mxu0
        %v3689 = vadd.f32 0.0, %v3688
        %3690 = vmatprep.mubr.bf16.mxu0 0
        %3691 = vmatmul.mubr.bf16.gmra.mxu0 %v3607
        %v3692 = vpop.f32.mrf.mxu0
        %v3693 = vadd.f32 0.0, %v3692
        %v3694 = vpop.f32.mrf.mxu0
        %v3695 = vadd.f32 0.0, %v3694
        %v3696 = vpop.f32.mrf.mxu0
        %v3697 = vadd.f32 0.0, %v3696
        %v3698 = vpop.f32.mrf.mxu0
        %v3699 = vadd.f32 0.0, %v3698
        %3700 = vmatprep.mubr.bf16.mxu0 0
        %3701 = vmatmul.mubr.bf16.gmra.mxu0 %v3610
        %v3702 = vpop.f32.mrf.mxu0
        %v3703 = vadd.f32 0.0, %v3702
        %v3704 = vpop.f32.mrf.mxu0
        %v3705 = vadd.f32 0.0, %v3704
        %v3706 = vpop.f32.mrf.mxu0
        %v3707 = vadd.f32 0.0, %v3706
        %v3708 = vpop.f32.mrf.mxu0
        %v3709 = vadd.f32 0.0, %v3708
        %3710 = vmatprep.mubr.bf16.mxu0 0
        %3711 = vmatmul.mubr.bf16.gmra.mxu0 %v3613
        %v3712 = vpop.f32.mrf.mxu0
        %v3713 = vadd.f32 0.0, %v3712
        %v3714 = vpop.f32.mrf.mxu0
        %v3715 = vadd.f32 0.0, %v3714
        %v3716 = vpop.f32.mrf.mxu0
        %v3717 = vadd.f32 0.0, %v3716
        %v3718 = vpop.f32.mrf.mxu0
        %v3719 = vadd.f32 0.0, %v3718
        %3720 = vmatprep.mubr.bf16.mxu0 0
        %3721 = vmatmul.mubr.bf16.gmra.mxu0 %v3616
        %v3722 = vpop.f32.mrf.mxu0
        %v3723 = vadd.f32 0.0, %v3722
        %v3724 = vpop.f32.mrf.mxu0
        %v3725 = vadd.f32 0.0, %v3724
        %v3726 = vpop.f32.mrf.mxu0
        %v3727 = vadd.f32 0.0, %v3726
        %v3728 = vpop.f32.mrf.mxu0
        %v3729 = vadd.f32 0.0, %v3728
        %3730 = vdwg.mxu0
        %v3747 = vunpack.c.l.b16 %v3420
        %v3748 = vunpack.c.l.b16 %v3421
        %v3749 = vunpack.c.l.b16 %v3422
        %v3750 = vunpack.c.l.b16 %v3423
        %v3751 = vunpack.c.l.b16 %v3424
        %v3752 = vunpack.c.l.b16 %v3425
        %v3753 = vunpack.c.l.b16 %v3426
        %v3754 = vunpack.c.l.b16 %v3427
        %v3755 = vunpack.c.l.b16 %v3428
        %v3756 = vunpack.c.l.b16 %v3429
        %v3757 = vunpack.c.l.b16 %v3430
        %v3758 = vunpack.c.l.b16 %v3431
        %v3759 = vunpack.c.l.b16 %v3432
        %v3760 = vunpack.c.l.b16 %v3433
        %v3761 = vunpack.c.l.b16 %v3434
        %v3762 = vunpack.c.l.b16 %v3435
        %v3763 = vpack.c.b16 %v3748, %v3747
        %v3764 = vpack.c.b16 %v3750, %v3749
        %v3765 = vpack.c.b16 %v3752, %v3751
        %v3766 = vpack.c.b16 %v3754, %v3753
        %v3767 = vpack.c.b16 %v3756, %v3755
        %v3768 = vpack.c.b16 %v3758, %v3757
        %v3769 = vpack.c.b16 %v3760, %v3759
        %v3770 = vpack.c.b16 %v3762, %v3761
        %v3779 = vunpack.c.l.b16 %v3412
        %v3780 = vunpack.c.h.b16 %v3412
        %v3781 = vunpack.c.l.b16 %v3413
        %v3782 = vunpack.c.h.b16 %v3413
        %v3783 = vunpack.c.l.b16 %v3414
        %v3784 = vunpack.c.h.b16 %v3414
        %v3785 = vunpack.c.l.b16 %v3415
        %v3786 = vunpack.c.h.b16 %v3415
        %v3787 = vunpack.c.l.b16 %v3416
        %v3788 = vunpack.c.h.b16 %v3416
        %v3789 = vunpack.c.l.b16 %v3417
        %v3790 = vunpack.c.h.b16 %v3417
        %v3791 = vunpack.c.l.b16 %v3418
        %v3792 = vunpack.c.h.b16 %v3418
        %v3793 = vunpack.c.l.b16 %v3419
        %v3794 = vunpack.c.h.b16 %v3419
        %v3795 = vpack.c.b16 %v3781, %v3779
        %v3796 = vpack.c.b16 %v3782, %v3780
        %v3797 = vpack.c.b16 %v3785, %v3783
        %v3798 = vpack.c.b16 %v3786, %v3784
        %v3799 = vpack.c.b16 %v3789, %v3787
        %v3800 = vpack.c.b16 %v3790, %v3788
        %v3801 = vpack.c.b16 %v3793, %v3791
        %v3802 = vpack.c.b16 %v3794, %v3792
        %v3812 = vsel %vm3593, %v3763, 0
        %v3815 = vsel %vm3593, %v3764, 0
        %v3818 = vsel %vm3593, %v3765, 0
        %v3821 = vsel %vm3593, %v3766, 0
        %v3824 = vsel %vm3593, %v3767, 0
        %v3827 = vsel %vm3593, %v3768, 0
        %v3830 = vsel %vm3593, %v3769, 0
        %v3833 = vsel %vm3593, %v3770, 0
        %3835 = vmatprep.subr.bf16.mxu0 0
        %3836 = vmatpush1.bf16.msra.mxu0 0
        %3837 = vmatprep.subr.bf16.mxu0 0
        %3838 = vmatpush1.bf16.msra.mxu0 0
        %3839 = vmatprep.subr.bf16.mxu0 0
        %3840 = vmatpush1.bf16.msra.mxu0 0
        %3841 = vmatprep.subr.bf16.mxu0 0
        %3842 = vmatpush1.bf16.msra.mxu0 0
        %3843 = vmatprep.subr.bf16.mxu0 %v3802
        %3844 = vmatpush1.bf16.msra.mxu0 %v3801
        %3845 = vmatprep.subr.bf16.mxu0 %v3800
        %3846 = vmatpush1.bf16.msra.mxu0 %v3799
        %3847 = vmatprep.subr.bf16.mxu0 %v3798
        %3848 = vmatpush1.bf16.msra.mxu0 %v3797
        %3849 = vmatprep.subr.bf16.mxu0 %v3796
        %3850 = vmatpush1.bf16.msra.mxu0 %v3795
        %3851 = vmatprep.subr.bf16.mxu0 0
        %3852 = vmatpush2.bf16.msra.mxu0 0
        %3853 = vmatprep.subr.bf16.mxu0 0
        %3854 = vmatpush2.bf16.msra.mxu0 0
        %3855 = vmatprep.subr.bf16.mxu0 0
        %3856 = vmatpush2.bf16.msra.mxu0 0
        %3857 = vmatprep.subr.bf16.mxu0 0
        %3858 = vmatpush2.bf16.msra.mxu0 0
        %3859 = vmatprep.subr.bf16.mxu0 0
        %3860 = vmatpush2.bf16.msra.mxu0 0
        %3861 = vmatprep.subr.bf16.mxu0 0
        %3862 = vmatpush2.bf16.msra.mxu0 0
        %3863 = vmatprep.subr.bf16.mxu0 0
        %3864 = vmatpush2.bf16.msra.mxu0 0
        %3865 = vmatprep.subr.bf16.mxu0 0
        %3866 = vmatpush2.bf16.msra.mxu0 0
        %3867 = vmatprep.mubr.bf16.mxu0 0
        %3868 = vmatmul.mubr.bf16.gmra.mxu0 %v3812
        %v3869 = vpop.f32.mrf.mxu0
        %v3870 = vadd.f32 %v3653, %v3869
        %v3871 = vpop.f32.mrf.mxu0
        %v3872 = vadd.f32 %v3655, %v3871
        %v3873 = vpop.f32.mrf.mxu0
        %v3874 = vadd.f32 %v3657, %v3873
        %v3875 = vpop.f32.mrf.mxu0
        %v3876 = vadd.f32 %v3659, %v3875
        %3877 = vmatprep.mubr.bf16.mxu0 0
        %3878 = vmatmul.mubr.bf16.gmra.mxu0 %v3815
        %v3879 = vpop.f32.mrf.mxu0
        %v3880 = vadd.f32 %v3663, %v3879
        %v3881 = vpop.f32.mrf.mxu0
        %v3882 = vadd.f32 %v3665, %v3881
        %v3883 = vpop.f32.mrf.mxu0
        %v3884 = vadd.f32 %v3667, %v3883
        %v3885 = vpop.f32.mrf.mxu0
        %v3886 = vadd.f32 %v3669, %v3885
        %3887 = vmatprep.mubr.bf16.mxu0 0
        %3888 = vmatmul.mubr.bf16.gmra.mxu0 %v3818
        %v3889 = vpop.f32.mrf.mxu0
        %v3890 = vadd.f32 %v3673, %v3889
        %v3891 = vpop.f32.mrf.mxu0
        %v3892 = vadd.f32 %v3675, %v3891
        %v3893 = vpop.f32.mrf.mxu0
        %v3894 = vadd.f32 %v3677, %v3893
        %v3895 = vpop.f32.mrf.mxu0
        %v3896 = vadd.f32 %v3679, %v3895
        %3897 = vmatprep.mubr.bf16.mxu0 0
        %3898 = vmatmul.mubr.bf16.gmra.mxu0 %v3821
        %v3899 = vpop.f32.mrf.mxu0
        %v3900 = vadd.f32 %v3683, %v3899
        %v3901 = vpop.f32.mrf.mxu0
        %v3902 = vadd.f32 %v3685, %v3901
        %v3903 = vpop.f32.mrf.mxu0
        %v3904 = vadd.f32 %v3687, %v3903
        %v3905 = vpop.f32.mrf.mxu0
        %v3906 = vadd.f32 %v3689, %v3905
        %3907 = vmatprep.mubr.bf16.mxu0 0
        %3908 = vmatmul.mubr.bf16.gmra.mxu0 %v3824
        %v3909 = vpop.f32.mrf.mxu0
        %v3910 = vadd.f32 %v3693, %v3909
        %v3911 = vpop.f32.mrf.mxu0
        %v3912 = vadd.f32 %v3695, %v3911
        %v3913 = vpop.f32.mrf.mxu0
        %v3914 = vadd.f32 %v3697, %v3913
        %v3915 = vpop.f32.mrf.mxu0
        %v3916 = vadd.f32 %v3699, %v3915
        %3917 = vmatprep.mubr.bf16.mxu0 0
        %3918 = vmatmul.mubr.bf16.gmra.mxu0 %v3827
        %v3919 = vpop.f32.mrf.mxu0
        %v3920 = vadd.f32 %v3703, %v3919
        %v3921 = vpop.f32.mrf.mxu0
        %v3922 = vadd.f32 %v3705, %v3921
        %v3923 = vpop.f32.mrf.mxu0
        %v3924 = vadd.f32 %v3707, %v3923
        %v3925 = vpop.f32.mrf.mxu0
        %v3926 = vadd.f32 %v3709, %v3925
        %3927 = vmatprep.mubr.bf16.mxu0 0
        %3928 = vmatmul.mubr.bf16.gmra.mxu0 %v3830
        %v3929 = vpop.f32.mrf.mxu0
        %v3930 = vadd.f32 %v3713, %v3929
        %v3931 = vpop.f32.mrf.mxu0
        %v3932 = vadd.f32 %v3715, %v3931
        %v3933 = vpop.f32.mrf.mxu0
        %v3934 = vadd.f32 %v3717, %v3933
        %v3935 = vpop.f32.mrf.mxu0
        %v3936 = vadd.f32 %v3719, %v3935
        %3937 = vmatprep.mubr.bf16.mxu0 0
        %3938 = vmatmul.mubr.bf16.gmra.mxu0 %v3833
        %v3939 = vpop.f32.mrf.mxu0
        %v3940 = vadd.f32 %v3723, %v3939
        %v3941 = vpop.f32.mrf.mxu0
        %v3942 = vadd.f32 %v3725, %v3941
        %v3943 = vpop.f32.mrf.mxu0
        %v3944 = vadd.f32 %v3727, %v3943
        %v3945 = vpop.f32.mrf.mxu0
        %v3946 = vadd.f32 %v3729, %v3945
        %3947 = vdwg.mxu0
        %v3948 = vmul.bf16 %v3404, %v977
        %v3949 = vmul.bf16 %v3436, %v975
        %v3950 = vmul.bf16 %v3405, %v977
        %v3951 = vmul.bf16 %v3437, %v975
        %v3952 = vmul.bf16 %v3406, %v977
        %v3953 = vmul.bf16 %v3438, %v975
        %v3954 = vmul.bf16 %v3407, %v977
        %v3955 = vmul.bf16 %v3439, %v975
        %v3956 = vmul.bf16 %v3408, %v977
        %v3957 = vmul.bf16 %v3440, %v975
        %v3958 = vmul.bf16 %v3409, %v977
        %v3959 = vmul.bf16 %v3441, %v975
        %v3960 = vmul.bf16 %v3410, %v977
        %v3961 = vmul.bf16 %v3442, %v975
        %v3962 = vmul.bf16 %v3411, %v977
        %v3963 = vmul.bf16 %v3443, %v975
        %s3964 = scalar_lea.vmem %s5, 128
        %v3965 = vld [vmem:[%s3964] sm:$0xf]
        %v3966 = vld [vmem:[%s3964 + $0x4] sm:$0xf]
        %v3967 = vld [vmem:[%s3964 + $0x8] sm:$0xf]
        %v3968 = vld [vmem:[%s3964 + $0xc] sm:$0xf]
        %v3969 = vld [vmem:[%s3964 + $0x10] sm:$0xf]
        %v3970 = vld [vmem:[%s3964 + $0x14] sm:$0xf]
        %v3971 = vld [vmem:[%s3964 + $0x18] sm:$0xf]
        %v3972 = vld [vmem:[%s3964 + $0x1c] sm:$0xf]
        %v3973 = vld [vmem:[%s3964 + $0x20] sm:$0xf]
        %v3974 = vld [vmem:[%s3964 + $0x24] sm:$0xf]
        %v3975 = vld [vmem:[%s3964 + $0x28] sm:$0xf]
        %v3976 = vld [vmem:[%s3964 + $0x2c] sm:$0xf]
        %v3977 = vld [vmem:[%s3964 + $0x30] sm:$0xf]
        %v3978 = vld [vmem:[%s3964 + $0x34] sm:$0xf]
        %v3979 = vld [vmem:[%s3964 + $0x38] sm:$0xf]
        %v3980 = vld [vmem:[%s3964 + $0x3c] sm:$0xf]
        %v3997 = vunpack.c.l.b16 %v3965
        %v3998 = vunpack.c.l.b16 %v3966
        %v3999 = vunpack.c.l.b16 %v3967
        %v4000 = vunpack.c.l.b16 %v3968
        %v4001 = vunpack.c.l.b16 %v3969
        %v4002 = vunpack.c.l.b16 %v3970
        %v4003 = vunpack.c.l.b16 %v3971
        %v4004 = vunpack.c.l.b16 %v3972
        %v4005 = vunpack.c.l.b16 %v3973
        %v4006 = vunpack.c.l.b16 %v3974
        %v4007 = vunpack.c.l.b16 %v3975
        %v4008 = vunpack.c.l.b16 %v3976
        %v4009 = vunpack.c.l.b16 %v3977
        %v4010 = vunpack.c.l.b16 %v3978
        %v4011 = vunpack.c.l.b16 %v3979
        %v4012 = vunpack.c.l.b16 %v3980
        %v4013 = vpack.c.b16 %v3998, %v3997
        %v4014 = vpack.c.b16 %v4000, %v3999
        %v4015 = vpack.c.b16 %v4002, %v4001
        %v4016 = vpack.c.b16 %v4004, %v4003
        %v4017 = vpack.c.b16 %v4006, %v4005
        %v4018 = vpack.c.b16 %v4008, %v4007
        %v4019 = vpack.c.b16 %v4010, %v4009
        %v4020 = vpack.c.b16 %v4012, %v4011
        %v4037 = vunpack.c.l.b16 %v3948
        %v4038 = vunpack.c.h.b16 %v3948
        %v4039 = vunpack.c.l.b16 %v3949
        %v4040 = vunpack.c.l.b16 %v3950
        %v4041 = vunpack.c.h.b16 %v3950
        %v4042 = vunpack.c.l.b16 %v3951
        %v4043 = vunpack.c.l.b16 %v3952
        %v4044 = vunpack.c.h.b16 %v3952
        %v4045 = vunpack.c.l.b16 %v3953
        %v4046 = vunpack.c.l.b16 %v3954
        %v4047 = vunpack.c.h.b16 %v3954
        %v4048 = vunpack.c.l.b16 %v3955
        %v4049 = vunpack.c.l.b16 %v3956
        %v4050 = vunpack.c.h.b16 %v3956
        %v4051 = vunpack.c.l.b16 %v3957
        %v4052 = vunpack.c.l.b16 %v3958
        %v4053 = vunpack.c.h.b16 %v3958
        %v4054 = vunpack.c.l.b16 %v3959
        %v4055 = vunpack.c.l.b16 %v3960
        %v4056 = vunpack.c.h.b16 %v3960
        %v4057 = vunpack.c.l.b16 %v3961
        %v4058 = vunpack.c.l.b16 %v3962
        %v4059 = vunpack.c.h.b16 %v3962
        %v4060 = vunpack.c.l.b16 %v3963
        %v4061 = vpack.c.b16 %v4040, %v4037
        %v4062 = vpack.c.b16 %v4041, %v4038
        %v4063 = vpack.c.b16 %v4042, %v4039
        %v4064 = vpack.c.b16 %v4046, %v4043
        %v4065 = vpack.c.b16 %v4047, %v4044
        %v4066 = vpack.c.b16 %v4048, %v4045
        %v4067 = vpack.c.b16 %v4052, %v4049
        %v4068 = vpack.c.b16 %v4053, %v4050
        %v4069 = vpack.c.b16 %v4054, %v4051
        %v4070 = vpack.c.b16 %v4058, %v4055
        %v4071 = vpack.c.b16 %v4059, %v4056
        %v4072 = vpack.c.b16 %v4060, %v4057
        %4073 = vrot.lane.b32.xlu0 %v4061, 126
        %v4074 = vpop.permute.xlu0 %4073
        %4075 = vrot.lane.b32.xlu0 %v4062, 126
        %v4076 = vpop.permute.xlu0 %4075
        %4077 = vrot.lane.b32.xlu0 %v4063, 126
        %v4078 = vpop.permute.xlu0 %4077
        %4079 = vrot.lane.b32.xlu0 %v4064, 126
        %v4080 = vpop.permute.xlu0 %4079
        %4081 = vrot.lane.b32.xlu0 %v4065, 126
        %v4082 = vpop.permute.xlu0 %4081
        %4083 = vrot.lane.b32.xlu0 %v4066, 126
        %v4084 = vpop.permute.xlu0 %4083
        %4085 = vrot.lane.b32.xlu0 %v4067, 126
        %v4086 = vpop.permute.xlu0 %4085
        %4087 = vrot.lane.b32.xlu0 %v4068, 126
        %v4088 = vpop.permute.xlu0 %4087
        %4089 = vrot.lane.b32.xlu0 %v4069, 126
        %v4090 = vpop.permute.xlu0 %4089
        %4091 = vrot.lane.b32.xlu0 %v4070, 126
        %v4092 = vpop.permute.xlu0 %4091
        %4093 = vrot.lane.b32.xlu0 %v4071, 126
        %v4094 = vpop.permute.xlu0 %4093
        %4095 = vrot.lane.b32.xlu0 %v4072, 126
        %v4096 = vpop.permute.xlu0 %4095
        %v4097 = vsel %vm1083, %v4074, %v4076
        %v4098 = vsel %vm1083, %v4076, %v4078
        %v4099 = vsel %vm1083, %v4080, %v4082
        %v4100 = vsel %vm1083, %v4082, %v4084
        %v4101 = vsel %vm1083, %v4086, %v4088
        %v4102 = vsel %vm1083, %v4088, %v4090
        %v4103 = vsel %vm1083, %v4092, %v4094
        %v4104 = vsel %vm1083, %v4094, %v4096
        %v4114 = vsel %vm3593, %v4013, 0
        %v4117 = vsel %vm3593, %v4014, 0
        %v4120 = vsel %vm3593, %v4015, 0
        %v4123 = vsel %vm3593, %v4016, 0
        %v4126 = vsel %vm3593, %v4017, 0
        %v4129 = vsel %vm3593, %v4018, 0
        %v4132 = vsel %vm3593, %v4019, 0
        %v4135 = vsel %vm3593, %v4020, 0
        %4137 = vmatprep.subr.bf16.mxu0 0
        %4138 = vmatpush1.bf16.msra.mxu0 0
        %4139 = vmatprep.subr.bf16.mxu0 0
        %4140 = vmatpush1.bf16.msra.mxu0 0
        %4141 = vmatprep.subr.bf16.mxu0 0
        %4142 = vmatpush1.bf16.msra.mxu0 0
        %4143 = vmatprep.subr.bf16.mxu0 0
        %4144 = vmatpush1.bf16.msra.mxu0 0
        %4145 = vmatprep.subr.bf16.mxu0 %v4104
        %4146 = vmatpush1.bf16.msra.mxu0 %v4103
        %4147 = vmatprep.subr.bf16.mxu0 %v4102
        %4148 = vmatpush1.bf16.msra.mxu0 %v4101
        %4149 = vmatprep.subr.bf16.mxu0 %v4100
        %4150 = vmatpush1.bf16.msra.mxu0 %v4099
        %4151 = vmatprep.subr.bf16.mxu0 %v4098
        %4152 = vmatpush1.bf16.msra.mxu0 %v4097
        %4153 = vmatprep.subr.bf16.mxu0 0
        %4154 = vmatpush2.bf16.msra.mxu0 0
        %4155 = vmatprep.subr.bf16.mxu0 0
        %4156 = vmatpush2.bf16.msra.mxu0 0
        %4157 = vmatprep.subr.bf16.mxu0 0
        %4158 = vmatpush2.bf16.msra.mxu0 0
        %4159 = vmatprep.subr.bf16.mxu0 0
        %4160 = vmatpush2.bf16.msra.mxu0 0
        %4161 = vmatprep.subr.bf16.mxu0 0
        %4162 = vmatpush2.bf16.msra.mxu0 0
        %4163 = vmatprep.subr.bf16.mxu0 0
        %4164 = vmatpush2.bf16.msra.mxu0 0
        %4165 = vmatprep.subr.bf16.mxu0 0
        %4166 = vmatpush2.bf16.msra.mxu0 0
        %4167 = vmatprep.subr.bf16.mxu0 0
        %4168 = vmatpush2.bf16.msra.mxu0 0
        %4169 = vmatprep.mubr.bf16.mxu0 0
        %4170 = vmatmul.mubr.bf16.gmra.mxu0 %v4114
        %v4171 = vpop.f32.mrf.mxu0
        %v4172 = vadd.f32 0.0, %v4171
        %v4173 = vpop.f32.mrf.mxu0
        %v4174 = vadd.f32 0.0, %v4173
        %v4175 = vpop.f32.mrf.mxu0
        %v4176 = vadd.f32 0.0, %v4175
        %v4177 = vpop.f32.mrf.mxu0
        %v4178 = vadd.f32 0.0, %v4177
        %4179 = vmatprep.mubr.bf16.mxu0 0
        %4180 = vmatmul.mubr.bf16.gmra.mxu0 %v4117
        %v4181 = vpop.f32.mrf.mxu0
        %v4182 = vadd.f32 0.0, %v4181
        %v4183 = vpop.f32.mrf.mxu0
        %v4184 = vadd.f32 0.0, %v4183
        %v4185 = vpop.f32.mrf.mxu0
        %v4186 = vadd.f32 0.0, %v4185
        %v4187 = vpop.f32.mrf.mxu0
        %v4188 = vadd.f32 0.0, %v4187
        %4189 = vmatprep.mubr.bf16.mxu0 0
        %4190 = vmatmul.mubr.bf16.gmra.mxu0 %v4120
        %v4191 = vpop.f32.mrf.mxu0
        %v4192 = vadd.f32 0.0, %v4191
        %v4193 = vpop.f32.mrf.mxu0
        %v4194 = vadd.f32 0.0, %v4193
        %v4195 = vpop.f32.mrf.mxu0
        %v4196 = vadd.f32 0.0, %v4195
        %v4197 = vpop.f32.mrf.mxu0
        %v4198 = vadd.f32 0.0, %v4197
        %4199 = vmatprep.mubr.bf16.mxu0 0
        %4200 = vmatmul.mubr.bf16.gmra.mxu0 %v4123
        %v4201 = vpop.f32.mrf.mxu0
        %v4202 = vadd.f32 0.0, %v4201
        %v4203 = vpop.f32.mrf.mxu0
        %v4204 = vadd.f32 0.0, %v4203
        %v4205 = vpop.f32.mrf.mxu0
        %v4206 = vadd.f32 0.0, %v4205
        %v4207 = vpop.f32.mrf.mxu0
        %v4208 = vadd.f32 0.0, %v4207
        %4209 = vmatprep.mubr.bf16.mxu0 0
        %4210 = vmatmul.mubr.bf16.gmra.mxu0 %v4126
        %v4211 = vpop.f32.mrf.mxu0
        %v4212 = vadd.f32 0.0, %v4211
        %v4213 = vpop.f32.mrf.mxu0
        %v4214 = vadd.f32 0.0, %v4213
        %v4215 = vpop.f32.mrf.mxu0
        %v4216 = vadd.f32 0.0, %v4215
        %v4217 = vpop.f32.mrf.mxu0
        %v4218 = vadd.f32 0.0, %v4217
        %4219 = vmatprep.mubr.bf16.mxu0 0
        %4220 = vmatmul.mubr.bf16.gmra.mxu0 %v4129
        %v4221 = vpop.f32.mrf.mxu0
        %v4222 = vadd.f32 0.0, %v4221
        %v4223 = vpop.f32.mrf.mxu0
        %v4224 = vadd.f32 0.0, %v4223
        %v4225 = vpop.f32.mrf.mxu0
        %v4226 = vadd.f32 0.0, %v4225
        %v4227 = vpop.f32.mrf.mxu0
        %v4228 = vadd.f32 0.0, %v4227
        %4229 = vmatprep.mubr.bf16.mxu0 0
        %4230 = vmatmul.mubr.bf16.gmra.mxu0 %v4132
        %v4231 = vpop.f32.mrf.mxu0
        %v4232 = vadd.f32 0.0, %v4231
        %v4233 = vpop.f32.mrf.mxu0
        %v4234 = vadd.f32 0.0, %v4233
        %v4235 = vpop.f32.mrf.mxu0
        %v4236 = vadd.f32 0.0, %v4235
        %v4237 = vpop.f32.mrf.mxu0
        %v4238 = vadd.f32 0.0, %v4237
        %4239 = vmatprep.mubr.bf16.mxu0 0
        %4240 = vmatmul.mubr.bf16.gmra.mxu0 %v4135
        %v4241 = vpop.f32.mrf.mxu0
        %v4242 = vadd.f32 0.0, %v4241
        %v4243 = vpop.f32.mrf.mxu0
        %v4244 = vadd.f32 0.0, %v4243
        %v4245 = vpop.f32.mrf.mxu0
        %v4246 = vadd.f32 0.0, %v4245
        %v4247 = vpop.f32.mrf.mxu0
        %v4248 = vadd.f32 0.0, %v4247
        %4249 = vdwg.mxu0
        %v4250 = vadd.f32 %v3870, %v4172
        %v4251 = vadd.f32 %v3872, %v4174
        %v4252 = vadd.f32 %v3874, %v4176
        %v4253 = vadd.f32 %v3876, %v4178
        %v4254 = vadd.f32 %v3880, %v4182
        %v4255 = vadd.f32 %v3882, %v4184
        %v4256 = vadd.f32 %v3884, %v4186
        %v4257 = vadd.f32 %v3886, %v4188
        %v4258 = vadd.f32 %v3890, %v4192
        %v4259 = vadd.f32 %v3892, %v4194
        %v4260 = vadd.f32 %v3894, %v4196
        %v4261 = vadd.f32 %v3896, %v4198
        %v4262 = vadd.f32 %v3900, %v4202
        %v4263 = vadd.f32 %v3902, %v4204
        %v4264 = vadd.f32 %v3904, %v4206
        %v4265 = vadd.f32 %v3906, %v4208
        %v4266 = vadd.f32 %v3910, %v4212
        %v4267 = vadd.f32 %v3912, %v4214
        %v4268 = vadd.f32 %v3914, %v4216
        %v4269 = vadd.f32 %v3916, %v4218
        %v4270 = vadd.f32 %v3920, %v4222
        %v4271 = vadd.f32 %v3922, %v4224
        %v4272 = vadd.f32 %v3924, %v4226
        %v4273 = vadd.f32 %v3926, %v4228
        %v4274 = vadd.f32 %v3930, %v4232
        %v4275 = vadd.f32 %v3932, %v4234
        %v4276 = vadd.f32 %v3934, %v4236
        %v4277 = vadd.f32 %v3936, %v4238
        %v4278 = vadd.f32 %v3940, %v4242
        %v4279 = vadd.f32 %v3942, %v4244
        %v4280 = vadd.f32 %v3944, %v4246
        %v4281 = vadd.f32 %v3946, %v4248
        %v4282 = vmul.bf16 %v3404, %v1265
        %v4283 = vmul.bf16 %v3436, %v1263
        %v4284 = vmul.bf16 %v3405, %v1265
        %v4285 = vmul.bf16 %v3437, %v1263
        %v4286 = vmul.bf16 %v3406, %v1265
        %v4287 = vmul.bf16 %v3438, %v1263
        %v4288 = vmul.bf16 %v3407, %v1265
        %v4289 = vmul.bf16 %v3439, %v1263
        %v4290 = vmul.bf16 %v3408, %v1265
        %v4291 = vmul.bf16 %v3440, %v1263
        %v4292 = vmul.bf16 %v3409, %v1265
        %v4293 = vmul.bf16 %v3441, %v1263
        %v4294 = vmul.bf16 %v3410, %v1265
        %v4295 = vmul.bf16 %v3442, %v1263
        %v4296 = vmul.bf16 %v3411, %v1265
        %v4297 = vmul.bf16 %v3443, %v1263
        %s4298 = scalar_lea.vmem %s5, 192
        %v4299 = vld [vmem:[%s4298] sm:$0xf]
        %v4300 = vld [vmem:[%s4298 + $0x4] sm:$0xf]
        %v4301 = vld [vmem:[%s4298 + $0x8] sm:$0xf]
        %v4302 = vld [vmem:[%s4298 + $0xc] sm:$0xf]
        %v4303 = vld [vmem:[%s4298 + $0x10] sm:$0xf]
        %v4304 = vld [vmem:[%s4298 + $0x14] sm:$0xf]
        %v4305 = vld [vmem:[%s4298 + $0x18] sm:$0xf]
        %v4306 = vld [vmem:[%s4298 + $0x1c] sm:$0xf]
        %v4307 = vld [vmem:[%s4298 + $0x20] sm:$0xf]
        %v4308 = vld [vmem:[%s4298 + $0x24] sm:$0xf]
        %v4309 = vld [vmem:[%s4298 + $0x28] sm:$0xf]
        %v4310 = vld [vmem:[%s4298 + $0x2c] sm:$0xf]
        %v4311 = vld [vmem:[%s4298 + $0x30] sm:$0xf]
        %v4312 = vld [vmem:[%s4298 + $0x34] sm:$0xf]
        %v4313 = vld [vmem:[%s4298 + $0x38] sm:$0xf]
        %v4314 = vld [vmem:[%s4298 + $0x3c] sm:$0xf]
        %v4331 = vunpack.c.l.b16 %v4299
        %v4332 = vunpack.c.l.b16 %v4300
        %v4333 = vunpack.c.l.b16 %v4301
        %v4334 = vunpack.c.l.b16 %v4302
        %v4335 = vunpack.c.l.b16 %v4303
        %v4336 = vunpack.c.l.b16 %v4304
        %v4337 = vunpack.c.l.b16 %v4305
        %v4338 = vunpack.c.l.b16 %v4306
        %v4339 = vunpack.c.l.b16 %v4307
        %v4340 = vunpack.c.l.b16 %v4308
        %v4341 = vunpack.c.l.b16 %v4309
        %v4342 = vunpack.c.l.b16 %v4310
        %v4343 = vunpack.c.l.b16 %v4311
        %v4344 = vunpack.c.l.b16 %v4312
        %v4345 = vunpack.c.l.b16 %v4313
        %v4346 = vunpack.c.l.b16 %v4314
        %v4347 = vpack.c.b16 %v4332, %v4331
        %v4348 = vpack.c.b16 %v4334, %v4333
        %v4349 = vpack.c.b16 %v4336, %v4335
        %v4350 = vpack.c.b16 %v4338, %v4337
        %v4351 = vpack.c.b16 %v4340, %v4339
        %v4352 = vpack.c.b16 %v4342, %v4341
        %v4353 = vpack.c.b16 %v4344, %v4343
        %v4354 = vpack.c.b16 %v4346, %v4345
        %v4371 = vunpack.c.l.b16 %v4282
        %v4372 = vunpack.c.h.b16 %v4282
        %v4373 = vunpack.c.l.b16 %v4283
        %v4374 = vunpack.c.l.b16 %v4284
        %v4375 = vunpack.c.h.b16 %v4284
        %v4376 = vunpack.c.l.b16 %v4285
        %v4377 = vunpack.c.l.b16 %v4286
        %v4378 = vunpack.c.h.b16 %v4286
        %v4379 = vunpack.c.l.b16 %v4287
        %v4380 = vunpack.c.l.b16 %v4288
        %v4381 = vunpack.c.h.b16 %v4288
        %v4382 = vunpack.c.l.b16 %v4289
        %v4383 = vunpack.c.l.b16 %v4290
        %v4384 = vunpack.c.h.b16 %v4290
        %v4385 = vunpack.c.l.b16 %v4291
        %v4386 = vunpack.c.l.b16 %v4292
        %v4387 = vunpack.c.h.b16 %v4292
        %v4388 = vunpack.c.l.b16 %v4293
        %v4389 = vunpack.c.l.b16 %v4294
        %v4390 = vunpack.c.h.b16 %v4294
        %v4391 = vunpack.c.l.b16 %v4295
        %v4392 = vunpack.c.l.b16 %v4296
        %v4393 = vunpack.c.h.b16 %v4296
        %v4394 = vunpack.c.l.b16 %v4297
        %v4395 = vpack.c.b16 %v4374, %v4371
        %v4396 = vpack.c.b16 %v4375, %v4372
        %v4397 = vpack.c.b16 %v4376, %v4373
        %v4398 = vpack.c.b16 %v4380, %v4377
        %v4399 = vpack.c.b16 %v4381, %v4378
        %v4400 = vpack.c.b16 %v4382, %v4379
        %v4401 = vpack.c.b16 %v4386, %v4383
        %v4402 = vpack.c.b16 %v4387, %v4384
        %v4403 = vpack.c.b16 %v4388, %v4385
        %v4404 = vpack.c.b16 %v4392, %v4389
        %v4405 = vpack.c.b16 %v4393, %v4390
        %v4406 = vpack.c.b16 %v4394, %v4391
        %4407 = vrot.lane.b32.xlu0 %v4395, 112
        %v4408 = vpop.permute.xlu0 %4407
        %4409 = vrot.lane.b32.xlu0 %v4396, 112
        %v4410 = vpop.permute.xlu0 %4409
        %4411 = vrot.lane.b32.xlu0 %v4397, 112
        %v4412 = vpop.permute.xlu0 %4411
        %4413 = vrot.lane.b32.xlu0 %v4398, 112
        %v4414 = vpop.permute.xlu0 %4413
        %4415 = vrot.lane.b32.xlu0 %v4399, 112
        %v4416 = vpop.permute.xlu0 %4415
        %4417 = vrot.lane.b32.xlu0 %v4400, 112
        %v4418 = vpop.permute.xlu0 %4417
        %4419 = vrot.lane.b32.xlu0 %v4401, 112
        %v4420 = vpop.permute.xlu0 %4419
        %4421 = vrot.lane.b32.xlu0 %v4402, 112
        %v4422 = vpop.permute.xlu0 %4421
        %4423 = vrot.lane.b32.xlu0 %v4403, 112
        %v4424 = vpop.permute.xlu0 %4423
        %4425 = vrot.lane.b32.xlu0 %v4404, 112
        %v4426 = vpop.permute.xlu0 %4425
        %4427 = vrot.lane.b32.xlu0 %v4405, 112
        %v4428 = vpop.permute.xlu0 %4427
        %4429 = vrot.lane.b32.xlu0 %v4406, 112
        %v4430 = vpop.permute.xlu0 %4429
        %v4431 = vsel %vm1371, %v4408, %v4410
        %v4432 = vsel %vm1371, %v4410, %v4412
        %v4433 = vsel %vm1371, %v4414, %v4416
        %v4434 = vsel %vm1371, %v4416, %v4418
        %v4435 = vsel %vm1371, %v4420, %v4422
        %v4436 = vsel %vm1371, %v4422, %v4424
        %v4437 = vsel %vm1371, %v4426, %v4428
        %v4438 = vsel %vm1371, %v4428, %v4430
        %v4448 = vsel %vm3593, %v4347, 0
        %v4451 = vsel %vm3593, %v4348, 0
        %v4454 = vsel %vm3593, %v4349, 0
        %v4457 = vsel %vm3593, %v4350, 0
        %v4460 = vsel %vm3593, %v4351, 0
        %v4463 = vsel %vm3593, %v4352, 0
        %v4466 = vsel %vm3593, %v4353, 0
        %v4469 = vsel %vm3593, %v4354, 0
        %4471 = vmatprep.subr.bf16.mxu0 0
        %4472 = vmatpush1.bf16.msra.mxu0 0
        %4473 = vmatprep.subr.bf16.mxu0 0
        %4474 = vmatpush1.bf16.msra.mxu0 0
        %4475 = vmatprep.subr.bf16.mxu0 0
        %4476 = vmatpush1.bf16.msra.mxu0 0
        %4477 = vmatprep.subr.bf16.mxu0 0
        %4478 = vmatpush1.bf16.msra.mxu0 0
        %4479 = vmatprep.subr.bf16.mxu0 %v4438
        %4480 = vmatpush1.bf16.msra.mxu0 %v4437
        %4481 = vmatprep.subr.bf16.mxu0 %v4436
        %4482 = vmatpush1.bf16.msra.mxu0 %v4435
        %4483 = vmatprep.subr.bf16.mxu0 %v4434
        %4484 = vmatpush1.bf16.msra.mxu0 %v4433
        %4485 = vmatprep.subr.bf16.mxu0 %v4432
        %4486 = vmatpush1.bf16.msra.mxu0 %v4431
        %4487 = vmatprep.subr.bf16.mxu0 0
        %4488 = vmatpush2.bf16.msra.mxu0 0
        %4489 = vmatprep.subr.bf16.mxu0 0
        %4490 = vmatpush2.bf16.msra.mxu0 0
        %4491 = vmatprep.subr.bf16.mxu0 0
        %4492 = vmatpush2.bf16.msra.mxu0 0
        %4493 = vmatprep.subr.bf16.mxu0 0
        %4494 = vmatpush2.bf16.msra.mxu0 0
        %4495 = vmatprep.subr.bf16.mxu0 0
        %4496 = vmatpush2.bf16.msra.mxu0 0
        %4497 = vmatprep.subr.bf16.mxu0 0
        %4498 = vmatpush2.bf16.msra.mxu0 0
        %4499 = vmatprep.subr.bf16.mxu0 0
        %4500 = vmatpush2.bf16.msra.mxu0 0
        %4501 = vmatprep.subr.bf16.mxu0 0
        %4502 = vmatpush2.bf16.msra.mxu0 0
        %4503 = vmatprep.mubr.bf16.mxu0 0
        %4504 = vmatmul.mubr.bf16.gmra.mxu0 %v4448
        %v4505 = vpop.f32.mrf.mxu0
        %v4506 = vadd.f32 0.0, %v4505
        %v4507 = vpop.f32.mrf.mxu0
        %v4508 = vadd.f32 0.0, %v4507
        %v4509 = vpop.f32.mrf.mxu0
        %v4510 = vadd.f32 0.0, %v4509
        %v4511 = vpop.f32.mrf.mxu0
        %v4512 = vadd.f32 0.0, %v4511
        %4513 = vmatprep.mubr.bf16.mxu0 0
        %4514 = vmatmul.mubr.bf16.gmra.mxu0 %v4451
        %v4515 = vpop.f32.mrf.mxu0
        %v4516 = vadd.f32 0.0, %v4515
        %v4517 = vpop.f32.mrf.mxu0
        %v4518 = vadd.f32 0.0, %v4517
        %v4519 = vpop.f32.mrf.mxu0
        %v4520 = vadd.f32 0.0, %v4519
        %v4521 = vpop.f32.mrf.mxu0
        %v4522 = vadd.f32 0.0, %v4521
        %4523 = vmatprep.mubr.bf16.mxu0 0
        %4524 = vmatmul.mubr.bf16.gmra.mxu0 %v4454
        %v4525 = vpop.f32.mrf.mxu0
        %v4526 = vadd.f32 0.0, %v4525
        %v4527 = vpop.f32.mrf.mxu0
        %v4528 = vadd.f32 0.0, %v4527
        %v4529 = vpop.f32.mrf.mxu0
        %v4530 = vadd.f32 0.0, %v4529
        %v4531 = vpop.f32.mrf.mxu0
        %v4532 = vadd.f32 0.0, %v4531
        %4533 = vmatprep.mubr.bf16.mxu0 0
        %4534 = vmatmul.mubr.bf16.gmra.mxu0 %v4457
        %v4535 = vpop.f32.mrf.mxu0
        %v4536 = vadd.f32 0.0, %v4535
        %v4537 = vpop.f32.mrf.mxu0
        %v4538 = vadd.f32 0.0, %v4537
        %v4539 = vpop.f32.mrf.mxu0
        %v4540 = vadd.f32 0.0, %v4539
        %v4541 = vpop.f32.mrf.mxu0
        %v4542 = vadd.f32 0.0, %v4541
        %4543 = vmatprep.mubr.bf16.mxu0 0
        %4544 = vmatmul.mubr.bf16.gmra.mxu0 %v4460
        %v4545 = vpop.f32.mrf.mxu0
        %v4546 = vadd.f32 0.0, %v4545
        %v4547 = vpop.f32.mrf.mxu0
        %v4548 = vadd.f32 0.0, %v4547
        %v4549 = vpop.f32.mrf.mxu0
        %v4550 = vadd.f32 0.0, %v4549
        %v4551 = vpop.f32.mrf.mxu0
        %v4552 = vadd.f32 0.0, %v4551
        %4553 = vmatprep.mubr.bf16.mxu0 0
        %4554 = vmatmul.mubr.bf16.gmra.mxu0 %v4463
        %v4555 = vpop.f32.mrf.mxu0
        %v4556 = vadd.f32 0.0, %v4555
        %v4557 = vpop.f32.mrf.mxu0
        %v4558 = vadd.f32 0.0, %v4557
        %v4559 = vpop.f32.mrf.mxu0
        %v4560 = vadd.f32 0.0, %v4559
        %v4561 = vpop.f32.mrf.mxu0
        %v4562 = vadd.f32 0.0, %v4561
        %4563 = vmatprep.mubr.bf16.mxu0 0
        %4564 = vmatmul.mubr.bf16.gmra.mxu0 %v4466
        %v4565 = vpop.f32.mrf.mxu0
        %v4566 = vadd.f32 0.0, %v4565
        %v4567 = vpop.f32.mrf.mxu0
        %v4568 = vadd.f32 0.0, %v4567
        %v4569 = vpop.f32.mrf.mxu0
        %v4570 = vadd.f32 0.0, %v4569
        %v4571 = vpop.f32.mrf.mxu0
        %v4572 = vadd.f32 0.0, %v4571
        %4573 = vmatprep.mubr.bf16.mxu0 0
        %4574 = vmatmul.mubr.bf16.gmra.mxu0 %v4469
        %v4575 = vpop.f32.mrf.mxu0
        %v4576 = vadd.f32 0.0, %v4575
        %v4577 = vpop.f32.mrf.mxu0
        %v4578 = vadd.f32 0.0, %v4577
        %v4579 = vpop.f32.mrf.mxu0
        %v4580 = vadd.f32 0.0, %v4579
        %v4581 = vpop.f32.mrf.mxu0
        %v4582 = vadd.f32 0.0, %v4581
        %4583 = vdwg.mxu0
        %v4584 = vadd.f32 %v4250, %v4506
        %v4585 = vadd.f32 %v4251, %v4508
        %v4586 = vadd.f32 %v4252, %v4510
        %v4587 = vadd.f32 %v4253, %v4512
        %v4588 = vadd.f32 %v4254, %v4516
        %v4589 = vadd.f32 %v4255, %v4518
        %v4590 = vadd.f32 %v4256, %v4520
        %v4591 = vadd.f32 %v4257, %v4522
        %v4592 = vadd.f32 %v4258, %v4526
        %v4593 = vadd.f32 %v4259, %v4528
        %v4594 = vadd.f32 %v4260, %v4530
        %v4595 = vadd.f32 %v4261, %v4532
        %v4596 = vadd.f32 %v4262, %v4536
        %v4597 = vadd.f32 %v4263, %v4538
        %v4598 = vadd.f32 %v4264, %v4540
        %v4599 = vadd.f32 %v4265, %v4542
        %v4600 = vadd.f32 %v4266, %v4546
        %v4601 = vadd.f32 %v4267, %v4548
        %v4602 = vadd.f32 %v4268, %v4550
        %v4603 = vadd.f32 %v4269, %v4552
        %v4604 = vadd.f32 %v4270, %v4556
        %v4605 = vadd.f32 %v4271, %v4558
        %v4606 = vadd.f32 %v4272, %v4560
        %v4607 = vadd.f32 %v4273, %v4562
        %v4608 = vadd.f32 %v4274, %v4566
        %v4609 = vadd.f32 %v4275, %v4568
        %v4610 = vadd.f32 %v4276, %v4570
        %v4611 = vadd.f32 %v4277, %v4572
        %v4612 = vadd.f32 %v4278, %v4576
        %v4613 = vadd.f32 %v4279, %v4578
        %v4614 = vadd.f32 %v4280, %v4580
        %v4615 = vadd.f32 %v4281, %v4582
        %s4616 = scalar_lea.vmem %s5, 256
        %v4617 = vld [vmem:[%s4616] sm:$0xf]
        %v4618 = vld [vmem:[%s4616 + $0x4] sm:$0xf]
        %v4619 = vld [vmem:[%s4616 + $0x8] sm:$0xf]
        %v4620 = vld [vmem:[%s4616 + $0xc] sm:$0xf]
        %v4621 = vld [vmem:[%s4616 + $0x10] sm:$0xf]
        %v4622 = vld [vmem:[%s4616 + $0x14] sm:$0xf]
        %v4623 = vld [vmem:[%s4616 + $0x18] sm:$0xf]
        %v4624 = vld [vmem:[%s4616 + $0x1c] sm:$0xf]
        %v4625 = vld [vmem:[%s4616 + $0x20] sm:$0xf]
        %v4626 = vld [vmem:[%s4616 + $0x24] sm:$0xf]
        %v4627 = vld [vmem:[%s4616 + $0x28] sm:$0xf]
        %v4628 = vld [vmem:[%s4616 + $0x2c] sm:$0xf]
        %v4629 = vld [vmem:[%s4616 + $0x30] sm:$0xf]
        %v4630 = vld [vmem:[%s4616 + $0x34] sm:$0xf]
        %v4631 = vld [vmem:[%s4616 + $0x38] sm:$0xf]
        %v4632 = vld [vmem:[%s4616 + $0x3c] sm:$0xf]
        %v4649 = vunpack.c.l.b16 %v4617
        %v4650 = vunpack.c.l.b16 %v4618
        %v4651 = vunpack.c.l.b16 %v4619
        %v4652 = vunpack.c.l.b16 %v4620
        %v4653 = vunpack.c.l.b16 %v4621
        %v4654 = vunpack.c.l.b16 %v4622
        %v4655 = vunpack.c.l.b16 %v4623
        %v4656 = vunpack.c.l.b16 %v4624
        %v4657 = vunpack.c.l.b16 %v4625
        %v4658 = vunpack.c.l.b16 %v4626
        %v4659 = vunpack.c.l.b16 %v4627
        %v4660 = vunpack.c.l.b16 %v4628
        %v4661 = vunpack.c.l.b16 %v4629
        %v4662 = vunpack.c.l.b16 %v4630
        %v4663 = vunpack.c.l.b16 %v4631
        %v4664 = vunpack.c.l.b16 %v4632
        %v4665 = vpack.c.b16 %v4650, %v4649
        %v4666 = vpack.c.b16 %v4652, %v4651
        %v4667 = vpack.c.b16 %v4654, %v4653
        %v4668 = vpack.c.b16 %v4656, %v4655
        %v4669 = vpack.c.b16 %v4658, %v4657
        %v4670 = vpack.c.b16 %v4660, %v4659
        %v4671 = vpack.c.b16 %v4662, %v4661
        %v4672 = vpack.c.b16 %v4664, %v4663
        %4673 = vrot.lane.b32.xlu0 %v3541, 111
        %v4674 = vpop.permute.xlu0 %4673
        %4675 = vrot.lane.b32.xlu0 %v3542, 111
        %v4676 = vpop.permute.xlu0 %4675
        %4677 = vrot.lane.b32.xlu0 %v3543, 111
        %v4678 = vpop.permute.xlu0 %4677
        %4679 = vrot.lane.b32.xlu0 %v3544, 111
        %v4680 = vpop.permute.xlu0 %4679
        %4681 = vrot.lane.b32.xlu0 %v3545, 111
        %v4682 = vpop.permute.xlu0 %4681
        %4683 = vrot.lane.b32.xlu0 %v3546, 111
        %v4684 = vpop.permute.xlu0 %4683
        %4685 = vrot.lane.b32.xlu0 %v3547, 111
        %v4686 = vpop.permute.xlu0 %4685
        %4687 = vrot.lane.b32.xlu0 %v3548, 111
        %v4688 = vpop.permute.xlu0 %4687
        %4689 = vrot.lane.b32.xlu0 %v3549, 111
        %v4690 = vpop.permute.xlu0 %4689
        %4691 = vrot.lane.b32.xlu0 %v3550, 111
        %v4692 = vpop.permute.xlu0 %4691
        %4693 = vrot.lane.b32.xlu0 %v3551, 111
        %v4694 = vpop.permute.xlu0 %4693
        %4695 = vrot.lane.b32.xlu0 %v3552, 111
        %v4696 = vpop.permute.xlu0 %4695
        %v4697 = vsel %vm1618, %v4674, %v4676
        %v4698 = vsel %vm1618, %v4676, %v4678
        %v4699 = vsel %vm1618, %v4680, %v4682
        %v4700 = vsel %vm1618, %v4682, %v4684
        %v4701 = vsel %vm1618, %v4686, %v4688
        %v4702 = vsel %vm1618, %v4688, %v4690
        %v4703 = vsel %vm1618, %v4692, %v4694
        %v4704 = vsel %vm1618, %v4694, %v4696
        %v4714 = vsel %vm3593, %v4665, 0
        %v4717 = vsel %vm3593, %v4666, 0
        %v4720 = vsel %vm3593, %v4667, 0
        %v4723 = vsel %vm3593, %v4668, 0
        %v4726 = vsel %vm3593, %v4669, 0
        %v4729 = vsel %vm3593, %v4670, 0
        %v4732 = vsel %vm3593, %v4671, 0
        %v4735 = vsel %vm3593, %v4672, 0
        %4737 = vmatprep.subr.bf16.mxu0 0
        %4738 = vmatpush1.bf16.msra.mxu0 0
        %4739 = vmatprep.subr.bf16.mxu0 0
        %4740 = vmatpush1.bf16.msra.mxu0 0
        %4741 = vmatprep.subr.bf16.mxu0 0
        %4742 = vmatpush1.bf16.msra.mxu0 0
        %4743 = vmatprep.subr.bf16.mxu0 0
        %4744 = vmatpush1.bf16.msra.mxu0 0
        %4745 = vmatprep.subr.bf16.mxu0 %v4704
        %4746 = vmatpush1.bf16.msra.mxu0 %v4703
        %4747 = vmatprep.subr.bf16.mxu0 %v4702
        %4748 = vmatpush1.bf16.msra.mxu0 %v4701
        %4749 = vmatprep.subr.bf16.mxu0 %v4700
        %4750 = vmatpush1.bf16.msra.mxu0 %v4699
        %4751 = vmatprep.subr.bf16.mxu0 %v4698
        %4752 = vmatpush1.bf16.msra.mxu0 %v4697
        %4753 = vmatprep.subr.bf16.mxu0 0
        %4754 = vmatpush2.bf16.msra.mxu0 0
        %4755 = vmatprep.subr.bf16.mxu0 0
        %4756 = vmatpush2.bf16.msra.mxu0 0
        %4757 = vmatprep.subr.bf16.mxu0 0
        %4758 = vmatpush2.bf16.msra.mxu0 0
        %4759 = vmatprep.subr.bf16.mxu0 0
        %4760 = vmatpush2.bf16.msra.mxu0 0
        %4761 = vmatprep.subr.bf16.mxu0 0
        %4762 = vmatpush2.bf16.msra.mxu0 0
        %4763 = vmatprep.subr.bf16.mxu0 0
        %4764 = vmatpush2.bf16.msra.mxu0 0
        %4765 = vmatprep.subr.bf16.mxu0 0
        %4766 = vmatpush2.bf16.msra.mxu0 0
        %4767 = vmatprep.subr.bf16.mxu0 0
        %4768 = vmatpush2.bf16.msra.mxu0 0
        %4769 = vmatprep.mubr.bf16.mxu0 0
        %4770 = vmatmul.mubr.bf16.gmra.mxu0 %v4714
        %v4771 = vpop.f32.mrf.mxu0
        %v4772 = vadd.f32 0.0, %v4771
        %v4773 = vpop.f32.mrf.mxu0
        %v4774 = vadd.f32 0.0, %v4773
        %v4775 = vpop.f32.mrf.mxu0
        %v4776 = vadd.f32 0.0, %v4775
        %v4777 = vpop.f32.mrf.mxu0
        %v4778 = vadd.f32 0.0, %v4777
        %4779 = vmatprep.mubr.bf16.mxu0 0
        %4780 = vmatmul.mubr.bf16.gmra.mxu0 %v4717
        %v4781 = vpop.f32.mrf.mxu0
        %v4782 = vadd.f32 0.0, %v4781
        %v4783 = vpop.f32.mrf.mxu0
        %v4784 = vadd.f32 0.0, %v4783
        %v4785 = vpop.f32.mrf.mxu0
        %v4786 = vadd.f32 0.0, %v4785
        %v4787 = vpop.f32.mrf.mxu0
        %v4788 = vadd.f32 0.0, %v4787
        %4789 = vmatprep.mubr.bf16.mxu0 0
        %4790 = vmatmul.mubr.bf16.gmra.mxu0 %v4720
        %v4791 = vpop.f32.mrf.mxu0
        %v4792 = vadd.f32 0.0, %v4791
        %v4793 = vpop.f32.mrf.mxu0
        %v4794 = vadd.f32 0.0, %v4793
        %v4795 = vpop.f32.mrf.mxu0
        %v4796 = vadd.f32 0.0, %v4795
        %v4797 = vpop.f32.mrf.mxu0
        %v4798 = vadd.f32 0.0, %v4797
        %4799 = vmatprep.mubr.bf16.mxu0 0
        %4800 = vmatmul.mubr.bf16.gmra.mxu0 %v4723
        %v4801 = vpop.f32.mrf.mxu0
        %v4802 = vadd.f32 0.0, %v4801
        %v4803 = vpop.f32.mrf.mxu0
        %v4804 = vadd.f32 0.0, %v4803
        %v4805 = vpop.f32.mrf.mxu0
        %v4806 = vadd.f32 0.0, %v4805
        %v4807 = vpop.f32.mrf.mxu0
        %v4808 = vadd.f32 0.0, %v4807
        %4809 = vmatprep.mubr.bf16.mxu0 0
        %4810 = vmatmul.mubr.bf16.gmra.mxu0 %v4726
        %v4811 = vpop.f32.mrf.mxu0
        %v4812 = vadd.f32 0.0, %v4811
        %v4813 = vpop.f32.mrf.mxu0
        %v4814 = vadd.f32 0.0, %v4813
        %v4815 = vpop.f32.mrf.mxu0
        %v4816 = vadd.f32 0.0, %v4815
        %v4817 = vpop.f32.mrf.mxu0
        %v4818 = vadd.f32 0.0, %v4817
        %4819 = vmatprep.mubr.bf16.mxu0 0
        %4820 = vmatmul.mubr.bf16.gmra.mxu0 %v4729
        %v4821 = vpop.f32.mrf.mxu0
        %v4822 = vadd.f32 0.0, %v4821
        %v4823 = vpop.f32.mrf.mxu0
        %v4824 = vadd.f32 0.0, %v4823
        %v4825 = vpop.f32.mrf.mxu0
        %v4826 = vadd.f32 0.0, %v4825
        %v4827 = vpop.f32.mrf.mxu0
        %v4828 = vadd.f32 0.0, %v4827
        %4829 = vmatprep.mubr.bf16.mxu0 0
        %4830 = vmatmul.mubr.bf16.gmra.mxu0 %v4732
        %v4831 = vpop.f32.mrf.mxu0
        %v4832 = vadd.f32 0.0, %v4831
        %v4833 = vpop.f32.mrf.mxu0
        %v4834 = vadd.f32 0.0, %v4833
        %v4835 = vpop.f32.mrf.mxu0
        %v4836 = vadd.f32 0.0, %v4835
        %v4837 = vpop.f32.mrf.mxu0
        %v4838 = vadd.f32 0.0, %v4837
        %4839 = vmatprep.mubr.bf16.mxu0 0
        %4840 = vmatmul.mubr.bf16.gmra.mxu0 %v4735
        %v4841 = vpop.f32.mrf.mxu0
        %v4842 = vadd.f32 0.0, %v4841
        %v4843 = vpop.f32.mrf.mxu0
        %v4844 = vadd.f32 0.0, %v4843
        %v4845 = vpop.f32.mrf.mxu0
        %v4846 = vadd.f32 0.0, %v4845
        %v4847 = vpop.f32.mrf.mxu0
        %v4848 = vadd.f32 0.0, %v4847
        %4849 = vdwg.mxu0
        %v4850 = vadd.f32 %v4584, %v4772
        %v4851 = vadd.f32 %v4585, %v4774
        %v4852 = vadd.f32 %v4586, %v4776
        %v4853 = vadd.f32 %v4587, %v4778
        %v4854 = vadd.f32 %v4588, %v4782
        %v4855 = vadd.f32 %v4589, %v4784
        %v4856 = vadd.f32 %v4590, %v4786
        %v4857 = vadd.f32 %v4591, %v4788
        %v4858 = vadd.f32 %v4592, %v4792
        %v4859 = vadd.f32 %v4593, %v4794
        %v4860 = vadd.f32 %v4594, %v4796
        %v4861 = vadd.f32 %v4595, %v4798
        %v4862 = vadd.f32 %v4596, %v4802
        %v4863 = vadd.f32 %v4597, %v4804
        %v4864 = vadd.f32 %v4598, %v4806
        %v4865 = vadd.f32 %v4599, %v4808
        %v4866 = vadd.f32 %v4600, %v4812
        %v4867 = vadd.f32 %v4601, %v4814
        %v4868 = vadd.f32 %v4602, %v4816
        %v4869 = vadd.f32 %v4603, %v4818
        %v4870 = vadd.f32 %v4604, %v4822
        %v4871 = vadd.f32 %v4605, %v4824
        %v4872 = vadd.f32 %v4606, %v4826
        %v4873 = vadd.f32 %v4607, %v4828
        %v4874 = vadd.f32 %v4608, %v4832
        %v4875 = vadd.f32 %v4609, %v4834
        %v4876 = vadd.f32 %v4610, %v4836
        %v4877 = vadd.f32 %v4611, %v4838
        %v4878 = vadd.f32 %v4612, %v4842
        %v4879 = vadd.f32 %v4613, %v4844
        %v4880 = vadd.f32 %v4614, %v4846
        %v4881 = vadd.f32 %v4615, %v4848
        %v4882 = vmul.bf16 %v3404, %v1800
        %v4883 = vmul.bf16 %v3436, %v1798
        %v4884 = vmul.bf16 %v3405, %v1800
        %v4885 = vmul.bf16 %v3437, %v1798
        %v4886 = vmul.bf16 %v3406, %v1800
        %v4887 = vmul.bf16 %v3438, %v1798
        %v4888 = vmul.bf16 %v3407, %v1800
        %v4889 = vmul.bf16 %v3439, %v1798
        %v4890 = vmul.bf16 %v3408, %v1800
        %v4891 = vmul.bf16 %v3440, %v1798
        %v4892 = vmul.bf16 %v3409, %v1800
        %v4893 = vmul.bf16 %v3441, %v1798
        %v4894 = vmul.bf16 %v3410, %v1800
        %v4895 = vmul.bf16 %v3442, %v1798
        %v4896 = vmul.bf16 %v3411, %v1800
        %v4897 = vmul.bf16 %v3443, %v1798
        %s4898 = scalar_lea.vmem %s5, 320
        %v4899 = vld [vmem:[%s4898] sm:$0xf]
        %v4900 = vld [vmem:[%s4898 + $0x4] sm:$0xf]
        %v4901 = vld [vmem:[%s4898 + $0x8] sm:$0xf]
        %v4902 = vld [vmem:[%s4898 + $0xc] sm:$0xf]
        %v4903 = vld [vmem:[%s4898 + $0x10] sm:$0xf]
        %v4904 = vld [vmem:[%s4898 + $0x14] sm:$0xf]
        %v4905 = vld [vmem:[%s4898 + $0x18] sm:$0xf]
        %v4906 = vld [vmem:[%s4898 + $0x1c] sm:$0xf]
        %v4907 = vld [vmem:[%s4898 + $0x20] sm:$0xf]
        %v4908 = vld [vmem:[%s4898 + $0x24] sm:$0xf]
        %v4909 = vld [vmem:[%s4898 + $0x28] sm:$0xf]
        %v4910 = vld [vmem:[%s4898 + $0x2c] sm:$0xf]
        %v4911 = vld [vmem:[%s4898 + $0x30] sm:$0xf]
        %v4912 = vld [vmem:[%s4898 + $0x34] sm:$0xf]
        %v4913 = vld [vmem:[%s4898 + $0x38] sm:$0xf]
        %v4914 = vld [vmem:[%s4898 + $0x3c] sm:$0xf]
        %v4931 = vunpack.c.l.b16 %v4899
        %v4932 = vunpack.c.l.b16 %v4900
        %v4933 = vunpack.c.l.b16 %v4901
        %v4934 = vunpack.c.l.b16 %v4902
        %v4935 = vunpack.c.l.b16 %v4903
        %v4936 = vunpack.c.l.b16 %v4904
        %v4937 = vunpack.c.l.b16 %v4905
        %v4938 = vunpack.c.l.b16 %v4906
        %v4939 = vunpack.c.l.b16 %v4907
        %v4940 = vunpack.c.l.b16 %v4908
        %v4941 = vunpack.c.l.b16 %v4909
        %v4942 = vunpack.c.l.b16 %v4910
        %v4943 = vunpack.c.l.b16 %v4911
        %v4944 = vunpack.c.l.b16 %v4912
        %v4945 = vunpack.c.l.b16 %v4913
        %v4946 = vunpack.c.l.b16 %v4914
        %v4947 = vpack.c.b16 %v4932, %v4931
        %v4948 = vpack.c.b16 %v4934, %v4933
        %v4949 = vpack.c.b16 %v4936, %v4935
        %v4950 = vpack.c.b16 %v4938, %v4937
        %v4951 = vpack.c.b16 %v4940, %v4939
        %v4952 = vpack.c.b16 %v4942, %v4941
        %v4953 = vpack.c.b16 %v4944, %v4943
        %v4954 = vpack.c.b16 %v4946, %v4945
        %v4971 = vunpack.c.l.b16 %v4882
        %v4972 = vunpack.c.h.b16 %v4882
        %v4973 = vunpack.c.l.b16 %v4883
        %v4974 = vunpack.c.l.b16 %v4884
        %v4975 = vunpack.c.h.b16 %v4884
        %v4976 = vunpack.c.l.b16 %v4885
        %v4977 = vunpack.c.l.b16 %v4886
        %v4978 = vunpack.c.h.b16 %v4886
        %v4979 = vunpack.c.l.b16 %v4887
        %v4980 = vunpack.c.l.b16 %v4888
        %v4981 = vunpack.c.h.b16 %v4888
        %v4982 = vunpack.c.l.b16 %v4889
        %v4983 = vunpack.c.l.b16 %v4890
        %v4984 = vunpack.c.h.b16 %v4890
        %v4985 = vunpack.c.l.b16 %v4891
        %v4986 = vunpack.c.l.b16 %v4892
        %v4987 = vunpack.c.h.b16 %v4892
        %v4988 = vunpack.c.l.b16 %v4893
        %v4989 = vunpack.c.l.b16 %v4894
        %v4990 = vunpack.c.h.b16 %v4894
        %v4991 = vunpack.c.l.b16 %v4895
        %v4992 = vunpack.c.l.b16 %v4896
        %v4993 = vunpack.c.h.b16 %v4896
        %v4994 = vunpack.c.l.b16 %v4897
        %v4995 = vpack.c.b16 %v4974, %v4971
        %v4996 = vpack.c.b16 %v4975, %v4972
        %v4997 = vpack.c.b16 %v4976, %v4973
        %v4998 = vpack.c.b16 %v4980, %v4977
        %v4999 = vpack.c.b16 %v4981, %v4978
        %v5000 = vpack.c.b16 %v4982, %v4979
        %v5001 = vpack.c.b16 %v4986, %v4983
        %v5002 = vpack.c.b16 %v4987, %v4984
        %v5003 = vpack.c.b16 %v4988, %v4985
        %v5004 = vpack.c.b16 %v4992, %v4989
        %v5005 = vpack.c.b16 %v4993, %v4990
        %v5006 = vpack.c.b16 %v4994, %v4991
        %5007 = vrot.lane.b32.xlu0 %v4995, 110
        %v5008 = vpop.permute.xlu0 %5007
        %5009 = vrot.lane.b32.xlu0 %v4996, 110
        %v5010 = vpop.permute.xlu0 %5009
        %5011 = vrot.lane.b32.xlu0 %v4997, 110
        %v5012 = vpop.permute.xlu0 %5011
        %5013 = vrot.lane.b32.xlu0 %v4998, 110
        %v5014 = vpop.permute.xlu0 %5013
        %5015 = vrot.lane.b32.xlu0 %v4999, 110
        %v5016 = vpop.permute.xlu0 %5015
        %5017 = vrot.lane.b32.xlu0 %v5000, 110
        %v5018 = vpop.permute.xlu0 %5017
        %5019 = vrot.lane.b32.xlu0 %v5001, 110
        %v5020 = vpop.permute.xlu0 %5019
        %5021 = vrot.lane.b32.xlu0 %v5002, 110
        %v5022 = vpop.permute.xlu0 %5021
        %5023 = vrot.lane.b32.xlu0 %v5003, 110
        %v5024 = vpop.permute.xlu0 %5023
        %5025 = vrot.lane.b32.xlu0 %v5004, 110
        %v5026 = vpop.permute.xlu0 %5025
        %5027 = vrot.lane.b32.xlu0 %v5005, 110
        %v5028 = vpop.permute.xlu0 %5027
        %5029 = vrot.lane.b32.xlu0 %v5006, 110
        %v5030 = vpop.permute.xlu0 %5029
        %v5031 = vsel %vm1906, %v5008, %v5010
        %v5032 = vsel %vm1906, %v5010, %v5012
        %v5033 = vsel %vm1906, %v5014, %v5016
        %v5034 = vsel %vm1906, %v5016, %v5018
        %v5035 = vsel %vm1906, %v5020, %v5022
        %v5036 = vsel %vm1906, %v5022, %v5024
        %v5037 = vsel %vm1906, %v5026, %v5028
        %v5038 = vsel %vm1906, %v5028, %v5030
        %v5048 = vsel %vm3593, %v4947, 0
        %v5051 = vsel %vm3593, %v4948, 0
        %v5054 = vsel %vm3593, %v4949, 0
        %v5057 = vsel %vm3593, %v4950, 0
        %v5060 = vsel %vm3593, %v4951, 0
        %v5063 = vsel %vm3593, %v4952, 0
        %v5066 = vsel %vm3593, %v4953, 0
        %v5069 = vsel %vm3593, %v4954, 0
        %5071 = vmatprep.subr.bf16.mxu0 0
        %5072 = vmatpush1.bf16.msra.mxu0 0
        %5073 = vmatprep.subr.bf16.mxu0 0
        %5074 = vmatpush1.bf16.msra.mxu0 0
        %5075 = vmatprep.subr.bf16.mxu0 0
        %5076 = vmatpush1.bf16.msra.mxu0 0
        %5077 = vmatprep.subr.bf16.mxu0 0
        %5078 = vmatpush1.bf16.msra.mxu0 0
        %5079 = vmatprep.subr.bf16.mxu0 %v5038
        %5080 = vmatpush1.bf16.msra.mxu0 %v5037
        %5081 = vmatprep.subr.bf16.mxu0 %v5036
        %5082 = vmatpush1.bf16.msra.mxu0 %v5035
        %5083 = vmatprep.subr.bf16.mxu0 %v5034
        %5084 = vmatpush1.bf16.msra.mxu0 %v5033
        %5085 = vmatprep.subr.bf16.mxu0 %v5032
        %5086 = vmatpush1.bf16.msra.mxu0 %v5031
        %5087 = vmatprep.subr.bf16.mxu0 0
        %5088 = vmatpush2.bf16.msra.mxu0 0
        %5089 = vmatprep.subr.bf16.mxu0 0
        %5090 = vmatpush2.bf16.msra.mxu0 0
        %5091 = vmatprep.subr.bf16.mxu0 0
        %5092 = vmatpush2.bf16.msra.mxu0 0
        %5093 = vmatprep.subr.bf16.mxu0 0
        %5094 = vmatpush2.bf16.msra.mxu0 0
        %5095 = vmatprep.subr.bf16.mxu0 0
        %5096 = vmatpush2.bf16.msra.mxu0 0
        %5097 = vmatprep.subr.bf16.mxu0 0
        %5098 = vmatpush2.bf16.msra.mxu0 0
        %5099 = vmatprep.subr.bf16.mxu0 0
        %5100 = vmatpush2.bf16.msra.mxu0 0
        %5101 = vmatprep.subr.bf16.mxu0 0
        %5102 = vmatpush2.bf16.msra.mxu0 0
        %5103 = vmatprep.mubr.bf16.mxu0 0
        %5104 = vmatmul.mubr.bf16.gmra.mxu0 %v5048
        %v5105 = vpop.f32.mrf.mxu0
        %v5106 = vadd.f32 0.0, %v5105
        %v5107 = vpop.f32.mrf.mxu0
        %v5108 = vadd.f32 0.0, %v5107
        %v5109 = vpop.f32.mrf.mxu0
        %v5110 = vadd.f32 0.0, %v5109
        %v5111 = vpop.f32.mrf.mxu0
        %v5112 = vadd.f32 0.0, %v5111
        %5113 = vmatprep.mubr.bf16.mxu0 0
        %5114 = vmatmul.mubr.bf16.gmra.mxu0 %v5051
        %v5115 = vpop.f32.mrf.mxu0
        %v5116 = vadd.f32 0.0, %v5115
        %v5117 = vpop.f32.mrf.mxu0
        %v5118 = vadd.f32 0.0, %v5117
        %v5119 = vpop.f32.mrf.mxu0
        %v5120 = vadd.f32 0.0, %v5119
        %v5121 = vpop.f32.mrf.mxu0
        %v5122 = vadd.f32 0.0, %v5121
        %5123 = vmatprep.mubr.bf16.mxu0 0
        %5124 = vmatmul.mubr.bf16.gmra.mxu0 %v5054
        %v5125 = vpop.f32.mrf.mxu0
        %v5126 = vadd.f32 0.0, %v5125
        %v5127 = vpop.f32.mrf.mxu0
        %v5128 = vadd.f32 0.0, %v5127
        %v5129 = vpop.f32.mrf.mxu0
        %v5130 = vadd.f32 0.0, %v5129
        %v5131 = vpop.f32.mrf.mxu0
        %v5132 = vadd.f32 0.0, %v5131
        %5133 = vmatprep.mubr.bf16.mxu0 0
        %5134 = vmatmul.mubr.bf16.gmra.mxu0 %v5057
        %v5135 = vpop.f32.mrf.mxu0
        %v5136 = vadd.f32 0.0, %v5135
        %v5137 = vpop.f32.mrf.mxu0
        %v5138 = vadd.f32 0.0, %v5137
        %v5139 = vpop.f32.mrf.mxu0
        %v5140 = vadd.f32 0.0, %v5139
        %v5141 = vpop.f32.mrf.mxu0
        %v5142 = vadd.f32 0.0, %v5141
        %5143 = vmatprep.mubr.bf16.mxu0 0
        %5144 = vmatmul.mubr.bf16.gmra.mxu0 %v5060
        %v5145 = vpop.f32.mrf.mxu0
        %v5146 = vadd.f32 0.0, %v5145
        %v5147 = vpop.f32.mrf.mxu0
        %v5148 = vadd.f32 0.0, %v5147
        %v5149 = vpop.f32.mrf.mxu0
        %v5150 = vadd.f32 0.0, %v5149
        %v5151 = vpop.f32.mrf.mxu0
        %v5152 = vadd.f32 0.0, %v5151
        %5153 = vmatprep.mubr.bf16.mxu0 0
        %5154 = vmatmul.mubr.bf16.gmra.mxu0 %v5063
        %v5155 = vpop.f32.mrf.mxu0
        %v5156 = vadd.f32 0.0, %v5155
        %v5157 = vpop.f32.mrf.mxu0
        %v5158 = vadd.f32 0.0, %v5157
        %v5159 = vpop.f32.mrf.mxu0
        %v5160 = vadd.f32 0.0, %v5159
        %v5161 = vpop.f32.mrf.mxu0
        %v5162 = vadd.f32 0.0, %v5161
        %5163 = vmatprep.mubr.bf16.mxu0 0
        %5164 = vmatmul.mubr.bf16.gmra.mxu0 %v5066
        %v5165 = vpop.f32.mrf.mxu0
        %v5166 = vadd.f32 0.0, %v5165
        %v5167 = vpop.f32.mrf.mxu0
        %v5168 = vadd.f32 0.0, %v5167
        %v5169 = vpop.f32.mrf.mxu0
        %v5170 = vadd.f32 0.0, %v5169
        %v5171 = vpop.f32.mrf.mxu0
        %v5172 = vadd.f32 0.0, %v5171
        %5173 = vmatprep.mubr.bf16.mxu0 0
        %5174 = vmatmul.mubr.bf16.gmra.mxu0 %v5069
        %v5175 = vpop.f32.mrf.mxu0
        %v5176 = vadd.f32 0.0, %v5175
        %v5177 = vpop.f32.mrf.mxu0
        %v5178 = vadd.f32 0.0, %v5177
        %v5179 = vpop.f32.mrf.mxu0
        %v5180 = vadd.f32 0.0, %v5179
        %v5181 = vpop.f32.mrf.mxu0
        %v5182 = vadd.f32 0.0, %v5181
        %5183 = vdwg.mxu0
        %v5184 = vadd.f32 %v4850, %v5106
        %v5185 = vadd.f32 %v4851, %v5108
        %v5186 = vadd.f32 %v4852, %v5110
        %v5187 = vadd.f32 %v4853, %v5112
        %v5188 = vadd.f32 %v4854, %v5116
        %v5189 = vadd.f32 %v4855, %v5118
        %v5190 = vadd.f32 %v4856, %v5120
        %v5191 = vadd.f32 %v4857, %v5122
        %v5192 = vadd.f32 %v4858, %v5126
        %v5193 = vadd.f32 %v4859, %v5128
        %v5194 = vadd.f32 %v4860, %v5130
        %v5195 = vadd.f32 %v4861, %v5132
        %v5196 = vadd.f32 %v4862, %v5136
        %v5197 = vadd.f32 %v4863, %v5138
        %v5198 = vadd.f32 %v4864, %v5140
        %v5199 = vadd.f32 %v4865, %v5142
        %v5200 = vadd.f32 %v4866, %v5146
        %v5201 = vadd.f32 %v4867, %v5148
        %v5202 = vadd.f32 %v4868, %v5150
        %v5203 = vadd.f32 %v4869, %v5152
        %v5204 = vadd.f32 %v4870, %v5156
        %v5205 = vadd.f32 %v4871, %v5158
        %v5206 = vadd.f32 %v4872, %v5160
        %v5207 = vadd.f32 %v4873, %v5162
        %v5208 = vadd.f32 %v4874, %v5166
        %v5209 = vadd.f32 %v4875, %v5168
        %v5210 = vadd.f32 %v4876, %v5170
        %v5211 = vadd.f32 %v4877, %v5172
        %v5212 = vadd.f32 %v4878, %v5176
        %v5213 = vadd.f32 %v4879, %v5178
        %v5214 = vadd.f32 %v4880, %v5180
        %v5215 = vadd.f32 %v4881, %v5182
        %v5216 = vmul.bf16 %v3404, %v2088
        %v5217 = vmul.bf16 %v3436, %v2086
        %v5218 = vmul.bf16 %v3405, %v2088
        %v5219 = vmul.bf16 %v3437, %v2086
        %v5220 = vmul.bf16 %v3406, %v2088
        %v5221 = vmul.bf16 %v3438, %v2086
        %v5222 = vmul.bf16 %v3407, %v2088
        %v5223 = vmul.bf16 %v3439, %v2086
        %v5224 = vmul.bf16 %v3408, %v2088
        %v5225 = vmul.bf16 %v3440, %v2086
        %v5226 = vmul.bf16 %v3409, %v2088
        %v5227 = vmul.bf16 %v3441, %v2086
        %v5228 = vmul.bf16 %v3410, %v2088
        %v5229 = vmul.bf16 %v3442, %v2086
        %v5230 = vmul.bf16 %v3411, %v2088
        %v5231 = vmul.bf16 %v3443, %v2086
        %s5232 = scalar_lea.vmem %s5, 384
        %v5233 = vld [vmem:[%s5232] sm:$0xf]
        %v5234 = vld [vmem:[%s5232 + $0x4] sm:$0xf]
        %v5235 = vld [vmem:[%s5232 + $0x8] sm:$0xf]
        %v5236 = vld [vmem:[%s5232 + $0xc] sm:$0xf]
        %v5237 = vld [vmem:[%s5232 + $0x10] sm:$0xf]
        %v5238 = vld [vmem:[%s5232 + $0x14] sm:$0xf]
        %v5239 = vld [vmem:[%s5232 + $0x18] sm:$0xf]
        %v5240 = vld [vmem:[%s5232 + $0x1c] sm:$0xf]
        %v5241 = vld [vmem:[%s5232 + $0x20] sm:$0xf]
        %v5242 = vld [vmem:[%s5232 + $0x24] sm:$0xf]
        %v5243 = vld [vmem:[%s5232 + $0x28] sm:$0xf]
        %v5244 = vld [vmem:[%s5232 + $0x2c] sm:$0xf]
        %v5245 = vld [vmem:[%s5232 + $0x30] sm:$0xf]
        %v5246 = vld [vmem:[%s5232 + $0x34] sm:$0xf]
        %v5247 = vld [vmem:[%s5232 + $0x38] sm:$0xf]
        %v5248 = vld [vmem:[%s5232 + $0x3c] sm:$0xf]
        %v5265 = vunpack.c.l.b16 %v5233
        %v5266 = vunpack.c.l.b16 %v5234
        %v5267 = vunpack.c.l.b16 %v5235
        %v5268 = vunpack.c.l.b16 %v5236
        %v5269 = vunpack.c.l.b16 %v5237
        %v5270 = vunpack.c.l.b16 %v5238
        %v5271 = vunpack.c.l.b16 %v5239
        %v5272 = vunpack.c.l.b16 %v5240
        %v5273 = vunpack.c.l.b16 %v5241
        %v5274 = vunpack.c.l.b16 %v5242
        %v5275 = vunpack.c.l.b16 %v5243
        %v5276 = vunpack.c.l.b16 %v5244
        %v5277 = vunpack.c.l.b16 %v5245
        %v5278 = vunpack.c.l.b16 %v5246
        %v5279 = vunpack.c.l.b16 %v5247
        %v5280 = vunpack.c.l.b16 %v5248
        %v5281 = vpack.c.b16 %v5266, %v5265
        %v5282 = vpack.c.b16 %v5268, %v5267
        %v5283 = vpack.c.b16 %v5270, %v5269
        %v5284 = vpack.c.b16 %v5272, %v5271
        %v5285 = vpack.c.b16 %v5274, %v5273
        %v5286 = vpack.c.b16 %v5276, %v5275
        %v5287 = vpack.c.b16 %v5278, %v5277
        %v5288 = vpack.c.b16 %v5280, %v5279
        %v5305 = vunpack.c.l.b16 %v5216
        %v5306 = vunpack.c.h.b16 %v5216
        %v5307 = vunpack.c.l.b16 %v5217
        %v5308 = vunpack.c.l.b16 %v5218
        %v5309 = vunpack.c.h.b16 %v5218
        %v5310 = vunpack.c.l.b16 %v5219
        %v5311 = vunpack.c.l.b16 %v5220
        %v5312 = vunpack.c.h.b16 %v5220
        %v5313 = vunpack.c.l.b16 %v5221
        %v5314 = vunpack.c.l.b16 %v5222
        %v5315 = vunpack.c.h.b16 %v5222
        %v5316 = vunpack.c.l.b16 %v5223
        %v5317 = vunpack.c.l.b16 %v5224
        %v5318 = vunpack.c.h.b16 %v5224
        %v5319 = vunpack.c.l.b16 %v5225
        %v5320 = vunpack.c.l.b16 %v5226
        %v5321 = vunpack.c.h.b16 %v5226
        %v5322 = vunpack.c.l.b16 %v5227
        %v5323 = vunpack.c.l.b16 %v5228
        %v5324 = vunpack.c.h.b16 %v5228
        %v5325 = vunpack.c.l.b16 %v5229
        %v5326 = vunpack.c.l.b16 %v5230
        %v5327 = vunpack.c.h.b16 %v5230
        %v5328 = vunpack.c.l.b16 %v5231
        %v5329 = vpack.c.b16 %v5308, %v5305
        %v5330 = vpack.c.b16 %v5309, %v5306
        %v5331 = vpack.c.b16 %v5310, %v5307
        %v5332 = vpack.c.b16 %v5314, %v5311
        %v5333 = vpack.c.b16 %v5315, %v5312
        %v5334 = vpack.c.b16 %v5316, %v5313
        %v5335 = vpack.c.b16 %v5320, %v5317
        %v5336 = vpack.c.b16 %v5321, %v5318
        %v5337 = vpack.c.b16 %v5322, %v5319
        %v5338 = vpack.c.b16 %v5326, %v5323
        %v5339 = vpack.c.b16 %v5327, %v5324
        %v5340 = vpack.c.b16 %v5328, %v5325
        %5341 = vrot.lane.b32.xlu0 %v5329, 96
        %v5342 = vpop.permute.xlu0 %5341
        %5343 = vrot.lane.b32.xlu0 %v5330, 96
        %v5344 = vpop.permute.xlu0 %5343
        %5345 = vrot.lane.b32.xlu0 %v5331, 96
        %v5346 = vpop.permute.xlu0 %5345
        %5347 = vrot.lane.b32.xlu0 %v5332, 96
        %v5348 = vpop.permute.xlu0 %5347
        %5349 = vrot.lane.b32.xlu0 %v5333, 96
        %v5350 = vpop.permute.xlu0 %5349
        %5351 = vrot.lane.b32.xlu0 %v5334, 96
        %v5352 = vpop.permute.xlu0 %5351
        %5353 = vrot.lane.b32.xlu0 %v5335, 96
        %v5354 = vpop.permute.xlu0 %5353
        %5355 = vrot.lane.b32.xlu0 %v5336, 96
        %v5356 = vpop.permute.xlu0 %5355
        %5357 = vrot.lane.b32.xlu0 %v5337, 96
        %v5358 = vpop.permute.xlu0 %5357
        %5359 = vrot.lane.b32.xlu0 %v5338, 96
        %v5360 = vpop.permute.xlu0 %5359
        %5361 = vrot.lane.b32.xlu0 %v5339, 96
        %v5362 = vpop.permute.xlu0 %5361
        %5363 = vrot.lane.b32.xlu0 %v5340, 96
        %v5364 = vpop.permute.xlu0 %5363
        %v5365 = vsel %vm2194, %v5342, %v5344
        %v5366 = vsel %vm2194, %v5344, %v5346
        %v5367 = vsel %vm2194, %v5348, %v5350
        %v5368 = vsel %vm2194, %v5350, %v5352
        %v5369 = vsel %vm2194, %v5354, %v5356
        %v5370 = vsel %vm2194, %v5356, %v5358
        %v5371 = vsel %vm2194, %v5360, %v5362
        %v5372 = vsel %vm2194, %v5362, %v5364
        %v5382 = vsel %vm3593, %v5281, 0
        %v5385 = vsel %vm3593, %v5282, 0
        %v5388 = vsel %vm3593, %v5283, 0
        %v5391 = vsel %vm3593, %v5284, 0
        %v5394 = vsel %vm3593, %v5285, 0
        %v5397 = vsel %vm3593, %v5286, 0
        %v5400 = vsel %vm3593, %v5287, 0
        %v5403 = vsel %vm3593, %v5288, 0
        %5405 = vmatprep.subr.bf16.mxu0 0
        %5406 = vmatpush1.bf16.msra.mxu0 0
        %5407 = vmatprep.subr.bf16.mxu0 0
        %5408 = vmatpush1.bf16.msra.mxu0 0
        %5409 = vmatprep.subr.bf16.mxu0 0
        %5410 = vmatpush1.bf16.msra.mxu0 0
        %5411 = vmatprep.subr.bf16.mxu0 0
        %5412 = vmatpush1.bf16.msra.mxu0 0
        %5413 = vmatprep.subr.bf16.mxu0 %v5372
        %5414 = vmatpush1.bf16.msra.mxu0 %v5371
        %5415 = vmatprep.subr.bf16.mxu0 %v5370
        %5416 = vmatpush1.bf16.msra.mxu0 %v5369
        %5417 = vmatprep.subr.bf16.mxu0 %v5368
        %5418 = vmatpush1.bf16.msra.mxu0 %v5367
        %5419 = vmatprep.subr.bf16.mxu0 %v5366
        %5420 = vmatpush1.bf16.msra.mxu0 %v5365
        %5421 = vmatprep.subr.bf16.mxu0 0
        %5422 = vmatpush2.bf16.msra.mxu0 0
        %5423 = vmatprep.subr.bf16.mxu0 0
        %5424 = vmatpush2.bf16.msra.mxu0 0
        %5425 = vmatprep.subr.bf16.mxu0 0
        %5426 = vmatpush2.bf16.msra.mxu0 0
        %5427 = vmatprep.subr.bf16.mxu0 0
        %5428 = vmatpush2.bf16.msra.mxu0 0
        %5429 = vmatprep.subr.bf16.mxu0 0
        %5430 = vmatpush2.bf16.msra.mxu0 0
        %5431 = vmatprep.subr.bf16.mxu0 0
        %5432 = vmatpush2.bf16.msra.mxu0 0
        %5433 = vmatprep.subr.bf16.mxu0 0
        %5434 = vmatpush2.bf16.msra.mxu0 0
        %5435 = vmatprep.subr.bf16.mxu0 0
        %5436 = vmatpush2.bf16.msra.mxu0 0
        %5437 = vmatprep.mubr.bf16.mxu0 0
        %5438 = vmatmul.mubr.bf16.gmra.mxu0 %v5382
        %v5439 = vpop.f32.mrf.mxu0
        %v5440 = vadd.f32 0.0, %v5439
        %v5441 = vpop.f32.mrf.mxu0
        %v5442 = vadd.f32 0.0, %v5441
        %v5443 = vpop.f32.mrf.mxu0
        %v5444 = vadd.f32 0.0, %v5443
        %v5445 = vpop.f32.mrf.mxu0
        %v5446 = vadd.f32 0.0, %v5445
        %5447 = vmatprep.mubr.bf16.mxu0 0
        %5448 = vmatmul.mubr.bf16.gmra.mxu0 %v5385
        %v5449 = vpop.f32.mrf.mxu0
        %v5450 = vadd.f32 0.0, %v5449
        %v5451 = vpop.f32.mrf.mxu0
        %v5452 = vadd.f32 0.0, %v5451
        %v5453 = vpop.f32.mrf.mxu0
        %v5454 = vadd.f32 0.0, %v5453
        %v5455 = vpop.f32.mrf.mxu0
        %v5456 = vadd.f32 0.0, %v5455
        %5457 = vmatprep.mubr.bf16.mxu0 0
        %5458 = vmatmul.mubr.bf16.gmra.mxu0 %v5388
        %v5459 = vpop.f32.mrf.mxu0
        %v5460 = vadd.f32 0.0, %v5459
        %v5461 = vpop.f32.mrf.mxu0
        %v5462 = vadd.f32 0.0, %v5461
        %v5463 = vpop.f32.mrf.mxu0
        %v5464 = vadd.f32 0.0, %v5463
        %v5465 = vpop.f32.mrf.mxu0
        %v5466 = vadd.f32 0.0, %v5465
        %5467 = vmatprep.mubr.bf16.mxu0 0
        %5468 = vmatmul.mubr.bf16.gmra.mxu0 %v5391
        %v5469 = vpop.f32.mrf.mxu0
        %v5470 = vadd.f32 0.0, %v5469
        %v5471 = vpop.f32.mrf.mxu0
        %v5472 = vadd.f32 0.0, %v5471
        %v5473 = vpop.f32.mrf.mxu0
        %v5474 = vadd.f32 0.0, %v5473
        %v5475 = vpop.f32.mrf.mxu0
        %v5476 = vadd.f32 0.0, %v5475
        %5477 = vmatprep.mubr.bf16.mxu0 0
        %5478 = vmatmul.mubr.bf16.gmra.mxu0 %v5394
        %v5479 = vpop.f32.mrf.mxu0
        %v5480 = vadd.f32 0.0, %v5479
        %v5481 = vpop.f32.mrf.mxu0
        %v5482 = vadd.f32 0.0, %v5481
        %v5483 = vpop.f32.mrf.mxu0
        %v5484 = vadd.f32 0.0, %v5483
        %v5485 = vpop.f32.mrf.mxu0
        %v5486 = vadd.f32 0.0, %v5485
        %5487 = vmatprep.mubr.bf16.mxu0 0
        %5488 = vmatmul.mubr.bf16.gmra.mxu0 %v5397
        %v5489 = vpop.f32.mrf.mxu0
        %v5490 = vadd.f32 0.0, %v5489
        %v5491 = vpop.f32.mrf.mxu0
        %v5492 = vadd.f32 0.0, %v5491
        %v5493 = vpop.f32.mrf.mxu0
        %v5494 = vadd.f32 0.0, %v5493
        %v5495 = vpop.f32.mrf.mxu0
        %v5496 = vadd.f32 0.0, %v5495
        %5497 = vmatprep.mubr.bf16.mxu0 0
        %5498 = vmatmul.mubr.bf16.gmra.mxu0 %v5400
        %v5499 = vpop.f32.mrf.mxu0
        %v5500 = vadd.f32 0.0, %v5499
        %v5501 = vpop.f32.mrf.mxu0
        %v5502 = vadd.f32 0.0, %v5501
        %v5503 = vpop.f32.mrf.mxu0
        %v5504 = vadd.f32 0.0, %v5503
        %v5505 = vpop.f32.mrf.mxu0
        %v5506 = vadd.f32 0.0, %v5505
        %5507 = vmatprep.mubr.bf16.mxu0 0
        %5508 = vmatmul.mubr.bf16.gmra.mxu0 %v5403
        %v5509 = vpop.f32.mrf.mxu0
        %v5510 = vadd.f32 0.0, %v5509
        %v5511 = vpop.f32.mrf.mxu0
        %v5512 = vadd.f32 0.0, %v5511
        %v5513 = vpop.f32.mrf.mxu0
        %v5514 = vadd.f32 0.0, %v5513
        %v5515 = vpop.f32.mrf.mxu0
        %v5516 = vadd.f32 0.0, %v5515
        %5517 = vdwg.mxu0
        %v5518 = vadd.f32 %v5184, %v5440
        %v5519 = vadd.f32 %v5185, %v5442
        %v5520 = vadd.f32 %v5186, %v5444
        %v5521 = vadd.f32 %v5187, %v5446
        %v5522 = vadd.f32 %v5188, %v5450
        %v5523 = vadd.f32 %v5189, %v5452
        %v5524 = vadd.f32 %v5190, %v5454
        %v5525 = vadd.f32 %v5191, %v5456
        %v5526 = vadd.f32 %v5192, %v5460
        %v5527 = vadd.f32 %v5193, %v5462
        %v5528 = vadd.f32 %v5194, %v5464
        %v5529 = vadd.f32 %v5195, %v5466
        %v5530 = vadd.f32 %v5196, %v5470
        %v5531 = vadd.f32 %v5197, %v5472
        %v5532 = vadd.f32 %v5198, %v5474
        %v5533 = vadd.f32 %v5199, %v5476
        %v5534 = vadd.f32 %v5200, %v5480
        %v5535 = vadd.f32 %v5201, %v5482
        %v5536 = vadd.f32 %v5202, %v5484
        %v5537 = vadd.f32 %v5203, %v5486
        %v5538 = vadd.f32 %v5204, %v5490
        %v5539 = vadd.f32 %v5205, %v5492
        %v5540 = vadd.f32 %v5206, %v5494
        %v5541 = vadd.f32 %v5207, %v5496
        %v5542 = vadd.f32 %v5208, %v5500
        %v5543 = vadd.f32 %v5209, %v5502
        %v5544 = vadd.f32 %v5210, %v5504
        %v5545 = vadd.f32 %v5211, %v5506
        %v5546 = vadd.f32 %v5212, %v5510
        %v5547 = vadd.f32 %v5213, %v5512
        %v5548 = vadd.f32 %v5214, %v5514
        %v5549 = vadd.f32 %v5215, %v5516
        %s5550 = scalar_lea.vmem %s5, 448
        %v5551 = vld [vmem:[%s5550] sm:$0xf]
        %v5552 = vld [vmem:[%s5550 + $0x4] sm:$0xf]
        %v5553 = vld [vmem:[%s5550 + $0x8] sm:$0xf]
        %v5554 = vld [vmem:[%s5550 + $0xc] sm:$0xf]
        %v5555 = vld [vmem:[%s5550 + $0x10] sm:$0xf]
        %v5556 = vld [vmem:[%s5550 + $0x14] sm:$0xf]
        %v5557 = vld [vmem:[%s5550 + $0x18] sm:$0xf]
        %v5558 = vld [vmem:[%s5550 + $0x1c] sm:$0xf]
        %v5559 = vld [vmem:[%s5550 + $0x20] sm:$0xf]
        %v5560 = vld [vmem:[%s5550 + $0x24] sm:$0xf]
        %v5561 = vld [vmem:[%s5550 + $0x28] sm:$0xf]
        %v5562 = vld [vmem:[%s5550 + $0x2c] sm:$0xf]
        %v5563 = vld [vmem:[%s5550 + $0x30] sm:$0xf]
        %v5564 = vld [vmem:[%s5550 + $0x34] sm:$0xf]
        %v5565 = vld [vmem:[%s5550 + $0x38] sm:$0xf]
        %v5566 = vld [vmem:[%s5550 + $0x3c] sm:$0xf]
        %v5583 = vunpack.c.l.b16 %v5551
        %v5584 = vunpack.c.l.b16 %v5552
        %v5585 = vunpack.c.l.b16 %v5553
        %v5586 = vunpack.c.l.b16 %v5554
        %v5587 = vunpack.c.l.b16 %v5555
        %v5588 = vunpack.c.l.b16 %v5556
        %v5589 = vunpack.c.l.b16 %v5557
        %v5590 = vunpack.c.l.b16 %v5558
        %v5591 = vunpack.c.l.b16 %v5559
        %v5592 = vunpack.c.l.b16 %v5560
        %v5593 = vunpack.c.l.b16 %v5561
        %v5594 = vunpack.c.l.b16 %v5562
        %v5595 = vunpack.c.l.b16 %v5563
        %v5596 = vunpack.c.l.b16 %v5564
        %v5597 = vunpack.c.l.b16 %v5565
        %v5598 = vunpack.c.l.b16 %v5566
        %v5599 = vpack.c.b16 %v5584, %v5583
        %v5600 = vpack.c.b16 %v5586, %v5585
        %v5601 = vpack.c.b16 %v5588, %v5587
        %v5602 = vpack.c.b16 %v5590, %v5589
        %v5603 = vpack.c.b16 %v5592, %v5591
        %v5604 = vpack.c.b16 %v5594, %v5593
        %v5605 = vpack.c.b16 %v5596, %v5595
        %v5606 = vpack.c.b16 %v5598, %v5597
        %5607 = vrot.lane.b32.xlu0 %v3541, 95
        %v5608 = vpop.permute.xlu0 %5607
        %5609 = vrot.lane.b32.xlu0 %v3542, 95
        %v5610 = vpop.permute.xlu0 %5609
        %5611 = vrot.lane.b32.xlu0 %v3543, 95
        %v5612 = vpop.permute.xlu0 %5611
        %5613 = vrot.lane.b32.xlu0 %v3544, 95
        %v5614 = vpop.permute.xlu0 %5613
        %5615 = vrot.lane.b32.xlu0 %v3545, 95
        %v5616 = vpop.permute.xlu0 %5615
        %5617 = vrot.lane.b32.xlu0 %v3546, 95
        %v5618 = vpop.permute.xlu0 %5617
        %5619 = vrot.lane.b32.xlu0 %v3547, 95
        %v5620 = vpop.permute.xlu0 %5619
        %5621 = vrot.lane.b32.xlu0 %v3548, 95
        %v5622 = vpop.permute.xlu0 %5621
        %5623 = vrot.lane.b32.xlu0 %v3549, 95
        %v5624 = vpop.permute.xlu0 %5623
        %5625 = vrot.lane.b32.xlu0 %v3550, 95
        %v5626 = vpop.permute.xlu0 %5625
        %5627 = vrot.lane.b32.xlu0 %v3551, 95
        %v5628 = vpop.permute.xlu0 %5627
        %5629 = vrot.lane.b32.xlu0 %v3552, 95
        %v5630 = vpop.permute.xlu0 %5629
        %v5631 = vsel %vm2441, %v5608, %v5610
        %v5632 = vsel %vm2441, %v5610, %v5612
        %v5633 = vsel %vm2441, %v5614, %v5616
        %v5634 = vsel %vm2441, %v5616, %v5618
        %v5635 = vsel %vm2441, %v5620, %v5622
        %v5636 = vsel %vm2441, %v5622, %v5624
        %v5637 = vsel %vm2441, %v5626, %v5628
        %v5638 = vsel %vm2441, %v5628, %v5630
        %v5648 = vsel %vm3593, %v5599, 0
        %v5651 = vsel %vm3593, %v5600, 0
        %v5654 = vsel %vm3593, %v5601, 0
        %v5657 = vsel %vm3593, %v5602, 0
        %v5660 = vsel %vm3593, %v5603, 0
        %v5663 = vsel %vm3593, %v5604, 0
        %v5666 = vsel %vm3593, %v5605, 0
        %v5669 = vsel %vm3593, %v5606, 0
        %5671 = vmatprep.subr.bf16.mxu0 0
        %5672 = vmatpush1.bf16.msra.mxu0 0
        %5673 = vmatprep.subr.bf16.mxu0 0
        %5674 = vmatpush1.bf16.msra.mxu0 0
        %5675 = vmatprep.subr.bf16.mxu0 0
        %5676 = vmatpush1.bf16.msra.mxu0 0
        %5677 = vmatprep.subr.bf16.mxu0 0
        %5678 = vmatpush1.bf16.msra.mxu0 0
        %5679 = vmatprep.subr.bf16.mxu0 %v5638
        %5680 = vmatpush1.bf16.msra.mxu0 %v5637
        %5681 = vmatprep.subr.bf16.mxu0 %v5636
        %5682 = vmatpush1.bf16.msra.mxu0 %v5635
        %5683 = vmatprep.subr.bf16.mxu0 %v5634
        %5684 = vmatpush1.bf16.msra.mxu0 %v5633
        %5685 = vmatprep.subr.bf16.mxu0 %v5632
        %5686 = vmatpush1.bf16.msra.mxu0 %v5631
        %5687 = vmatprep.subr.bf16.mxu0 0
        %5688 = vmatpush2.bf16.msra.mxu0 0
        %5689 = vmatprep.subr.bf16.mxu0 0
        %5690 = vmatpush2.bf16.msra.mxu0 0
        %5691 = vmatprep.subr.bf16.mxu0 0
        %5692 = vmatpush2.bf16.msra.mxu0 0
        %5693 = vmatprep.subr.bf16.mxu0 0
        %5694 = vmatpush2.bf16.msra.mxu0 0
        %5695 = vmatprep.subr.bf16.mxu0 0
        %5696 = vmatpush2.bf16.msra.mxu0 0
        %5697 = vmatprep.subr.bf16.mxu0 0
        %5698 = vmatpush2.bf16.msra.mxu0 0
        %5699 = vmatprep.subr.bf16.mxu0 0
        %5700 = vmatpush2.bf16.msra.mxu0 0
        %5701 = vmatprep.subr.bf16.mxu0 0
        %5702 = vmatpush2.bf16.msra.mxu0 0
        %5703 = vmatprep.mubr.bf16.mxu0 0
        %5704 = vmatmul.mubr.bf16.gmra.mxu0 %v5648
        %v5705 = vpop.f32.mrf.mxu0
        %v5706 = vadd.f32 0.0, %v5705
        %v5707 = vpop.f32.mrf.mxu0
        %v5708 = vadd.f32 0.0, %v5707
        %v5709 = vpop.f32.mrf.mxu0
        %v5710 = vadd.f32 0.0, %v5709
        %v5711 = vpop.f32.mrf.mxu0
        %v5712 = vadd.f32 0.0, %v5711
        %5713 = vmatprep.mubr.bf16.mxu0 0
        %5714 = vmatmul.mubr.bf16.gmra.mxu0 %v5651
        %v5715 = vpop.f32.mrf.mxu0
        %v5716 = vadd.f32 0.0, %v5715
        %v5717 = vpop.f32.mrf.mxu0
        %v5718 = vadd.f32 0.0, %v5717
        %v5719 = vpop.f32.mrf.mxu0
        %v5720 = vadd.f32 0.0, %v5719
        %v5721 = vpop.f32.mrf.mxu0
        %v5722 = vadd.f32 0.0, %v5721
        %5723 = vmatprep.mubr.bf16.mxu0 0
        %5724 = vmatmul.mubr.bf16.gmra.mxu0 %v5654
        %v5725 = vpop.f32.mrf.mxu0
        %v5726 = vadd.f32 0.0, %v5725
        %v5727 = vpop.f32.mrf.mxu0
        %v5728 = vadd.f32 0.0, %v5727
        %v5729 = vpop.f32.mrf.mxu0
        %v5730 = vadd.f32 0.0, %v5729
        %v5731 = vpop.f32.mrf.mxu0
        %v5732 = vadd.f32 0.0, %v5731
        %5733 = vmatprep.mubr.bf16.mxu0 0
        %5734 = vmatmul.mubr.bf16.gmra.mxu0 %v5657
        %v5735 = vpop.f32.mrf.mxu0
        %v5736 = vadd.f32 0.0, %v5735
        %v5737 = vpop.f32.mrf.mxu0
        %v5738 = vadd.f32 0.0, %v5737
        %v5739 = vpop.f32.mrf.mxu0
        %v5740 = vadd.f32 0.0, %v5739
        %v5741 = vpop.f32.mrf.mxu0
        %v5742 = vadd.f32 0.0, %v5741
        %5743 = vmatprep.mubr.bf16.mxu0 0
        %5744 = vmatmul.mubr.bf16.gmra.mxu0 %v5660
        %v5745 = vpop.f32.mrf.mxu0
        %v5746 = vadd.f32 0.0, %v5745
        %v5747 = vpop.f32.mrf.mxu0
        %v5748 = vadd.f32 0.0, %v5747
        %v5749 = vpop.f32.mrf.mxu0
        %v5750 = vadd.f32 0.0, %v5749
        %v5751 = vpop.f32.mrf.mxu0
        %v5752 = vadd.f32 0.0, %v5751
        %5753 = vmatprep.mubr.bf16.mxu0 0
        %5754 = vmatmul.mubr.bf16.gmra.mxu0 %v5663
        %v5755 = vpop.f32.mrf.mxu0
        %v5756 = vadd.f32 0.0, %v5755
        %v5757 = vpop.f32.mrf.mxu0
        %v5758 = vadd.f32 0.0, %v5757
        %v5759 = vpop.f32.mrf.mxu0
        %v5760 = vadd.f32 0.0, %v5759
        %v5761 = vpop.f32.mrf.mxu0
        %v5762 = vadd.f32 0.0, %v5761
        %5763 = vmatprep.mubr.bf16.mxu0 0
        %5764 = vmatmul.mubr.bf16.gmra.mxu0 %v5666
        %v5765 = vpop.f32.mrf.mxu0
        %v5766 = vadd.f32 0.0, %v5765
        %v5767 = vpop.f32.mrf.mxu0
        %v5768 = vadd.f32 0.0, %v5767
        %v5769 = vpop.f32.mrf.mxu0
        %v5770 = vadd.f32 0.0, %v5769
        %v5771 = vpop.f32.mrf.mxu0
        %v5772 = vadd.f32 0.0, %v5771
        %5773 = vmatprep.mubr.bf16.mxu0 0
        %5774 = vmatmul.mubr.bf16.gmra.mxu0 %v5669
        %v5775 = vpop.f32.mrf.mxu0
        %v5776 = vadd.f32 0.0, %v5775
        %v5777 = vpop.f32.mrf.mxu0
        %v5778 = vadd.f32 0.0, %v5777
        %v5779 = vpop.f32.mrf.mxu0
        %v5780 = vadd.f32 0.0, %v5779
        %v5781 = vpop.f32.mrf.mxu0
        %v5782 = vadd.f32 0.0, %v5781
        %5783 = vdwg.mxu0
        %v5784 = vadd.f32 %v5518, %v5706
        %v5785 = vadd.f32 %v5519, %v5708
        %v5786 = vadd.f32 %v5520, %v5710
        %v5787 = vadd.f32 %v5521, %v5712
        %v5788 = vadd.f32 %v5522, %v5716
        %v5789 = vadd.f32 %v5523, %v5718
        %v5790 = vadd.f32 %v5524, %v5720
        %v5791 = vadd.f32 %v5525, %v5722
        %v5792 = vadd.f32 %v5526, %v5726
        %v5793 = vadd.f32 %v5527, %v5728
        %v5794 = vadd.f32 %v5528, %v5730
        %v5795 = vadd.f32 %v5529, %v5732
        %v5796 = vadd.f32 %v5530, %v5736
        %v5797 = vadd.f32 %v5531, %v5738
        %v5798 = vadd.f32 %v5532, %v5740
        %v5799 = vadd.f32 %v5533, %v5742
        %v5800 = vadd.f32 %v5534, %v5746
        %v5801 = vadd.f32 %v5535, %v5748
        %v5802 = vadd.f32 %v5536, %v5750
        %v5803 = vadd.f32 %v5537, %v5752
        %v5804 = vadd.f32 %v5538, %v5756
        %v5805 = vadd.f32 %v5539, %v5758
        %v5806 = vadd.f32 %v5540, %v5760
        %v5807 = vadd.f32 %v5541, %v5762
        %v5808 = vadd.f32 %v5542, %v5766
        %v5809 = vadd.f32 %v5543, %v5768
        %v5810 = vadd.f32 %v5544, %v5770
        %v5811 = vadd.f32 %v5545, %v5772
        %v5812 = vadd.f32 %v5546, %v5776
        %v5813 = vadd.f32 %v5547, %v5778
        %v5814 = vadd.f32 %v5548, %v5780
        %v5815 = vadd.f32 %v5549, %v5782
        %v5816 = vmul.bf16 %v3404, %v2623
        %v5817 = vmul.bf16 %v3436, %v2621
        %v5818 = vmul.bf16 %v3405, %v2623
        %v5819 = vmul.bf16 %v3437, %v2621
        %v5820 = vmul.bf16 %v3406, %v2623
        %v5821 = vmul.bf16 %v3438, %v2621
        %v5822 = vmul.bf16 %v3407, %v2623
        %v5823 = vmul.bf16 %v3439, %v2621
        %v5824 = vmul.bf16 %v3408, %v2623
        %v5825 = vmul.bf16 %v3440, %v2621
        %v5826 = vmul.bf16 %v3409, %v2623
        %v5827 = vmul.bf16 %v3441, %v2621
        %v5828 = vmul.bf16 %v3410, %v2623
        %v5829 = vmul.bf16 %v3442, %v2621
        %v5830 = vmul.bf16 %v3411, %v2623
        %v5831 = vmul.bf16 %v3443, %v2621
        %s5832 = scalar_lea.vmem %s5, 512
        %v5833 = vld [vmem:[%s5832] sm:$0xf]
        %v5834 = vld [vmem:[%s5832 + $0x4] sm:$0xf]
        %v5835 = vld [vmem:[%s5832 + $0x8] sm:$0xf]
        %v5836 = vld [vmem:[%s5832 + $0xc] sm:$0xf]
        %v5837 = vld [vmem:[%s5832 + $0x10] sm:$0xf]
        %v5838 = vld [vmem:[%s5832 + $0x14] sm:$0xf]
        %v5839 = vld [vmem:[%s5832 + $0x18] sm:$0xf]
        %v5840 = vld [vmem:[%s5832 + $0x1c] sm:$0xf]
        %v5841 = vld [vmem:[%s5832 + $0x20] sm:$0xf]
        %v5842 = vld [vmem:[%s5832 + $0x24] sm:$0xf]
        %v5843 = vld [vmem:[%s5832 + $0x28] sm:$0xf]
        %v5844 = vld [vmem:[%s5832 + $0x2c] sm:$0xf]
        %v5845 = vld [vmem:[%s5832 + $0x30] sm:$0xf]
        %v5846 = vld [vmem:[%s5832 + $0x34] sm:$0xf]
        %v5847 = vld [vmem:[%s5832 + $0x38] sm:$0xf]
        %v5848 = vld [vmem:[%s5832 + $0x3c] sm:$0xf]
        %v5865 = vunpack.c.l.b16 %v5833
        %v5866 = vunpack.c.l.b16 %v5834
        %v5867 = vunpack.c.l.b16 %v5835
        %v5868 = vunpack.c.l.b16 %v5836
        %v5869 = vunpack.c.l.b16 %v5837
        %v5870 = vunpack.c.l.b16 %v5838
        %v5871 = vunpack.c.l.b16 %v5839
        %v5872 = vunpack.c.l.b16 %v5840
        %v5873 = vunpack.c.l.b16 %v5841
        %v5874 = vunpack.c.l.b16 %v5842
        %v5875 = vunpack.c.l.b16 %v5843
        %v5876 = vunpack.c.l.b16 %v5844
        %v5877 = vunpack.c.l.b16 %v5845
        %v5878 = vunpack.c.l.b16 %v5846
        %v5879 = vunpack.c.l.b16 %v5847
        %v5880 = vunpack.c.l.b16 %v5848
        %v5881 = vpack.c.b16 %v5866, %v5865
        %v5882 = vpack.c.b16 %v5868, %v5867
        %v5883 = vpack.c.b16 %v5870, %v5869
        %v5884 = vpack.c.b16 %v5872, %v5871
        %v5885 = vpack.c.b16 %v5874, %v5873
        %v5886 = vpack.c.b16 %v5876, %v5875
        %v5887 = vpack.c.b16 %v5878, %v5877
        %v5888 = vpack.c.b16 %v5880, %v5879
        %v5905 = vunpack.c.l.b16 %v5816
        %v5906 = vunpack.c.h.b16 %v5816
        %v5907 = vunpack.c.l.b16 %v5817
        %v5908 = vunpack.c.l.b16 %v5818
        %v5909 = vunpack.c.h.b16 %v5818
        %v5910 = vunpack.c.l.b16 %v5819
        %v5911 = vunpack.c.l.b16 %v5820
        %v5912 = vunpack.c.h.b16 %v5820
        %v5913 = vunpack.c.l.b16 %v5821
        %v5914 = vunpack.c.l.b16 %v5822
        %v5915 = vunpack.c.h.b16 %v5822
        %v5916 = vunpack.c.l.b16 %v5823
        %v5917 = vunpack.c.l.b16 %v5824
        %v5918 = vunpack.c.h.b16 %v5824
        %v5919 = vunpack.c.l.b16 %v5825
        %v5920 = vunpack.c.l.b16 %v5826
        %v5921 = vunpack.c.h.b16 %v5826
        %v5922 = vunpack.c.l.b16 %v5827
        %v5923 = vunpack.c.l.b16 %v5828
        %v5924 = vunpack.c.h.b16 %v5828
        %v5925 = vunpack.c.l.b16 %v5829
        %v5926 = vunpack.c.l.b16 %v5830
        %v5927 = vunpack.c.h.b16 %v5830
        %v5928 = vunpack.c.l.b16 %v5831
        %v5929 = vpack.c.b16 %v5908, %v5905
        %v5930 = vpack.c.b16 %v5909, %v5906
        %v5931 = vpack.c.b16 %v5910, %v5907
        %v5932 = vpack.c.b16 %v5914, %v5911
        %v5933 = vpack.c.b16 %v5915, %v5912
        %v5934 = vpack.c.b16 %v5916, %v5913
        %v5935 = vpack.c.b16 %v5920, %v5917
        %v5936 = vpack.c.b16 %v5921, %v5918
        %v5937 = vpack.c.b16 %v5922, %v5919
        %v5938 = vpack.c.b16 %v5926, %v5923
        %v5939 = vpack.c.b16 %v5927, %v5924
        %v5940 = vpack.c.b16 %v5928, %v5925
        %5941 = vrot.lane.b32.xlu0 %v5929, 94
        %v5942 = vpop.permute.xlu0 %5941
        %5943 = vrot.lane.b32.xlu0 %v5930, 94
        %v5944 = vpop.permute.xlu0 %5943
        %5945 = vrot.lane.b32.xlu0 %v5931, 94
        %v5946 = vpop.permute.xlu0 %5945
        %5947 = vrot.lane.b32.xlu0 %v5932, 94
        %v5948 = vpop.permute.xlu0 %5947
        %5949 = vrot.lane.b32.xlu0 %v5933, 94
        %v5950 = vpop.permute.xlu0 %5949
        %5951 = vrot.lane.b32.xlu0 %v5934, 94
        %v5952 = vpop.permute.xlu0 %5951
        %5953 = vrot.lane.b32.xlu0 %v5935, 94
        %v5954 = vpop.permute.xlu0 %5953
        %5955 = vrot.lane.b32.xlu0 %v5936, 94
        %v5956 = vpop.permute.xlu0 %5955
        %5957 = vrot.lane.b32.xlu0 %v5937, 94
        %v5958 = vpop.permute.xlu0 %5957
        %5959 = vrot.lane.b32.xlu0 %v5938, 94
        %v5960 = vpop.permute.xlu0 %5959
        %5961 = vrot.lane.b32.xlu0 %v5939, 94
        %v5962 = vpop.permute.xlu0 %5961
        %5963 = vrot.lane.b32.xlu0 %v5940, 94
        %v5964 = vpop.permute.xlu0 %5963
        %v5965 = vsel %vm2729, %v5942, %v5944
        %v5966 = vsel %vm2729, %v5944, %v5946
        %v5967 = vsel %vm2729, %v5948, %v5950
        %v5968 = vsel %vm2729, %v5950, %v5952
        %v5969 = vsel %vm2729, %v5954, %v5956
        %v5970 = vsel %vm2729, %v5956, %v5958
        %v5971 = vsel %vm2729, %v5960, %v5962
        %v5972 = vsel %vm2729, %v5962, %v5964
        %v5982 = vsel %vm3593, %v5881, 0
        %v5985 = vsel %vm3593, %v5882, 0
        %v5988 = vsel %vm3593, %v5883, 0
        %v5991 = vsel %vm3593, %v5884, 0
        %v5994 = vsel %vm3593, %v5885, 0
        %v5997 = vsel %vm3593, %v5886, 0
        %v6000 = vsel %vm3593, %v5887, 0
        %v6003 = vsel %vm3593, %v5888, 0
        %6005 = vmatprep.subr.bf16.mxu0 0
        %6006 = vmatpush1.bf16.msra.mxu0 0
        %6007 = vmatprep.subr.bf16.mxu0 0
        %6008 = vmatpush1.bf16.msra.mxu0 0
        %6009 = vmatprep.subr.bf16.mxu0 0
        %6010 = vmatpush1.bf16.msra.mxu0 0
        %6011 = vmatprep.subr.bf16.mxu0 0
        %6012 = vmatpush1.bf16.msra.mxu0 0
        %6013 = vmatprep.subr.bf16.mxu0 %v5972
        %6014 = vmatpush1.bf16.msra.mxu0 %v5971
        %6015 = vmatprep.subr.bf16.mxu0 %v5970
        %6016 = vmatpush1.bf16.msra.mxu0 %v5969
        %6017 = vmatprep.subr.bf16.mxu0 %v5968
        %6018 = vmatpush1.bf16.msra.mxu0 %v5967
        %6019 = vmatprep.subr.bf16.mxu0 %v5966
        %6020 = vmatpush1.bf16.msra.mxu0 %v5965
        %6021 = vmatprep.subr.bf16.mxu0 0
        %6022 = vmatpush2.bf16.msra.mxu0 0
        %6023 = vmatprep.subr.bf16.mxu0 0
        %6024 = vmatpush2.bf16.msra.mxu0 0
        %6025 = vmatprep.subr.bf16.mxu0 0
        %6026 = vmatpush2.bf16.msra.mxu0 0
        %6027 = vmatprep.subr.bf16.mxu0 0
        %6028 = vmatpush2.bf16.msra.mxu0 0
        %6029 = vmatprep.subr.bf16.mxu0 0
        %6030 = vmatpush2.bf16.msra.mxu0 0
        %6031 = vmatprep.subr.bf16.mxu0 0
        %6032 = vmatpush2.bf16.msra.mxu0 0
        %6033 = vmatprep.subr.bf16.mxu0 0
        %6034 = vmatpush2.bf16.msra.mxu0 0
        %6035 = vmatprep.subr.bf16.mxu0 0
        %6036 = vmatpush2.bf16.msra.mxu0 0
        %6037 = vmatprep.mubr.bf16.mxu0 0
        %6038 = vmatmul.mubr.bf16.gmra.mxu0 %v5982
        %v6039 = vpop.f32.mrf.mxu0
        %v6040 = vadd.f32 0.0, %v6039
        %v6041 = vpop.f32.mrf.mxu0
        %v6042 = vadd.f32 0.0, %v6041
        %v6043 = vpop.f32.mrf.mxu0
        %v6044 = vadd.f32 0.0, %v6043
        %v6045 = vpop.f32.mrf.mxu0
        %v6046 = vadd.f32 0.0, %v6045
        %6047 = vmatprep.mubr.bf16.mxu0 0
        %6048 = vmatmul.mubr.bf16.gmra.mxu0 %v5985
        %v6049 = vpop.f32.mrf.mxu0
        %v6050 = vadd.f32 0.0, %v6049
        %v6051 = vpop.f32.mrf.mxu0
        %v6052 = vadd.f32 0.0, %v6051
        %v6053 = vpop.f32.mrf.mxu0
        %v6054 = vadd.f32 0.0, %v6053
        %v6055 = vpop.f32.mrf.mxu0
        %v6056 = vadd.f32 0.0, %v6055
        %6057 = vmatprep.mubr.bf16.mxu0 0
        %6058 = vmatmul.mubr.bf16.gmra.mxu0 %v5988
        %v6059 = vpop.f32.mrf.mxu0
        %v6060 = vadd.f32 0.0, %v6059
        %v6061 = vpop.f32.mrf.mxu0
        %v6062 = vadd.f32 0.0, %v6061
        %v6063 = vpop.f32.mrf.mxu0
        %v6064 = vadd.f32 0.0, %v6063
        %v6065 = vpop.f32.mrf.mxu0
        %v6066 = vadd.f32 0.0, %v6065
        %6067 = vmatprep.mubr.bf16.mxu0 0
        %6068 = vmatmul.mubr.bf16.gmra.mxu0 %v5991
        %v6069 = vpop.f32.mrf.mxu0
        %v6070 = vadd.f32 0.0, %v6069
        %v6071 = vpop.f32.mrf.mxu0
        %v6072 = vadd.f32 0.0, %v6071
        %v6073 = vpop.f32.mrf.mxu0
        %v6074 = vadd.f32 0.0, %v6073
        %v6075 = vpop.f32.mrf.mxu0
        %v6076 = vadd.f32 0.0, %v6075
        %6077 = vmatprep.mubr.bf16.mxu0 0
        %6078 = vmatmul.mubr.bf16.gmra.mxu0 %v5994
        %v6079 = vpop.f32.mrf.mxu0
        %v6080 = vadd.f32 0.0, %v6079
        %v6081 = vpop.f32.mrf.mxu0
        %v6082 = vadd.f32 0.0, %v6081
        %v6083 = vpop.f32.mrf.mxu0
        %v6084 = vadd.f32 0.0, %v6083
        %v6085 = vpop.f32.mrf.mxu0
        %v6086 = vadd.f32 0.0, %v6085
        %6087 = vmatprep.mubr.bf16.mxu0 0
        %6088 = vmatmul.mubr.bf16.gmra.mxu0 %v5997
        %v6089 = vpop.f32.mrf.mxu0
        %v6090 = vadd.f32 0.0, %v6089
        %v6091 = vpop.f32.mrf.mxu0
        %v6092 = vadd.f32 0.0, %v6091
        %v6093 = vpop.f32.mrf.mxu0
        %v6094 = vadd.f32 0.0, %v6093
        %v6095 = vpop.f32.mrf.mxu0
        %v6096 = vadd.f32 0.0, %v6095
        %6097 = vmatprep.mubr.bf16.mxu0 0
        %6098 = vmatmul.mubr.bf16.gmra.mxu0 %v6000
        %v6099 = vpop.f32.mrf.mxu0
        %v6100 = vadd.f32 0.0, %v6099
        %v6101 = vpop.f32.mrf.mxu0
        %v6102 = vadd.f32 0.0, %v6101
        %v6103 = vpop.f32.mrf.mxu0
        %v6104 = vadd.f32 0.0, %v6103
        %v6105 = vpop.f32.mrf.mxu0
        %v6106 = vadd.f32 0.0, %v6105
        %6107 = vmatprep.mubr.bf16.mxu0 0
        %6108 = vmatmul.mubr.bf16.gmra.mxu0 %v6003
        %v6109 = vpop.f32.mrf.mxu0
        %v6110 = vadd.f32 0.0, %v6109
        %v6111 = vpop.f32.mrf.mxu0
        %v6112 = vadd.f32 0.0, %v6111
        %v6113 = vpop.f32.mrf.mxu0
        %v6114 = vadd.f32 0.0, %v6113
        %v6115 = vpop.f32.mrf.mxu0
        %v6116 = vadd.f32 0.0, %v6115
        %6117 = vdwg.mxu0
        %v6118 = vadd.f32 %v5784, %v6040
        %v6119 = vadd.f32 %v5785, %v6042
        %v6120 = vadd.f32 %v5786, %v6044
        %v6121 = vadd.f32 %v5787, %v6046
        %v6122 = vadd.f32 %v5788, %v6050
        %v6123 = vadd.f32 %v5789, %v6052
        %v6124 = vadd.f32 %v5790, %v6054
        %v6125 = vadd.f32 %v5791, %v6056
        %v6126 = vadd.f32 %v5792, %v6060
        %v6127 = vadd.f32 %v5793, %v6062
        %v6128 = vadd.f32 %v5794, %v6064
        %v6129 = vadd.f32 %v5795, %v6066
        %v6130 = vadd.f32 %v5796, %v6070
        %v6131 = vadd.f32 %v5797, %v6072
        %v6132 = vadd.f32 %v5798, %v6074
        %v6133 = vadd.f32 %v5799, %v6076
        %v6134 = vadd.f32 %v5800, %v6080
        %v6135 = vadd.f32 %v5801, %v6082
        %v6136 = vadd.f32 %v5802, %v6084
        %v6137 = vadd.f32 %v5803, %v6086
        %v6138 = vadd.f32 %v5804, %v6090
        %v6139 = vadd.f32 %v5805, %v6092
        %v6140 = vadd.f32 %v5806, %v6094
        %v6141 = vadd.f32 %v5807, %v6096
        %v6142 = vadd.f32 %v5808, %v6100
        %v6143 = vadd.f32 %v5809, %v6102
        %v6144 = vadd.f32 %v5810, %v6104
        %v6145 = vadd.f32 %v5811, %v6106
        %v6146 = vadd.f32 %v5812, %v6110
        %v6147 = vadd.f32 %v5813, %v6112
        %v6148 = vadd.f32 %v5814, %v6114
        %v6149 = vadd.f32 %v5815, %v6116
        %v6150 = vld [vmem:[%s6] sm:$0xff]
        %v6151 = vld [vmem:[%s6 + $0x8] sm:$0xff]
        %v6152 = vld [vmem:[%s6 + $0x10] sm:$0xff]
        %v6153 = vld [vmem:[%s6 + $0x18] sm:$0xff]
        %v6154 = vld [vmem:[%s6 + $0x20] sm:$0xff]
        %v6155 = vld [vmem:[%s6 + $0x28] sm:$0xff]
        %v6156 = vld [vmem:[%s6 + $0x30] sm:$0xff]
        %v6157 = vld [vmem:[%s6 + $0x38] sm:$0xff]
        %v6158 = vld [vmem:[%s6 + $0x40] sm:$0xff]
        %v6159 = vld [vmem:[%s6 + $0x48] sm:$0xff]
        %v6160 = vld [vmem:[%s6 + $0x50] sm:$0xff]
        %v6161 = vld [vmem:[%s6 + $0x58] sm:$0xff]
        %v6162 = vld [vmem:[%s6 + $0x60] sm:$0xff]
        %v6163 = vld [vmem:[%s6 + $0x68] sm:$0xff]
        %v6164 = vld [vmem:[%s6 + $0x70] sm:$0xff]
        %v6165 = vld [vmem:[%s6 + $0x78] sm:$0xff]
        %6167 = vset.pattern.permute.xlu0 0
        %6168 = vperm.xlu0 %6167, %v6150
        %v6169 = vpop.permute.xlu0 %6168
        %6172 = vset.pattern.permute.xlu0 0
        %6173 = vperm.xlu0 %6172, %v6151
        %v6174 = vpop.permute.xlu0 %6173
        %6177 = vset.pattern.permute.xlu0 0
        %6178 = vperm.xlu0 %6177, %v6152
        %v6179 = vpop.permute.xlu0 %6178
        %6182 = vset.pattern.permute.xlu0 0
        %6183 = vperm.xlu0 %6182, %v6153
        %v6184 = vpop.permute.xlu0 %6183
        %6187 = vset.pattern.permute.xlu0 0
        %6188 = vperm.xlu0 %6187, %v6154
        %v6189 = vpop.permute.xlu0 %6188
        %6192 = vset.pattern.permute.xlu0 0
        %6193 = vperm.xlu0 %6192, %v6155
        %v6194 = vpop.permute.xlu0 %6193
        %6197 = vset.pattern.permute.xlu0 0
        %6198 = vperm.xlu0 %6197, %v6156
        %v6199 = vpop.permute.xlu0 %6198
        %6202 = vset.pattern.permute.xlu0 0
        %6203 = vperm.xlu0 %6202, %v6157
        %v6204 = vpop.permute.xlu0 %6203
        %6207 = vset.pattern.permute.xlu0 0
        %6208 = vperm.xlu0 %6207, %v6158
        %v6209 = vpop.permute.xlu0 %6208
        %6212 = vset.pattern.permute.xlu0 0
        %6213 = vperm.xlu0 %6212, %v6159
        %v6214 = vpop.permute.xlu0 %6213
        %6217 = vset.pattern.permute.xlu0 0
        %6218 = vperm.xlu0 %6217, %v6160
        %v6219 = vpop.permute.xlu0 %6218
        %6222 = vset.pattern.permute.xlu0 0
        %6223 = vperm.xlu0 %6222, %v6161
        %v6224 = vpop.permute.xlu0 %6223
        %6227 = vset.pattern.permute.xlu0 0
        %6228 = vperm.xlu0 %6227, %v6162
        %v6229 = vpop.permute.xlu0 %6228
        %6232 = vset.pattern.permute.xlu0 0
        %6233 = vperm.xlu0 %6232, %v6163
        %v6234 = vpop.permute.xlu0 %6233
        %6237 = vset.pattern.permute.xlu0 0
        %6238 = vperm.xlu0 %6237, %v6164
        %v6239 = vpop.permute.xlu0 %6238
        %6242 = vset.pattern.permute.xlu0 0
        %6243 = vperm.xlu0 %6242, %v6165
        %v6244 = vpop.permute.xlu0 %6243
        %v6246 = vadd.f32 %v6118, %v6169
        %v6247 = vadd.f32 %v6119, %v6169
        %v6248 = vadd.f32 %v6120, %v6174
        %v6249 = vadd.f32 %v6121, %v6174
        %v6250 = vadd.f32 %v6122, %v6179
        %v6251 = vadd.f32 %v6123, %v6179
        %v6252 = vadd.f32 %v6124, %v6184
        %v6253 = vadd.f32 %v6125, %v6184
        %v6254 = vadd.f32 %v6126, %v6189
        %v6255 = vadd.f32 %v6127, %v6189
        %v6256 = vadd.f32 %v6128, %v6194
        %v6257 = vadd.f32 %v6129, %v6194
        %v6258 = vadd.f32 %v6130, %v6199
        %v6259 = vadd.f32 %v6131, %v6199
        %v6260 = vadd.f32 %v6132, %v6204
        %v6261 = vadd.f32 %v6133, %v6204
        %v6262 = vadd.f32 %v6134, %v6209
        %v6263 = vadd.f32 %v6135, %v6209
        %v6264 = vadd.f32 %v6136, %v6214
        %v6265 = vadd.f32 %v6137, %v6214
        %v6266 = vadd.f32 %v6138, %v6219
        %v6267 = vadd.f32 %v6139, %v6219
        %v6268 = vadd.f32 %v6140, %v6224
        %v6269 = vadd.f32 %v6141, %v6224
        %v6270 = vadd.f32 %v6142, %v6229
        %v6271 = vadd.f32 %v6143, %v6229
        %v6272 = vadd.f32 %v6144, %v6234
        %v6273 = vadd.f32 %v6145, %v6234
        %v6274 = vadd.f32 %v6146, %v6239
        %v6275 = vadd.f32 %v6147, %v6239
        %v6276 = vadd.f32 %v6148, %v6244
        %v6277 = vadd.f32 %v6149, %v6244
        %v6278 = vmul.f32 %v6246, 0.1
        %v6279 = vmul.f32 %v6247, 0.1
        %v6280 = vmul.f32 %v6248, 0.1
        %v6281 = vmul.f32 %v6249, 0.1
        %v6282 = vmul.f32 %v6250, 0.1
        %v6283 = vmul.f32 %v6251, 0.1
        %v6284 = vmul.f32 %v6252, 0.1
        %v6285 = vmul.f32 %v6253, 0.1
        %v6286 = vmul.f32 %v6254, 0.1
        %v6287 = vmul.f32 %v6255, 0.1
        %v6288 = vmul.f32 %v6256, 0.1
        %v6289 = vmul.f32 %v6257, 0.1
        %v6290 = vmul.f32 %v6258, 0.1
        %v6291 = vmul.f32 %v6259, 0.1
        %v6292 = vmul.f32 %v6260, 0.1
        %v6293 = vmul.f32 %v6261, 0.1
        %v6294 = vmul.f32 %v6262, 0.1
        %v6295 = vmul.f32 %v6263, 0.1
        %v6296 = vmul.f32 %v6264, 0.1
        %v6297 = vmul.f32 %v6265, 0.1
        %v6298 = vmul.f32 %v6266, 0.1
        %v6299 = vmul.f32 %v6267, 0.1
        %v6300 = vmul.f32 %v6268, 0.1
        %v6301 = vmul.f32 %v6269, 0.1
        %v6302 = vmul.f32 %v6270, 0.1
        %v6303 = vmul.f32 %v6271, 0.1
        %v6304 = vmul.f32 %v6272, 0.1
        %v6305 = vmul.f32 %v6273, 0.1
        %v6306 = vmul.f32 %v6274, 0.1
        %v6307 = vmul.f32 %v6275, 0.1
        %v6308 = vmul.f32 %v6276, 0.1
        %v6309 = vmul.f32 %v6277, 0.1
        %v6310 = vmax.f32 %v6246, %v6278
        %v6311 = vmax.f32 %v6247, %v6279
        %v6312 = vmax.f32 %v6248, %v6280
        %v6313 = vmax.f32 %v6249, %v6281
        %v6314 = vmax.f32 %v6250, %v6282
        %v6315 = vmax.f32 %v6251, %v6283
        %v6316 = vmax.f32 %v6252, %v6284
        %v6317 = vmax.f32 %v6253, %v6285
        %v6318 = vmax.f32 %v6254, %v6286
        %v6319 = vmax.f32 %v6255, %v6287
        %v6320 = vmax.f32 %v6256, %v6288
        %v6321 = vmax.f32 %v6257, %v6289
        %v6322 = vmax.f32 %v6258, %v6290
        %v6323 = vmax.f32 %v6259, %v6291
        %v6324 = vmax.f32 %v6260, %v6292
        %v6325 = vmax.f32 %v6261, %v6293
        %v6326 = vmax.f32 %v6262, %v6294
        %v6327 = vmax.f32 %v6263, %v6295
        %v6328 = vmax.f32 %v6264, %v6296
        %v6329 = vmax.f32 %v6265, %v6297
        %v6330 = vmax.f32 %v6266, %v6298
        %v6331 = vmax.f32 %v6267, %v6299
        %v6332 = vmax.f32 %v6268, %v6300
        %v6333 = vmax.f32 %v6269, %v6301
        %v6334 = vmax.f32 %v6270, %v6302
        %v6335 = vmax.f32 %v6271, %v6303
        %v6336 = vmax.f32 %v6272, %v6304
        %v6337 = vmax.f32 %v6273, %v6305
        %v6338 = vmax.f32 %v6274, %v6306
        %v6339 = vmax.f32 %v6275, %v6307
        %v6340 = vmax.f32 %v6276, %v6308
        %v6341 = vmax.f32 %v6277, %v6309
        %v6342 = vpack.c.bf16 %v6312, %v6310
        %v6343 = vpack.c.bf16 %v6313, %v6311
        %v6344 = vpack.c.bf16 %v6316, %v6314
        %v6345 = vpack.c.bf16 %v6317, %v6315
        %v6346 = vpack.c.bf16 %v6320, %v6318
        %v6347 = vpack.c.bf16 %v6321, %v6319
        %v6348 = vpack.c.bf16 %v6324, %v6322
        %v6349 = vpack.c.bf16 %v6325, %v6323
        %v6350 = vpack.c.bf16 %v6328, %v6326
        %v6351 = vpack.c.bf16 %v6329, %v6327
        %v6352 = vpack.c.bf16 %v6332, %v6330
        %v6353 = vpack.c.bf16 %v6333, %v6331
        %v6354 = vpack.c.bf16 %v6336, %v6334
        %v6355 = vpack.c.bf16 %v6337, %v6335
        %v6356 = vpack.c.bf16 %v6340, %v6338
        %v6357 = vpack.c.bf16 %v6341, %v6339
        %v6358 = vld [vmem:[%s7] sm:$0xf]
        %v6359 = vld [vmem:[%s7 + $0x4] sm:$0xf]
        %v6360 = vld [vmem:[%s7 + $0x8] sm:$0xf]
        %v6361 = vld [vmem:[%s7 + $0xc] sm:$0xf]
        %v6362 = vld [vmem:[%s7 + $0x10] sm:$0xf]
        %v6363 = vld [vmem:[%s7 + $0x14] sm:$0xf]
        %v6364 = vld [vmem:[%s7 + $0x18] sm:$0xf]
        %v6365 = vld [vmem:[%s7 + $0x1c] sm:$0xf]
        %v6366 = vld [vmem:[%s8] sm:$0xff]
        %v6367 = vld [vmem:[%s8 + $0x8] sm:$0xff]
        %v6368 = vld [vmem:[%s8 + $0x10] sm:$0xff]
        %v6369 = vld [vmem:[%s8 + $0x18] sm:$0xff]
        %v6370 = vld [vmem:[%s8 + $0x20] sm:$0xff]
        %v6371 = vld [vmem:[%s8 + $0x28] sm:$0xff]
        %v6372 = vld [vmem:[%s8 + $0x30] sm:$0xff]
        %v6373 = vld [vmem:[%s8 + $0x38] sm:$0xff]
        %6375 = vset.pattern.permute.xlu0 0
        %6376 = vperm.xlu0 %6375, %v6366
        %v6377 = vpop.permute.xlu0 %6376
        %6380 = vset.pattern.permute.xlu0 0
        %6381 = vperm.xlu0 %6380, %v6367
        %v6382 = vpop.permute.xlu0 %6381
        %6385 = vset.pattern.permute.xlu0 0
        %6386 = vperm.xlu0 %6385, %v6368
        %v6387 = vpop.permute.xlu0 %6386
        %6390 = vset.pattern.permute.xlu0 0
        %6391 = vperm.xlu0 %6390, %v6369
        %v6392 = vpop.permute.xlu0 %6391
        %6395 = vset.pattern.permute.xlu0 0
        %6396 = vperm.xlu0 %6395, %v6370
        %v6397 = vpop.permute.xlu0 %6396
        %6400 = vset.pattern.permute.xlu0 0
        %6401 = vperm.xlu0 %6400, %v6371
        %v6402 = vpop.permute.xlu0 %6401
        %6405 = vset.pattern.permute.xlu0 0
        %6406 = vperm.xlu0 %6405, %v6372
        %v6407 = vpop.permute.xlu0 %6406
        %6410 = vset.pattern.permute.xlu0 0
        %6411 = vperm.xlu0 %6410, %v6373
        %v6412 = vpop.permute.xlu0 %6411
        %v6422 = vunpack.c.l.b16 %v6358
        %v6423 = vunpack.c.l.b16 %v6359
        %v6424 = vunpack.c.l.b16 %v6360
        %v6425 = vunpack.c.l.b16 %v6361
        %v6426 = vunpack.c.l.b16 %v6362
        %v6427 = vunpack.c.l.b16 %v6363
        %v6428 = vunpack.c.l.b16 %v6364
        %v6429 = vunpack.c.l.b16 %v6365
        %v6430 = vpack.c.b16 %v6423, %v6422
        %v6431 = vpack.c.b16 %v6425, %v6424
        %v6432 = vpack.c.b16 %v6427, %v6426
        %v6433 = vpack.c.b16 %v6429, %v6428
        %6438 = vmatprep.subr.bf16.mxu0 %v6357
        %6439 = vmatpush1.bf16.msra.mxu0 %v6356
        %6440 = vmatprep.subr.bf16.mxu0 %v6355
        %6441 = vmatpush1.bf16.msra.mxu0 %v6354
        %6442 = vmatprep.subr.bf16.mxu0 %v6353
        %6443 = vmatpush1.bf16.msra.mxu0 %v6352
        %6444 = vmatprep.subr.bf16.mxu0 %v6351
        %6445 = vmatpush1.bf16.msra.mxu0 %v6350
        %6446 = vmatprep.subr.bf16.mxu0 %v6349
        %6447 = vmatpush1.bf16.msra.mxu0 %v6348
        %6448 = vmatprep.subr.bf16.mxu0 %v6347
        %6449 = vmatpush1.bf16.msra.mxu0 %v6346
        %6450 = vmatprep.subr.bf16.mxu0 %v6345
        %6451 = vmatpush1.bf16.msra.mxu0 %v6344
        %6452 = vmatprep.subr.bf16.mxu0 %v6343
        %6453 = vmatpush1.bf16.msra.mxu0 %v6342
        %6454 = vmatprep.subr.bf16.mxu0 0
        %6455 = vmatpush2.bf16.msra.mxu0 0
        %6456 = vmatprep.subr.bf16.mxu0 0
        %6457 = vmatpush2.bf16.msra.mxu0 0
        %6458 = vmatprep.subr.bf16.mxu0 0
        %6459 = vmatpush2.bf16.msra.mxu0 0
        %6460 = vmatprep.subr.bf16.mxu0 0
        %6461 = vmatpush2.bf16.msra.mxu0 0
        %6462 = vmatprep.subr.bf16.mxu0 0
        %6463 = vmatpush2.bf16.msra.mxu0 0
        %6464 = vmatprep.subr.bf16.mxu0 0
        %6465 = vmatpush2.bf16.msra.mxu0 0
        %6466 = vmatprep.subr.bf16.mxu0 0
        %6467 = vmatpush2.bf16.msra.mxu0 0
        %6468 = vmatprep.subr.bf16.mxu0 0
        %6469 = vmatpush2.bf16.msra.mxu0 0
        %6470 = vmatprep.mubr.bf16.mxu0 0
        %6471 = vmatmul.mubr.bf16.gmra.mxu0 %v6430
        %v6472 = vpop.f32.mrf.mxu0
        %v6473 = vadd.f32 %v6377, %v6472
        %v6474 = vpop.f32.mrf.mxu0
        %v6475 = vadd.f32 %v6377, %v6474
        %v6476 = vpop.f32.mrf.mxu0
        %v6477 = vadd.f32 %v6382, %v6476
        %v6478 = vpop.f32.mrf.mxu0
        %v6479 = vadd.f32 %v6382, %v6478
        %6480 = vmatprep.mubr.bf16.mxu0 0
        %6481 = vmatmul.mubr.bf16.gmra.mxu0 %v6431
        %v6482 = vpop.f32.mrf.mxu0
        %v6483 = vadd.f32 %v6387, %v6482
        %v6484 = vpop.f32.mrf.mxu0
        %v6485 = vadd.f32 %v6387, %v6484
        %v6486 = vpop.f32.mrf.mxu0
        %v6487 = vadd.f32 %v6392, %v6486
        %v6488 = vpop.f32.mrf.mxu0
        %v6489 = vadd.f32 %v6392, %v6488
        %6490 = vmatprep.mubr.bf16.mxu0 0
        %6491 = vmatmul.mubr.bf16.gmra.mxu0 %v6432
        %v6492 = vpop.f32.mrf.mxu0
        %v6493 = vadd.f32 %v6397, %v6492
        %v6494 = vpop.f32.mrf.mxu0
        %v6495 = vadd.f32 %v6397, %v6494
        %v6496 = vpop.f32.mrf.mxu0
        %v6497 = vadd.f32 %v6402, %v6496
        %v6498 = vpop.f32.mrf.mxu0
        %v6499 = vadd.f32 %v6402, %v6498
        %6500 = vmatprep.mubr.bf16.mxu0 0
        %6501 = vmatmul.mubr.bf16.gmra.mxu0 %v6433
        %v6502 = vpop.f32.mrf.mxu0
        %v6503 = vadd.f32 %v6407, %v6502
        %v6504 = vpop.f32.mrf.mxu0
        %v6505 = vadd.f32 %v6407, %v6504
        %v6506 = vpop.f32.mrf.mxu0
        %v6507 = vadd.f32 %v6412, %v6506
        %v6508 = vpop.f32.mrf.mxu0
        %v6509 = vadd.f32 %v6412, %v6508
        %6510 = vdwg.mxu0
        %v6511 = vmul.f32 %v6473, 0.1
        %v6512 = vmul.f32 %v6475, 0.1
        %v6513 = vmul.f32 %v6477, 0.1
        %v6514 = vmul.f32 %v6479, 0.1
        %v6515 = vmul.f32 %v6483, 0.1
        %v6516 = vmul.f32 %v6485, 0.1
        %v6517 = vmul.f32 %v6487, 0.1
        %v6518 = vmul.f32 %v6489, 0.1
        %v6519 = vmul.f32 %v6493, 0.1
        %v6520 = vmul.f32 %v6495, 0.1
        %v6521 = vmul.f32 %v6497, 0.1
        %v6522 = vmul.f32 %v6499, 0.1
        %v6523 = vmul.f32 %v6503, 0.1
        %v6524 = vmul.f32 %v6505, 0.1
        %v6525 = vmul.f32 %v6507, 0.1
        %v6526 = vmul.f32 %v6509, 0.1
        %v6527 = vmax.f32 %v6473, %v6511
        %v6528 = vmax.f32 %v6475, %v6512
        %v6529 = vmax.f32 %v6477, %v6513
        %v6530 = vmax.f32 %v6479, %v6514
        %v6531 = vmax.f32 %v6483, %v6515
        %v6532 = vmax.f32 %v6485, %v6516
        %v6533 = vmax.f32 %v6487, %v6517
        %v6534 = vmax.f32 %v6489, %v6518
        %v6535 = vmax.f32 %v6493, %v6519
        %v6536 = vmax.f32 %v6495, %v6520
        %v6537 = vmax.f32 %v6497, %v6521
        %v6538 = vmax.f32 %v6499, %v6522
        %v6539 = vmax.f32 %v6503, %v6523
        %v6540 = vmax.f32 %v6505, %v6524
        %v6541 = vmax.f32 %v6507, %v6525
        %v6542 = vmax.f32 %v6509, %v6526
        %v6543 = vpack.c.bf16 %v6529, %v6527
        %v6544 = vpack.c.bf16 %v6530, %v6528
        %v6545 = vpack.c.bf16 %v6533, %v6531
        %v6546 = vpack.c.bf16 %v6534, %v6532
        %v6547 = vpack.c.bf16 %v6537, %v6535
        %v6548 = vpack.c.bf16 %v6538, %v6536
        %v6549 = vpack.c.bf16 %v6541, %v6539
        %v6550 = vpack.c.bf16 %v6542, %v6540
        %v6559 = vunpack.c.l.b16 %v6543
        %v6560 = vunpack.c.l.b16 %v6544
        %v6561 = vunpack.c.h.b16 %v6543
        %v6562 = vunpack.c.h.b16 %v6544
        %v6563 = vunpack.c.l.b16 %v6545
        %v6564 = vunpack.c.l.b16 %v6546
        %v6565 = vunpack.c.h.b16 %v6545
        %v6566 = vunpack.c.h.b16 %v6546
        %v6567 = vunpack.c.l.b16 %v6547
        %v6568 = vunpack.c.l.b16 %v6548
        %v6569 = vunpack.c.h.b16 %v6547
        %v6570 = vunpack.c.h.b16 %v6548
        %v6571 = vunpack.c.l.b16 %v6549
        %v6572 = vunpack.c.l.b16 %v6550
        %v6573 = vunpack.c.h.b16 %v6549
        %v6574 = vunpack.c.h.b16 %v6550
        %v6575 = vpack.c.b16 %v6560, %v6559
        %v6576 = vpack.c.b16 %v6562, %v6561
        %v6577 = vpack.c.b16 %v6564, %v6563
        %v6578 = vpack.c.b16 %v6566, %v6565
        %v6579 = vpack.c.b16 %v6568, %v6567
        %v6580 = vpack.c.b16 %v6570, %v6569
        %v6581 = vpack.c.b16 %v6572, %v6571
        %v6582 = vpack.c.b16 %v6574, %v6573
        %6583 = vrot.lane.b32.xlu0 %v6575, 17
        %v6584 = vpop.permute.xlu0 %6583
        %6585 = vrot.lane.b32.xlu0 %v6576, 17
        %v6586 = vpop.permute.xlu0 %6585
        %6587 = vrot.lane.b32.xlu0 %v6577, 17
        %v6588 = vpop.permute.xlu0 %6587
        %6589 = vrot.lane.b32.xlu0 %v6578, 17
        %v6590 = vpop.permute.xlu0 %6589
        %6591 = vrot.lane.b32.xlu0 %v6579, 17
        %v6592 = vpop.permute.xlu0 %6591
        %6593 = vrot.lane.b32.xlu0 %v6580, 17
        %v6594 = vpop.permute.xlu0 %6593
        %6595 = vrot.lane.b32.xlu0 %v6581, 17
        %v6596 = vpop.permute.xlu0 %6595
        %6597 = vrot.lane.b32.xlu0 %v6582, 17
        %v6598 = vpop.permute.xlu0 %6597
        %v6599 = vrot.slane %v6584, 4
        %v6600 = vrot.slane %v6586, 4
        %v6601 = vrot.slane %v6588, 4
        %v6602 = vrot.slane %v6590, 4
        %v6603 = vrot.slane %v6592, 4
        %v6604 = vrot.slane %v6594, 4
        %v6605 = vrot.slane %v6596, 4
        %v6606 = vrot.slane %v6598, 4
        %v6607 = vsel %vm470, %v6599, %v6584
        %v6608 = vsel %vm470, %v6600, %v6586
        %v6609 = vsel %vm470, %v6601, %v6588
        %v6610 = vsel %vm470, %v6602, %v6590
        %v6611 = vsel %vm470, %v6603, %v6592
        %v6612 = vsel %vm470, %v6604, %v6594
        %v6613 = vsel %vm470, %v6605, %v6596
        %v6614 = vsel %vm470, %v6606, %v6598
        %6631 = vst.msk [vmem:[#allocation2] sm:$0xff] %vm485, %v6607
        %6632 = vst.msk [vmem:[#allocation2 + $0x8] sm:$0xf] %vm487, %v6599
        %6633 = vst.msk [vmem:[#allocation2 + $0xc] sm:$0xff] %vm485, %v6608
        %6634 = vst.msk [vmem:[#allocation2 + $0x14] sm:$0xf] %vm487, %v6600
        %6635 = vst.msk [vmem:[#allocation2 + $0x18] sm:$0xff] %vm485, %v6609
        %6636 = vst.msk [vmem:[#allocation2 + $0x20] sm:$0xf] %vm487, %v6601
        %6637 = vst.msk [vmem:[#allocation2 + $0x24] sm:$0xff] %vm485, %v6610
        %6638 = vst.msk [vmem:[#allocation2 + $0x2c] sm:$0xf] %vm487, %v6602
        %6639 = vst.msk [vmem:[#allocation2 + $0x30] sm:$0xff] %vm485, %v6611
        %6640 = vst.msk [vmem:[#allocation2 + $0x38] sm:$0xf] %vm487, %v6603
        %6641 = vst.msk [vmem:[#allocation2 + $0x3c] sm:$0xff] %vm485, %v6612
        %6642 = vst.msk [vmem:[#allocation2 + $0x44] sm:$0xf] %vm487, %v6604
        %6643 = vst.msk [vmem:[#allocation2 + $0x48] sm:$0xff] %vm485, %v6613
        %6644 = vst.msk [vmem:[#allocation2 + $0x50] sm:$0xf] %vm487, %v6605
        %6645 = vst.msk [vmem:[#allocation2 + $0x54] sm:$0xff] %vm485, %v6614
        %6646 = vst.msk [vmem:[#allocation2 + $0x5c] sm:$0xf] %vm487, %v6606
        %v6647 = vld [vmem:[#allocation2] sm:$0xff]
        %v6648 = vld [vmem:[#allocation2 + $0xc] sm:$0xff]
        %v6649 = vld [vmem:[#allocation2 + $0x18] sm:$0xff]
        %v6650 = vld [vmem:[#allocation2 + $0x24] sm:$0xff]
        %v6651 = vld [vmem:[#allocation2 + $0x30] sm:$0xff]
        %v6652 = vld [vmem:[#allocation2 + $0x3c] sm:$0xff]
        %v6653 = vld [vmem:[#allocation2 + $0x48] sm:$0xff]
        %v6654 = vld [vmem:[#allocation2 + $0x54] sm:$0xff]
        %v6655 = vmul.bf16 %v6647, %v503
        %v6656 = vmul.bf16 %v6648, %v503
        %v6657 = vmul.bf16 %v6649, %v503
        %v6658 = vmul.bf16 %v6650, %v503
        %v6659 = vmul.bf16 %v6651, %v503
        %v6660 = vmul.bf16 %v6652, %v503
        %v6661 = vmul.bf16 %v6653, %v503
        %v6662 = vmul.bf16 %v6654, %v503
        %v6663 = vld [vmem:[%s9] sm:$0xf]
        %v6664 = vld [vmem:[%s9 + $0x4] sm:$0xf]
        %v6665 = vld [vmem:[%s9 + $0x8] sm:$0xf]
        %v6666 = vld [vmem:[%s9 + $0xc] sm:$0xf]
        %v6667 = vld [vmem:[%s9 + $0x10] sm:$0xf]
        %v6668 = vld [vmem:[%s9 + $0x14] sm:$0xf]
        %v6669 = vld [vmem:[%s9 + $0x18] sm:$0xf]
        %v6670 = vld [vmem:[%s9 + $0x1c] sm:$0xf]
        %v6671 = vld [vmem:[%s9 + $0x20] sm:$0xf]
        %v6672 = vld [vmem:[%s9 + $0x24] sm:$0xf]
        %v6673 = vld [vmem:[%s9 + $0x28] sm:$0xf]
        %v6674 = vld [vmem:[%s9 + $0x2c] sm:$0xf]
        %v6675 = vld [vmem:[%s9 + $0x30] sm:$0xf]
        %v6676 = vld [vmem:[%s9 + $0x34] sm:$0xf]
        %v6677 = vld [vmem:[%s9 + $0x38] sm:$0xf]
        %v6678 = vld [vmem:[%s9 + $0x3c] sm:$0xf]
        %v6679 = vld [vmem:[#allocation2 + $0x8] sm:$0xf]
        %v6680 = vld [vmem:[#allocation2 + $0x14] sm:$0xf]
        %v6681 = vld [vmem:[#allocation2 + $0x20] sm:$0xf]
        %v6682 = vld [vmem:[#allocation2 + $0x2c] sm:$0xf]
        %v6683 = vld [vmem:[#allocation2 + $0x38] sm:$0xf]
        %v6684 = vld [vmem:[#allocation2 + $0x44] sm:$0xf]
        %v6685 = vld [vmem:[#allocation2 + $0x50] sm:$0xf]
        %v6686 = vld [vmem:[#allocation2 + $0x5c] sm:$0xf]
        %s6687 = scalar_lea.vmem %s9, 64
        %v6688 = vld [vmem:[%s6687] sm:$0xf]
        %v6689 = vld [vmem:[%s6687 + $0x4] sm:$0xf]
        %v6690 = vld [vmem:[%s6687 + $0x8] sm:$0xf]
        %v6691 = vld [vmem:[%s6687 + $0xc] sm:$0xf]
        %v6692 = vld [vmem:[%s6687 + $0x10] sm:$0xf]
        %v6693 = vld [vmem:[%s6687 + $0x14] sm:$0xf]
        %v6694 = vld [vmem:[%s6687 + $0x18] sm:$0xf]
        %v6695 = vld [vmem:[%s6687 + $0x1c] sm:$0xf]
        %v6696 = vld [vmem:[%s6687 + $0x20] sm:$0xf]
        %v6697 = vld [vmem:[%s6687 + $0x24] sm:$0xf]
        %v6698 = vld [vmem:[%s6687 + $0x28] sm:$0xf]
        %v6699 = vld [vmem:[%s6687 + $0x2c] sm:$0xf]
        %v6700 = vld [vmem:[%s6687 + $0x30] sm:$0xf]
        %v6701 = vld [vmem:[%s6687 + $0x34] sm:$0xf]
        %v6702 = vld [vmem:[%s6687 + $0x38] sm:$0xf]
        %v6703 = vld [vmem:[%s6687 + $0x3c] sm:$0xf]
        %v6720 = vunpack.c.l.b16 %v6688
        %v6721 = vunpack.c.l.b16 %v6689
        %v6722 = vunpack.c.l.b16 %v6690
        %v6723 = vunpack.c.l.b16 %v6691
        %v6724 = vunpack.c.l.b16 %v6692
        %v6725 = vunpack.c.l.b16 %v6693
        %v6726 = vunpack.c.l.b16 %v6694
        %v6727 = vunpack.c.l.b16 %v6695
        %v6728 = vunpack.c.l.b16 %v6696
        %v6729 = vunpack.c.l.b16 %v6697
        %v6730 = vunpack.c.l.b16 %v6698
        %v6731 = vunpack.c.l.b16 %v6699
        %v6732 = vunpack.c.l.b16 %v6700
        %v6733 = vunpack.c.l.b16 %v6701
        %v6734 = vunpack.c.l.b16 %v6702
        %v6735 = vunpack.c.l.b16 %v6703
        %v6736 = vpack.c.b16 %v6721, %v6720
        %v6737 = vpack.c.b16 %v6723, %v6722
        %v6738 = vpack.c.b16 %v6725, %v6724
        %v6739 = vpack.c.b16 %v6727, %v6726
        %v6740 = vpack.c.b16 %v6729, %v6728
        %v6741 = vpack.c.b16 %v6731, %v6730
        %v6742 = vpack.c.b16 %v6733, %v6732
        %v6743 = vpack.c.b16 %v6735, %v6734
        %v6760 = vunpack.c.l.b16 %v6647
        %v6761 = vunpack.c.h.b16 %v6647
        %v6762 = vunpack.c.l.b16 %v6679
        %v6763 = vunpack.c.l.b16 %v6648
        %v6764 = vunpack.c.h.b16 %v6648
        %v6765 = vunpack.c.l.b16 %v6680
        %v6766 = vunpack.c.l.b16 %v6649
        %v6767 = vunpack.c.h.b16 %v6649
        %v6768 = vunpack.c.l.b16 %v6681
        %v6769 = vunpack.c.l.b16 %v6650
        %v6770 = vunpack.c.h.b16 %v6650
        %v6771 = vunpack.c.l.b16 %v6682
        %v6772 = vunpack.c.l.b16 %v6651
        %v6773 = vunpack.c.h.b16 %v6651
        %v6774 = vunpack.c.l.b16 %v6683
        %v6775 = vunpack.c.l.b16 %v6652
        %v6776 = vunpack.c.h.b16 %v6652
        %v6777 = vunpack.c.l.b16 %v6684
        %v6778 = vunpack.c.l.b16 %v6653
        %v6779 = vunpack.c.h.b16 %v6653
        %v6780 = vunpack.c.l.b16 %v6685
        %v6781 = vunpack.c.l.b16 %v6654
        %v6782 = vunpack.c.h.b16 %v6654
        %v6783 = vunpack.c.l.b16 %v6686
        %v6784 = vpack.c.b16 %v6763, %v6760
        %v6785 = vpack.c.b16 %v6764, %v6761
        %v6786 = vpack.c.b16 %v6765, %v6762
        %v6787 = vpack.c.b16 %v6769, %v6766
        %v6788 = vpack.c.b16 %v6770, %v6767
        %v6789 = vpack.c.b16 %v6771, %v6768
        %v6790 = vpack.c.b16 %v6775, %v6772
        %v6791 = vpack.c.b16 %v6776, %v6773
        %v6792 = vpack.c.b16 %v6777, %v6774
        %v6793 = vpack.c.b16 %v6781, %v6778
        %v6794 = vpack.c.b16 %v6782, %v6779
        %v6795 = vpack.c.b16 %v6783, %v6780
        %6796 = vrot.lane.b32.xlu0 %v6784, 127
        %v6797 = vpop.permute.xlu0 %6796
        %6798 = vrot.lane.b32.xlu0 %v6785, 127
        %v6799 = vpop.permute.xlu0 %6798
        %6800 = vrot.lane.b32.xlu0 %v6786, 127
        %v6801 = vpop.permute.xlu0 %6800
        %6802 = vrot.lane.b32.xlu0 %v6787, 127
        %v6803 = vpop.permute.xlu0 %6802
        %6804 = vrot.lane.b32.xlu0 %v6788, 127
        %v6805 = vpop.permute.xlu0 %6804
        %6806 = vrot.lane.b32.xlu0 %v6789, 127
        %v6807 = vpop.permute.xlu0 %6806
        %6808 = vrot.lane.b32.xlu0 %v6790, 127
        %v6809 = vpop.permute.xlu0 %6808
        %6810 = vrot.lane.b32.xlu0 %v6791, 127
        %v6811 = vpop.permute.xlu0 %6810
        %6812 = vrot.lane.b32.xlu0 %v6792, 127
        %v6813 = vpop.permute.xlu0 %6812
        %6814 = vrot.lane.b32.xlu0 %v6793, 127
        %v6815 = vpop.permute.xlu0 %6814
        %6816 = vrot.lane.b32.xlu0 %v6794, 127
        %v6817 = vpop.permute.xlu0 %6816
        %6818 = vrot.lane.b32.xlu0 %v6795, 127
        %v6819 = vpop.permute.xlu0 %6818
        %v6820 = vsel %vm624, %v6797, %v6799
        %v6821 = vsel %vm624, %v6799, %v6801
        %v6822 = vsel %vm624, %v6803, %v6805
        %v6823 = vsel %vm624, %v6805, %v6807
        %v6824 = vsel %vm624, %v6809, %v6811
        %v6825 = vsel %vm624, %v6811, %v6813
        %v6826 = vsel %vm624, %v6815, %v6817
        %v6827 = vsel %vm624, %v6817, %v6819
        %v6837 = vsel %vm3593, %v6736, 0
        %v6840 = vsel %vm3593, %v6737, 0
        %v6843 = vsel %vm3593, %v6738, 0
        %v6846 = vsel %vm3593, %v6739, 0
        %v6849 = vsel %vm3593, %v6740, 0
        %v6852 = vsel %vm3593, %v6741, 0
        %v6855 = vsel %vm3593, %v6742, 0
        %v6858 = vsel %vm3593, %v6743, 0
        %6860 = vmatprep.subr.bf16.mxu0 0
        %6861 = vmatpush1.bf16.msra.mxu0 0
        %6862 = vmatprep.subr.bf16.mxu0 0
        %6863 = vmatpush1.bf16.msra.mxu0 0
        %6864 = vmatprep.subr.bf16.mxu0 0
        %6865 = vmatpush1.bf16.msra.mxu0 0
        %6866 = vmatprep.subr.bf16.mxu0 0
        %6867 = vmatpush1.bf16.msra.mxu0 0
        %6868 = vmatprep.subr.bf16.mxu0 %v6827
        %6869 = vmatpush1.bf16.msra.mxu0 %v6826
        %6870 = vmatprep.subr.bf16.mxu0 %v6825
        %6871 = vmatpush1.bf16.msra.mxu0 %v6824
        %6872 = vmatprep.subr.bf16.mxu0 %v6823
        %6873 = vmatpush1.bf16.msra.mxu0 %v6822
        %6874 = vmatprep.subr.bf16.mxu0 %v6821
        %6875 = vmatpush1.bf16.msra.mxu0 %v6820
        %6876 = vmatprep.subr.bf16.mxu0 0
        %6877 = vmatpush2.bf16.msra.mxu0 0
        %6878 = vmatprep.subr.bf16.mxu0 0
        %6879 = vmatpush2.bf16.msra.mxu0 0
        %6880 = vmatprep.subr.bf16.mxu0 0
        %6881 = vmatpush2.bf16.msra.mxu0 0
        %6882 = vmatprep.subr.bf16.mxu0 0
        %6883 = vmatpush2.bf16.msra.mxu0 0
        %6884 = vmatprep.subr.bf16.mxu0 0
        %6885 = vmatpush2.bf16.msra.mxu0 0
        %6886 = vmatprep.subr.bf16.mxu0 0
        %6887 = vmatpush2.bf16.msra.mxu0 0
        %6888 = vmatprep.subr.bf16.mxu0 0
        %6889 = vmatpush2.bf16.msra.mxu0 0
        %6890 = vmatprep.subr.bf16.mxu0 0
        %6891 = vmatpush2.bf16.msra.mxu0 0
        %6892 = vmatprep.mubr.bf16.mxu0 0
        %6893 = vmatmul.mubr.bf16.gmra.mxu0 %v6837
        %v6894 = vpop.f32.mrf.mxu0
        %v6895 = vadd.f32 0.0, %v6894
        %v6896 = vpop.f32.mrf.mxu0
        %v6897 = vadd.f32 0.0, %v6896
        %v6898 = vpop.f32.mrf.mxu0
        %v6899 = vadd.f32 0.0, %v6898
        %v6900 = vpop.f32.mrf.mxu0
        %v6901 = vadd.f32 0.0, %v6900
        %6902 = vmatprep.mubr.bf16.mxu0 0
        %6903 = vmatmul.mubr.bf16.gmra.mxu0 %v6840
        %v6904 = vpop.f32.mrf.mxu0
        %v6905 = vadd.f32 0.0, %v6904
        %v6906 = vpop.f32.mrf.mxu0
        %v6907 = vadd.f32 0.0, %v6906
        %v6908 = vpop.f32.mrf.mxu0
        %v6909 = vadd.f32 0.0, %v6908
        %v6910 = vpop.f32.mrf.mxu0
        %v6911 = vadd.f32 0.0, %v6910
        %6912 = vmatprep.mubr.bf16.mxu0 0
        %6913 = vmatmul.mubr.bf16.gmra.mxu0 %v6843
        %v6914 = vpop.f32.mrf.mxu0
        %v6915 = vadd.f32 0.0, %v6914
        %v6916 = vpop.f32.mrf.mxu0
        %v6917 = vadd.f32 0.0, %v6916
        %v6918 = vpop.f32.mrf.mxu0
        %v6919 = vadd.f32 0.0, %v6918
        %v6920 = vpop.f32.mrf.mxu0
        %v6921 = vadd.f32 0.0, %v6920
        %6922 = vmatprep.mubr.bf16.mxu0 0
        %6923 = vmatmul.mubr.bf16.gmra.mxu0 %v6846
        %v6924 = vpop.f32.mrf.mxu0
        %v6925 = vadd.f32 0.0, %v6924
        %v6926 = vpop.f32.mrf.mxu0
        %v6927 = vadd.f32 0.0, %v6926
        %v6928 = vpop.f32.mrf.mxu0
        %v6929 = vadd.f32 0.0, %v6928
        %v6930 = vpop.f32.mrf.mxu0
        %v6931 = vadd.f32 0.0, %v6930
        %6932 = vmatprep.mubr.bf16.mxu0 0
        %6933 = vmatmul.mubr.bf16.gmra.mxu0 %v6849
        %v6934 = vpop.f32.mrf.mxu0
        %v6935 = vadd.f32 0.0, %v6934
        %v6936 = vpop.f32.mrf.mxu0
        %v6937 = vadd.f32 0.0, %v6936
        %v6938 = vpop.f32.mrf.mxu0
        %v6939 = vadd.f32 0.0, %v6938
        %v6940 = vpop.f32.mrf.mxu0
        %v6941 = vadd.f32 0.0, %v6940
        %6942 = vmatprep.mubr.bf16.mxu0 0
        %6943 = vmatmul.mubr.bf16.gmra.mxu0 %v6852
        %v6944 = vpop.f32.mrf.mxu0
        %v6945 = vadd.f32 0.0, %v6944
        %v6946 = vpop.f32.mrf.mxu0
        %v6947 = vadd.f32 0.0, %v6946
        %v6948 = vpop.f32.mrf.mxu0
        %v6949 = vadd.f32 0.0, %v6948
        %v6950 = vpop.f32.mrf.mxu0
        %v6951 = vadd.f32 0.0, %v6950
        %6952 = vmatprep.mubr.bf16.mxu0 0
        %6953 = vmatmul.mubr.bf16.gmra.mxu0 %v6855
        %v6954 = vpop.f32.mrf.mxu0
        %v6955 = vadd.f32 0.0, %v6954
        %v6956 = vpop.f32.mrf.mxu0
        %v6957 = vadd.f32 0.0, %v6956
        %v6958 = vpop.f32.mrf.mxu0
        %v6959 = vadd.f32 0.0, %v6958
        %v6960 = vpop.f32.mrf.mxu0
        %v6961 = vadd.f32 0.0, %v6960
        %6962 = vmatprep.mubr.bf16.mxu0 0
        %6963 = vmatmul.mubr.bf16.gmra.mxu0 %v6858
        %v6964 = vpop.f32.mrf.mxu0
        %v6965 = vadd.f32 0.0, %v6964
        %v6966 = vpop.f32.mrf.mxu0
        %v6967 = vadd.f32 0.0, %v6966
        %v6968 = vpop.f32.mrf.mxu0
        %v6969 = vadd.f32 0.0, %v6968
        %v6970 = vpop.f32.mrf.mxu0
        %v6971 = vadd.f32 0.0, %v6970
        %6972 = vdwg.mxu0
        %v6989 = vunpack.c.l.b16 %v6663
        %v6990 = vunpack.c.l.b16 %v6664
        %v6991 = vunpack.c.l.b16 %v6665
        %v6992 = vunpack.c.l.b16 %v6666
        %v6993 = vunpack.c.l.b16 %v6667
        %v6994 = vunpack.c.l.b16 %v6668
        %v6995 = vunpack.c.l.b16 %v6669
        %v6996 = vunpack.c.l.b16 %v6670
        %v6997 = vunpack.c.l.b16 %v6671
        %v6998 = vunpack.c.l.b16 %v6672
        %v6999 = vunpack.c.l.b16 %v6673
        %v7000 = vunpack.c.l.b16 %v6674
        %v7001 = vunpack.c.l.b16 %v6675
        %v7002 = vunpack.c.l.b16 %v6676
        %v7003 = vunpack.c.l.b16 %v6677
        %v7004 = vunpack.c.l.b16 %v6678
        %v7005 = vpack.c.b16 %v6990, %v6989
        %v7006 = vpack.c.b16 %v6992, %v6991
        %v7007 = vpack.c.b16 %v6994, %v6993
        %v7008 = vpack.c.b16 %v6996, %v6995
        %v7009 = vpack.c.b16 %v6998, %v6997
        %v7010 = vpack.c.b16 %v7000, %v6999
        %v7011 = vpack.c.b16 %v7002, %v7001
        %v7012 = vpack.c.b16 %v7004, %v7003
        %v7021 = vunpack.c.l.b16 %v6655
        %v7022 = vunpack.c.h.b16 %v6655
        %v7023 = vunpack.c.l.b16 %v6656
        %v7024 = vunpack.c.h.b16 %v6656
        %v7025 = vunpack.c.l.b16 %v6657
        %v7026 = vunpack.c.h.b16 %v6657
        %v7027 = vunpack.c.l.b16 %v6658
        %v7028 = vunpack.c.h.b16 %v6658
        %v7029 = vunpack.c.l.b16 %v6659
        %v7030 = vunpack.c.h.b16 %v6659
        %v7031 = vunpack.c.l.b16 %v6660
        %v7032 = vunpack.c.h.b16 %v6660
        %v7033 = vunpack.c.l.b16 %v6661
        %v7034 = vunpack.c.h.b16 %v6661
        %v7035 = vunpack.c.l.b16 %v6662
        %v7036 = vunpack.c.h.b16 %v6662
        %v7037 = vpack.c.b16 %v7023, %v7021
        %v7038 = vpack.c.b16 %v7024, %v7022
        %v7039 = vpack.c.b16 %v7027, %v7025
        %v7040 = vpack.c.b16 %v7028, %v7026
        %v7041 = vpack.c.b16 %v7031, %v7029
        %v7042 = vpack.c.b16 %v7032, %v7030
        %v7043 = vpack.c.b16 %v7035, %v7033
        %v7044 = vpack.c.b16 %v7036, %v7034
        %v7054 = vsel %vm3593, %v7005, 0
        %v7057 = vsel %vm3593, %v7006, 0
        %v7060 = vsel %vm3593, %v7007, 0
        %v7063 = vsel %vm3593, %v7008, 0
        %v7066 = vsel %vm3593, %v7009, 0
        %v7069 = vsel %vm3593, %v7010, 0
        %v7072 = vsel %vm3593, %v7011, 0
        %v7075 = vsel %vm3593, %v7012, 0
        %7077 = vmatprep.subr.bf16.mxu0 0
        %7078 = vmatpush1.bf16.msra.mxu0 0
        %7079 = vmatprep.subr.bf16.mxu0 0
        %7080 = vmatpush1.bf16.msra.mxu0 0
        %7081 = vmatprep.subr.bf16.mxu0 0
        %7082 = vmatpush1.bf16.msra.mxu0 0
        %7083 = vmatprep.subr.bf16.mxu0 0
        %7084 = vmatpush1.bf16.msra.mxu0 0
        %7085 = vmatprep.subr.bf16.mxu0 %v7044
        %7086 = vmatpush1.bf16.msra.mxu0 %v7043
        %7087 = vmatprep.subr.bf16.mxu0 %v7042
        %7088 = vmatpush1.bf16.msra.mxu0 %v7041
        %7089 = vmatprep.subr.bf16.mxu0 %v7040
        %7090 = vmatpush1.bf16.msra.mxu0 %v7039
        %7091 = vmatprep.subr.bf16.mxu0 %v7038
        %7092 = vmatpush1.bf16.msra.mxu0 %v7037
        %7093 = vmatprep.subr.bf16.mxu0 0
        %7094 = vmatpush2.bf16.msra.mxu0 0
        %7095 = vmatprep.subr.bf16.mxu0 0
        %7096 = vmatpush2.bf16.msra.mxu0 0
        %7097 = vmatprep.subr.bf16.mxu0 0
        %7098 = vmatpush2.bf16.msra.mxu0 0
        %7099 = vmatprep.subr.bf16.mxu0 0
        %7100 = vmatpush2.bf16.msra.mxu0 0
        %7101 = vmatprep.subr.bf16.mxu0 0
        %7102 = vmatpush2.bf16.msra.mxu0 0
        %7103 = vmatprep.subr.bf16.mxu0 0
        %7104 = vmatpush2.bf16.msra.mxu0 0
        %7105 = vmatprep.subr.bf16.mxu0 0
        %7106 = vmatpush2.bf16.msra.mxu0 0
        %7107 = vmatprep.subr.bf16.mxu0 0
        %7108 = vmatpush2.bf16.msra.mxu0 0
        %7109 = vmatprep.mubr.bf16.mxu0 0
        %7110 = vmatmul.mubr.bf16.gmra.mxu0 %v7054
        %v7111 = vpop.f32.mrf.mxu0
        %v7112 = vadd.f32 %v6895, %v7111
        %v7113 = vpop.f32.mrf.mxu0
        %v7114 = vadd.f32 %v6897, %v7113
        %v7115 = vpop.f32.mrf.mxu0
        %v7116 = vadd.f32 %v6899, %v7115
        %v7117 = vpop.f32.mrf.mxu0
        %v7118 = vadd.f32 %v6901, %v7117
        %7119 = vmatprep.mubr.bf16.mxu0 0
        %7120 = vmatmul.mubr.bf16.gmra.mxu0 %v7057
        %v7121 = vpop.f32.mrf.mxu0
        %v7122 = vadd.f32 %v6905, %v7121
        %v7123 = vpop.f32.mrf.mxu0
        %v7124 = vadd.f32 %v6907, %v7123
        %v7125 = vpop.f32.mrf.mxu0
        %v7126 = vadd.f32 %v6909, %v7125
        %v7127 = vpop.f32.mrf.mxu0
        %v7128 = vadd.f32 %v6911, %v7127
        %7129 = vmatprep.mubr.bf16.mxu0 0
        %7130 = vmatmul.mubr.bf16.gmra.mxu0 %v7060
        %v7131 = vpop.f32.mrf.mxu0
        %v7132 = vadd.f32 %v6915, %v7131
        %v7133 = vpop.f32.mrf.mxu0
        %v7134 = vadd.f32 %v6917, %v7133
        %v7135 = vpop.f32.mrf.mxu0
        %v7136 = vadd.f32 %v6919, %v7135
        %v7137 = vpop.f32.mrf.mxu0
        %v7138 = vadd.f32 %v6921, %v7137
        %7139 = vmatprep.mubr.bf16.mxu0 0
        %7140 = vmatmul.mubr.bf16.gmra.mxu0 %v7063
        %v7141 = vpop.f32.mrf.mxu0
        %v7142 = vadd.f32 %v6925, %v7141
        %v7143 = vpop.f32.mrf.mxu0
        %v7144 = vadd.f32 %v6927, %v7143
        %v7145 = vpop.f32.mrf.mxu0
        %v7146 = vadd.f32 %v6929, %v7145
        %v7147 = vpop.f32.mrf.mxu0
        %v7148 = vadd.f32 %v6931, %v7147
        %7149 = vmatprep.mubr.bf16.mxu0 0
        %7150 = vmatmul.mubr.bf16.gmra.mxu0 %v7066
        %v7151 = vpop.f32.mrf.mxu0
        %v7152 = vadd.f32 %v6935, %v7151
        %v7153 = vpop.f32.mrf.mxu0
        %v7154 = vadd.f32 %v6937, %v7153
        %v7155 = vpop.f32.mrf.mxu0
        %v7156 = vadd.f32 %v6939, %v7155
        %v7157 = vpop.f32.mrf.mxu0
        %v7158 = vadd.f32 %v6941, %v7157
        %7159 = vmatprep.mubr.bf16.mxu0 0
        %7160 = vmatmul.mubr.bf16.gmra.mxu0 %v7069
        %v7161 = vpop.f32.mrf.mxu0
        %v7162 = vadd.f32 %v6945, %v7161
        %v7163 = vpop.f32.mrf.mxu0
        %v7164 = vadd.f32 %v6947, %v7163
        %v7165 = vpop.f32.mrf.mxu0
        %v7166 = vadd.f32 %v6949, %v7165
        %v7167 = vpop.f32.mrf.mxu0
        %v7168 = vadd.f32 %v6951, %v7167
        %7169 = vmatprep.mubr.bf16.mxu0 0
        %7170 = vmatmul.mubr.bf16.gmra.mxu0 %v7072
        %v7171 = vpop.f32.mrf.mxu0
        %v7172 = vadd.f32 %v6955, %v7171
        %v7173 = vpop.f32.mrf.mxu0
        %v7174 = vadd.f32 %v6957, %v7173
        %v7175 = vpop.f32.mrf.mxu0
        %v7176 = vadd.f32 %v6959, %v7175
        %v7177 = vpop.f32.mrf.mxu0
        %v7178 = vadd.f32 %v6961, %v7177
        %7179 = vmatprep.mubr.bf16.mxu0 0
        %7180 = vmatmul.mubr.bf16.gmra.mxu0 %v7075
        %v7181 = vpop.f32.mrf.mxu0
        %v7182 = vadd.f32 %v6965, %v7181
        %v7183 = vpop.f32.mrf.mxu0
        %v7184 = vadd.f32 %v6967, %v7183
        %v7185 = vpop.f32.mrf.mxu0
        %v7186 = vadd.f32 %v6969, %v7185
        %v7187 = vpop.f32.mrf.mxu0
        %v7188 = vadd.f32 %v6971, %v7187
        %7189 = vdwg.mxu0
        %v7190 = vmul.bf16 %v6647, %v977
        %v7191 = vmul.bf16 %v6679, %v975
        %v7192 = vmul.bf16 %v6648, %v977
        %v7193 = vmul.bf16 %v6680, %v975
        %v7194 = vmul.bf16 %v6649, %v977
        %v7195 = vmul.bf16 %v6681, %v975
        %v7196 = vmul.bf16 %v6650, %v977
        %v7197 = vmul.bf16 %v6682, %v975
        %v7198 = vmul.bf16 %v6651, %v977
        %v7199 = vmul.bf16 %v6683, %v975
        %v7200 = vmul.bf16 %v6652, %v977
        %v7201 = vmul.bf16 %v6684, %v975
        %v7202 = vmul.bf16 %v6653, %v977
        %v7203 = vmul.bf16 %v6685, %v975
        %v7204 = vmul.bf16 %v6654, %v977
        %v7205 = vmul.bf16 %v6686, %v975
        %s7206 = scalar_lea.vmem %s9, 128
        %v7207 = vld [vmem:[%s7206] sm:$0xf]
        %v7208 = vld [vmem:[%s7206 + $0x4] sm:$0xf]
        %v7209 = vld [vmem:[%s7206 + $0x8] sm:$0xf]
        %v7210 = vld [vmem:[%s7206 + $0xc] sm:$0xf]
        %v7211 = vld [vmem:[%s7206 + $0x10] sm:$0xf]
        %v7212 = vld [vmem:[%s7206 + $0x14] sm:$0xf]
        %v7213 = vld [vmem:[%s7206 + $0x18] sm:$0xf]
        %v7214 = vld [vmem:[%s7206 + $0x1c] sm:$0xf]
        %v7215 = vld [vmem:[%s7206 + $0x20] sm:$0xf]
        %v7216 = vld [vmem:[%s7206 + $0x24] sm:$0xf]
        %v7217 = vld [vmem:[%s7206 + $0x28] sm:$0xf]
        %v7218 = vld [vmem:[%s7206 + $0x2c] sm:$0xf]
        %v7219 = vld [vmem:[%s7206 + $0x30] sm:$0xf]
        %v7220 = vld [vmem:[%s7206 + $0x34] sm:$0xf]
        %v7221 = vld [vmem:[%s7206 + $0x38] sm:$0xf]
        %v7222 = vld [vmem:[%s7206 + $0x3c] sm:$0xf]
        %v7239 = vunpack.c.l.b16 %v7207
        %v7240 = vunpack.c.l.b16 %v7208
        %v7241 = vunpack.c.l.b16 %v7209
        %v7242 = vunpack.c.l.b16 %v7210
        %v7243 = vunpack.c.l.b16 %v7211
        %v7244 = vunpack.c.l.b16 %v7212
        %v7245 = vunpack.c.l.b16 %v7213
        %v7246 = vunpack.c.l.b16 %v7214
        %v7247 = vunpack.c.l.b16 %v7215
        %v7248 = vunpack.c.l.b16 %v7216
        %v7249 = vunpack.c.l.b16 %v7217
        %v7250 = vunpack.c.l.b16 %v7218
        %v7251 = vunpack.c.l.b16 %v7219
        %v7252 = vunpack.c.l.b16 %v7220
        %v7253 = vunpack.c.l.b16 %v7221
        %v7254 = vunpack.c.l.b16 %v7222
        %v7255 = vpack.c.b16 %v7240, %v7239
        %v7256 = vpack.c.b16 %v7242, %v7241
        %v7257 = vpack.c.b16 %v7244, %v7243
        %v7258 = vpack.c.b16 %v7246, %v7245
        %v7259 = vpack.c.b16 %v7248, %v7247
        %v7260 = vpack.c.b16 %v7250, %v7249
        %v7261 = vpack.c.b16 %v7252, %v7251
        %v7262 = vpack.c.b16 %v7254, %v7253
        %v7279 = vunpack.c.l.b16 %v7190
        %v7280 = vunpack.c.h.b16 %v7190
        %v7281 = vunpack.c.l.b16 %v7191
        %v7282 = vunpack.c.l.b16 %v7192
        %v7283 = vunpack.c.h.b16 %v7192
        %v7284 = vunpack.c.l.b16 %v7193
        %v7285 = vunpack.c.l.b16 %v7194
        %v7286 = vunpack.c.h.b16 %v7194
        %v7287 = vunpack.c.l.b16 %v7195
        %v7288 = vunpack.c.l.b16 %v7196
        %v7289 = vunpack.c.h.b16 %v7196
        %v7290 = vunpack.c.l.b16 %v7197
        %v7291 = vunpack.c.l.b16 %v7198
        %v7292 = vunpack.c.h.b16 %v7198
        %v7293 = vunpack.c.l.b16 %v7199
        %v7294 = vunpack.c.l.b16 %v7200
        %v7295 = vunpack.c.h.b16 %v7200
        %v7296 = vunpack.c.l.b16 %v7201
        %v7297 = vunpack.c.l.b16 %v7202
        %v7298 = vunpack.c.h.b16 %v7202
        %v7299 = vunpack.c.l.b16 %v7203
        %v7300 = vunpack.c.l.b16 %v7204
        %v7301 = vunpack.c.h.b16 %v7204
        %v7302 = vunpack.c.l.b16 %v7205
        %v7303 = vpack.c.b16 %v7282, %v7279
        %v7304 = vpack.c.b16 %v7283, %v7280
        %v7305 = vpack.c.b16 %v7284, %v7281
        %v7306 = vpack.c.b16 %v7288, %v7285
        %v7307 = vpack.c.b16 %v7289, %v7286
        %v7308 = vpack.c.b16 %v7290, %v7287
        %v7309 = vpack.c.b16 %v7294, %v7291
        %v7310 = vpack.c.b16 %v7295, %v7292
        %v7311 = vpack.c.b16 %v7296, %v7293
        %v7312 = vpack.c.b16 %v7300, %v7297
        %v7313 = vpack.c.b16 %v7301, %v7298
        %v7314 = vpack.c.b16 %v7302, %v7299
        %7315 = vrot.lane.b32.xlu0 %v7303, 126
        %v7316 = vpop.permute.xlu0 %7315
        %7317 = vrot.lane.b32.xlu0 %v7304, 126
        %v7318 = vpop.permute.xlu0 %7317
        %7319 = vrot.lane.b32.xlu0 %v7305, 126
        %v7320 = vpop.permute.xlu0 %7319
        %7321 = vrot.lane.b32.xlu0 %v7306, 126
        %v7322 = vpop.permute.xlu0 %7321
        %7323 = vrot.lane.b32.xlu0 %v7307, 126
        %v7324 = vpop.permute.xlu0 %7323
        %7325 = vrot.lane.b32.xlu0 %v7308, 126
        %v7326 = vpop.permute.xlu0 %7325
        %7327 = vrot.lane.b32.xlu0 %v7309, 126
        %v7328 = vpop.permute.xlu0 %7327
        %7329 = vrot.lane.b32.xlu0 %v7310, 126
        %v7330 = vpop.permute.xlu0 %7329
        %7331 = vrot.lane.b32.xlu0 %v7311, 126
        %v7332 = vpop.permute.xlu0 %7331
        %7333 = vrot.lane.b32.xlu0 %v7312, 126
        %v7334 = vpop.permute.xlu0 %7333
        %7335 = vrot.lane.b32.xlu0 %v7313, 126
        %v7336 = vpop.permute.xlu0 %7335
        %7337 = vrot.lane.b32.xlu0 %v7314, 126
        %v7338 = vpop.permute.xlu0 %7337
        %v7339 = vsel %vm1083, %v7316, %v7318
        %v7340 = vsel %vm1083, %v7318, %v7320
        %v7341 = vsel %vm1083, %v7322, %v7324
        %v7342 = vsel %vm1083, %v7324, %v7326
        %v7343 = vsel %vm1083, %v7328, %v7330
        %v7344 = vsel %vm1083, %v7330, %v7332
        %v7345 = vsel %vm1083, %v7334, %v7336
        %v7346 = vsel %vm1083, %v7336, %v7338
        %v7356 = vsel %vm3593, %v7255, 0
        %v7359 = vsel %vm3593, %v7256, 0
        %v7362 = vsel %vm3593, %v7257, 0
        %v7365 = vsel %vm3593, %v7258, 0
        %v7368 = vsel %vm3593, %v7259, 0
        %v7371 = vsel %vm3593, %v7260, 0
        %v7374 = vsel %vm3593, %v7261, 0
        %v7377 = vsel %vm3593, %v7262, 0
        %7379 = vmatprep.subr.bf16.mxu0 0
        %7380 = vmatpush1.bf16.msra.mxu0 0
        %7381 = vmatprep.subr.bf16.mxu0 0
        %7382 = vmatpush1.bf16.msra.mxu0 0
        %7383 = vmatprep.subr.bf16.mxu0 0
        %7384 = vmatpush1.bf16.msra.mxu0 0
        %7385 = vmatprep.subr.bf16.mxu0 0
        %7386 = vmatpush1.bf16.msra.mxu0 0
        %7387 = vmatprep.subr.bf16.mxu0 %v7346
        %7388 = vmatpush1.bf16.msra.mxu0 %v7345
        %7389 = vmatprep.subr.bf16.mxu0 %v7344
        %7390 = vmatpush1.bf16.msra.mxu0 %v7343
        %7391 = vmatprep.subr.bf16.mxu0 %v7342
        %7392 = vmatpush1.bf16.msra.mxu0 %v7341
        %7393 = vmatprep.subr.bf16.mxu0 %v7340
        %7394 = vmatpush1.bf16.msra.mxu0 %v7339
        %7395 = vmatprep.subr.bf16.mxu0 0
        %7396 = vmatpush2.bf16.msra.mxu0 0
        %7397 = vmatprep.subr.bf16.mxu0 0
        %7398 = vmatpush2.bf16.msra.mxu0 0
        %7399 = vmatprep.subr.bf16.mxu0 0
        %7400 = vmatpush2.bf16.msra.mxu0 0
        %7401 = vmatprep.subr.bf16.mxu0 0
        %7402 = vmatpush2.bf16.msra.mxu0 0
        %7403 = vmatprep.subr.bf16.mxu0 0
        %7404 = vmatpush2.bf16.msra.mxu0 0
        %7405 = vmatprep.subr.bf16.mxu0 0
        %7406 = vmatpush2.bf16.msra.mxu0 0
        %7407 = vmatprep.subr.bf16.mxu0 0
        %7408 = vmatpush2.bf16.msra.mxu0 0
        %7409 = vmatprep.subr.bf16.mxu0 0
        %7410 = vmatpush2.bf16.msra.mxu0 0
        %7411 = vmatprep.mubr.bf16.mxu0 0
        %7412 = vmatmul.mubr.bf16.gmra.mxu0 %v7356
        %v7413 = vpop.f32.mrf.mxu0
        %v7414 = vadd.f32 0.0, %v7413
        %v7415 = vpop.f32.mrf.mxu0
        %v7416 = vadd.f32 0.0, %v7415
        %v7417 = vpop.f32.mrf.mxu0
        %v7418 = vadd.f32 0.0, %v7417
        %v7419 = vpop.f32.mrf.mxu0
        %v7420 = vadd.f32 0.0, %v7419
        %7421 = vmatprep.mubr.bf16.mxu0 0
        %7422 = vmatmul.mubr.bf16.gmra.mxu0 %v7359
        %v7423 = vpop.f32.mrf.mxu0
        %v7424 = vadd.f32 0.0, %v7423
        %v7425 = vpop.f32.mrf.mxu0
        %v7426 = vadd.f32 0.0, %v7425
        %v7427 = vpop.f32.mrf.mxu0
        %v7428 = vadd.f32 0.0, %v7427
        %v7429 = vpop.f32.mrf.mxu0
        %v7430 = vadd.f32 0.0, %v7429
        %7431 = vmatprep.mubr.bf16.mxu0 0
        %7432 = vmatmul.mubr.bf16.gmra.mxu0 %v7362
        %v7433 = vpop.f32.mrf.mxu0
        %v7434 = vadd.f32 0.0, %v7433
        %v7435 = vpop.f32.mrf.mxu0
        %v7436 = vadd.f32 0.0, %v7435
        %v7437 = vpop.f32.mrf.mxu0
        %v7438 = vadd.f32 0.0, %v7437
        %v7439 = vpop.f32.mrf.mxu0
        %v7440 = vadd.f32 0.0, %v7439
        %7441 = vmatprep.mubr.bf16.mxu0 0
        %7442 = vmatmul.mubr.bf16.gmra.mxu0 %v7365
        %v7443 = vpop.f32.mrf.mxu0
        %v7444 = vadd.f32 0.0, %v7443
        %v7445 = vpop.f32.mrf.mxu0
        %v7446 = vadd.f32 0.0, %v7445
        %v7447 = vpop.f32.mrf.mxu0
        %v7448 = vadd.f32 0.0, %v7447
        %v7449 = vpop.f32.mrf.mxu0
        %v7450 = vadd.f32 0.0, %v7449
        %7451 = vmatprep.mubr.bf16.mxu0 0
        %7452 = vmatmul.mubr.bf16.gmra.mxu0 %v7368
        %v7453 = vpop.f32.mrf.mxu0
        %v7454 = vadd.f32 0.0, %v7453
        %v7455 = vpop.f32.mrf.mxu0
        %v7456 = vadd.f32 0.0, %v7455
        %v7457 = vpop.f32.mrf.mxu0
        %v7458 = vadd.f32 0.0, %v7457
        %v7459 = vpop.f32.mrf.mxu0
        %v7460 = vadd.f32 0.0, %v7459
        %7461 = vmatprep.mubr.bf16.mxu0 0
        %7462 = vmatmul.mubr.bf16.gmra.mxu0 %v7371
        %v7463 = vpop.f32.mrf.mxu0
        %v7464 = vadd.f32 0.0, %v7463
        %v7465 = vpop.f32.mrf.mxu0
        %v7466 = vadd.f32 0.0, %v7465
        %v7467 = vpop.f32.mrf.mxu0
        %v7468 = vadd.f32 0.0, %v7467
        %v7469 = vpop.f32.mrf.mxu0
        %v7470 = vadd.f32 0.0, %v7469
        %7471 = vmatprep.mubr.bf16.mxu0 0
        %7472 = vmatmul.mubr.bf16.gmra.mxu0 %v7374
        %v7473 = vpop.f32.mrf.mxu0
        %v7474 = vadd.f32 0.0, %v7473
        %v7475 = vpop.f32.mrf.mxu0
        %v7476 = vadd.f32 0.0, %v7475
        %v7477 = vpop.f32.mrf.mxu0
        %v7478 = vadd.f32 0.0, %v7477
        %v7479 = vpop.f32.mrf.mxu0
        %v7480 = vadd.f32 0.0, %v7479
        %7481 = vmatprep.mubr.bf16.mxu0 0
        %7482 = vmatmul.mubr.bf16.gmra.mxu0 %v7377
        %v7483 = vpop.f32.mrf.mxu0
        %v7484 = vadd.f32 0.0, %v7483
        %v7485 = vpop.f32.mrf.mxu0
        %v7486 = vadd.f32 0.0, %v7485
        %v7487 = vpop.f32.mrf.mxu0
        %v7488 = vadd.f32 0.0, %v7487
        %v7489 = vpop.f32.mrf.mxu0
        %v7490 = vadd.f32 0.0, %v7489
        %7491 = vdwg.mxu0
        %v7492 = vadd.f32 %v7112, %v7414
        %v7493 = vadd.f32 %v7114, %v7416
        %v7494 = vadd.f32 %v7116, %v7418
        %v7495 = vadd.f32 %v7118, %v7420
        %v7496 = vadd.f32 %v7122, %v7424
        %v7497 = vadd.f32 %v7124, %v7426
        %v7498 = vadd.f32 %v7126, %v7428
        %v7499 = vadd.f32 %v7128, %v7430
        %v7500 = vadd.f32 %v7132, %v7434
        %v7501 = vadd.f32 %v7134, %v7436
        %v7502 = vadd.f32 %v7136, %v7438
        %v7503 = vadd.f32 %v7138, %v7440
        %v7504 = vadd.f32 %v7142, %v7444
        %v7505 = vadd.f32 %v7144, %v7446
        %v7506 = vadd.f32 %v7146, %v7448
        %v7507 = vadd.f32 %v7148, %v7450
        %v7508 = vadd.f32 %v7152, %v7454
        %v7509 = vadd.f32 %v7154, %v7456
        %v7510 = vadd.f32 %v7156, %v7458
        %v7511 = vadd.f32 %v7158, %v7460
        %v7512 = vadd.f32 %v7162, %v7464
        %v7513 = vadd.f32 %v7164, %v7466
        %v7514 = vadd.f32 %v7166, %v7468
        %v7515 = vadd.f32 %v7168, %v7470
        %v7516 = vadd.f32 %v7172, %v7474
        %v7517 = vadd.f32 %v7174, %v7476
        %v7518 = vadd.f32 %v7176, %v7478
        %v7519 = vadd.f32 %v7178, %v7480
        %v7520 = vadd.f32 %v7182, %v7484
        %v7521 = vadd.f32 %v7184, %v7486
        %v7522 = vadd.f32 %v7186, %v7488
        %v7523 = vadd.f32 %v7188, %v7490
        %v7524 = vmul.bf16 %v6647, %v1265
        %v7525 = vmul.bf16 %v6679, %v1263
        %v7526 = vmul.bf16 %v6648, %v1265
        %v7527 = vmul.bf16 %v6680, %v1263
        %v7528 = vmul.bf16 %v6649, %v1265
        %v7529 = vmul.bf16 %v6681, %v1263
        %v7530 = vmul.bf16 %v6650, %v1265
        %v7531 = vmul.bf16 %v6682, %v1263
        %v7532 = vmul.bf16 %v6651, %v1265
        %v7533 = vmul.bf16 %v6683, %v1263
        %v7534 = vmul.bf16 %v6652, %v1265
        %v7535 = vmul.bf16 %v6684, %v1263
        %v7536 = vmul.bf16 %v6653, %v1265
        %v7537 = vmul.bf16 %v6685, %v1263
        %v7538 = vmul.bf16 %v6654, %v1265
        %v7539 = vmul.bf16 %v6686, %v1263
        %s7540 = scalar_lea.vmem %s9, 192
        %v7541 = vld [vmem:[%s7540] sm:$0xf]
        %v7542 = vld [vmem:[%s7540 + $0x4] sm:$0xf]
        %v7543 = vld [vmem:[%s7540 + $0x8] sm:$0xf]
        %v7544 = vld [vmem:[%s7540 + $0xc] sm:$0xf]
        %v7545 = vld [vmem:[%s7540 + $0x10] sm:$0xf]
        %v7546 = vld [vmem:[%s7540 + $0x14] sm:$0xf]
        %v7547 = vld [vmem:[%s7540 + $0x18] sm:$0xf]
        %v7548 = vld [vmem:[%s7540 + $0x1c] sm:$0xf]
        %v7549 = vld [vmem:[%s7540 + $0x20] sm:$0xf]
        %v7550 = vld [vmem:[%s7540 + $0x24] sm:$0xf]
        %v7551 = vld [vmem:[%s7540 + $0x28] sm:$0xf]
        %v7552 = vld [vmem:[%s7540 + $0x2c] sm:$0xf]
        %v7553 = vld [vmem:[%s7540 + $0x30] sm:$0xf]
        %v7554 = vld [vmem:[%s7540 + $0x34] sm:$0xf]
        %v7555 = vld [vmem:[%s7540 + $0x38] sm:$0xf]
        %v7556 = vld [vmem:[%s7540 + $0x3c] sm:$0xf]
        %v7573 = vunpack.c.l.b16 %v7541
        %v7574 = vunpack.c.l.b16 %v7542
        %v7575 = vunpack.c.l.b16 %v7543
        %v7576 = vunpack.c.l.b16 %v7544
        %v7577 = vunpack.c.l.b16 %v7545
        %v7578 = vunpack.c.l.b16 %v7546
        %v7579 = vunpack.c.l.b16 %v7547
        %v7580 = vunpack.c.l.b16 %v7548
        %v7581 = vunpack.c.l.b16 %v7549
        %v7582 = vunpack.c.l.b16 %v7550
        %v7583 = vunpack.c.l.b16 %v7551
        %v7584 = vunpack.c.l.b16 %v7552
        %v7585 = vunpack.c.l.b16 %v7553
        %v7586 = vunpack.c.l.b16 %v7554
        %v7587 = vunpack.c.l.b16 %v7555
        %v7588 = vunpack.c.l.b16 %v7556
        %v7589 = vpack.c.b16 %v7574, %v7573
        %v7590 = vpack.c.b16 %v7576, %v7575
        %v7591 = vpack.c.b16 %v7578, %v7577
        %v7592 = vpack.c.b16 %v7580, %v7579
        %v7593 = vpack.c.b16 %v7582, %v7581
        %v7594 = vpack.c.b16 %v7584, %v7583
        %v7595 = vpack.c.b16 %v7586, %v7585
        %v7596 = vpack.c.b16 %v7588, %v7587
        %v7613 = vunpack.c.l.b16 %v7524
        %v7614 = vunpack.c.h.b16 %v7524
        %v7615 = vunpack.c.l.b16 %v7525
        %v7616 = vunpack.c.l.b16 %v7526
        %v7617 = vunpack.c.h.b16 %v7526
        %v7618 = vunpack.c.l.b16 %v7527
        %v7619 = vunpack.c.l.b16 %v7528
        %v7620 = vunpack.c.h.b16 %v7528
        %v7621 = vunpack.c.l.b16 %v7529
        %v7622 = vunpack.c.l.b16 %v7530
        %v7623 = vunpack.c.h.b16 %v7530
        %v7624 = vunpack.c.l.b16 %v7531
        %v7625 = vunpack.c.l.b16 %v7532
        %v7626 = vunpack.c.h.b16 %v7532
        %v7627 = vunpack.c.l.b16 %v7533
        %v7628 = vunpack.c.l.b16 %v7534
        %v7629 = vunpack.c.h.b16 %v7534
        %v7630 = vunpack.c.l.b16 %v7535
        %v7631 = vunpack.c.l.b16 %v7536
        %v7632 = vunpack.c.h.b16 %v7536
        %v7633 = vunpack.c.l.b16 %v7537
        %v7634 = vunpack.c.l.b16 %v7538
        %v7635 = vunpack.c.h.b16 %v7538
        %v7636 = vunpack.c.l.b16 %v7539
        %v7637 = vpack.c.b16 %v7616, %v7613
        %v7638 = vpack.c.b16 %v7617, %v7614
        %v7639 = vpack.c.b16 %v7618, %v7615
        %v7640 = vpack.c.b16 %v7622, %v7619
        %v7641 = vpack.c.b16 %v7623, %v7620
        %v7642 = vpack.c.b16 %v7624, %v7621
        %v7643 = vpack.c.b16 %v7628, %v7625
        %v7644 = vpack.c.b16 %v7629, %v7626
        %v7645 = vpack.c.b16 %v7630, %v7627
        %v7646 = vpack.c.b16 %v7634, %v7631
        %v7647 = vpack.c.b16 %v7635, %v7632
        %v7648 = vpack.c.b16 %v7636, %v7633
        %7649 = vrot.lane.b32.xlu0 %v7637, 112
        %v7650 = vpop.permute.xlu0 %7649
        %7651 = vrot.lane.b32.xlu0 %v7638, 112
        %v7652 = vpop.permute.xlu0 %7651
        %7653 = vrot.lane.b32.xlu0 %v7639, 112
        %v7654 = vpop.permute.xlu0 %7653
        %7655 = vrot.lane.b32.xlu0 %v7640, 112
        %v7656 = vpop.permute.xlu0 %7655
        %7657 = vrot.lane.b32.xlu0 %v7641, 112
        %v7658 = vpop.permute.xlu0 %7657
        %7659 = vrot.lane.b32.xlu0 %v7642, 112
        %v7660 = vpop.permute.xlu0 %7659
        %7661 = vrot.lane.b32.xlu0 %v7643, 112
        %v7662 = vpop.permute.xlu0 %7661
        %7663 = vrot.lane.b32.xlu0 %v7644, 112
        %v7664 = vpop.permute.xlu0 %7663
        %7665 = vrot.lane.b32.xlu0 %v7645, 112
        %v7666 = vpop.permute.xlu0 %7665
        %7667 = vrot.lane.b32.xlu0 %v7646, 112
        %v7668 = vpop.permute.xlu0 %7667
        %7669 = vrot.lane.b32.xlu0 %v7647, 112
        %v7670 = vpop.permute.xlu0 %7669
        %7671 = vrot.lane.b32.xlu0 %v7648, 112
        %v7672 = vpop.permute.xlu0 %7671
        %v7673 = vsel %vm1371, %v7650, %v7652
        %v7674 = vsel %vm1371, %v7652, %v7654
        %v7675 = vsel %vm1371, %v7656, %v7658
        %v7676 = vsel %vm1371, %v7658, %v7660
        %v7677 = vsel %vm1371, %v7662, %v7664
        %v7678 = vsel %vm1371, %v7664, %v7666
        %v7679 = vsel %vm1371, %v7668, %v7670
        %v7680 = vsel %vm1371, %v7670, %v7672
        %v7690 = vsel %vm3593, %v7589, 0
        %v7693 = vsel %vm3593, %v7590, 0
        %v7696 = vsel %vm3593, %v7591, 0
        %v7699 = vsel %vm3593, %v7592, 0
        %v7702 = vsel %vm3593, %v7593, 0
        %v7705 = vsel %vm3593, %v7594, 0
        %v7708 = vsel %vm3593, %v7595, 0
        %v7711 = vsel %vm3593, %v7596, 0
        %7713 = vmatprep.subr.bf16.mxu0 0
        %7714 = vmatpush1.bf16.msra.mxu0 0
        %7715 = vmatprep.subr.bf16.mxu0 0
        %7716 = vmatpush1.bf16.msra.mxu0 0
        %7717 = vmatprep.subr.bf16.mxu0 0
        %7718 = vmatpush1.bf16.msra.mxu0 0
        %7719 = vmatprep.subr.bf16.mxu0 0
        %7720 = vmatpush1.bf16.msra.mxu0 0
        %7721 = vmatprep.subr.bf16.mxu0 %v7680
        %7722 = vmatpush1.bf16.msra.mxu0 %v7679
        %7723 = vmatprep.subr.bf16.mxu0 %v7678
        %7724 = vmatpush1.bf16.msra.mxu0 %v7677
        %7725 = vmatprep.subr.bf16.mxu0 %v7676
        %7726 = vmatpush1.bf16.msra.mxu0 %v7675
        %7727 = vmatprep.subr.bf16.mxu0 %v7674
        %7728 = vmatpush1.bf16.msra.mxu0 %v7673
        %7729 = vmatprep.subr.bf16.mxu0 0
        %7730 = vmatpush2.bf16.msra.mxu0 0
        %7731 = vmatprep.subr.bf16.mxu0 0
        %7732 = vmatpush2.bf16.msra.mxu0 0
        %7733 = vmatprep.subr.bf16.mxu0 0
        %7734 = vmatpush2.bf16.msra.mxu0 0
        %7735 = vmatprep.subr.bf16.mxu0 0
        %7736 = vmatpush2.bf16.msra.mxu0 0
        %7737 = vmatprep.subr.bf16.mxu0 0
        %7738 = vmatpush2.bf16.msra.mxu0 0
        %7739 = vmatprep.subr.bf16.mxu0 0
        %7740 = vmatpush2.bf16.msra.mxu0 0
        %7741 = vmatprep.subr.bf16.mxu0 0
        %7742 = vmatpush2.bf16.msra.mxu0 0
        %7743 = vmatprep.subr.bf16.mxu0 0
        %7744 = vmatpush2.bf16.msra.mxu0 0
        %7745 = vmatprep.mubr.bf16.mxu0 0
        %7746 = vmatmul.mubr.bf16.gmra.mxu0 %v7690
        %v7747 = vpop.f32.mrf.mxu0
        %v7748 = vadd.f32 0.0, %v7747
        %v7749 = vpop.f32.mrf.mxu0
        %v7750 = vadd.f32 0.0, %v7749
        %v7751 = vpop.f32.mrf.mxu0
        %v7752 = vadd.f32 0.0, %v7751
        %v7753 = vpop.f32.mrf.mxu0
        %v7754 = vadd.f32 0.0, %v7753
        %7755 = vmatprep.mubr.bf16.mxu0 0
        %7756 = vmatmul.mubr.bf16.gmra.mxu0 %v7693
        %v7757 = vpop.f32.mrf.mxu0
        %v7758 = vadd.f32 0.0, %v7757
        %v7759 = vpop.f32.mrf.mxu0
        %v7760 = vadd.f32 0.0, %v7759
        %v7761 = vpop.f32.mrf.mxu0
        %v7762 = vadd.f32 0.0, %v7761
        %v7763 = vpop.f32.mrf.mxu0
        %v7764 = vadd.f32 0.0, %v7763
        %7765 = vmatprep.mubr.bf16.mxu0 0
        %7766 = vmatmul.mubr.bf16.gmra.mxu0 %v7696
        %v7767 = vpop.f32.mrf.mxu0
        %v7768 = vadd.f32 0.0, %v7767
        %v7769 = vpop.f32.mrf.mxu0
        %v7770 = vadd.f32 0.0, %v7769
        %v7771 = vpop.f32.mrf.mxu0
        %v7772 = vadd.f32 0.0, %v7771
        %v7773 = vpop.f32.mrf.mxu0
        %v7774 = vadd.f32 0.0, %v7773
        %7775 = vmatprep.mubr.bf16.mxu0 0
        %7776 = vmatmul.mubr.bf16.gmra.mxu0 %v7699
        %v7777 = vpop.f32.mrf.mxu0
        %v7778 = vadd.f32 0.0, %v7777
        %v7779 = vpop.f32.mrf.mxu0
        %v7780 = vadd.f32 0.0, %v7779
        %v7781 = vpop.f32.mrf.mxu0
        %v7782 = vadd.f32 0.0, %v7781
        %v7783 = vpop.f32.mrf.mxu0
        %v7784 = vadd.f32 0.0, %v7783
        %7785 = vmatprep.mubr.bf16.mxu0 0
        %7786 = vmatmul.mubr.bf16.gmra.mxu0 %v7702
        %v7787 = vpop.f32.mrf.mxu0
        %v7788 = vadd.f32 0.0, %v7787
        %v7789 = vpop.f32.mrf.mxu0
        %v7790 = vadd.f32 0.0, %v7789
        %v7791 = vpop.f32.mrf.mxu0
        %v7792 = vadd.f32 0.0, %v7791
        %v7793 = vpop.f32.mrf.mxu0
        %v7794 = vadd.f32 0.0, %v7793
        %7795 = vmatprep.mubr.bf16.mxu0 0
        %7796 = vmatmul.mubr.bf16.gmra.mxu0 %v7705
        %v7797 = vpop.f32.mrf.mxu0
        %v7798 = vadd.f32 0.0, %v7797
        %v7799 = vpop.f32.mrf.mxu0
        %v7800 = vadd.f32 0.0, %v7799
        %v7801 = vpop.f32.mrf.mxu0
        %v7802 = vadd.f32 0.0, %v7801
        %v7803 = vpop.f32.mrf.mxu0
        %v7804 = vadd.f32 0.0, %v7803
        %7805 = vmatprep.mubr.bf16.mxu0 0
        %7806 = vmatmul.mubr.bf16.gmra.mxu0 %v7708
        %v7807 = vpop.f32.mrf.mxu0
        %v7808 = vadd.f32 0.0, %v7807
        %v7809 = vpop.f32.mrf.mxu0
        %v7810 = vadd.f32 0.0, %v7809
        %v7811 = vpop.f32.mrf.mxu0
        %v7812 = vadd.f32 0.0, %v7811
        %v7813 = vpop.f32.mrf.mxu0
        %v7814 = vadd.f32 0.0, %v7813
        %7815 = vmatprep.mubr.bf16.mxu0 0
        %7816 = vmatmul.mubr.bf16.gmra.mxu0 %v7711
        %v7817 = vpop.f32.mrf.mxu0
        %v7818 = vadd.f32 0.0, %v7817
        %v7819 = vpop.f32.mrf.mxu0
        %v7820 = vadd.f32 0.0, %v7819
        %v7821 = vpop.f32.mrf.mxu0
        %v7822 = vadd.f32 0.0, %v7821
        %v7823 = vpop.f32.mrf.mxu0
        %v7824 = vadd.f32 0.0, %v7823
        %7825 = vdwg.mxu0
        %v7826 = vadd.f32 %v7492, %v7748
        %v7827 = vadd.f32 %v7493, %v7750
        %v7828 = vadd.f32 %v7494, %v7752
        %v7829 = vadd.f32 %v7495, %v7754
        %v7830 = vadd.f32 %v7496, %v7758
        %v7831 = vadd.f32 %v7497, %v7760
        %v7832 = vadd.f32 %v7498, %v7762
        %v7833 = vadd.f32 %v7499, %v7764
        %v7834 = vadd.f32 %v7500, %v7768
        %v7835 = vadd.f32 %v7501, %v7770
        %v7836 = vadd.f32 %v7502, %v7772
        %v7837 = vadd.f32 %v7503, %v7774
        %v7838 = vadd.f32 %v7504, %v7778
        %v7839 = vadd.f32 %v7505, %v7780
        %v7840 = vadd.f32 %v7506, %v7782
        %v7841 = vadd.f32 %v7507, %v7784
        %v7842 = vadd.f32 %v7508, %v7788
        %v7843 = vadd.f32 %v7509, %v7790
        %v7844 = vadd.f32 %v7510, %v7792
        %v7845 = vadd.f32 %v7511, %v7794
        %v7846 = vadd.f32 %v7512, %v7798
        %v7847 = vadd.f32 %v7513, %v7800
        %v7848 = vadd.f32 %v7514, %v7802
        %v7849 = vadd.f32 %v7515, %v7804
        %v7850 = vadd.f32 %v7516, %v7808
        %v7851 = vadd.f32 %v7517, %v7810
        %v7852 = vadd.f32 %v7518, %v7812
        %v7853 = vadd.f32 %v7519, %v7814
        %v7854 = vadd.f32 %v7520, %v7818
        %v7855 = vadd.f32 %v7521, %v7820
        %v7856 = vadd.f32 %v7522, %v7822
        %v7857 = vadd.f32 %v7523, %v7824
        %s7858 = scalar_lea.vmem %s9, 256
        %v7859 = vld [vmem:[%s7858] sm:$0xf]
        %v7860 = vld [vmem:[%s7858 + $0x4] sm:$0xf]
        %v7861 = vld [vmem:[%s7858 + $0x8] sm:$0xf]
        %v7862 = vld [vmem:[%s7858 + $0xc] sm:$0xf]
        %v7863 = vld [vmem:[%s7858 + $0x10] sm:$0xf]
        %v7864 = vld [vmem:[%s7858 + $0x14] sm:$0xf]
        %v7865 = vld [vmem:[%s7858 + $0x18] sm:$0xf]
        %v7866 = vld [vmem:[%s7858 + $0x1c] sm:$0xf]
        %v7867 = vld [vmem:[%s7858 + $0x20] sm:$0xf]
        %v7868 = vld [vmem:[%s7858 + $0x24] sm:$0xf]
        %v7869 = vld [vmem:[%s7858 + $0x28] sm:$0xf]
        %v7870 = vld [vmem:[%s7858 + $0x2c] sm:$0xf]
        %v7871 = vld [vmem:[%s7858 + $0x30] sm:$0xf]
        %v7872 = vld [vmem:[%s7858 + $0x34] sm:$0xf]
        %v7873 = vld [vmem:[%s7858 + $0x38] sm:$0xf]
        %v7874 = vld [vmem:[%s7858 + $0x3c] sm:$0xf]
        %v7891 = vunpack.c.l.b16 %v7859
        %v7892 = vunpack.c.l.b16 %v7860
        %v7893 = vunpack.c.l.b16 %v7861
        %v7894 = vunpack.c.l.b16 %v7862
        %v7895 = vunpack.c.l.b16 %v7863
        %v7896 = vunpack.c.l.b16 %v7864
        %v7897 = vunpack.c.l.b16 %v7865
        %v7898 = vunpack.c.l.b16 %v7866
        %v7899 = vunpack.c.l.b16 %v7867
        %v7900 = vunpack.c.l.b16 %v7868
        %v7901 = vunpack.c.l.b16 %v7869
        %v7902 = vunpack.c.l.b16 %v7870
        %v7903 = vunpack.c.l.b16 %v7871
        %v7904 = vunpack.c.l.b16 %v7872
        %v7905 = vunpack.c.l.b16 %v7873
        %v7906 = vunpack.c.l.b16 %v7874
        %v7907 = vpack.c.b16 %v7892, %v7891
        %v7908 = vpack.c.b16 %v7894, %v7893
        %v7909 = vpack.c.b16 %v7896, %v7895
        %v7910 = vpack.c.b16 %v7898, %v7897
        %v7911 = vpack.c.b16 %v7900, %v7899
        %v7912 = vpack.c.b16 %v7902, %v7901
        %v7913 = vpack.c.b16 %v7904, %v7903
        %v7914 = vpack.c.b16 %v7906, %v7905
        %7915 = vrot.lane.b32.xlu0 %v6784, 111
        %v7916 = vpop.permute.xlu0 %7915
        %7917 = vrot.lane.b32.xlu0 %v6785, 111
        %v7918 = vpop.permute.xlu0 %7917
        %7919 = vrot.lane.b32.xlu0 %v6786, 111
        %v7920 = vpop.permute.xlu0 %7919
        %7921 = vrot.lane.b32.xlu0 %v6787, 111
        %v7922 = vpop.permute.xlu0 %7921
        %7923 = vrot.lane.b32.xlu0 %v6788, 111
        %v7924 = vpop.permute.xlu0 %7923
        %7925 = vrot.lane.b32.xlu0 %v6789, 111
        %v7926 = vpop.permute.xlu0 %7925
        %7927 = vrot.lane.b32.xlu0 %v6790, 111
        %v7928 = vpop.permute.xlu0 %7927
        %7929 = vrot.lane.b32.xlu0 %v6791, 111
        %v7930 = vpop.permute.xlu0 %7929
        %7931 = vrot.lane.b32.xlu0 %v6792, 111
        %v7932 = vpop.permute.xlu0 %7931
        %7933 = vrot.lane.b32.xlu0 %v6793, 111
        %v7934 = vpop.permute.xlu0 %7933
        %7935 = vrot.lane.b32.xlu0 %v6794, 111
        %v7936 = vpop.permute.xlu0 %7935
        %7937 = vrot.lane.b32.xlu0 %v6795, 111
        %v7938 = vpop.permute.xlu0 %7937
        %v7939 = vsel %vm1618, %v7916, %v7918
        %v7940 = vsel %vm1618, %v7918, %v7920
        %v7941 = vsel %vm1618, %v7922, %v7924
        %v7942 = vsel %vm1618, %v7924, %v7926
        %v7943 = vsel %vm1618, %v7928, %v7930
        %v7944 = vsel %vm1618, %v7930, %v7932
        %v7945 = vsel %vm1618, %v7934, %v7936
        %v7946 = vsel %vm1618, %v7936, %v7938
        %v7956 = vsel %vm3593, %v7907, 0
        %v7959 = vsel %vm3593, %v7908, 0
        %v7962 = vsel %vm3593, %v7909, 0
        %v7965 = vsel %vm3593, %v7910, 0
        %v7968 = vsel %vm3593, %v7911, 0
        %v7971 = vsel %vm3593, %v7912, 0
        %v7974 = vsel %vm3593, %v7913, 0
        %v7977 = vsel %vm3593, %v7914, 0
        %7979 = vmatprep.subr.bf16.mxu0 0
        %7980 = vmatpush1.bf16.msra.mxu0 0
        %7981 = vmatprep.subr.bf16.mxu0 0
        %7982 = vmatpush1.bf16.msra.mxu0 0
        %7983 = vmatprep.subr.bf16.mxu0 0
        %7984 = vmatpush1.bf16.msra.mxu0 0
        %7985 = vmatprep.subr.bf16.mxu0 0
        %7986 = vmatpush1.bf16.msra.mxu0 0
        %7987 = vmatprep.subr.bf16.mxu0 %v7946
        %7988 = vmatpush1.bf16.msra.mxu0 %v7945
        %7989 = vmatprep.subr.bf16.mxu0 %v7944
        %7990 = vmatpush1.bf16.msra.mxu0 %v7943
        %7991 = vmatprep.subr.bf16.mxu0 %v7942
        %7992 = vmatpush1.bf16.msra.mxu0 %v7941
        %7993 = vmatprep.subr.bf16.mxu0 %v7940
        %7994 = vmatpush1.bf16.msra.mxu0 %v7939
        %7995 = vmatprep.subr.bf16.mxu0 0
        %7996 = vmatpush2.bf16.msra.mxu0 0
        %7997 = vmatprep.subr.bf16.mxu0 0
        %7998 = vmatpush2.bf16.msra.mxu0 0
        %7999 = vmatprep.subr.bf16.mxu0 0
        %8000 = vmatpush2.bf16.msra.mxu0 0
        %8001 = vmatprep.subr.bf16.mxu0 0
        %8002 = vmatpush2.bf16.msra.mxu0 0
        %8003 = vmatprep.subr.bf16.mxu0 0
        %8004 = vmatpush2.bf16.msra.mxu0 0
        %8005 = vmatprep.subr.bf16.mxu0 0
        %8006 = vmatpush2.bf16.msra.mxu0 0
        %8007 = vmatprep.subr.bf16.mxu0 0
        %8008 = vmatpush2.bf16.msra.mxu0 0
        %8009 = vmatprep.subr.bf16.mxu0 0
        %8010 = vmatpush2.bf16.msra.mxu0 0
        %8011 = vmatprep.mubr.bf16.mxu0 0
        %8012 = vmatmul.mubr.bf16.gmra.mxu0 %v7956
        %v8013 = vpop.f32.mrf.mxu0
        %v8014 = vadd.f32 0.0, %v8013
        %v8015 = vpop.f32.mrf.mxu0
        %v8016 = vadd.f32 0.0, %v8015
        %v8017 = vpop.f32.mrf.mxu0
        %v8018 = vadd.f32 0.0, %v8017
        %v8019 = vpop.f32.mrf.mxu0
        %v8020 = vadd.f32 0.0, %v8019
        %8021 = vmatprep.mubr.bf16.mxu0 0
        %8022 = vmatmul.mubr.bf16.gmra.mxu0 %v7959
        %v8023 = vpop.f32.mrf.mxu0
        %v8024 = vadd.f32 0.0, %v8023
        %v8025 = vpop.f32.mrf.mxu0
        %v8026 = vadd.f32 0.0, %v8025
        %v8027 = vpop.f32.mrf.mxu0
        %v8028 = vadd.f32 0.0, %v8027
        %v8029 = vpop.f32.mrf.mxu0
        %v8030 = vadd.f32 0.0, %v8029
        %8031 = vmatprep.mubr.bf16.mxu0 0
        %8032 = vmatmul.mubr.bf16.gmra.mxu0 %v7962
        %v8033 = vpop.f32.mrf.mxu0
        %v8034 = vadd.f32 0.0, %v8033
        %v8035 = vpop.f32.mrf.mxu0
        %v8036 = vadd.f32 0.0, %v8035
        %v8037 = vpop.f32.mrf.mxu0
        %v8038 = vadd.f32 0.0, %v8037
        %v8039 = vpop.f32.mrf.mxu0
        %v8040 = vadd.f32 0.0, %v8039
        %8041 = vmatprep.mubr.bf16.mxu0 0
        %8042 = vmatmul.mubr.bf16.gmra.mxu0 %v7965
        %v8043 = vpop.f32.mrf.mxu0
        %v8044 = vadd.f32 0.0, %v8043
        %v8045 = vpop.f32.mrf.mxu0
        %v8046 = vadd.f32 0.0, %v8045
        %v8047 = vpop.f32.mrf.mxu0
        %v8048 = vadd.f32 0.0, %v8047
        %v8049 = vpop.f32.mrf.mxu0
        %v8050 = vadd.f32 0.0, %v8049
        %8051 = vmatprep.mubr.bf16.mxu0 0
        %8052 = vmatmul.mubr.bf16.gmra.mxu0 %v7968
        %v8053 = vpop.f32.mrf.mxu0
        %v8054 = vadd.f32 0.0, %v8053
        %v8055 = vpop.f32.mrf.mxu0
        %v8056 = vadd.f32 0.0, %v8055
        %v8057 = vpop.f32.mrf.mxu0
        %v8058 = vadd.f32 0.0, %v8057
        %v8059 = vpop.f32.mrf.mxu0
        %v8060 = vadd.f32 0.0, %v8059
        %8061 = vmatprep.mubr.bf16.mxu0 0
        %8062 = vmatmul.mubr.bf16.gmra.mxu0 %v7971
        %v8063 = vpop.f32.mrf.mxu0
        %v8064 = vadd.f32 0.0, %v8063
        %v8065 = vpop.f32.mrf.mxu0
        %v8066 = vadd.f32 0.0, %v8065
        %v8067 = vpop.f32.mrf.mxu0
        %v8068 = vadd.f32 0.0, %v8067
        %v8069 = vpop.f32.mrf.mxu0
        %v8070 = vadd.f32 0.0, %v8069
        %8071 = vmatprep.mubr.bf16.mxu0 0
        %8072 = vmatmul.mubr.bf16.gmra.mxu0 %v7974
        %v8073 = vpop.f32.mrf.mxu0
        %v8074 = vadd.f32 0.0, %v8073
        %v8075 = vpop.f32.mrf.mxu0
        %v8076 = vadd.f32 0.0, %v8075
        %v8077 = vpop.f32.mrf.mxu0
        %v8078 = vadd.f32 0.0, %v8077
        %v8079 = vpop.f32.mrf.mxu0
        %v8080 = vadd.f32 0.0, %v8079
        %8081 = vmatprep.mubr.bf16.mxu0 0
        %8082 = vmatmul.mubr.bf16.gmra.mxu0 %v7977
        %v8083 = vpop.f32.mrf.mxu0
        %v8084 = vadd.f32 0.0, %v8083
        %v8085 = vpop.f32.mrf.mxu0
        %v8086 = vadd.f32 0.0, %v8085
        %v8087 = vpop.f32.mrf.mxu0
        %v8088 = vadd.f32 0.0, %v8087
        %v8089 = vpop.f32.mrf.mxu0
        %v8090 = vadd.f32 0.0, %v8089
        %8091 = vdwg.mxu0
        %v8092 = vadd.f32 %v7826, %v8014
        %v8093 = vadd.f32 %v7827, %v8016
        %v8094 = vadd.f32 %v7828, %v8018
        %v8095 = vadd.f32 %v7829, %v8020
        %v8096 = vadd.f32 %v7830, %v8024
        %v8097 = vadd.f32 %v7831, %v8026
        %v8098 = vadd.f32 %v7832, %v8028
        %v8099 = vadd.f32 %v7833, %v8030
        %v8100 = vadd.f32 %v7834, %v8034
        %v8101 = vadd.f32 %v7835, %v8036
        %v8102 = vadd.f32 %v7836, %v8038
        %v8103 = vadd.f32 %v7837, %v8040
        %v8104 = vadd.f32 %v7838, %v8044
        %v8105 = vadd.f32 %v7839, %v8046
        %v8106 = vadd.f32 %v7840, %v8048
        %v8107 = vadd.f32 %v7841, %v8050
        %v8108 = vadd.f32 %v7842, %v8054
        %v8109 = vadd.f32 %v7843, %v8056
        %v8110 = vadd.f32 %v7844, %v8058
        %v8111 = vadd.f32 %v7845, %v8060
        %v8112 = vadd.f32 %v7846, %v8064
        %v8113 = vadd.f32 %v7847, %v8066
        %v8114 = vadd.f32 %v7848, %v8068
        %v8115 = vadd.f32 %v7849, %v8070
        %v8116 = vadd.f32 %v7850, %v8074
        %v8117 = vadd.f32 %v7851, %v8076
        %v8118 = vadd.f32 %v7852, %v8078
        %v8119 = vadd.f32 %v7853, %v8080
        %v8120 = vadd.f32 %v7854, %v8084
        %v8121 = vadd.f32 %v7855, %v8086
        %v8122 = vadd.f32 %v7856, %v8088
        %v8123 = vadd.f32 %v7857, %v8090
        %v8124 = vmul.bf16 %v6647, %v1800
        %v8125 = vmul.bf16 %v6679, %v1798
        %v8126 = vmul.bf16 %v6648, %v1800
        %v8127 = vmul.bf16 %v6680, %v1798
        %v8128 = vmul.bf16 %v6649, %v1800
        %v8129 = vmul.bf16 %v6681, %v1798
        %v8130 = vmul.bf16 %v6650, %v1800
        %v8131 = vmul.bf16 %v6682, %v1798
        %v8132 = vmul.bf16 %v6651, %v1800
        %v8133 = vmul.bf16 %v6683, %v1798
        %v8134 = vmul.bf16 %v6652, %v1800
        %v8135 = vmul.bf16 %v6684, %v1798
        %v8136 = vmul.bf16 %v6653, %v1800
        %v8137 = vmul.bf16 %v6685, %v1798
        %v8138 = vmul.bf16 %v6654, %v1800
        %v8139 = vmul.bf16 %v6686, %v1798
        %s8140 = scalar_lea.vmem %s9, 320
        %v8141 = vld [vmem:[%s8140] sm:$0xf]
        %v8142 = vld [vmem:[%s8140 + $0x4] sm:$0xf]
        %v8143 = vld [vmem:[%s8140 + $0x8] sm:$0xf]
        %v8144 = vld [vmem:[%s8140 + $0xc] sm:$0xf]
        %v8145 = vld [vmem:[%s8140 + $0x10] sm:$0xf]
        %v8146 = vld [vmem:[%s8140 + $0x14] sm:$0xf]
        %v8147 = vld [vmem:[%s8140 + $0x18] sm:$0xf]
        %v8148 = vld [vmem:[%s8140 + $0x1c] sm:$0xf]
        %v8149 = vld [vmem:[%s8140 + $0x20] sm:$0xf]
        %v8150 = vld [vmem:[%s8140 + $0x24] sm:$0xf]
        %v8151 = vld [vmem:[%s8140 + $0x28] sm:$0xf]
        %v8152 = vld [vmem:[%s8140 + $0x2c] sm:$0xf]
        %v8153 = vld [vmem:[%s8140 + $0x30] sm:$0xf]
        %v8154 = vld [vmem:[%s8140 + $0x34] sm:$0xf]
        %v8155 = vld [vmem:[%s8140 + $0x38] sm:$0xf]
        %v8156 = vld [vmem:[%s8140 + $0x3c] sm:$0xf]
        %v8173 = vunpack.c.l.b16 %v8141
        %v8174 = vunpack.c.l.b16 %v8142
        %v8175 = vunpack.c.l.b16 %v8143
        %v8176 = vunpack.c.l.b16 %v8144
        %v8177 = vunpack.c.l.b16 %v8145
        %v8178 = vunpack.c.l.b16 %v8146
        %v8179 = vunpack.c.l.b16 %v8147
        %v8180 = vunpack.c.l.b16 %v8148
        %v8181 = vunpack.c.l.b16 %v8149
        %v8182 = vunpack.c.l.b16 %v8150
        %v8183 = vunpack.c.l.b16 %v8151
        %v8184 = vunpack.c.l.b16 %v8152
        %v8185 = vunpack.c.l.b16 %v8153
        %v8186 = vunpack.c.l.b16 %v8154
        %v8187 = vunpack.c.l.b16 %v8155
        %v8188 = vunpack.c.l.b16 %v8156
        %v8189 = vpack.c.b16 %v8174, %v8173
        %v8190 = vpack.c.b16 %v8176, %v8175
        %v8191 = vpack.c.b16 %v8178, %v8177
        %v8192 = vpack.c.b16 %v8180, %v8179
        %v8193 = vpack.c.b16 %v8182, %v8181
        %v8194 = vpack.c.b16 %v8184, %v8183
        %v8195 = vpack.c.b16 %v8186, %v8185
        %v8196 = vpack.c.b16 %v8188, %v8187
        %v8213 = vunpack.c.l.b16 %v8124
        %v8214 = vunpack.c.h.b16 %v8124
        %v8215 = vunpack.c.l.b16 %v8125
        %v8216 = vunpack.c.l.b16 %v8126
        %v8217 = vunpack.c.h.b16 %v8126
        %v8218 = vunpack.c.l.b16 %v8127
        %v8219 = vunpack.c.l.b16 %v8128
        %v8220 = vunpack.c.h.b16 %v8128
        %v8221 = vunpack.c.l.b16 %v8129
        %v8222 = vunpack.c.l.b16 %v8130
        %v8223 = vunpack.c.h.b16 %v8130
        %v8224 = vunpack.c.l.b16 %v8131
        %v8225 = vunpack.c.l.b16 %v8132
        %v8226 = vunpack.c.h.b16 %v8132
        %v8227 = vunpack.c.l.b16 %v8133
        %v8228 = vunpack.c.l.b16 %v8134
        %v8229 = vunpack.c.h.b16 %v8134
        %v8230 = vunpack.c.l.b16 %v8135
        %v8231 = vunpack.c.l.b16 %v8136
        %v8232 = vunpack.c.h.b16 %v8136
        %v8233 = vunpack.c.l.b16 %v8137
        %v8234 = vunpack.c.l.b16 %v8138
        %v8235 = vunpack.c.h.b16 %v8138
        %v8236 = vunpack.c.l.b16 %v8139
        %v8237 = vpack.c.b16 %v8216, %v8213
        %v8238 = vpack.c.b16 %v8217, %v8214
        %v8239 = vpack.c.b16 %v8218, %v8215
        %v8240 = vpack.c.b16 %v8222, %v8219
        %v8241 = vpack.c.b16 %v8223, %v8220
        %v8242 = vpack.c.b16 %v8224, %v8221
        %v8243 = vpack.c.b16 %v8228, %v8225
        %v8244 = vpack.c.b16 %v8229, %v8226
        %v8245 = vpack.c.b16 %v8230, %v8227
        %v8246 = vpack.c.b16 %v8234, %v8231
        %v8247 = vpack.c.b16 %v8235, %v8232
        %v8248 = vpack.c.b16 %v8236, %v8233
        %8249 = vrot.lane.b32.xlu0 %v8237, 110
        %v8250 = vpop.permute.xlu0 %8249
        %8251 = vrot.lane.b32.xlu0 %v8238, 110
        %v8252 = vpop.permute.xlu0 %8251
        %8253 = vrot.lane.b32.xlu0 %v8239, 110
        %v8254 = vpop.permute.xlu0 %8253
        %8255 = vrot.lane.b32.xlu0 %v8240, 110
        %v8256 = vpop.permute.xlu0 %8255
        %8257 = vrot.lane.b32.xlu0 %v8241, 110
        %v8258 = vpop.permute.xlu0 %8257
        %8259 = vrot.lane.b32.xlu0 %v8242, 110
        %v8260 = vpop.permute.xlu0 %8259
        %8261 = vrot.lane.b32.xlu0 %v8243, 110
        %v8262 = vpop.permute.xlu0 %8261
        %8263 = vrot.lane.b32.xlu0 %v8244, 110
        %v8264 = vpop.permute.xlu0 %8263
        %8265 = vrot.lane.b32.xlu0 %v8245, 110
        %v8266 = vpop.permute.xlu0 %8265
        %8267 = vrot.lane.b32.xlu0 %v8246, 110
        %v8268 = vpop.permute.xlu0 %8267
        %8269 = vrot.lane.b32.xlu0 %v8247, 110
        %v8270 = vpop.permute.xlu0 %8269
        %8271 = vrot.lane.b32.xlu0 %v8248, 110
        %v8272 = vpop.permute.xlu0 %8271
        %v8273 = vsel %vm1906, %v8250, %v8252
        %v8274 = vsel %vm1906, %v8252, %v8254
        %v8275 = vsel %vm1906, %v8256, %v8258
        %v8276 = vsel %vm1906, %v8258, %v8260
        %v8277 = vsel %vm1906, %v8262, %v8264
        %v8278 = vsel %vm1906, %v8264, %v8266
        %v8279 = vsel %vm1906, %v8268, %v8270
        %v8280 = vsel %vm1906, %v8270, %v8272
        %v8290 = vsel %vm3593, %v8189, 0
        %v8293 = vsel %vm3593, %v8190, 0
        %v8296 = vsel %vm3593, %v8191, 0
        %v8299 = vsel %vm3593, %v8192, 0
        %v8302 = vsel %vm3593, %v8193, 0
        %v8305 = vsel %vm3593, %v8194, 0
        %v8308 = vsel %vm3593, %v8195, 0
        %v8311 = vsel %vm3593, %v8196, 0
        %8313 = vmatprep.subr.bf16.mxu0 0
        %8314 = vmatpush1.bf16.msra.mxu0 0
        %8315 = vmatprep.subr.bf16.mxu0 0
        %8316 = vmatpush1.bf16.msra.mxu0 0
        %8317 = vmatprep.subr.bf16.mxu0 0
        %8318 = vmatpush1.bf16.msra.mxu0 0
        %8319 = vmatprep.subr.bf16.mxu0 0
        %8320 = vmatpush1.bf16.msra.mxu0 0
        %8321 = vmatprep.subr.bf16.mxu0 %v8280
        %8322 = vmatpush1.bf16.msra.mxu0 %v8279
        %8323 = vmatprep.subr.bf16.mxu0 %v8278
        %8324 = vmatpush1.bf16.msra.mxu0 %v8277
        %8325 = vmatprep.subr.bf16.mxu0 %v8276
        %8326 = vmatpush1.bf16.msra.mxu0 %v8275
        %8327 = vmatprep.subr.bf16.mxu0 %v8274
        %8328 = vmatpush1.bf16.msra.mxu0 %v8273
        %8329 = vmatprep.subr.bf16.mxu0 0
        %8330 = vmatpush2.bf16.msra.mxu0 0
        %8331 = vmatprep.subr.bf16.mxu0 0
        %8332 = vmatpush2.bf16.msra.mxu0 0
        %8333 = vmatprep.subr.bf16.mxu0 0
        %8334 = vmatpush2.bf16.msra.mxu0 0
        %8335 = vmatprep.subr.bf16.mxu0 0
        %8336 = vmatpush2.bf16.msra.mxu0 0
        %8337 = vmatprep.subr.bf16.mxu0 0
        %8338 = vmatpush2.bf16.msra.mxu0 0
        %8339 = vmatprep.subr.bf16.mxu0 0
        %8340 = vmatpush2.bf16.msra.mxu0 0
        %8341 = vmatprep.subr.bf16.mxu0 0
        %8342 = vmatpush2.bf16.msra.mxu0 0
        %8343 = vmatprep.subr.bf16.mxu0 0
        %8344 = vmatpush2.bf16.msra.mxu0 0
        %8345 = vmatprep.mubr.bf16.mxu0 0
        %8346 = vmatmul.mubr.bf16.gmra.mxu0 %v8290
        %v8347 = vpop.f32.mrf.mxu0
        %v8348 = vadd.f32 0.0, %v8347
        %v8349 = vpop.f32.mrf.mxu0
        %v8350 = vadd.f32 0.0, %v8349
        %v8351 = vpop.f32.mrf.mxu0
        %v8352 = vadd.f32 0.0, %v8351
        %v8353 = vpop.f32.mrf.mxu0
        %v8354 = vadd.f32 0.0, %v8353
        %8355 = vmatprep.mubr.bf16.mxu0 0
        %8356 = vmatmul.mubr.bf16.gmra.mxu0 %v8293
        %v8357 = vpop.f32.mrf.mxu0
        %v8358 = vadd.f32 0.0, %v8357
        %v8359 = vpop.f32.mrf.mxu0
        %v8360 = vadd.f32 0.0, %v8359
        %v8361 = vpop.f32.mrf.mxu0
        %v8362 = vadd.f32 0.0, %v8361
        %v8363 = vpop.f32.mrf.mxu0
        %v8364 = vadd.f32 0.0, %v8363
        %8365 = vmatprep.mubr.bf16.mxu0 0
        %8366 = vmatmul.mubr.bf16.gmra.mxu0 %v8296
        %v8367 = vpop.f32.mrf.mxu0
        %v8368 = vadd.f32 0.0, %v8367
        %v8369 = vpop.f32.mrf.mxu0
        %v8370 = vadd.f32 0.0, %v8369
        %v8371 = vpop.f32.mrf.mxu0
        %v8372 = vadd.f32 0.0, %v8371
        %v8373 = vpop.f32.mrf.mxu0
        %v8374 = vadd.f32 0.0, %v8373
        %8375 = vmatprep.mubr.bf16.mxu0 0
        %8376 = vmatmul.mubr.bf16.gmra.mxu0 %v8299
        %v8377 = vpop.f32.mrf.mxu0
        %v8378 = vadd.f32 0.0, %v8377
        %v8379 = vpop.f32.mrf.mxu0
        %v8380 = vadd.f32 0.0, %v8379
        %v8381 = vpop.f32.mrf.mxu0
        %v8382 = vadd.f32 0.0, %v8381
        %v8383 = vpop.f32.mrf.mxu0
        %v8384 = vadd.f32 0.0, %v8383
        %8385 = vmatprep.mubr.bf16.mxu0 0
        %8386 = vmatmul.mubr.bf16.gmra.mxu0 %v8302
        %v8387 = vpop.f32.mrf.mxu0
        %v8388 = vadd.f32 0.0, %v8387
        %v8389 = vpop.f32.mrf.mxu0
        %v8390 = vadd.f32 0.0, %v8389
        %v8391 = vpop.f32.mrf.mxu0
        %v8392 = vadd.f32 0.0, %v8391
        %v8393 = vpop.f32.mrf.mxu0
        %v8394 = vadd.f32 0.0, %v8393
        %8395 = vmatprep.mubr.bf16.mxu0 0
        %8396 = vmatmul.mubr.bf16.gmra.mxu0 %v8305
        %v8397 = vpop.f32.mrf.mxu0
        %v8398 = vadd.f32 0.0, %v8397
        %v8399 = vpop.f32.mrf.mxu0
        %v8400 = vadd.f32 0.0, %v8399
        %v8401 = vpop.f32.mrf.mxu0
        %v8402 = vadd.f32 0.0, %v8401
        %v8403 = vpop.f32.mrf.mxu0
        %v8404 = vadd.f32 0.0, %v8403
        %8405 = vmatprep.mubr.bf16.mxu0 0
        %8406 = vmatmul.mubr.bf16.gmra.mxu0 %v8308
        %v8407 = vpop.f32.mrf.mxu0
        %v8408 = vadd.f32 0.0, %v8407
        %v8409 = vpop.f32.mrf.mxu0
        %v8410 = vadd.f32 0.0, %v8409
        %v8411 = vpop.f32.mrf.mxu0
        %v8412 = vadd.f32 0.0, %v8411
        %v8413 = vpop.f32.mrf.mxu0
        %v8414 = vadd.f32 0.0, %v8413
        %8415 = vmatprep.mubr.bf16.mxu0 0
        %8416 = vmatmul.mubr.bf16.gmra.mxu0 %v8311
        %v8417 = vpop.f32.mrf.mxu0
        %v8418 = vadd.f32 0.0, %v8417
        %v8419 = vpop.f32.mrf.mxu0
        %v8420 = vadd.f32 0.0, %v8419
        %v8421 = vpop.f32.mrf.mxu0
        %v8422 = vadd.f32 0.0, %v8421
        %v8423 = vpop.f32.mrf.mxu0
        %v8424 = vadd.f32 0.0, %v8423
        %8425 = vdwg.mxu0
        %v8426 = vadd.f32 %v8092, %v8348
        %v8427 = vadd.f32 %v8093, %v8350
        %v8428 = vadd.f32 %v8094, %v8352
        %v8429 = vadd.f32 %v8095, %v8354
        %v8430 = vadd.f32 %v8096, %v8358
        %v8431 = vadd.f32 %v8097, %v8360
        %v8432 = vadd.f32 %v8098, %v8362
        %v8433 = vadd.f32 %v8099, %v8364
        %v8434 = vadd.f32 %v8100, %v8368
        %v8435 = vadd.f32 %v8101, %v8370
        %v8436 = vadd.f32 %v8102, %v8372
        %v8437 = vadd.f32 %v8103, %v8374
        %v8438 = vadd.f32 %v8104, %v8378
        %v8439 = vadd.f32 %v8105, %v8380
        %v8440 = vadd.f32 %v8106, %v8382
        %v8441 = vadd.f32 %v8107, %v8384
        %v8442 = vadd.f32 %v8108, %v8388
        %v8443 = vadd.f32 %v8109, %v8390
        %v8444 = vadd.f32 %v8110, %v8392
        %v8445 = vadd.f32 %v8111, %v8394
        %v8446 = vadd.f32 %v8112, %v8398
        %v8447 = vadd.f32 %v8113, %v8400
        %v8448 = vadd.f32 %v8114, %v8402
        %v8449 = vadd.f32 %v8115, %v8404
        %v8450 = vadd.f32 %v8116, %v8408
        %v8451 = vadd.f32 %v8117, %v8410
        %v8452 = vadd.f32 %v8118, %v8412
        %v8453 = vadd.f32 %v8119, %v8414
        %v8454 = vadd.f32 %v8120, %v8418
        %v8455 = vadd.f32 %v8121, %v8420
        %v8456 = vadd.f32 %v8122, %v8422
        %v8457 = vadd.f32 %v8123, %v8424
        %v8458 = vmul.bf16 %v6647, %v2088
        %v8459 = vmul.bf16 %v6679, %v2086
        %v8460 = vmul.bf16 %v6648, %v2088
        %v8461 = vmul.bf16 %v6680, %v2086
        %v8462 = vmul.bf16 %v6649, %v2088
        %v8463 = vmul.bf16 %v6681, %v2086
        %v8464 = vmul.bf16 %v6650, %v2088
        %v8465 = vmul.bf16 %v6682, %v2086
        %v8466 = vmul.bf16 %v6651, %v2088
        %v8467 = vmul.bf16 %v6683, %v2086
        %v8468 = vmul.bf16 %v6652, %v2088
        %v8469 = vmul.bf16 %v6684, %v2086
        %v8470 = vmul.bf16 %v6653, %v2088
        %v8471 = vmul.bf16 %v6685, %v2086
        %v8472 = vmul.bf16 %v6654, %v2088
        %v8473 = vmul.bf16 %v6686, %v2086
        %s8474 = scalar_lea.vmem %s9, 384
        %v8475 = vld [vmem:[%s8474] sm:$0xf]
        %v8476 = vld [vmem:[%s8474 + $0x4] sm:$0xf]
        %v8477 = vld [vmem:[%s8474 + $0x8] sm:$0xf]
        %v8478 = vld [vmem:[%s8474 + $0xc] sm:$0xf]
        %v8479 = vld [vmem:[%s8474 + $0x10] sm:$0xf]
        %v8480 = vld [vmem:[%s8474 + $0x14] sm:$0xf]
        %v8481 = vld [vmem:[%s8474 + $0x18] sm:$0xf]
        %v8482 = vld [vmem:[%s8474 + $0x1c] sm:$0xf]
        %v8483 = vld [vmem:[%s8474 + $0x20] sm:$0xf]
        %v8484 = vld [vmem:[%s8474 + $0x24] sm:$0xf]
        %v8485 = vld [vmem:[%s8474 + $0x28] sm:$0xf]
        %v8486 = vld [vmem:[%s8474 + $0x2c] sm:$0xf]
        %v8487 = vld [vmem:[%s8474 + $0x30] sm:$0xf]
        %v8488 = vld [vmem:[%s8474 + $0x34] sm:$0xf]
        %v8489 = vld [vmem:[%s8474 + $0x38] sm:$0xf]
        %v8490 = vld [vmem:[%s8474 + $0x3c] sm:$0xf]
        %v8507 = vunpack.c.l.b16 %v8475
        %v8508 = vunpack.c.l.b16 %v8476
        %v8509 = vunpack.c.l.b16 %v8477
        %v8510 = vunpack.c.l.b16 %v8478
        %v8511 = vunpack.c.l.b16 %v8479
        %v8512 = vunpack.c.l.b16 %v8480
        %v8513 = vunpack.c.l.b16 %v8481
        %v8514 = vunpack.c.l.b16 %v8482
        %v8515 = vunpack.c.l.b16 %v8483
        %v8516 = vunpack.c.l.b16 %v8484
        %v8517 = vunpack.c.l.b16 %v8485
        %v8518 = vunpack.c.l.b16 %v8486
        %v8519 = vunpack.c.l.b16 %v8487
        %v8520 = vunpack.c.l.b16 %v8488
        %v8521 = vunpack.c.l.b16 %v8489
        %v8522 = vunpack.c.l.b16 %v8490
        %v8523 = vpack.c.b16 %v8508, %v8507
        %v8524 = vpack.c.b16 %v8510, %v8509
        %v8525 = vpack.c.b16 %v8512, %v8511
        %v8526 = vpack.c.b16 %v8514, %v8513
        %v8527 = vpack.c.b16 %v8516, %v8515
        %v8528 = vpack.c.b16 %v8518, %v8517
        %v8529 = vpack.c.b16 %v8520, %v8519
        %v8530 = vpack.c.b16 %v8522, %v8521
        %v8547 = vunpack.c.l.b16 %v8458
        %v8548 = vunpack.c.h.b16 %v8458
        %v8549 = vunpack.c.l.b16 %v8459
        %v8550 = vunpack.c.l.b16 %v8460
        %v8551 = vunpack.c.h.b16 %v8460
        %v8552 = vunpack.c.l.b16 %v8461
        %v8553 = vunpack.c.l.b16 %v8462
        %v8554 = vunpack.c.h.b16 %v8462
        %v8555 = vunpack.c.l.b16 %v8463
        %v8556 = vunpack.c.l.b16 %v8464
        %v8557 = vunpack.c.h.b16 %v8464
        %v8558 = vunpack.c.l.b16 %v8465
        %v8559 = vunpack.c.l.b16 %v8466
        %v8560 = vunpack.c.h.b16 %v8466
        %v8561 = vunpack.c.l.b16 %v8467
        %v8562 = vunpack.c.l.b16 %v8468
        %v8563 = vunpack.c.h.b16 %v8468
        %v8564 = vunpack.c.l.b16 %v8469
        %v8565 = vunpack.c.l.b16 %v8470
        %v8566 = vunpack.c.h.b16 %v8470
        %v8567 = vunpack.c.l.b16 %v8471
        %v8568 = vunpack.c.l.b16 %v8472
        %v8569 = vunpack.c.h.b16 %v8472
        %v8570 = vunpack.c.l.b16 %v8473
        %v8571 = vpack.c.b16 %v8550, %v8547
        %v8572 = vpack.c.b16 %v8551, %v8548
        %v8573 = vpack.c.b16 %v8552, %v8549
        %v8574 = vpack.c.b16 %v8556, %v8553
        %v8575 = vpack.c.b16 %v8557, %v8554
        %v8576 = vpack.c.b16 %v8558, %v8555
        %v8577 = vpack.c.b16 %v8562, %v8559
        %v8578 = vpack.c.b16 %v8563, %v8560
        %v8579 = vpack.c.b16 %v8564, %v8561
        %v8580 = vpack.c.b16 %v8568, %v8565
        %v8581 = vpack.c.b16 %v8569, %v8566
        %v8582 = vpack.c.b16 %v8570, %v8567
        %8583 = vrot.lane.b32.xlu0 %v8571, 96
        %v8584 = vpop.permute.xlu0 %8583
        %8585 = vrot.lane.b32.xlu0 %v8572, 96
        %v8586 = vpop.permute.xlu0 %8585
        %8587 = vrot.lane.b32.xlu0 %v8573, 96
        %v8588 = vpop.permute.xlu0 %8587
        %8589 = vrot.lane.b32.xlu0 %v8574, 96
        %v8590 = vpop.permute.xlu0 %8589
        %8591 = vrot.lane.b32.xlu0 %v8575, 96
        %v8592 = vpop.permute.xlu0 %8591
        %8593 = vrot.lane.b32.xlu0 %v8576, 96
        %v8594 = vpop.permute.xlu0 %8593
        %8595 = vrot.lane.b32.xlu0 %v8577, 96
        %v8596 = vpop.permute.xlu0 %8595
        %8597 = vrot.lane.b32.xlu0 %v8578, 96
        %v8598 = vpop.permute.xlu0 %8597
        %8599 = vrot.lane.b32.xlu0 %v8579, 96
        %v8600 = vpop.permute.xlu0 %8599
        %8601 = vrot.lane.b32.xlu0 %v8580, 96
        %v8602 = vpop.permute.xlu0 %8601
        %8603 = vrot.lane.b32.xlu0 %v8581, 96
        %v8604 = vpop.permute.xlu0 %8603
        %8605 = vrot.lane.b32.xlu0 %v8582, 96
        %v8606 = vpop.permute.xlu0 %8605
        %v8607 = vsel %vm2194, %v8584, %v8586
        %v8608 = vsel %vm2194, %v8586, %v8588
        %v8609 = vsel %vm2194, %v8590, %v8592
        %v8610 = vsel %vm2194, %v8592, %v8594
        %v8611 = vsel %vm2194, %v8596, %v8598
        %v8612 = vsel %vm2194, %v8598, %v8600
        %v8613 = vsel %vm2194, %v8602, %v8604
        %v8614 = vsel %vm2194, %v8604, %v8606
        %v8624 = vsel %vm3593, %v8523, 0
        %v8627 = vsel %vm3593, %v8524, 0
        %v8630 = vsel %vm3593, %v8525, 0
        %v8633 = vsel %vm3593, %v8526, 0
        %v8636 = vsel %vm3593, %v8527, 0
        %v8639 = vsel %vm3593, %v8528, 0
        %v8642 = vsel %vm3593, %v8529, 0
        %v8645 = vsel %vm3593, %v8530, 0
        %8647 = vmatprep.subr.bf16.mxu0 0
        %8648 = vmatpush1.bf16.msra.mxu0 0
        %8649 = vmatprep.subr.bf16.mxu0 0
        %8650 = vmatpush1.bf16.msra.mxu0 0
        %8651 = vmatprep.subr.bf16.mxu0 0
        %8652 = vmatpush1.bf16.msra.mxu0 0
        %8653 = vmatprep.subr.bf16.mxu0 0
        %8654 = vmatpush1.bf16.msra.mxu0 0
        %8655 = vmatprep.subr.bf16.mxu0 %v8614
        %8656 = vmatpush1.bf16.msra.mxu0 %v8613
        %8657 = vmatprep.subr.bf16.mxu0 %v8612
        %8658 = vmatpush1.bf16.msra.mxu0 %v8611
        %8659 = vmatprep.subr.bf16.mxu0 %v8610
        %8660 = vmatpush1.bf16.msra.mxu0 %v8609
        %8661 = vmatprep.subr.bf16.mxu0 %v8608
        %8662 = vmatpush1.bf16.msra.mxu0 %v8607
        %8663 = vmatprep.subr.bf16.mxu0 0
        %8664 = vmatpush2.bf16.msra.mxu0 0
        %8665 = vmatprep.subr.bf16.mxu0 0
        %8666 = vmatpush2.bf16.msra.mxu0 0
        %8667 = vmatprep.subr.bf16.mxu0 0
        %8668 = vmatpush2.bf16.msra.mxu0 0
        %8669 = vmatprep.subr.bf16.mxu0 0
        %8670 = vmatpush2.bf16.msra.mxu0 0
        %8671 = vmatprep.subr.bf16.mxu0 0
        %8672 = vmatpush2.bf16.msra.mxu0 0
        %8673 = vmatprep.subr.bf16.mxu0 0
        %8674 = vmatpush2.bf16.msra.mxu0 0
        %8675 = vmatprep.subr.bf16.mxu0 0
        %8676 = vmatpush2.bf16.msra.mxu0 0
        %8677 = vmatprep.subr.bf16.mxu0 0
        %8678 = vmatpush2.bf16.msra.mxu0 0
        %8679 = vmatprep.mubr.bf16.mxu0 0
        %8680 = vmatmul.mubr.bf16.gmra.mxu0 %v8624
        %v8681 = vpop.f32.mrf.mxu0
        %v8682 = vadd.f32 0.0, %v8681
        %v8683 = vpop.f32.mrf.mxu0
        %v8684 = vadd.f32 0.0, %v8683
        %v8685 = vpop.f32.mrf.mxu0
        %v8686 = vadd.f32 0.0, %v8685
        %v8687 = vpop.f32.mrf.mxu0
        %v8688 = vadd.f32 0.0, %v8687
        %8689 = vmatprep.mubr.bf16.mxu0 0
        %8690 = vmatmul.mubr.bf16.gmra.mxu0 %v8627
        %v8691 = vpop.f32.mrf.mxu0
        %v8692 = vadd.f32 0.0, %v8691
        %v8693 = vpop.f32.mrf.mxu0
        %v8694 = vadd.f32 0.0, %v8693
        %v8695 = vpop.f32.mrf.mxu0
        %v8696 = vadd.f32 0.0, %v8695
        %v8697 = vpop.f32.mrf.mxu0
        %v8698 = vadd.f32 0.0, %v8697
        %8699 = vmatprep.mubr.bf16.mxu0 0
        %8700 = vmatmul.mubr.bf16.gmra.mxu0 %v8630
        %v8701 = vpop.f32.mrf.mxu0
        %v8702 = vadd.f32 0.0, %v8701
        %v8703 = vpop.f32.mrf.mxu0
        %v8704 = vadd.f32 0.0, %v8703
        %v8705 = vpop.f32.mrf.mxu0
        %v8706 = vadd.f32 0.0, %v8705
        %v8707 = vpop.f32.mrf.mxu0
        %v8708 = vadd.f32 0.0, %v8707
        %8709 = vmatprep.mubr.bf16.mxu0 0
        %8710 = vmatmul.mubr.bf16.gmra.mxu0 %v8633
        %v8711 = vpop.f32.mrf.mxu0
        %v8712 = vadd.f32 0.0, %v8711
        %v8713 = vpop.f32.mrf.mxu0
        %v8714 = vadd.f32 0.0, %v8713
        %v8715 = vpop.f32.mrf.mxu0
        %v8716 = vadd.f32 0.0, %v8715
        %v8717 = vpop.f32.mrf.mxu0
        %v8718 = vadd.f32 0.0, %v8717
        %8719 = vmatprep.mubr.bf16.mxu0 0
        %8720 = vmatmul.mubr.bf16.gmra.mxu0 %v8636
        %v8721 = vpop.f32.mrf.mxu0
        %v8722 = vadd.f32 0.0, %v8721
        %v8723 = vpop.f32.mrf.mxu0
        %v8724 = vadd.f32 0.0, %v8723
        %v8725 = vpop.f32.mrf.mxu0
        %v8726 = vadd.f32 0.0, %v8725
        %v8727 = vpop.f32.mrf.mxu0
        %v8728 = vadd.f32 0.0, %v8727
        %8729 = vmatprep.mubr.bf16.mxu0 0
        %8730 = vmatmul.mubr.bf16.gmra.mxu0 %v8639
        %v8731 = vpop.f32.mrf.mxu0
        %v8732 = vadd.f32 0.0, %v8731
        %v8733 = vpop.f32.mrf.mxu0
        %v8734 = vadd.f32 0.0, %v8733
        %v8735 = vpop.f32.mrf.mxu0
        %v8736 = vadd.f32 0.0, %v8735
        %v8737 = vpop.f32.mrf.mxu0
        %v8738 = vadd.f32 0.0, %v8737
        %8739 = vmatprep.mubr.bf16.mxu0 0
        %8740 = vmatmul.mubr.bf16.gmra.mxu0 %v8642
        %v8741 = vpop.f32.mrf.mxu0
        %v8742 = vadd.f32 0.0, %v8741
        %v8743 = vpop.f32.mrf.mxu0
        %v8744 = vadd.f32 0.0, %v8743
        %v8745 = vpop.f32.mrf.mxu0
        %v8746 = vadd.f32 0.0, %v8745
        %v8747 = vpop.f32.mrf.mxu0
        %v8748 = vadd.f32 0.0, %v8747
        %8749 = vmatprep.mubr.bf16.mxu0 0
        %8750 = vmatmul.mubr.bf16.gmra.mxu0 %v8645
        %v8751 = vpop.f32.mrf.mxu0
        %v8752 = vadd.f32 0.0, %v8751
        %v8753 = vpop.f32.mrf.mxu0
        %v8754 = vadd.f32 0.0, %v8753
        %v8755 = vpop.f32.mrf.mxu0
        %v8756 = vadd.f32 0.0, %v8755
        %v8757 = vpop.f32.mrf.mxu0
        %v8758 = vadd.f32 0.0, %v8757
        %8759 = vdwg.mxu0
        %v8760 = vadd.f32 %v8426, %v8682
        %v8761 = vadd.f32 %v8427, %v8684
        %v8762 = vadd.f32 %v8428, %v8686
        %v8763 = vadd.f32 %v8429, %v8688
        %v8764 = vadd.f32 %v8430, %v8692
        %v8765 = vadd.f32 %v8431, %v8694
        %v8766 = vadd.f32 %v8432, %v8696
        %v8767 = vadd.f32 %v8433, %v8698
        %v8768 = vadd.f32 %v8434, %v8702
        %v8769 = vadd.f32 %v8435, %v8704
        %v8770 = vadd.f32 %v8436, %v8706
        %v8771 = vadd.f32 %v8437, %v8708
        %v8772 = vadd.f32 %v8438, %v8712
        %v8773 = vadd.f32 %v8439, %v8714
        %v8774 = vadd.f32 %v8440, %v8716
        %v8775 = vadd.f32 %v8441, %v8718
        %v8776 = vadd.f32 %v8442, %v8722
        %v8777 = vadd.f32 %v8443, %v8724
        %v8778 = vadd.f32 %v8444, %v8726
        %v8779 = vadd.f32 %v8445, %v8728
        %v8780 = vadd.f32 %v8446, %v8732
        %v8781 = vadd.f32 %v8447, %v8734
        %v8782 = vadd.f32 %v8448, %v8736
        %v8783 = vadd.f32 %v8449, %v8738
        %v8784 = vadd.f32 %v8450, %v8742
        %v8785 = vadd.f32 %v8451, %v8744
        %v8786 = vadd.f32 %v8452, %v8746
        %v8787 = vadd.f32 %v8453, %v8748
        %v8788 = vadd.f32 %v8454, %v8752
        %v8789 = vadd.f32 %v8455, %v8754
        %v8790 = vadd.f32 %v8456, %v8756
        %v8791 = vadd.f32 %v8457, %v8758
        %s8792 = scalar_lea.vmem %s9, 448
        %v8793 = vld [vmem:[%s8792] sm:$0xf]
        %v8794 = vld [vmem:[%s8792 + $0x4] sm:$0xf]
        %v8795 = vld [vmem:[%s8792 + $0x8] sm:$0xf]
        %v8796 = vld [vmem:[%s8792 + $0xc] sm:$0xf]
        %v8797 = vld [vmem:[%s8792 + $0x10] sm:$0xf]
        %v8798 = vld [vmem:[%s8792 + $0x14] sm:$0xf]
        %v8799 = vld [vmem:[%s8792 + $0x18] sm:$0xf]
        %v8800 = vld [vmem:[%s8792 + $0x1c] sm:$0xf]
        %v8801 = vld [vmem:[%s8792 + $0x20] sm:$0xf]
        %v8802 = vld [vmem:[%s8792 + $0x24] sm:$0xf]
        %v8803 = vld [vmem:[%s8792 + $0x28] sm:$0xf]
        %v8804 = vld [vmem:[%s8792 + $0x2c] sm:$0xf]
        %v8805 = vld [vmem:[%s8792 + $0x30] sm:$0xf]
        %v8806 = vld [vmem:[%s8792 + $0x34] sm:$0xf]
        %v8807 = vld [vmem:[%s8792 + $0x38] sm:$0xf]
        %v8808 = vld [vmem:[%s8792 + $0x3c] sm:$0xf]
        %v8825 = vunpack.c.l.b16 %v8793
        %v8826 = vunpack.c.l.b16 %v8794
        %v8827 = vunpack.c.l.b16 %v8795
        %v8828 = vunpack.c.l.b16 %v8796
        %v8829 = vunpack.c.l.b16 %v8797
        %v8830 = vunpack.c.l.b16 %v8798
        %v8831 = vunpack.c.l.b16 %v8799
        %v8832 = vunpack.c.l.b16 %v8800
        %v8833 = vunpack.c.l.b16 %v8801
        %v8834 = vunpack.c.l.b16 %v8802
        %v8835 = vunpack.c.l.b16 %v8803
        %v8836 = vunpack.c.l.b16 %v8804
        %v8837 = vunpack.c.l.b16 %v8805
        %v8838 = vunpack.c.l.b16 %v8806
        %v8839 = vunpack.c.l.b16 %v8807
        %v8840 = vunpack.c.l.b16 %v8808
        %v8841 = vpack.c.b16 %v8826, %v8825
        %v8842 = vpack.c.b16 %v8828, %v8827
        %v8843 = vpack.c.b16 %v8830, %v8829
        %v8844 = vpack.c.b16 %v8832, %v8831
        %v8845 = vpack.c.b16 %v8834, %v8833
        %v8846 = vpack.c.b16 %v8836, %v8835
        %v8847 = vpack.c.b16 %v8838, %v8837
        %v8848 = vpack.c.b16 %v8840, %v8839
        %8849 = vrot.lane.b32.xlu0 %v6784, 95
        %v8850 = vpop.permute.xlu0 %8849
        %8851 = vrot.lane.b32.xlu0 %v6785, 95
        %v8852 = vpop.permute.xlu0 %8851
        %8853 = vrot.lane.b32.xlu0 %v6786, 95
        %v8854 = vpop.permute.xlu0 %8853
        %8855 = vrot.lane.b32.xlu0 %v6787, 95
        %v8856 = vpop.permute.xlu0 %8855
        %8857 = vrot.lane.b32.xlu0 %v6788, 95
        %v8858 = vpop.permute.xlu0 %8857
        %8859 = vrot.lane.b32.xlu0 %v6789, 95
        %v8860 = vpop.permute.xlu0 %8859
        %8861 = vrot.lane.b32.xlu0 %v6790, 95
        %v8862 = vpop.permute.xlu0 %8861
        %8863 = vrot.lane.b32.xlu0 %v6791, 95
        %v8864 = vpop.permute.xlu0 %8863
        %8865 = vrot.lane.b32.xlu0 %v6792, 95
        %v8866 = vpop.permute.xlu0 %8865
        %8867 = vrot.lane.b32.xlu0 %v6793, 95
        %v8868 = vpop.permute.xlu0 %8867
        %8869 = vrot.lane.b32.xlu0 %v6794, 95
        %v8870 = vpop.permute.xlu0 %8869
        %8871 = vrot.lane.b32.xlu0 %v6795, 95
        %v8872 = vpop.permute.xlu0 %8871
        %v8873 = vsel %vm2441, %v8850, %v8852
        %v8874 = vsel %vm2441, %v8852, %v8854
        %v8875 = vsel %vm2441, %v8856, %v8858
        %v8876 = vsel %vm2441, %v8858, %v8860
        %v8877 = vsel %vm2441, %v8862, %v8864
        %v8878 = vsel %vm2441, %v8864, %v8866
        %v8879 = vsel %vm2441, %v8868, %v8870
        %v8880 = vsel %vm2441, %v8870, %v8872
        %v8890 = vsel %vm3593, %v8841, 0
        %v8893 = vsel %vm3593, %v8842, 0
        %v8896 = vsel %vm3593, %v8843, 0
        %v8899 = vsel %vm3593, %v8844, 0
        %v8902 = vsel %vm3593, %v8845, 0
        %v8905 = vsel %vm3593, %v8846, 0
        %v8908 = vsel %vm3593, %v8847, 0
        %v8911 = vsel %vm3593, %v8848, 0
        %8913 = vmatprep.subr.bf16.mxu0 0
        %8914 = vmatpush1.bf16.msra.mxu0 0
        %8915 = vmatprep.subr.bf16.mxu0 0
        %8916 = vmatpush1.bf16.msra.mxu0 0
        %8917 = vmatprep.subr.bf16.mxu0 0
        %8918 = vmatpush1.bf16.msra.mxu0 0
        %8919 = vmatprep.subr.bf16.mxu0 0
        %8920 = vmatpush1.bf16.msra.mxu0 0
        %8921 = vmatprep.subr.bf16.mxu0 %v8880
        %8922 = vmatpush1.bf16.msra.mxu0 %v8879
        %8923 = vmatprep.subr.bf16.mxu0 %v8878
        %8924 = vmatpush1.bf16.msra.mxu0 %v8877
        %8925 = vmatprep.subr.bf16.mxu0 %v8876
        %8926 = vmatpush1.bf16.msra.mxu0 %v8875
        %8927 = vmatprep.subr.bf16.mxu0 %v8874
        %8928 = vmatpush1.bf16.msra.mxu0 %v8873
        %8929 = vmatprep.subr.bf16.mxu0 0
        %8930 = vmatpush2.bf16.msra.mxu0 0
        %8931 = vmatprep.subr.bf16.mxu0 0
        %8932 = vmatpush2.bf16.msra.mxu0 0
        %8933 = vmatprep.subr.bf16.mxu0 0
        %8934 = vmatpush2.bf16.msra.mxu0 0
        %8935 = vmatprep.subr.bf16.mxu0 0
        %8936 = vmatpush2.bf16.msra.mxu0 0
        %8937 = vmatprep.subr.bf16.mxu0 0
        %8938 = vmatpush2.bf16.msra.mxu0 0
        %8939 = vmatprep.subr.bf16.mxu0 0
        %8940 = vmatpush2.bf16.msra.mxu0 0
        %8941 = vmatprep.subr.bf16.mxu0 0
        %8942 = vmatpush2.bf16.msra.mxu0 0
        %8943 = vmatprep.subr.bf16.mxu0 0
        %8944 = vmatpush2.bf16.msra.mxu0 0
        %8945 = vmatprep.mubr.bf16.mxu0 0
        %8946 = vmatmul.mubr.bf16.gmra.mxu0 %v8890
        %v8947 = vpop.f32.mrf.mxu0
        %v8948 = vadd.f32 0.0, %v8947
        %v8949 = vpop.f32.mrf.mxu0
        %v8950 = vadd.f32 0.0, %v8949
        %v8951 = vpop.f32.mrf.mxu0
        %v8952 = vadd.f32 0.0, %v8951
        %v8953 = vpop.f32.mrf.mxu0
        %v8954 = vadd.f32 0.0, %v8953
        %8955 = vmatprep.mubr.bf16.mxu0 0
        %8956 = vmatmul.mubr.bf16.gmra.mxu0 %v8893
        %v8957 = vpop.f32.mrf.mxu0
        %v8958 = vadd.f32 0.0, %v8957
        %v8959 = vpop.f32.mrf.mxu0
        %v8960 = vadd.f32 0.0, %v8959
        %v8961 = vpop.f32.mrf.mxu0
        %v8962 = vadd.f32 0.0, %v8961
        %v8963 = vpop.f32.mrf.mxu0
        %v8964 = vadd.f32 0.0, %v8963
        %8965 = vmatprep.mubr.bf16.mxu0 0
        %8966 = vmatmul.mubr.bf16.gmra.mxu0 %v8896
        %v8967 = vpop.f32.mrf.mxu0
        %v8968 = vadd.f32 0.0, %v8967
        %v8969 = vpop.f32.mrf.mxu0
        %v8970 = vadd.f32 0.0, %v8969
        %v8971 = vpop.f32.mrf.mxu0
        %v8972 = vadd.f32 0.0, %v8971
        %v8973 = vpop.f32.mrf.mxu0
        %v8974 = vadd.f32 0.0, %v8973
        %8975 = vmatprep.mubr.bf16.mxu0 0
        %8976 = vmatmul.mubr.bf16.gmra.mxu0 %v8899
        %v8977 = vpop.f32.mrf.mxu0
        %v8978 = vadd.f32 0.0, %v8977
        %v8979 = vpop.f32.mrf.mxu0
        %v8980 = vadd.f32 0.0, %v8979
        %v8981 = vpop.f32.mrf.mxu0
        %v8982 = vadd.f32 0.0, %v8981
        %v8983 = vpop.f32.mrf.mxu0
        %v8984 = vadd.f32 0.0, %v8983
        %8985 = vmatprep.mubr.bf16.mxu0 0
        %8986 = vmatmul.mubr.bf16.gmra.mxu0 %v8902
        %v8987 = vpop.f32.mrf.mxu0
        %v8988 = vadd.f32 0.0, %v8987
        %v8989 = vpop.f32.mrf.mxu0
        %v8990 = vadd.f32 0.0, %v8989
        %v8991 = vpop.f32.mrf.mxu0
        %v8992 = vadd.f32 0.0, %v8991
        %v8993 = vpop.f32.mrf.mxu0
        %v8994 = vadd.f32 0.0, %v8993
        %8995 = vmatprep.mubr.bf16.mxu0 0
        %8996 = vmatmul.mubr.bf16.gmra.mxu0 %v8905
        %v8997 = vpop.f32.mrf.mxu0
        %v8998 = vadd.f32 0.0, %v8997
        %v8999 = vpop.f32.mrf.mxu0
        %v9000 = vadd.f32 0.0, %v8999
        %v9001 = vpop.f32.mrf.mxu0
        %v9002 = vadd.f32 0.0, %v9001
        %v9003 = vpop.f32.mrf.mxu0
        %v9004 = vadd.f32 0.0, %v9003
        %9005 = vmatprep.mubr.bf16.mxu0 0
        %9006 = vmatmul.mubr.bf16.gmra.mxu0 %v8908
        %v9007 = vpop.f32.mrf.mxu0
        %v9008 = vadd.f32 0.0, %v9007
        %v9009 = vpop.f32.mrf.mxu0
        %v9010 = vadd.f32 0.0, %v9009
        %v9011 = vpop.f32.mrf.mxu0
        %v9012 = vadd.f32 0.0, %v9011
        %v9013 = vpop.f32.mrf.mxu0
        %v9014 = vadd.f32 0.0, %v9013
        %9015 = vmatprep.mubr.bf16.mxu0 0
        %9016 = vmatmul.mubr.bf16.gmra.mxu0 %v8911
        %v9017 = vpop.f32.mrf.mxu0
        %v9018 = vadd.f32 0.0, %v9017
        %v9019 = vpop.f32.mrf.mxu0
        %v9020 = vadd.f32 0.0, %v9019
        %v9021 = vpop.f32.mrf.mxu0
        %v9022 = vadd.f32 0.0, %v9021
        %v9023 = vpop.f32.mrf.mxu0
        %v9024 = vadd.f32 0.0, %v9023
        %9025 = vdwg.mxu0
        %v9026 = vadd.f32 %v8760, %v8948
        %v9027 = vadd.f32 %v8761, %v8950
        %v9028 = vadd.f32 %v8762, %v8952
        %v9029 = vadd.f32 %v8763, %v8954
        %v9030 = vadd.f32 %v8764, %v8958
        %v9031 = vadd.f32 %v8765, %v8960
        %v9032 = vadd.f32 %v8766, %v8962
        %v9033 = vadd.f32 %v8767, %v8964
        %v9034 = vadd.f32 %v8768, %v8968
        %v9035 = vadd.f32 %v8769, %v8970
        %v9036 = vadd.f32 %v8770, %v8972
        %v9037 = vadd.f32 %v8771, %v8974
        %v9038 = vadd.f32 %v8772, %v8978
        %v9039 = vadd.f32 %v8773, %v8980
        %v9040 = vadd.f32 %v8774, %v8982
        %v9041 = vadd.f32 %v8775, %v8984
        %v9042 = vadd.f32 %v8776, %v8988
        %v9043 = vadd.f32 %v8777, %v8990
        %v9044 = vadd.f32 %v8778, %v8992
        %v9045 = vadd.f32 %v8779, %v8994
        %v9046 = vadd.f32 %v8780, %v8998
        %v9047 = vadd.f32 %v8781, %v9000
        %v9048 = vadd.f32 %v8782, %v9002
        %v9049 = vadd.f32 %v8783, %v9004
        %v9050 = vadd.f32 %v8784, %v9008
        %v9051 = vadd.f32 %v8785, %v9010
        %v9052 = vadd.f32 %v8786, %v9012
        %v9053 = vadd.f32 %v8787, %v9014
        %v9054 = vadd.f32 %v8788, %v9018
        %v9055 = vadd.f32 %v8789, %v9020
        %v9056 = vadd.f32 %v8790, %v9022
        %v9057 = vadd.f32 %v8791, %v9024
        %v9058 = vmul.bf16 %v6647, %v2623
        %v9059 = vmul.bf16 %v6679, %v2621
        %v9060 = vmul.bf16 %v6648, %v2623
        %v9061 = vmul.bf16 %v6680, %v2621
        %v9062 = vmul.bf16 %v6649, %v2623
        %v9063 = vmul.bf16 %v6681, %v2621
        %v9064 = vmul.bf16 %v6650, %v2623
        %v9065 = vmul.bf16 %v6682, %v2621
        %v9066 = vmul.bf16 %v6651, %v2623
        %v9067 = vmul.bf16 %v6683, %v2621
        %v9068 = vmul.bf16 %v6652, %v2623
        %v9069 = vmul.bf16 %v6684, %v2621
        %v9070 = vmul.bf16 %v6653, %v2623
        %v9071 = vmul.bf16 %v6685, %v2621
        %v9072 = vmul.bf16 %v6654, %v2623
        %v9073 = vmul.bf16 %v6686, %v2621
        %s9074 = scalar_lea.vmem %s9, 512
        %v9075 = vld [vmem:[%s9074] sm:$0xf]
        %v9076 = vld [vmem:[%s9074 + $0x4] sm:$0xf]
        %v9077 = vld [vmem:[%s9074 + $0x8] sm:$0xf]
        %v9078 = vld [vmem:[%s9074 + $0xc] sm:$0xf]
        %v9079 = vld [vmem:[%s9074 + $0x10] sm:$0xf]
        %v9080 = vld [vmem:[%s9074 + $0x14] sm:$0xf]
        %v9081 = vld [vmem:[%s9074 + $0x18] sm:$0xf]
        %v9082 = vld [vmem:[%s9074 + $0x1c] sm:$0xf]
        %v9083 = vld [vmem:[%s9074 + $0x20] sm:$0xf]
        %v9084 = vld [vmem:[%s9074 + $0x24] sm:$0xf]
        %v9085 = vld [vmem:[%s9074 + $0x28] sm:$0xf]
        %v9086 = vld [vmem:[%s9074 + $0x2c] sm:$0xf]
        %v9087 = vld [vmem:[%s9074 + $0x30] sm:$0xf]
        %v9088 = vld [vmem:[%s9074 + $0x34] sm:$0xf]
        %v9089 = vld [vmem:[%s9074 + $0x38] sm:$0xf]
        %v9090 = vld [vmem:[%s9074 + $0x3c] sm:$0xf]
        %v9107 = vunpack.c.l.b16 %v9075
        %v9108 = vunpack.c.l.b16 %v9076
        %v9109 = vunpack.c.l.b16 %v9077
        %v9110 = vunpack.c.l.b16 %v9078
        %v9111 = vunpack.c.l.b16 %v9079
        %v9112 = vunpack.c.l.b16 %v9080
        %v9113 = vunpack.c.l.b16 %v9081
        %v9114 = vunpack.c.l.b16 %v9082
        %v9115 = vunpack.c.l.b16 %v9083
        %v9116 = vunpack.c.l.b16 %v9084
        %v9117 = vunpack.c.l.b16 %v9085
        %v9118 = vunpack.c.l.b16 %v9086
        %v9119 = vunpack.c.l.b16 %v9087
        %v9120 = vunpack.c.l.b16 %v9088
        %v9121 = vunpack.c.l.b16 %v9089
        %v9122 = vunpack.c.l.b16 %v9090
        %v9123 = vpack.c.b16 %v9108, %v9107
        %v9124 = vpack.c.b16 %v9110, %v9109
        %v9125 = vpack.c.b16 %v9112, %v9111
        %v9126 = vpack.c.b16 %v9114, %v9113
        %v9127 = vpack.c.b16 %v9116, %v9115
        %v9128 = vpack.c.b16 %v9118, %v9117
        %v9129 = vpack.c.b16 %v9120, %v9119
        %v9130 = vpack.c.b16 %v9122, %v9121
        %v9147 = vunpack.c.l.b16 %v9058
        %v9148 = vunpack.c.h.b16 %v9058
        %v9149 = vunpack.c.l.b16 %v9059
        %v9150 = vunpack.c.l.b16 %v9060
        %v9151 = vunpack.c.h.b16 %v9060
        %v9152 = vunpack.c.l.b16 %v9061
        %v9153 = vunpack.c.l.b16 %v9062
        %v9154 = vunpack.c.h.b16 %v9062
        %v9155 = vunpack.c.l.b16 %v9063
        %v9156 = vunpack.c.l.b16 %v9064
        %v9157 = vunpack.c.h.b16 %v9064
        %v9158 = vunpack.c.l.b16 %v9065
        %v9159 = vunpack.c.l.b16 %v9066
        %v9160 = vunpack.c.h.b16 %v9066
        %v9161 = vunpack.c.l.b16 %v9067
        %v9162 = vunpack.c.l.b16 %v9068
        %v9163 = vunpack.c.h.b16 %v9068
        %v9164 = vunpack.c.l.b16 %v9069
        %v9165 = vunpack.c.l.b16 %v9070
        %v9166 = vunpack.c.h.b16 %v9070
        %v9167 = vunpack.c.l.b16 %v9071
        %v9168 = vunpack.c.l.b16 %v9072
        %v9169 = vunpack.c.h.b16 %v9072
        %v9170 = vunpack.c.l.b16 %v9073
        %v9171 = vpack.c.b16 %v9150, %v9147
        %v9172 = vpack.c.b16 %v9151, %v9148
        %v9173 = vpack.c.b16 %v9152, %v9149
        %v9174 = vpack.c.b16 %v9156, %v9153
        %v9175 = vpack.c.b16 %v9157, %v9154
        %v9176 = vpack.c.b16 %v9158, %v9155
        %v9177 = vpack.c.b16 %v9162, %v9159
        %v9178 = vpack.c.b16 %v9163, %v9160
        %v9179 = vpack.c.b16 %v9164, %v9161
        %v9180 = vpack.c.b16 %v9168, %v9165
        %v9181 = vpack.c.b16 %v9169, %v9166
        %v9182 = vpack.c.b16 %v9170, %v9167
        %9183 = vrot.lane.b32.xlu0 %v9171, 94
        %v9184 = vpop.permute.xlu0 %9183
        %9185 = vrot.lane.b32.xlu0 %v9172, 94
        %v9186 = vpop.permute.xlu0 %9185
        %9187 = vrot.lane.b32.xlu0 %v9173, 94
        %v9188 = vpop.permute.xlu0 %9187
        %9189 = vrot.lane.b32.xlu0 %v9174, 94
        %v9190 = vpop.permute.xlu0 %9189
        %9191 = vrot.lane.b32.xlu0 %v9175, 94
        %v9192 = vpop.permute.xlu0 %9191
        %9193 = vrot.lane.b32.xlu0 %v9176, 94
        %v9194 = vpop.permute.xlu0 %9193
        %9195 = vrot.lane.b32.xlu0 %v9177, 94
        %v9196 = vpop.permute.xlu0 %9195
        %9197 = vrot.lane.b32.xlu0 %v9178, 94
        %v9198 = vpop.permute.xlu0 %9197
        %9199 = vrot.lane.b32.xlu0 %v9179, 94
        %v9200 = vpop.permute.xlu0 %9199
        %9201 = vrot.lane.b32.xlu0 %v9180, 94
        %v9202 = vpop.permute.xlu0 %9201
        %9203 = vrot.lane.b32.xlu0 %v9181, 94
        %v9204 = vpop.permute.xlu0 %9203
        %9205 = vrot.lane.b32.xlu0 %v9182, 94
        %v9206 = vpop.permute.xlu0 %9205
        %v9207 = vsel %vm2729, %v9184, %v9186
        %v9208 = vsel %vm2729, %v9186, %v9188
        %v9209 = vsel %vm2729, %v9190, %v9192
        %v9210 = vsel %vm2729, %v9192, %v9194
        %v9211 = vsel %vm2729, %v9196, %v9198
        %v9212 = vsel %vm2729, %v9198, %v9200
        %v9213 = vsel %vm2729, %v9202, %v9204
        %v9214 = vsel %vm2729, %v9204, %v9206
        %v9224 = vsel %vm3593, %v9123, 0
        %v9227 = vsel %vm3593, %v9124, 0
        %v9230 = vsel %vm3593, %v9125, 0
        %v9233 = vsel %vm3593, %v9126, 0
        %v9236 = vsel %vm3593, %v9127, 0
        %v9239 = vsel %vm3593, %v9128, 0
        %v9242 = vsel %vm3593, %v9129, 0
        %v9245 = vsel %vm3593, %v9130, 0
        %9247 = vmatprep.subr.bf16.mxu0 0
        %9248 = vmatpush1.bf16.msra.mxu0 0
        %9249 = vmatprep.subr.bf16.mxu0 0
        %9250 = vmatpush1.bf16.msra.mxu0 0
        %9251 = vmatprep.subr.bf16.mxu0 0
        %9252 = vmatpush1.bf16.msra.mxu0 0
        %9253 = vmatprep.subr.bf16.mxu0 0
        %9254 = vmatpush1.bf16.msra.mxu0 0
        %9255 = vmatprep.subr.bf16.mxu0 %v9214
        %9256 = vmatpush1.bf16.msra.mxu0 %v9213
        %9257 = vmatprep.subr.bf16.mxu0 %v9212
        %9258 = vmatpush1.bf16.msra.mxu0 %v9211
        %9259 = vmatprep.subr.bf16.mxu0 %v9210
        %9260 = vmatpush1.bf16.msra.mxu0 %v9209
        %9261 = vmatprep.subr.bf16.mxu0 %v9208
        %9262 = vmatpush1.bf16.msra.mxu0 %v9207
        %9263 = vmatprep.subr.bf16.mxu0 0
        %9264 = vmatpush2.bf16.msra.mxu0 0
        %9265 = vmatprep.subr.bf16.mxu0 0
        %9266 = vmatpush2.bf16.msra.mxu0 0
        %9267 = vmatprep.subr.bf16.mxu0 0
        %9268 = vmatpush2.bf16.msra.mxu0 0
        %9269 = vmatprep.subr.bf16.mxu0 0
        %9270 = vmatpush2.bf16.msra.mxu0 0
        %9271 = vmatprep.subr.bf16.mxu0 0
        %9272 = vmatpush2.bf16.msra.mxu0 0
        %9273 = vmatprep.subr.bf16.mxu0 0
        %9274 = vmatpush2.bf16.msra.mxu0 0
        %9275 = vmatprep.subr.bf16.mxu0 0
        %9276 = vmatpush2.bf16.msra.mxu0 0
        %9277 = vmatprep.subr.bf16.mxu0 0
        %9278 = vmatpush2.bf16.msra.mxu0 0
        %9279 = vmatprep.mubr.bf16.mxu0 0
        %9280 = vmatmul.mubr.bf16.gmra.mxu0 %v9224
        %v9281 = vpop.f32.mrf.mxu0
        %v9282 = vadd.f32 0.0, %v9281
        %v9283 = vpop.f32.mrf.mxu0
        %v9284 = vadd.f32 0.0, %v9283
        %v9285 = vpop.f32.mrf.mxu0
        %v9286 = vadd.f32 0.0, %v9285
        %v9287 = vpop.f32.mrf.mxu0
        %v9288 = vadd.f32 0.0, %v9287
        %9289 = vmatprep.mubr.bf16.mxu0 0
        %9290 = vmatmul.mubr.bf16.gmra.mxu0 %v9227
        %v9291 = vpop.f32.mrf.mxu0
        %v9292 = vadd.f32 0.0, %v9291
        %v9293 = vpop.f32.mrf.mxu0
        %v9294 = vadd.f32 0.0, %v9293
        %v9295 = vpop.f32.mrf.mxu0
        %v9296 = vadd.f32 0.0, %v9295
        %v9297 = vpop.f32.mrf.mxu0
        %v9298 = vadd.f32 0.0, %v9297
        %9299 = vmatprep.mubr.bf16.mxu0 0
        %9300 = vmatmul.mubr.bf16.gmra.mxu0 %v9230
        %v9301 = vpop.f32.mrf.mxu0
        %v9302 = vadd.f32 0.0, %v9301
        %v9303 = vpop.f32.mrf.mxu0
        %v9304 = vadd.f32 0.0, %v9303
        %v9305 = vpop.f32.mrf.mxu0
        %v9306 = vadd.f32 0.0, %v9305
        %v9307 = vpop.f32.mrf.mxu0
        %v9308 = vadd.f32 0.0, %v9307
        %9309 = vmatprep.mubr.bf16.mxu0 0
        %9310 = vmatmul.mubr.bf16.gmra.mxu0 %v9233
        %v9311 = vpop.f32.mrf.mxu0
        %v9312 = vadd.f32 0.0, %v9311
        %v9313 = vpop.f32.mrf.mxu0
        %v9314 = vadd.f32 0.0, %v9313
        %v9315 = vpop.f32.mrf.mxu0
        %v9316 = vadd.f32 0.0, %v9315
        %v9317 = vpop.f32.mrf.mxu0
        %v9318 = vadd.f32 0.0, %v9317
        %9319 = vmatprep.mubr.bf16.mxu0 0
        %9320 = vmatmul.mubr.bf16.gmra.mxu0 %v9236
        %v9321 = vpop.f32.mrf.mxu0
        %v9322 = vadd.f32 0.0, %v9321
        %v9323 = vpop.f32.mrf.mxu0
        %v9324 = vadd.f32 0.0, %v9323
        %v9325 = vpop.f32.mrf.mxu0
        %v9326 = vadd.f32 0.0, %v9325
        %v9327 = vpop.f32.mrf.mxu0
        %v9328 = vadd.f32 0.0, %v9327
        %9329 = vmatprep.mubr.bf16.mxu0 0
        %9330 = vmatmul.mubr.bf16.gmra.mxu0 %v9239
        %v9331 = vpop.f32.mrf.mxu0
        %v9332 = vadd.f32 0.0, %v9331
        %v9333 = vpop.f32.mrf.mxu0
        %v9334 = vadd.f32 0.0, %v9333
        %v9335 = vpop.f32.mrf.mxu0
        %v9336 = vadd.f32 0.0, %v9335
        %v9337 = vpop.f32.mrf.mxu0
        %v9338 = vadd.f32 0.0, %v9337
        %9339 = vmatprep.mubr.bf16.mxu0 0
        %9340 = vmatmul.mubr.bf16.gmra.mxu0 %v9242
        %v9341 = vpop.f32.mrf.mxu0
        %v9342 = vadd.f32 0.0, %v9341
        %v9343 = vpop.f32.mrf.mxu0
        %v9344 = vadd.f32 0.0, %v9343
        %v9345 = vpop.f32.mrf.mxu0
        %v9346 = vadd.f32 0.0, %v9345
        %v9347 = vpop.f32.mrf.mxu0
        %v9348 = vadd.f32 0.0, %v9347
        %9349 = vmatprep.mubr.bf16.mxu0 0
        %9350 = vmatmul.mubr.bf16.gmra.mxu0 %v9245
        %v9351 = vpop.f32.mrf.mxu0
        %v9352 = vadd.f32 0.0, %v9351
        %v9353 = vpop.f32.mrf.mxu0
        %v9354 = vadd.f32 0.0, %v9353
        %v9355 = vpop.f32.mrf.mxu0
        %v9356 = vadd.f32 0.0, %v9355
        %v9357 = vpop.f32.mrf.mxu0
        %v9358 = vadd.f32 0.0, %v9357
        %9359 = vdwg.mxu0
        %v9360 = vadd.f32 %v9026, %v9282
        %v9361 = vadd.f32 %v9027, %v9284
        %v9362 = vadd.f32 %v9028, %v9286
        %v9363 = vadd.f32 %v9029, %v9288
        %v9364 = vadd.f32 %v9030, %v9292
        %v9365 = vadd.f32 %v9031, %v9294
        %v9366 = vadd.f32 %v9032, %v9296
        %v9367 = vadd.f32 %v9033, %v9298
        %v9368 = vadd.f32 %v9034, %v9302
        %v9369 = vadd.f32 %v9035, %v9304
        %v9370 = vadd.f32 %v9036, %v9306
        %v9371 = vadd.f32 %v9037, %v9308
        %v9372 = vadd.f32 %v9038, %v9312
        %v9373 = vadd.f32 %v9039, %v9314
        %v9374 = vadd.f32 %v9040, %v9316
        %v9375 = vadd.f32 %v9041, %v9318
        %v9376 = vadd.f32 %v9042, %v9322
        %v9377 = vadd.f32 %v9043, %v9324
        %v9378 = vadd.f32 %v9044, %v9326
        %v9379 = vadd.f32 %v9045, %v9328
        %v9380 = vadd.f32 %v9046, %v9332
        %v9381 = vadd.f32 %v9047, %v9334
        %v9382 = vadd.f32 %v9048, %v9336
        %v9383 = vadd.f32 %v9049, %v9338
        %v9384 = vadd.f32 %v9050, %v9342
        %v9385 = vadd.f32 %v9051, %v9344
        %v9386 = vadd.f32 %v9052, %v9346
        %v9387 = vadd.f32 %v9053, %v9348
        %v9388 = vadd.f32 %v9054, %v9352
        %v9389 = vadd.f32 %v9055, %v9354
        %v9390 = vadd.f32 %v9056, %v9356
        %v9391 = vadd.f32 %v9057, %v9358
        %v9392 = vld [vmem:[%s10] sm:$0xff]
        %v9393 = vld [vmem:[%s10 + $0x8] sm:$0xff]
        %v9394 = vld [vmem:[%s10 + $0x10] sm:$0xff]
        %v9395 = vld [vmem:[%s10 + $0x18] sm:$0xff]
        %v9396 = vld [vmem:[%s10 + $0x20] sm:$0xff]
        %v9397 = vld [vmem:[%s10 + $0x28] sm:$0xff]
        %v9398 = vld [vmem:[%s10 + $0x30] sm:$0xff]
        %v9399 = vld [vmem:[%s10 + $0x38] sm:$0xff]
        %v9400 = vld [vmem:[%s10 + $0x40] sm:$0xff]
        %v9401 = vld [vmem:[%s10 + $0x48] sm:$0xff]
        %v9402 = vld [vmem:[%s10 + $0x50] sm:$0xff]
        %v9403 = vld [vmem:[%s10 + $0x58] sm:$0xff]
        %v9404 = vld [vmem:[%s10 + $0x60] sm:$0xff]
        %v9405 = vld [vmem:[%s10 + $0x68] sm:$0xff]
        %v9406 = vld [vmem:[%s10 + $0x70] sm:$0xff]
        %v9407 = vld [vmem:[%s10 + $0x78] sm:$0xff]
        %9409 = vset.pattern.permute.xlu0 0
        %9410 = vperm.xlu0 %9409, %v9392
        %v9411 = vpop.permute.xlu0 %9410
        %9414 = vset.pattern.permute.xlu0 0
        %9415 = vperm.xlu0 %9414, %v9393
        %v9416 = vpop.permute.xlu0 %9415
        %9419 = vset.pattern.permute.xlu0 0
        %9420 = vperm.xlu0 %9419, %v9394
        %v9421 = vpop.permute.xlu0 %9420
        %9424 = vset.pattern.permute.xlu0 0
        %9425 = vperm.xlu0 %9424, %v9395
        %v9426 = vpop.permute.xlu0 %9425
        %9429 = vset.pattern.permute.xlu0 0
        %9430 = vperm.xlu0 %9429, %v9396
        %v9431 = vpop.permute.xlu0 %9430
        %9434 = vset.pattern.permute.xlu0 0
        %9435 = vperm.xlu0 %9434, %v9397
        %v9436 = vpop.permute.xlu0 %9435
        %9439 = vset.pattern.permute.xlu0 0
        %9440 = vperm.xlu0 %9439, %v9398
        %v9441 = vpop.permute.xlu0 %9440
        %9444 = vset.pattern.permute.xlu0 0
        %9445 = vperm.xlu0 %9444, %v9399
        %v9446 = vpop.permute.xlu0 %9445
        %9449 = vset.pattern.permute.xlu0 0
        %9450 = vperm.xlu0 %9449, %v9400
        %v9451 = vpop.permute.xlu0 %9450
        %9454 = vset.pattern.permute.xlu0 0
        %9455 = vperm.xlu0 %9454, %v9401
        %v9456 = vpop.permute.xlu0 %9455
        %9459 = vset.pattern.permute.xlu0 0
        %9460 = vperm.xlu0 %9459, %v9402
        %v9461 = vpop.permute.xlu0 %9460
        %9464 = vset.pattern.permute.xlu0 0
        %9465 = vperm.xlu0 %9464, %v9403
        %v9466 = vpop.permute.xlu0 %9465
        %9469 = vset.pattern.permute.xlu0 0
        %9470 = vperm.xlu0 %9469, %v9404
        %v9471 = vpop.permute.xlu0 %9470
        %9474 = vset.pattern.permute.xlu0 0
        %9475 = vperm.xlu0 %9474, %v9405
        %v9476 = vpop.permute.xlu0 %9475
        %9479 = vset.pattern.permute.xlu0 0
        %9480 = vperm.xlu0 %9479, %v9406
        %v9481 = vpop.permute.xlu0 %9480
        %9484 = vset.pattern.permute.xlu0 0
        %9485 = vperm.xlu0 %9484, %v9407
        %v9486 = vpop.permute.xlu0 %9485
        %v9488 = vadd.f32 %v9360, %v9411
        %v9489 = vadd.f32 %v9361, %v9411
        %v9490 = vadd.f32 %v9362, %v9416
        %v9491 = vadd.f32 %v9363, %v9416
        %v9492 = vadd.f32 %v9364, %v9421
        %v9493 = vadd.f32 %v9365, %v9421
        %v9494 = vadd.f32 %v9366, %v9426
        %v9495 = vadd.f32 %v9367, %v9426
        %v9496 = vadd.f32 %v9368, %v9431
        %v9497 = vadd.f32 %v9369, %v9431
        %v9498 = vadd.f32 %v9370, %v9436
        %v9499 = vadd.f32 %v9371, %v9436
        %v9500 = vadd.f32 %v9372, %v9441
        %v9501 = vadd.f32 %v9373, %v9441
        %v9502 = vadd.f32 %v9374, %v9446
        %v9503 = vadd.f32 %v9375, %v9446
        %v9504 = vadd.f32 %v9376, %v9451
        %v9505 = vadd.f32 %v9377, %v9451
        %v9506 = vadd.f32 %v9378, %v9456
        %v9507 = vadd.f32 %v9379, %v9456
        %v9508 = vadd.f32 %v9380, %v9461
        %v9509 = vadd.f32 %v9381, %v9461
        %v9510 = vadd.f32 %v9382, %v9466
        %v9511 = vadd.f32 %v9383, %v9466
        %v9512 = vadd.f32 %v9384, %v9471
        %v9513 = vadd.f32 %v9385, %v9471
        %v9514 = vadd.f32 %v9386, %v9476
        %v9515 = vadd.f32 %v9387, %v9476
        %v9516 = vadd.f32 %v9388, %v9481
        %v9517 = vadd.f32 %v9389, %v9481
        %v9518 = vadd.f32 %v9390, %v9486
        %v9519 = vadd.f32 %v9391, %v9486
        %v9520 = vmul.f32 %v9488, 0.1
        %v9521 = vmul.f32 %v9489, 0.1
        %v9522 = vmul.f32 %v9490, 0.1
        %v9523 = vmul.f32 %v9491, 0.1
        %v9524 = vmul.f32 %v9492, 0.1
        %v9525 = vmul.f32 %v9493, 0.1
        %v9526 = vmul.f32 %v9494, 0.1
        %v9527 = vmul.f32 %v9495, 0.1
        %v9528 = vmul.f32 %v9496, 0.1
        %v9529 = vmul.f32 %v9497, 0.1
        %v9530 = vmul.f32 %v9498, 0.1
        %v9531 = vmul.f32 %v9499, 0.1
        %v9532 = vmul.f32 %v9500, 0.1
        %v9533 = vmul.f32 %v9501, 0.1
        %v9534 = vmul.f32 %v9502, 0.1
        %v9535 = vmul.f32 %v9503, 0.1
        %v9536 = vmul.f32 %v9504, 0.1
        %v9537 = vmul.f32 %v9505, 0.1
        %v9538 = vmul.f32 %v9506, 0.1
        %v9539 = vmul.f32 %v9507, 0.1
        %v9540 = vmul.f32 %v9508, 0.1
        %v9541 = vmul.f32 %v9509, 0.1
        %v9542 = vmul.f32 %v9510, 0.1
        %v9543 = vmul.f32 %v9511, 0.1
        %v9544 = vmul.f32 %v9512, 0.1
        %v9545 = vmul.f32 %v9513, 0.1
        %v9546 = vmul.f32 %v9514, 0.1
        %v9547 = vmul.f32 %v9515, 0.1
        %v9548 = vmul.f32 %v9516, 0.1
        %v9549 = vmul.f32 %v9517, 0.1
        %v9550 = vmul.f32 %v9518, 0.1
        %v9551 = vmul.f32 %v9519, 0.1
        %v9552 = vmax.f32 %v9488, %v9520
        %v9553 = vmax.f32 %v9489, %v9521
        %v9554 = vmax.f32 %v9490, %v9522
        %v9555 = vmax.f32 %v9491, %v9523
        %v9556 = vmax.f32 %v9492, %v9524
        %v9557 = vmax.f32 %v9493, %v9525
        %v9558 = vmax.f32 %v9494, %v9526
        %v9559 = vmax.f32 %v9495, %v9527
        %v9560 = vmax.f32 %v9496, %v9528
        %v9561 = vmax.f32 %v9497, %v9529
        %v9562 = vmax.f32 %v9498, %v9530
        %v9563 = vmax.f32 %v9499, %v9531
        %v9564 = vmax.f32 %v9500, %v9532
        %v9565 = vmax.f32 %v9501, %v9533
        %v9566 = vmax.f32 %v9502, %v9534
        %v9567 = vmax.f32 %v9503, %v9535
        %v9568 = vmax.f32 %v9504, %v9536
        %v9569 = vmax.f32 %v9505, %v9537
        %v9570 = vmax.f32 %v9506, %v9538
        %v9571 = vmax.f32 %v9507, %v9539
        %v9572 = vmax.f32 %v9508, %v9540
        %v9573 = vmax.f32 %v9509, %v9541
        %v9574 = vmax.f32 %v9510, %v9542
        %v9575 = vmax.f32 %v9511, %v9543
        %v9576 = vmax.f32 %v9512, %v9544
        %v9577 = vmax.f32 %v9513, %v9545
        %v9578 = vmax.f32 %v9514, %v9546
        %v9579 = vmax.f32 %v9515, %v9547
        %v9580 = vmax.f32 %v9516, %v9548
        %v9581 = vmax.f32 %v9517, %v9549
        %v9582 = vmax.f32 %v9518, %v9550
        %v9583 = vmax.f32 %v9519, %v9551
        %9584 = vst [vmem:[%s379] sm:$0xff] %v9552
        %9585 = vst [vmem:[%s379 + $0x8] sm:$0xff] %v9553
        %9586 = vst [vmem:[%s379 + $0x10] sm:$0xff] %v9554
        %9587 = vst [vmem:[%s379 + $0x18] sm:$0xff] %v9555
        %9588 = vst [vmem:[%s379 + $0x20] sm:$0xff] %v9556
        %9589 = vst [vmem:[%s379 + $0x28] sm:$0xff] %v9557
        %9590 = vst [vmem:[%s379 + $0x30] sm:$0xff] %v9558
        %9591 = vst [vmem:[%s379 + $0x38] sm:$0xff] %v9559
        %9592 = vst [vmem:[%s379 + $0x40] sm:$0xff] %v9560
        %9593 = vst [vmem:[%s379 + $0x48] sm:$0xff] %v9561
        %9594 = vst [vmem:[%s379 + $0x50] sm:$0xff] %v9562
        %9595 = vst [vmem:[%s379 + $0x58] sm:$0xff] %v9563
        %9596 = vst [vmem:[%s379 + $0x60] sm:$0xff] %v9564
        %9597 = vst [vmem:[%s379 + $0x68] sm:$0xff] %v9565
        %9598 = vst [vmem:[%s379 + $0x70] sm:$0xff] %v9566
        %9599 = vst [vmem:[%s379 + $0x78] sm:$0xff] %v9567
        %9600 = vst [vmem:[%s379 + $0x80] sm:$0xff] %v9568
        %9601 = vst [vmem:[%s379 + $0x88] sm:$0xff] %v9569
        %9602 = vst [vmem:[%s379 + $0x90] sm:$0xff] %v9570
        %9603 = vst [vmem:[%s379 + $0x98] sm:$0xff] %v9571
        %9604 = vst [vmem:[%s379 + $0xa0] sm:$0xff] %v9572
        %9605 = vst [vmem:[%s379 + $0xa8] sm:$0xff] %v9573
        %9606 = vst [vmem:[%s379 + $0xb0] sm:$0xff] %v9574
        %9607 = vst [vmem:[%s379 + $0xb8] sm:$0xff] %v9575
        %9608 = vst [vmem:[%s379 + $0xc0] sm:$0xff] %v9576
        %9609 = vst [vmem:[%s379 + $0xc8] sm:$0xff] %v9577
        %9610 = vst [vmem:[%s379 + $0xd0] sm:$0xff] %v9578
        %9611 = vst [vmem:[%s379 + $0xd8] sm:$0xff] %v9579
        %9612 = vst [vmem:[%s379 + $0xe0] sm:$0xff] %v9580
        %9613 = vst [vmem:[%s379 + $0xe8] sm:$0xff] %v9581
        %9614 = vst [vmem:[%s379 + $0xf0] sm:$0xff] %v9582
        %9615 = vst [vmem:[%s379 + $0xf8] sm:$0xff] %v9583
        %s9616 = sand.u32 %s269, 1
        %s9617 = scalar_lea.sflag [#allocation4], %s9616
        %s9618 = sand.u32 %s269, 1
        %s9619 = smul.addr %s9618, 256
        %s9620 = scalar_lea.vmem [#allocation3], %s9619
        // Predicated region
        $region65: #{tpu_custom_call.1} parent=63 // pred_check
          %p9621 = pneg %p279
        $region66: #{tpu_custom_call.1} parent=63 // pred_check_branch
          %9623 = sbr.rel (%p9621) target = $region68
        $region67: #{tpu_custom_call.1} parent=63 // pred_region
          %s9625 = ssub.s32 4096, 4096
          %9626 = vsyncadd %s9617, %s9625
          %s9627 = smul.addr %s25, 32
          %s9628 = smul.addr %s9627, 128
          %s9629 = scalar_lea.hbm %s11, %s9628
          %s9630 = sshll.u32 %s9620, 4
          %s9631 = int_to_ptr.vmem [resolvable:$true] %s9630
          %9636 = dma.vmem_to_hbm [thread:$0]  %s9631, 4096, %s9629, %s9617, 256, 256, 16
        $region68: #{tpu_custom_call.1} parent=63 // pred_fallthru
          _
      $region64: #{tpu_custom_call.1} parent=5 // pred_fallthru
        _
      %p9637 = scmp.le.s32.totalorder 2, %s20
      // Predicated region
      $region69: #{tpu_custom_call.1} parent=5 // pred_check
        %p9638 = pneg %p9637
      $region70: #{tpu_custom_call.1} parent=5 // pred_check_branch
        %9640 = sbr.rel (%p9638) target = $region72
      $region71: #{tpu_custom_call.1} parent=5 // pred_region
        %s9641 = ssub.s32 %s20, 2
        // Predicated region
        $region73: #{tpu_custom_call.1} parent=71 // pred_check
          %p9642 = pneg %p285
        $region74: #{tpu_custom_call.1} parent=71 // pred_check_branch
          %9644 = sbr.rel (%p9642) target = $region76
        $region75: #{tpu_custom_call.1} parent=71 // pred_region
          %s9645 = sand.u32 %s270, 1
          %s9646 = scalar_lea.sflag [#allocation4], %s9645
          %s9647 = sand.u32 %s270, 1
          %s9648 = smul.addr %s9647, 256
          %s9649 = scalar_lea.vmem [#allocation3], %s9648
          %9650 = dma.done %s9646, 4096
        $region76: #{tpu_custom_call.1} parent=71 // pred_fallthru
          _
      $region72: #{tpu_custom_call.1} parent=5 // pred_fallthru
        _
    $region6: #{tpu_custom_call.1} parent=1 // loop_footer
      %s24 = sadd.s32 1, %s20
    $region7: #{tpu_custom_call.1} parent=1 // loop_footer_branch
      %19 = sbr.rel target = $region3
    $region8: #{tpu_custom_call.1} parent=1 // loop_exit
      _
    %9651 = vsyncpa [#allocation4], 1
    %s9652 = scalar_lea.sflag [#allocation4], 1
    %9653 = vsyncpa %s9652, 1

</llo_original>
